<compile_context>
chip_gen: v7x
topology: tpu7x:2x2x1
jax: 0.10.0
libtpu: 0.0.40
codegen_flags: <defaults>
</compile_context>

<pallas_src>
import jax
import jax.numpy as jnp
from jax import lax
from jax.experimental import pallas as pl
from jax.experimental.pallas import tpu as pltpu


NOISE_SIGMA = 30.0 / 255.0
_IDXL = ((0, 0), (0, 1), (1, 0), (1, 1))


# ----------------------------------------------------------------------------
# Fused DnCNN Pallas kernel.
# ----------------------------------------------------------------------------
def _make_fused_dncnn_kernel(num_layers, out_ch):
    def kernel(x_ref, w_ref, scale_ref, bias_ref, o_ref, buf_a, buf_b):
        # x_ref     : (1, Hs+2, Ws+2, C)  zero-halo'd, channel-padded input
        # w_ref     : (L, 3, 3*C, C)      kh-major, K-packed (kw*C + ci) weights
        # scale_ref : (L, 1, C), bias_ref : (L, 1, C)   folded BN affine (f32)
        # o_ref     : (1, Hs, Ws, out_ch)
        # buf_a/b   : (Hs+2, Ws+2, C)     ping-pong activations (zero halo)
        _, Hp, Wp, C = x_ref.shape
        Hs, Ws = Hp - 2, Wp - 2

        # Zero the scratch buffers so the 1-pixel halo ring is zero (== SAME
        # padding) on every layer, every grid step, every core.  Interiors are
        # fully overwritten each layer, so this is the only init needed.
        buf_a[...] = jnp.zeros_like(buf_a)
        buf_b[...] = jnp.zeros_like(buf_b)

        bufs = (buf_a, buf_b)
        cur = x_ref[0]                                    # (Hp, Wp, C) value
        for li in range(num_layers):
            acc = None
            for kh in range(3):
                rows = cur[kh:kh + Hs]                    # (Hs, Wp, C)
                # K-pack the three kw taps along the contraction dim: K = 3*C.
                patch = jnp.concatenate(
                    [rows[:, kw:kw + Ws, :] for kw in range(3)], axis=-1
                ).reshape(Hs * Ws, 3 * C)
                part = jnp.dot(patch, w_ref[li, kh],
                               preferred_element_type=jnp.float32)
                acc = part if acc is None else acc + part

            acc = acc * scale_ref[li] + bias_ref[li]      # (1, C) broadcast

            if li < num_layers - 1:
                acc = jnp.maximum(acc, 0.0)
                dst = bufs[li % 2]
                dst[1:Hs + 1, 1:Ws + 1, :] = (
                    acc.reshape(Hs, Ws, C).astype(dst.dtype))
                cur = dst[...]                            # reload incl. zero halo
            else:
                # Last layer: no ReLU, keep only the real output channels.
                o_ref[...] = (acc[:, :out_ch]
                              .reshape(1, Hs, Ws, out_ch)
                              .astype(o_ref.dtype))

    return kernel


def dncnn_fused_pallas(x_nhwc, packed, compute_dtype=jnp.float32,
                       out_dtype=None):
    """x_nhwc: (N, Hs, Ws, cin0) = downsampled input + noise map, NHWC."""
    N, Hs, Ws, cin0 = x_nhwc.shape
    w_all = packed["w"].astype(compute_dtype)         # (L, 3, 3*C, C)
    scale_all = packed["scale"]                       # (L, 1, C) float32
    bias_all = packed["bias"]                         # (L, 1, C) float32
    L, _, K3, C = w_all.shape
    out_ch = packed["out_ch"]
    out_dtype = out_dtype or x_nhwc.dtype

    # Wrapper-side layout plumbing (no compute): add the 1-pixel spatial halo
    # and zero-pad channels up to the feature width so the kernel's layer-0
    # input already has the same zero-halo layout as its VMEM activations.
    x_pad = jnp.pad(x_nhwc.astype(compute_dtype),
                    ((0, 0), (1, 1), (1, 1), (0, C - cin0)))
    Hp, Wp = Hs + 2, Ws + 2

    # Explicit VMEM budget estimate (scratch + resident weights + blocks).
    isz = jnp.dtype(compute_dtype).itemsize
    est = (2 * Hp * Wp * C * isz
           + 2 * w_all.size * isz
           + 2 * (scale_all.size + bias_all.size) * 4
           + 2 * Hp * Wp * C * isz
           + 2 * Hs * Ws * out_ch * jnp.dtype(out_dtype).itemsize)
    vmem_limit = int(min(max(2 * est, 32 * 2 ** 20), 48 * 2 ** 20))

    return pl.pallas_call(
        _make_fused_dncnn_kernel(L, out_ch),
        out_shape=jax.ShapeDtypeStruct((N, Hs, Ws, out_ch), out_dtype),
        grid=(N,),
        in_specs=[
            pl.BlockSpec((1, Hp, Wp, C), lambda n: (n, 0, 0, 0)),
            # Constant block indices -> weights/affines DMA'd once, resident.
            pl.BlockSpec((L, 3, K3, C), lambda n: (0, 0, 0, 0)),
            pl.BlockSpec((L, 1, C), lambda n: (0, 0, 0)),
            pl.BlockSpec((L, 1, C), lambda n: (0, 0, 0)),
        ],
        out_specs=pl.BlockSpec((1, Hs, Ws, out_ch), lambda n: (n, 0, 0, 0)),
        scratch_shapes=[
            pltpu.VMEM((Hp, Wp, C), compute_dtype),
            pltpu.VMEM((Hp, Wp, C), compute_dtype),
        ],
        compiler_params=pltpu.CompilerParams(
            dimension_semantics=("parallel",),
            vmem_limit_bytes=vmem_limit,
        ),
    )(x_pad, w_all, scale_all, bias_all)


# ----------------------------------------------------------------------------
# Pure-JAX reference (correctness check only).
# ----------------------------------------------------------------------------
def conv3x3_ref(x_nhwc, w_hwio, scale, bias, relu):
    y = lax.conv_general_dilated(
        x_nhwc, w_hwio, window_strides=(1, 1), padding="SAME",
        dimension_numbers=("NHWC", "HWIO", "NHWC"))
    y = y * scale.reshape(1, 1, 1, -1) + bias.reshape(1, 1, 1, -1)
    if relu:
        y = jnp.maximum(y, 0.0)
    return y


def dncnn_ref(x_nhwc, layers):
    h = x_nhwc
    for p in layers:
        h = conv3x3_ref(h, p["w"], p["scale"], p["bias"], p["relu"])
    return h


# ----------------------------------------------------------------------------
# FFDNet glue: pixel-shuffle down/up-sample, noise map, parameter setup.
# ----------------------------------------------------------------------------
def downsample_nchw(x):
    # (N, C, H, W) -> (N, 4C, H/2, W/2); out channel = 4*c_in + idx
    N, C, H, W = x.shape
    parts = [x[:, :, i::2, j::2] for (i, j) in _IDXL]
    return jnp.stack(parts, axis=2).reshape(N, 4 * C, H // 2, W // 2)


def upsample_nchw(x):
    # (N, Cin, Hs, Ws) -> (N, Cin/4, 2*Hs, 2*Ws); in channel = 4*c_out + idx
    N, Cin, Hs, Ws = x.shape
    Cout = Cin // 4
    xr = x.reshape(N, Cout, 2, 2, Hs, Ws)
    return jnp.transpose(xr, (0, 1, 4, 2, 5, 3)).reshape(N, Cout, 2 * Hs, 2 * Ws)


def init_params(key, is_gray=True):
    if is_gray:
        num_conv_layers, in_ch, feat, out_ch = 15, 5, 64, 4
    else:
        num_conv_layers, in_ch, feat, out_ch = 12, 15, 96, 12

    eps = 1e-5
    layers = []
    cins = [in_ch] + [feat] * (num_conv_layers - 1)
    couts = [feat] * (num_conv_layers - 1) + [out_ch]
    keys = jax.random.split(key, num_conv_layers)
    for li in range(num_conv_layers):
        cin, cout = cins[li], couts[li]
        w_oihw = (jax.random.normal(keys[li], (cout, cin, 3, 3), jnp.float32)
                  * (1.0 / (3.0 * (cin ** 0.5))))
        w_hwio = jnp.transpose(w_oihw, (2, 3, 1, 0))
        has_bn = (0 < li < num_conv_layers - 1)
        if has_bn:
            # TODO(synk): nn.BatchNorm2d in train mode would use batch stats;
            # eval-mode running stats (PyTorch defaults mean=0, var=1, gamma=1,
            # beta=0) are folded into a per-channel scale/bias here.
            gamma = jnp.ones((cout,), jnp.float32)
            beta = jnp.zeros((cout,), jnp.float32)
            r_mean = jnp.zeros((cout,), jnp.float32)
            r_var = jnp.ones((cout,), jnp.float32)
            scale = gamma / jnp.sqrt(r_var + eps)
            bias = beta - r_mean * scale
        else:
            scale = jnp.ones((cout,), jnp.float32)
            bias = jnp.zeros((cout,), jnp.float32)
        relu = li < num_conv_layers - 1
        layers.append(dict(w=w_hwio, scale=scale, bias=bias, relu=relu))
    return layers


def pack_params(layers):
    """Stack per-layer params into uniform kernel-friendly arrays.

    Pads first-layer Cin and last-layer Cout to the feature width with zeros
    and K-packs the 3x3 taps per kernel row: (L, 3, 3*C, C), K index = kw*C+ci.
    """
    feat = layers[0]["w"].shape[-1]
    out_ch = layers[-1]["w"].shape[-1]
    w_list, s_list, b_list = [], [], []
    for p in layers:
        w = p["w"]                                    # (3, 3, cin, cout)
        cin, cout = w.shape[2], w.shape[3]
        w = jnp.pad(w, ((0, 0), (0, 0), (0, feat - cin), (0, feat - cout)))
        w_list.append(w.reshape(3, 3 * feat, feat))   # kh-major, kw*C + ci
        s = jnp.pad(p["scale"].astype(jnp.float32), (0, feat - cout),
                    constant_values=1.0)
        b = jnp.pad(p["bias"].astype(jnp.float32), (0, feat - cout))
        s_list.append(s.reshape(1, feat))
        b_list.append(b.reshape(1, feat))
    return dict(w=jnp.stack(w_list), scale=jnp.stack(s_list),
                bias=jnp.stack(b_list), out_ch=out_ch, feat=feat)


def ffdnet_forward(x_nchw, dncnn_fn):
    # x_nchw: (N, C, H, W) with C=1 for the gray model.
    N, C, H, W = x_nchw.shape
    noise_map = jnp.full((N, C, H // 2, W // 2), NOISE_SIGMA, dtype=x_nchw.dtype)
    x_dn = downsample_nchw(x_nchw)                       # (N, 4C, H/2, W/2)
    x_cat = jnp.concatenate([noise_map, x_dn], axis=1)   # (N, 5C, H/2, W/2)
    h = jnp.transpose(x_cat, (0, 2, 3, 1))               # NCHW -> NHWC
    h = dncnn_fn(h)                                      # fused 15-layer stack
    h = jnp.transpose(h, (0, 3, 1, 2))                   # NHWC -> NCHW
    return upsample_nchw(h)                              # (N, C, H, W)


if __name__ == "__main__":
    key = jax.random.PRNGKey(0)
    k_x, k_p = jax.random.split(key)
    x = jax.random.uniform(k_x, (2, 1, 16, 16), dtype=jnp.float32)
    layers = init_params(k_p, is_gray=True)
    packed = pack_params(layers)
    out_ch, feat = packed["out_ch"], packed["feat"]

    @jax.jit
    def run_fused(x_in, w, scale, bias):
        pk = dict(w=w, scale=scale, bias=bias, out_ch=out_ch, feat=feat)
        return ffdnet_forward(x_in, lambda h: dncnn_fused_pallas(h, pk))

    y = jax.block_until_ready(
        run_fused(x, packed["w"], packed["scale"], packed["bias"]))
    assert y.shape == (2, 1, 16, 16), y.shape

    # Numerical sanity check against a pure-JAX (lax.conv) reference.
    y_ref = jax.block_until_ready(
        ffdnet_forward(x, lambda h: dncnn_ref(h, layers)))
    max_err = float(jnp.max(jnp.abs(y - y_ref)))
    assert jnp.allclose(y, y_ref, atol=5e-3, rtol=5e-3), max_err

    print("KERNEL_OK")
</pallas_src>

<mosaic_0001>
module attributes {stable_mosaic.version = 11 : i64} {
  func.func @kernel(%arg0: i32, %arg1: memref<1x10x10x64xf32, #tpu.memory_space<vmem>>, %arg2: memref<15x3x192x64xf32, #tpu.memory_space<vmem>>, %arg3: memref<15x1x64xf32, #tpu.memory_space<vmem>>, %arg4: memref<15x1x64xf32, #tpu.memory_space<vmem>>, %arg5: memref<1x8x8x4xf32, #tpu.memory_space<vmem>>, %arg6: memref<10x10x64xf32, #tpu.memory_space<vmem>>, %arg7: memref<10x10x64xf32, #tpu.memory_space<vmem>>) attributes {dimension_semantics = [#tpu.dimension_semantics<parallel>], iteration_bounds = array<i64: 2>, scalar_prefetch = 0 : i64, scratch_operands = 2 : i64, tpu.core_type = #tpu.core_type<tc>, window_params = [{transform_indices = @transform_0, window_bounds = array<i64: 1, 10, 10, 64>}, {pipeline_mode = #tpu.pipeline_mode<synchronous>, transform_indices = @transform_1, window_bounds = array<i64: 15, 3, 192, 64>}, {pipeline_mode = #tpu.pipeline_mode<synchronous>, transform_indices = @transform_2, window_bounds = array<i64: 15, 1, 64>}, {pipeline_mode = #tpu.pipeline_mode<synchronous>, transform_indices = @transform_3, window_bounds = array<i64: 15, 1, 64>}, {transform_indices = @transform_4, window_bounds = array<i64: 1, 8, 8, 4>}]} {
    %cst = arith.constant 0.000000e+00 : f32
    %0 = vector.broadcast %cst : f32 to vector<10x10x64xf32>
    %c0 = arith.constant 0 : index
    %c0_0 = arith.constant 0 : index
    %c0_1 = arith.constant 0 : index
    %1 = vector.load %arg6[%c0, %c0_0, %c0_1] : memref<10x10x64xf32, #tpu.memory_space<vmem>>, vector<10x10x64xf32>
    tpu.vector_store %arg6[%c0, %c0_0, %c0_1], %0 {strides = array<i32>} : memref<10x10x64xf32, #tpu.memory_space<vmem>>, vector<10x10x64xf32>,
    %cst_2 = arith.constant 0.000000e+00 : f32
    %2 = vector.broadcast %cst_2 : f32 to vector<10x10x64xf32>
    %c0_3 = arith.constant 0 : index
    %c0_4 = arith.constant 0 : index
    %c0_5 = arith.constant 0 : index
    %3 = vector.load %arg7[%c0_3, %c0_4, %c0_5] : memref<10x10x64xf32, #tpu.memory_space<vmem>>, vector<10x10x64xf32>
    tpu.vector_store %arg7[%c0_3, %c0_4, %c0_5], %2 {strides = array<i32>} : memref<10x10x64xf32, #tpu.memory_space<vmem>>, vector<10x10x64xf32>,
    %c0_6 = arith.constant 0 : index
    %c0_7 = arith.constant 0 : index
    %c0_8 = arith.constant 0 : index
    %c0_9 = arith.constant 0 : index
    %4 = vector.load %arg1[%c0_6, %c0_7, %c0_8, %c0_9] : memref<1x10x10x64xf32, #tpu.memory_space<vmem>>, vector<1x10x10x64xf32>
    %5 = vector.shape_cast %4 : vector<1x10x10x64xf32> to vector<10x10x64xf32>
    %6 = vector.extract_strided_slice %5 {offsets = [0, 0, 0], sizes = [8, 10, 64], strides = [1, 1, 1]} : vector<10x10x64xf32> to vector<8x10x64xf32>
    %7 = vector.extract_strided_slice %6 {offsets = [0, 0, 0], sizes = [8, 8, 64], strides = [1, 1, 1]} : vector<8x10x64xf32> to vector<8x8x64xf32>
    %8 = vector.extract_strided_slice %6 {offsets = [0, 1, 0], sizes = [8, 8, 64], strides = [1, 1, 1]} : vector<8x10x64xf32> to vector<8x8x64xf32>
    %9 = vector.extract_strided_slice %6 {offsets = [0, 2, 0], sizes = [8, 8, 64], strides = [1, 1, 1]} : vector<8x10x64xf32> to vector<8x8x64xf32>
    %10 = tpu.concatenate %7, %8, %9 in 2 : vector<8x8x64xf32>, vector<8x8x64xf32>, vector<8x8x64xf32> -> vector<8x8x192xf32>
    %11 = vector.shape_cast %10 : vector<8x8x192xf32> to vector<64x192xf32>
    %c0_10 = arith.constant 0 : index
    %c0_11 = arith.constant 0 : index
    %c0_12 = arith.constant 0 : index
    %c0_13 = arith.constant 0 : index
    %12 = vector.load %arg2[%c0_10, %c0_11, %c0_12, %c0_13] : memref<15x3x192x64xf32, #tpu.memory_space<vmem>>, vector<1x1x192x64xf32>
    %13 = vector.shape_cast %12 : vector<1x1x192x64xf32> to vector<192x64xf32>
    %cst_14 = arith.constant dense<0.000000e+00> : vector<64x64xf32>
    %14 = tpu.matmul %11, %13, %cst_14 {dimension_numbers = #tpu.dot_dimension_numbers<[1], [0], [0], [1], [0, 0, 1, 1], [], []>} : vector<64x192xf32>, vector<192x64xf32>, vector<64x64xf32> -> vector<64x64xf32>
    %15 = vector.extract_strided_slice %5 {offsets = [1, 0, 0], sizes = [8, 10, 64], strides = [1, 1, 1]} : vector<10x10x64xf32> to vector<8x10x64xf32>
    %16 = vector.extract_strided_slice %15 {offsets = [0, 0, 0], sizes = [8, 8, 64], strides = [1, 1, 1]} : vector<8x10x64xf32> to vector<8x8x64xf32>
    %17 = vector.extract_strided_slice %15 {offsets = [0, 1, 0], sizes = [8, 8, 64], strides = [1, 1, 1]} : vector<8x10x64xf32> to vector<8x8x64xf32>
    %18 = vector.extract_strided_slice %15 {offsets = [0, 2, 0], sizes = [8, 8, 64], strides = [1, 1, 1]} : vector<8x10x64xf32> to vector<8x8x64xf32>
    %19 = tpu.concatenate %16, %17, %18 in 2 : vector<8x8x64xf32>, vector<8x8x64xf32>, vector<8x8x64xf32> -> vector<8x8x192xf32>
    %20 = vector.shape_cast %19 : vector<8x8x192xf32> to vector<64x192xf32>
    %c0_15 = arith.constant 0 : index
    %c1 = arith.constant 1 : index
    %c0_16 = arith.constant 0 : index
    %c0_17 = arith.constant 0 : index
    %21 = vector.load %arg2[%c0_15, %c1, %c0_16, %c0_17] : memref<15x3x192x64xf32, #tpu.memory_space<vmem>>, vector<1x1x192x64xf32>
    %22 = vector.shape_cast %21 : vector<1x1x192x64xf32> to vector<192x64xf32>
    %cst_18 = arith.constant dense<0.000000e+00> : vector<64x64xf32>
    %23 = tpu.matmul %20, %22, %cst_18 {dimension_numbers = #tpu.dot_dimension_numbers<[1], [0], [0], [1], [0, 0, 1, 1], [], []>} : vector<64x192xf32>, vector<192x64xf32>, vector<64x64xf32> -> vector<64x64xf32>
    %24 = arith.addf %14, %23 : vector<64x64xf32>
    %25 = vector.extract_strided_slice %5 {offsets = [2, 0, 0], sizes = [8, 10, 64], strides = [1, 1, 1]} : vector<10x10x64xf32> to vector<8x10x64xf32>
    %26 = vector.extract_strided_slice %25 {offsets = [0, 0, 0], sizes = [8, 8, 64], strides = [1, 1, 1]} : vector<8x10x64xf32> to vector<8x8x64xf32>
    %27 = vector.extract_strided_slice %25 {offsets = [0, 1, 0], sizes = [8, 8, 64], strides = [1, 1, 1]} : vector<8x10x64xf32> to vector<8x8x64xf32>
    %28 = vector.extract_strided_slice %25 {offsets = [0, 2, 0], sizes = [8, 8, 64], strides = [1, 1, 1]} : vector<8x10x64xf32> to vector<8x8x64xf32>
    %29 = tpu.concatenate %26, %27, %28 in 2 : vector<8x8x64xf32>, vector<8x8x64xf32>, vector<8x8x64xf32> -> vector<8x8x192xf32>
    %30 = vector.shape_cast %29 : vector<8x8x192xf32> to vector<64x192xf32>
    %c0_19 = arith.constant 0 : index
    %c2 = arith.constant 2 : index
    %c0_20 = arith.constant 0 : index
    %c0_21 = arith.constant 0 : index
    %31 = vector.load %arg2[%c0_19, %c2, %c0_20, %c0_21] : memref<15x3x192x64xf32, #tpu.memory_space<vmem>>, vector<1x1x192x64xf32>
    %32 = vector.shape_cast %31 : vector<1x1x192x64xf32> to vector<192x64xf32>
    %cst_22 = arith.constant dense<0.000000e+00> : vector<64x64xf32>
    %33 = tpu.matmul %30, %32, %cst_22 {dimension_numbers = #tpu.dot_dimension_numbers<[1], [0], [0], [1], [0, 0, 1, 1], [], []>} : vector<64x192xf32>, vector<192x64xf32>, vector<64x64xf32> -> vector<64x64xf32>
    %34 = arith.addf %24, %33 : vector<64x64xf32>
    %c0_23 = arith.constant 0 : index
    %c0_24 = arith.constant 0 : index
    %c0_25 = arith.constant 0 : index
    %35 = vector.load %arg3[%c0_23, %c0_24, %c0_25] : memref<15x1x64xf32, #tpu.memory_space<vmem>>, vector<1x1x64xf32>
    %36 = vector.shape_cast %35 : vector<1x1x64xf32> to vector<1x64xf32>
    %37 = vector.broadcast %36 : vector<1x64xf32> to vector<64x64xf32>
    %38 = arith.mulf %34, %37 : vector<64x64xf32>
    %c0_26 = arith.constant 0 : index
    %c0_27 = arith.constant 0 : index
    %c0_28 = arith.constant 0 : index
    %39 = vector.load %arg4[%c0_26, %c0_27, %c0_28] : memref<15x1x64xf32, #tpu.memory_space<vmem>>, vector<1x1x64xf32>
    %40 = vector.shape_cast %39 : vector<1x1x64xf32> to vector<1x64xf32>
    %41 = vector.broadcast %40 : vector<1x64xf32> to vector<64x64xf32>
    %42 = arith.addf %38, %41 : vector<64x64xf32>
    %cst_29 = arith.constant 0.000000e+00 : f32
    %43 = vector.broadcast %cst_29 : f32 to vector<64x64xf32>
    %44 = arith.maximumf %42, %43 : vector<64x64xf32>
    %45 = vector.shape_cast %44 : vector<64x64xf32> to vector<8x8x64xf32>
    %c1_30 = arith.constant 1 : index
    %c1_31 = arith.constant 1 : index
    %c0_32 = arith.constant 0 : index
    %46 = vector.load %arg6[%c1_30, %c1_31, %c0_32] : memref<10x10x64xf32, #tpu.memory_space<vmem>>, vector<8x8x64xf32>
    tpu.vector_store %arg6[%c1_30, %c1_31, %c0_32], %45 {strides = array<i32>} : memref<10x10x64xf32, #tpu.memory_space<vmem>>, vector<8x8x64xf32>,
    %c0_33 = arith.constant 0 : index
    %c0_34 = arith.constant 0 : index
    %c0_35 = arith.constant 0 : index
    %47 = vector.load %arg6[%c0_33, %c0_34, %c0_35] : memref<10x10x64xf32, #tpu.memory_space<vmem>>, vector<10x10x64xf32>
    %48 = vector.extract_strided_slice %47 {offsets = [0, 0, 0], sizes = [8, 10, 64], strides = [1, 1, 1]} : vector<10x10x64xf32> to vector<8x10x64xf32>
    %49 = vector.extract_strided_slice %48 {offsets = [0, 0, 0], sizes = [8, 8, 64], strides = [1, 1, 1]} : vector<8x10x64xf32> to vector<8x8x64xf32>
    %50 = vector.extract_strided_slice %48 {offsets = [0, 1, 0], sizes = [8, 8, 64], strides = [1, 1, 1]} : vector<8x10x64xf32> to vector<8x8x64xf32>
    %51 = vector.extract_strided_slice %48 {offsets = [0, 2, 0], sizes = [8, 8, 64], strides = [1, 1, 1]} : vector<8x10x64xf32> to vector<8x8x64xf32>
    %52 = tpu.concatenate %49, %50, %51 in 2 : vector<8x8x64xf32>, vector<8x8x64xf32>, vector<8x8x64xf32> -> vector<8x8x192xf32>
    %53 = vector.shape_cast %52 : vector<8x8x192xf32> to vector<64x192xf32>
    %c1_36 = arith.constant 1 : index
    %c0_37 = arith.constant 0 : index
    %c0_38 = arith.constant 0 : index
    %c0_39 = arith.constant 0 : index
    %54 = vector.load %arg2[%c1_36, %c0_37, %c0_38, %c0_39] : memref<15x3x192x64xf32, #tpu.memory_space<vmem>>, vector<1x1x192x64xf32>
    %55 = vector.shape_cast %54 : vector<1x1x192x64xf32> to vector<192x64xf32>
    %cst_40 = arith.constant dense<0.000000e+00> : vector<64x64xf32>
    %56 = tpu.matmul %53, %55, %cst_40 {dimension_numbers = #tpu.dot_dimension_numbers<[1], [0], [0], [1], [0, 0, 1, 1], [], []>} : vector<64x192xf32>, vector<192x64xf32>, vector<64x64xf32> -> vector<64x64xf32>
    %57 = vector.extract_strided_slice %47 {offsets = [1, 0, 0], sizes = [8, 10, 64], strides = [1, 1, 1]} : vector<10x10x64xf32> to vector<8x10x64xf32>
    %58 = vector.extract_strided_slice %57 {offsets = [0, 0, 0], sizes = [8, 8, 64], strides = [1, 1, 1]} : vector<8x10x64xf32> to vector<8x8x64xf32>
    %59 = vector.extract_strided_slice %57 {offsets = [0, 1, 0], sizes = [8, 8, 64], strides = [1, 1, 1]} : vector<8x10x64xf32> to vector<8x8x64xf32>
    %60 = vector.extract_strided_slice %57 {offsets = [0, 2, 0], sizes = [8, 8, 64], strides = [1, 1, 1]} : vector<8x10x64xf32> to vector<8x8x64xf32>
    %61 = tpu.concatenate %58, %59, %60 in 2 : vector<8x8x64xf32>, vector<8x8x64xf32>, vector<8x8x64xf32> -> vector<8x8x192xf32>
    %62 = vector.shape_cast %61 : vector<8x8x192xf32> to vector<64x192xf32>
    %c1_41 = arith.constant 1 : index
    %c1_42 = arith.constant 1 : index
    %c0_43 = arith.constant 0 : index
    %c0_44 = arith.constant 0 : index
    %63 = vector.load %arg2[%c1_41, %c1_42, %c0_43, %c0_44] : memref<15x3x192x64xf32, #tpu.memory_space<vmem>>, vector<1x1x192x64xf32>
    %64 = vector.shape_cast %63 : vector<1x1x192x64xf32> to vector<192x64xf32>
    %cst_45 = arith.constant dense<0.000000e+00> : vector<64x64xf32>
    %65 = tpu.matmul %62, %64, %cst_45 {dimension_numbers = #tpu.dot_dimension_numbers<[1], [0], [0], [1], [0, 0, 1, 1], [], []>} : vector<64x192xf32>, vector<192x64xf32>, vector<64x64xf32> -> vector<64x64xf32>
    %66 = arith.addf %56, %65 : vector<64x64xf32>
    %67 = vector.extract_strided_slice %47 {offsets = [2, 0, 0], sizes = [8, 10, 64], strides = [1, 1, 1]} : vector<10x10x64xf32> to vector<8x10x64xf32>
    %68 = vector.extract_strided_slice %67 {offsets = [0, 0, 0], sizes = [8, 8, 64], strides = [1, 1, 1]} : vector<8x10x64xf32> to vector<8x8x64xf32>
    %69 = vector.extract_strided_slice %67 {offsets = [0, 1, 0], sizes = [8, 8, 64], strides = [1, 1, 1]} : vector<8x10x64xf32> to vector<8x8x64xf32>
    %70 = vector.extract_strided_slice %67 {offsets = [0, 2, 0], sizes = [8, 8, 64], strides = [1, 1, 1]} : vector<8x10x64xf32> to vector<8x8x64xf32>
    %71 = tpu.concatenate %68, %69, %70 in 2 : vector<8x8x64xf32>, vector<8x8x64xf32>, vector<8x8x64xf32> -> vector<8x8x192xf32>
    %72 = vector.shape_cast %71 : vector<8x8x192xf32> to vector<64x192xf32>
    %c1_46 = arith.constant 1 : index
    %c2_47 = arith.constant 2 : index
    %c0_48 = arith.constant 0 : index
    %c0_49 = arith.constant 0 : index
    %73 = vector.load %arg2[%c1_46, %c2_47, %c0_48, %c0_49] : memref<15x3x192x64xf32, #tpu.memory_space<vmem>>, vector<1x1x192x64xf32>
    %74 = vector.shape_cast %73 : vector<1x1x192x64xf32> to vector<192x64xf32>
    %cst_50 = arith.constant dense<0.000000e+00> : vector<64x64xf32>
    %75 = tpu.matmul %72, %74, %cst_50 {dimension_numbers = #tpu.dot_dimension_numbers<[1], [0], [0], [1], [0, 0, 1, 1], [], []>} : vector<64x192xf32>, vector<192x64xf32>, vector<64x64xf32> -> vector<64x64xf32>
    %76 = arith.addf %66, %75 : vector<64x64xf32>
    %c1_51 = arith.constant 1 : index
    %c0_52 = arith.constant 0 : index
    %c0_53 = arith.constant 0 : index
    %77 = vector.load %arg3[%c1_51, %c0_52, %c0_53] : memref<15x1x64xf32, #tpu.memory_space<vmem>>, vector<1x1x64xf32>
    %78 = vector.shape_cast %77 : vector<1x1x64xf32> to vector<1x64xf32>
    %79 = vector.broadcast %78 : vector<1x64xf32> to vector<64x64xf32>
    %80 = arith.mulf %76, %79 : vector<64x64xf32>
    %c1_54 = arith.constant 1 : index
    %c0_55 = arith.constant 0 : index
    %c0_56 = arith.constant 0 : index
    %81 = vector.load %arg4[%c1_54, %c0_55, %c0_56] : memref<15x1x64xf32, #tpu.memory_space<vmem>>, vector<1x1x64xf32>
    %82 = vector.shape_cast %81 : vector<1x1x64xf32> to vector<1x64xf32>
    %83 = vector.broadcast %82 : vector<1x64xf32> to vector<64x64xf32>
    %84 = arith.addf %80, %83 : vector<64x64xf32>
    %cst_57 = arith.constant 0.000000e+00 : f32
    %85 = vector.broadcast %cst_57 : f32 to vector<64x64xf32>
    %86 = arith.maximumf %84, %85 : vector<64x64xf32>
    %87 = vector.shape_cast %86 : vector<64x64xf32> to vector<8x8x64xf32>
    %c1_58 = arith.constant 1 : index
    %c1_59 = arith.constant 1 : index
    %c0_60 = arith.constant 0 : index
    %88 = vector.load %arg7[%c1_58, %c1_59, %c0_60] : memref<10x10x64xf32, #tpu.memory_space<vmem>>, vector<8x8x64xf32>
    tpu.vector_store %arg7[%c1_58, %c1_59, %c0_60], %87 {strides = array<i32>} : memref<10x10x64xf32, #tpu.memory_space<vmem>>, vector<8x8x64xf32>,
    %c0_61 = arith.constant 0 : index
    %c0_62 = arith.constant 0 : index
    %c0_63 = arith.constant 0 : index
    %89 = vector.load %arg7[%c0_61, %c0_62, %c0_63] : memref<10x10x64xf32, #tpu.memory_space<vmem>>, vector<10x10x64xf32>
    %90 = vector.extract_strided_slice %89 {offsets = [0, 0, 0], sizes = [8, 10, 64], strides = [1, 1, 1]} : vector<10x10x64xf32> to vector<8x10x64xf32>
    %91 = vector.extract_strided_slice %90 {offsets = [0, 0, 0], sizes = [8, 8, 64], strides = [1, 1, 1]} : vector<8x10x64xf32> to vector<8x8x64xf32>
    %92 = vector.extract_strided_slice %90 {offsets = [0, 1, 0], sizes = [8, 8, 64], strides = [1, 1, 1]} : vector<8x10x64xf32> to vector<8x8x64xf32>
    %93 = vector.extract_strided_slice %90 {offsets = [0, 2, 0], sizes = [8, 8, 64], strides = [1, 1, 1]} : vector<8x10x64xf32> to vector<8x8x64xf32>
    %94 = tpu.concatenate %91, %92, %93 in 2 : vector<8x8x64xf32>, vector<8x8x64xf32>, vector<8x8x64xf32> -> vector<8x8x192xf32>
    %95 = vector.shape_cast %94 : vector<8x8x192xf32> to vector<64x192xf32>
    %c2_64 = arith.constant 2 : index
    %c0_65 = arith.constant 0 : index
    %c0_66 = arith.constant 0 : index
    %c0_67 = arith.constant 0 : index
    %96 = vector.load %arg2[%c2_64, %c0_65, %c0_66, %c0_67] : memref<15x3x192x64xf32, #tpu.memory_space<vmem>>, vector<1x1x192x64xf32>
    %97 = vector.shape_cast %96 : vector<1x1x192x64xf32> to vector<192x64xf32>
    %cst_68 = arith.constant dense<0.000000e+00> : vector<64x64xf32>
    %98 = tpu.matmul %95, %97, %cst_68 {dimension_numbers = #tpu.dot_dimension_numbers<[1], [0], [0], [1], [0, 0, 1, 1], [], []>} : vector<64x192xf32>, vector<192x64xf32>, vector<64x64xf32> -> vector<64x64xf32>
    %99 = vector.extract_strided_slice %89 {offsets = [1, 0, 0], sizes = [8, 10, 64], strides = [1, 1, 1]} : vector<10x10x64xf32> to vector<8x10x64xf32>
    %100 = vector.extract_strided_slice %99 {offsets = [0, 0, 0], sizes = [8, 8, 64], strides = [1, 1, 1]} : vector<8x10x64xf32> to vector<8x8x64xf32>
    %101 = vector.extract_strided_slice %99 {offsets = [0, 1, 0], sizes = [8, 8, 64], strides = [1, 1, 1]} : vector<8x10x64xf32> to vector<8x8x64xf32>
    %102 = vector.extract_strided_slice %99 {offsets = [0, 2, 0], sizes = [8, 8, 64], strides = [1, 1, 1]} : vector<8x10x64xf32> to vector<8x8x64xf32>
    %103 = tpu.concatenate %100, %101, %102 in 2 : vector<8x8x64xf32>, vector<8x8x64xf32>, vector<8x8x64xf32> -> vector<8x8x192xf32>
    %104 = vector.shape_cast %103 : vector<8x8x192xf32> to vector<64x192xf32>
    %c2_69 = arith.constant 2 : index
    %c1_70 = arith.constant 1 : index
    %c0_71 = arith.constant 0 : index
    %c0_72 = arith.constant 0 : index
    %105 = vector.load %arg2[%c2_69, %c1_70, %c0_71, %c0_72] : memref<15x3x192x64xf32, #tpu.memory_space<vmem>>, vector<1x1x192x64xf32>
    %106 = vector.shape_cast %105 : vector<1x1x192x64xf32> to vector<192x64xf32>
    %cst_73 = arith.constant dense<0.000000e+00> : vector<64x64xf32>
    %107 = tpu.matmul %104, %106, %cst_73 {dimension_numbers = #tpu.dot_dimension_numbers<[1], [0], [0], [1], [0, 0, 1, 1], [], []>} : vector<64x192xf32>, vector<192x64xf32>, vector<64x64xf32> -> vector<64x64xf32>
    %108 = arith.addf %98, %107 : vector<64x64xf32>
    %109 = vector.extract_strided_slice %89 {offsets = [2, 0, 0], sizes = [8, 10, 64], strides = [1, 1, 1]} : vector<10x10x64xf32> to vector<8x10x64xf32>
    %110 = vector.extract_strided_slice %109 {offsets = [0, 0, 0], sizes = [8, 8, 64], strides = [1, 1, 1]} : vector<8x10x64xf32> to vector<8x8x64xf32>
    %111 = vector.extract_strided_slice %109 {offsets = [0, 1, 0], sizes = [8, 8, 64], strides = [1, 1, 1]} : vector<8x10x64xf32> to vector<8x8x64xf32>
    %112 = vector.extract_strided_slice %109 {offsets = [0, 2, 0], sizes = [8, 8, 64], strides = [1, 1, 1]} : vector<8x10x64xf32> to vector<8x8x64xf32>
    %113 = tpu.concatenate %110, %111, %112 in 2 : vector<8x8x64xf32>, vector<8x8x64xf32>, vector<8x8x64xf32> -> vector<8x8x192xf32>
    %114 = vector.shape_cast %113 : vector<8x8x192xf32> to vector<64x192xf32>
    %c2_74 = arith.constant 2 : index
    %c2_75 = arith.constant 2 : index
    %c0_76 = arith.constant 0 : index
    %c0_77 = arith.constant 0 : index
    %115 = vector.load %arg2[%c2_74, %c2_75, %c0_76, %c0_77] : memref<15x3x192x64xf32, #tpu.memory_space<vmem>>, vector<1x1x192x64xf32>
    %116 = vector.shape_cast %115 : vector<1x1x192x64xf32> to vector<192x64xf32>
    %cst_78 = arith.constant dense<0.000000e+00> : vector<64x64xf32>
    %117 = tpu.matmul %114, %116, %cst_78 {dimension_numbers = #tpu.dot_dimension_numbers<[1], [0], [0], [1], [0, 0, 1, 1], [], []>} : vector<64x192xf32>, vector<192x64xf32>, vector<64x64xf32> -> vector<64x64xf32>
    %118 = arith.addf %108, %117 : vector<64x64xf32>
    %c2_79 = arith.constant 2 : index
    %c0_80 = arith.constant 0 : index
    %c0_81 = arith.constant 0 : index
    %119 = vector.load %arg3[%c2_79, %c0_80, %c0_81] : memref<15x1x64xf32, #tpu.memory_space<vmem>>, vector<1x1x64xf32>
    %120 = vector.shape_cast %119 : vector<1x1x64xf32> to vector<1x64xf32>
    %121 = vector.broadcast %120 : vector<1x64xf32> to vector<64x64xf32>
    %122 = arith.mulf %118, %121 : vector<64x64xf32>
    %c2_82 = arith.constant 2 : index
    %c0_83 = arith.constant 0 : index
    %c0_84 = arith.constant 0 : index
    %123 = vector.load %arg4[%c2_82, %c0_83, %c0_84] : memref<15x1x64xf32, #tpu.memory_space<vmem>>, vector<1x1x64xf32>
    %124 = vector.shape_cast %123 : vector<1x1x64xf32> to vector<1x64xf32>
    %125 = vector.broadcast %124 : vector<1x64xf32> to vector<64x64xf32>
    %126 = arith.addf %122, %125 : vector<64x64xf32>
    %cst_85 = arith.constant 0.000000e+00 : f32
    %127 = vector.broadcast %cst_85 : f32 to vector<64x64xf32>
    %128 = arith.maximumf %126, %127 : vector<64x64xf32>
    %129 = vector.shape_cast %128 : vector<64x64xf32> to vector<8x8x64xf32>
    %c1_86 = arith.constant 1 : index
    %c1_87 = arith.constant 1 : index
    %c0_88 = arith.constant 0 : index
    %130 = vector.load %arg6[%c1_86, %c1_87, %c0_88] : memref<10x10x64xf32, #tpu.memory_space<vmem>>, vector<8x8x64xf32>
    tpu.vector_store %arg6[%c1_86, %c1_87, %c0_88], %129 {strides = array<i32>} : memref<10x10x64xf32, #tpu.memory_space<vmem>>, vector<8x8x64xf32>,
    %c0_89 = arith.constant 0 : index
    %c0_90 = arith.constant 0 : index
    %c0_91 = arith.constant 0 : index
    %131 = vector.load %arg6[%c0_89, %c0_90, %c0_91] : memref<10x10x64xf32, #tpu.memory_space<vmem>>, vector<10x10x64xf32>
    %132 = vector.extract_strided_slice %131 {offsets = [0, 0, 0], sizes = [8, 10, 64], strides = [1, 1, 1]} : vector<10x10x64xf32> to vector<8x10x64xf32>
    %133 = vector.extract_strided_slice %132 {offsets = [0, 0, 0], sizes = [8, 8, 64], strides = [1, 1, 1]} : vector<8x10x64xf32> to vector<8x8x64xf32>
    %134 = vector.extract_strided_slice %132 {offsets = [0, 1, 0], sizes = [8, 8, 64], strides = [1, 1, 1]} : vector<8x10x64xf32> to vector<8x8x64xf32>
    %135 = vector.extract_strided_slice %132 {offsets = [0, 2, 0], sizes = [8, 8, 64], strides = [1, 1, 1]} : vector<8x10x64xf32> to vector<8x8x64xf32>
    %136 = tpu.concatenate %133, %134, %135 in 2 : vector<8x8x64xf32>, vector<8x8x64xf32>, vector<8x8x64xf32> -> vector<8x8x192xf32>
    %137 = vector.shape_cast %136 : vector<8x8x192xf32> to vector<64x192xf32>
    %c3 = arith.constant 3 : index
    %c0_92 = arith.constant 0 : index
    %c0_93 = arith.constant 0 : index
    %c0_94 = arith.constant 0 : index
    %138 = vector.load %arg2[%c3, %c0_92, %c0_93, %c0_94] : memref<15x3x192x64xf32, #tpu.memory_space<vmem>>, vector<1x1x192x64xf32>
    %139 = vector.shape_cast %138 : vector<1x1x192x64xf32> to vector<192x64xf32>
    %cst_95 = arith.constant dense<0.000000e+00> : vector<64x64xf32>
    %140 = tpu.matmul %137, %139, %cst_95 {dimension_numbers = #tpu.dot_dimension_numbers<[1], [0], [0], [1], [0, 0, 1, 1], [], []>} : vector<64x192xf32>, vector<192x64xf32>, vector<64x64xf32> -> vector<64x64xf32>
    %141 = vector.extract_strided_slice %131 {offsets = [1, 0, 0], sizes = [8, 10, 64], strides = [1, 1, 1]} : vector<10x10x64xf32> to vector<8x10x64xf32>
    %142 = vector.extract_strided_slice %141 {offsets = [0, 0, 0], sizes = [8, 8, 64], strides = [1, 1, 1]} : vector<8x10x64xf32> to vector<8x8x64xf32>
    %143 = vector.extract_strided_slice %141 {offsets = [0, 1, 0], sizes = [8, 8, 64], strides = [1, 1, 1]} : vector<8x10x64xf32> to vector<8x8x64xf32>
    %144 = vector.extract_strided_slice %141 {offsets = [0, 2, 0], sizes = [8, 8, 64], strides = [1, 1, 1]} : vector<8x10x64xf32> to vector<8x8x64xf32>
    %145 = tpu.concatenate %142, %143, %144 in 2 : vector<8x8x64xf32>, vector<8x8x64xf32>, vector<8x8x64xf32> -> vector<8x8x192xf32>
    %146 = vector.shape_cast %145 : vector<8x8x192xf32> to vector<64x192xf32>
    %c3_96 = arith.constant 3 : index
    %c1_97 = arith.constant 1 : index
    %c0_98 = arith.constant 0 : index
    %c0_99 = arith.constant 0 : index
    %147 = vector.load %arg2[%c3_96, %c1_97, %c0_98, %c0_99] : memref<15x3x192x64xf32, #tpu.memory_space<vmem>>, vector<1x1x192x64xf32>
    %148 = vector.shape_cast %147 : vector<1x1x192x64xf32> to vector<192x64xf32>
    %cst_100 = arith.constant dense<0.000000e+00> : vector<64x64xf32>
    %149 = tpu.matmul %146, %148, %cst_100 {dimension_numbers = #tpu.dot_dimension_numbers<[1], [0], [0], [1], [0, 0, 1, 1], [], []>} : vector<64x192xf32>, vector<192x64xf32>, vector<64x64xf32> -> vector<64x64xf32>
    %150 = arith.addf %140, %149 : vector<64x64xf32>
    %151 = vector.extract_strided_slice %131 {offsets = [2, 0, 0], sizes = [8, 10, 64], strides = [1, 1, 1]} : vector<10x10x64xf32> to vector<8x10x64xf32>
    %152 = vector.extract_strided_slice %151 {offsets = [0, 0, 0], sizes = [8, 8, 64], strides = [1, 1, 1]} : vector<8x10x64xf32> to vector<8x8x64xf32>
    %153 = vector.extract_strided_slice %151 {offsets = [0, 1, 0], sizes = [8, 8, 64], strides = [1, 1, 1]} : vector<8x10x64xf32> to vector<8x8x64xf32>
    %154 = vector.extract_strided_slice %151 {offsets = [0, 2, 0], sizes = [8, 8, 64], strides = [1, 1, 1]} : vector<8x10x64xf32> to vector<8x8x64xf32>
    %155 = tpu.concatenate %152, %153, %154 in 2 : vector<8x8x64xf32>, vector<8x8x64xf32>, vector<8x8x64xf32> -> vector<8x8x192xf32>
    %156 = vector.shape_cast %155 : vector<8x8x192xf32> to vector<64x192xf32>
    %c3_101 = arith.constant 3 : index
    %c2_102 = arith.constant 2 : index
    %c0_103 = arith.constant 0 : index
    %c0_104 = arith.constant 0 : index
    %157 = vector.load %arg2[%c3_101, %c2_102, %c0_103, %c0_104] : memref<15x3x192x64xf32, #tpu.memory_space<vmem>>, vector<1x1x192x64xf32>
    %158 = vector.shape_cast %157 : vector<1x1x192x64xf32> to vector<192x64xf32>
    %cst_105 = arith.constant dense<0.000000e+00> : vector<64x64xf32>
    %159 = tpu.matmul %156, %158, %cst_105 {dimension_numbers = #tpu.dot_dimension_numbers<[1], [0], [0], [1], [0, 0, 1, 1], [], []>} : vector<64x192xf32>, vector<192x64xf32>, vector<64x64xf32> -> vector<64x64xf32>
    %160 = arith.addf %150, %159 : vector<64x64xf32>
    %c3_106 = arith.constant 3 : index
    %c0_107 = arith.constant 0 : index
    %c0_108 = arith.constant 0 : index
    %161 = vector.load %arg3[%c3_106, %c0_107, %c0_108] : memref<15x1x64xf32, #tpu.memory_space<vmem>>, vector<1x1x64xf32>
    %162 = vector.shape_cast %161 : vector<1x1x64xf32> to vector<1x64xf32>
    %163 = vector.broadcast %162 : vector<1x64xf32> to vector<64x64xf32>
    %164 = arith.mulf %160, %163 : vector<64x64xf32>
    %c3_109 = arith.constant 3 : index
    %c0_110 = arith.constant 0 : index
    %c0_111 = arith.constant 0 : index
    %165 = vector.load %arg4[%c3_109, %c0_110, %c0_111] : memref<15x1x64xf32, #tpu.memory_space<vmem>>, vector<1x1x64xf32>
    %166 = vector.shape_cast %165 : vector<1x1x64xf32> to vector<1x64xf32>
    %167 = vector.broadcast %166 : vector<1x64xf32> to vector<64x64xf32>
    %168 = arith.addf %164, %167 : vector<64x64xf32>
    %cst_112 = arith.constant 0.000000e+00 : f32
    %169 = vector.broadcast %cst_112 : f32 to vector<64x64xf32>
    %170 = arith.maximumf %168, %169 : vector<64x64xf32>
    %171 = vector.shape_cast %170 : vector<64x64xf32> to vector<8x8x64xf32>
    %c1_113 = arith.constant 1 : index
    %c1_114 = arith.constant 1 : index
    %c0_115 = arith.constant 0 : index
    %172 = vector.load %arg7[%c1_113, %c1_114, %c0_115] : memref<10x10x64xf32, #tpu.memory_space<vmem>>, vector<8x8x64xf32>
    tpu.vector_store %arg7[%c1_113, %c1_114, %c0_115], %171 {strides = array<i32>} : memref<10x10x64xf32, #tpu.memory_space<vmem>>, vector<8x8x64xf32>,
    %c0_116 = arith.constant 0 : index
    %c0_117 = arith.constant 0 : index
    %c0_118 = arith.constant 0 : index
    %173 = vector.load %arg7[%c0_116, %c0_117, %c0_118] : memref<10x10x64xf32, #tpu.memory_space<vmem>>, vector<10x10x64xf32>
    %174 = vector.extract_strided_slice %173 {offsets = [0, 0, 0], sizes = [8, 10, 64], strides = [1, 1, 1]} : vector<10x10x64xf32> to vector<8x10x64xf32>
    %175 = vector.extract_strided_slice %174 {offsets = [0, 0, 0], sizes = [8, 8, 64], strides = [1, 1, 1]} : vector<8x10x64xf32> to vector<8x8x64xf32>
    %176 = vector.extract_strided_slice %174 {offsets = [0, 1, 0], sizes = [8, 8, 64], strides = [1, 1, 1]} : vector<8x10x64xf32> to vector<8x8x64xf32>
    %177 = vector.extract_strided_slice %174 {offsets = [0, 2, 0], sizes = [8, 8, 64], strides = [1, 1, 1]} : vector<8x10x64xf32> to vector<8x8x64xf32>
    %178 = tpu.concatenate %175, %176, %177 in 2 : vector<8x8x64xf32>, vector<8x8x64xf32>, vector<8x8x64xf32> -> vector<8x8x192xf32>
    %179 = vector.shape_cast %178 : vector<8x8x192xf32> to vector<64x192xf32>
    %c4 = arith.constant 4 : index
    %c0_119 = arith.constant 0 : index
    %c0_120 = arith.constant 0 : index
    %c0_121 = arith.constant 0 : index
    %180 = vector.load %arg2[%c4, %c0_119, %c0_120, %c0_121] : memref<15x3x192x64xf32, #tpu.memory_space<vmem>>, vector<1x1x192x64xf32>
    %181 = vector.shape_cast %180 : vector<1x1x192x64xf32> to vector<192x64xf32>
    %cst_122 = arith.constant dense<0.000000e+00> : vector<64x64xf32>
    %182 = tpu.matmul %179, %181, %cst_122 {dimension_numbers = #tpu.dot_dimension_numbers<[1], [0], [0], [1], [0, 0, 1, 1], [], []>} : vector<64x192xf32>, vector<192x64xf32>, vector<64x64xf32> -> vector<64x64xf32>
    %183 = vector.extract_strided_slice %173 {offsets = [1, 0, 0], sizes = [8, 10, 64], strides = [1, 1, 1]} : vector<10x10x64xf32> to vector<8x10x64xf32>
    %184 = vector.extract_strided_slice %183 {offsets = [0, 0, 0], sizes = [8, 8, 64], strides = [1, 1, 1]} : vector<8x10x64xf32> to vector<8x8x64xf32>
    %185 = vector.extract_strided_slice %183 {offsets = [0, 1, 0], sizes = [8, 8, 64], strides = [1, 1, 1]} : vector<8x10x64xf32> to vector<8x8x64xf32>
    %186 = vector.extract_strided_slice %183 {offsets = [0, 2, 0], sizes = [8, 8, 64], strides = [1, 1, 1]} : vector<8x10x64xf32> to vector<8x8x64xf32>
    %187 = tpu.concatenate %184, %185, %186 in 2 : vector<8x8x64xf32>, vector<8x8x64xf32>, vector<8x8x64xf32> -> vector<8x8x192xf32>
    %188 = vector.shape_cast %187 : vector<8x8x192xf32> to vector<64x192xf32>
    %c4_123 = arith.constant 4 : index
    %c1_124 = arith.constant 1 : index
    %c0_125 = arith.constant 0 : index
    %c0_126 = arith.constant 0 : index
    %189 = vector.load %arg2[%c4_123, %c1_124, %c0_125, %c0_126] : memref<15x3x192x64xf32, #tpu.memory_space<vmem>>, vector<1x1x192x64xf32>
    %190 = vector.shape_cast %189 : vector<1x1x192x64xf32> to vector<192x64xf32>
    %cst_127 = arith.constant dense<0.000000e+00> : vector<64x64xf32>
    %191 = tpu.matmul %188, %190, %cst_127 {dimension_numbers = #tpu.dot_dimension_numbers<[1], [0], [0], [1], [0, 0, 1, 1], [], []>} : vector<64x192xf32>, vector<192x64xf32>, vector<64x64xf32> -> vector<64x64xf32>
    %192 = arith.addf %182, %191 : vector<64x64xf32>
    %193 = vector.extract_strided_slice %173 {offsets = [2, 0, 0], sizes = [8, 10, 64], strides = [1, 1, 1]} : vector<10x10x64xf32> to vector<8x10x64xf32>
    %194 = vector.extract_strided_slice %193 {offsets = [0, 0, 0], sizes = [8, 8, 64], strides = [1, 1, 1]} : vector<8x10x64xf32> to vector<8x8x64xf32>
    %195 = vector.extract_strided_slice %193 {offsets = [0, 1, 0], sizes = [8, 8, 64], strides = [1, 1, 1]} : vector<8x10x64xf32> to vector<8x8x64xf32>
    %196 = vector.extract_strided_slice %193 {offsets = [0, 2, 0], sizes = [8, 8, 64], strides = [1, 1, 1]} : vector<8x10x64xf32> to vector<8x8x64xf32>
    %197 = tpu.concatenate %194, %195, %196 in 2 : vector<8x8x64xf32>, vector<8x8x64xf32>, vector<8x8x64xf32> -> vector<8x8x192xf32>
    %198 = vector.shape_cast %197 : vector<8x8x192xf32> to vector<64x192xf32>
    %c4_128 = arith.constant 4 : index
    %c2_129 = arith.constant 2 : index
    %c0_130 = arith.constant 0 : index
    %c0_131 = arith.constant 0 : index
    %199 = vector.load %arg2[%c4_128, %c2_129, %c0_130, %c0_131] : memref<15x3x192x64xf32, #tpu.memory_space<vmem>>, vector<1x1x192x64xf32>
    %200 = vector.shape_cast %199 : vector<1x1x192x64xf32> to vector<192x64xf32>
    %cst_132 = arith.constant dense<0.000000e+00> : vector<64x64xf32>
    %201 = tpu.matmul %198, %200, %cst_132 {dimension_numbers = #tpu.dot_dimension_numbers<[1], [0], [0], [1], [0, 0, 1, 1], [], []>} : vector<64x192xf32>, vector<192x64xf32>, vector<64x64xf32> -> vector<64x64xf32>
    %202 = arith.addf %192, %201 : vector<64x64xf32>
    %c4_133 = arith.constant 4 : index
    %c0_134 = arith.constant 0 : index
    %c0_135 = arith.constant 0 : index
    %203 = vector.load %arg3[%c4_133, %c0_134, %c0_135] : memref<15x1x64xf32, #tpu.memory_space<vmem>>, vector<1x1x64xf32>
    %204 = vector.shape_cast %203 : vector<1x1x64xf32> to vector<1x64xf32>
    %205 = vector.broadcast %204 : vector<1x64xf32> to vector<64x64xf32>
    %206 = arith.mulf %202, %205 : vector<64x64xf32>
    %c4_136 = arith.constant 4 : index
    %c0_137 = arith.constant 0 : index
    %c0_138 = arith.constant 0 : index
    %207 = vector.load %arg4[%c4_136, %c0_137, %c0_138] : memref<15x1x64xf32, #tpu.memory_space<vmem>>, vector<1x1x64xf32>
    %208 = vector.shape_cast %207 : vector<1x1x64xf32> to vector<1x64xf32>
    %209 = vector.broadcast %208 : vector<1x64xf32> to vector<64x64xf32>
    %210 = arith.addf %206, %209 : vector<64x64xf32>
    %cst_139 = arith.constant 0.000000e+00 : f32
    %211 = vector.broadcast %cst_139 : f32 to vector<64x64xf32>
    %212 = arith.maximumf %210, %211 : vector<64x64xf32>
    %213 = vector.shape_cast %212 : vector<64x64xf32> to vector<8x8x64xf32>
    %c1_140 = arith.constant 1 : index
    %c1_141 = arith.constant 1 : index
    %c0_142 = arith.constant 0 : index
    %214 = vector.load %arg6[%c1_140, %c1_141, %c0_142] : memref<10x10x64xf32, #tpu.memory_space<vmem>>, vector<8x8x64xf32>
    tpu.vector_store %arg6[%c1_140, %c1_141, %c0_142], %213 {strides = array<i32>} : memref<10x10x64xf32, #tpu.memory_space<vmem>>, vector<8x8x64xf32>,
    %c0_143 = arith.constant 0 : index
    %c0_144 = arith.constant 0 : index
    %c0_145 = arith.constant 0 : index
    %215 = vector.load %arg6[%c0_143, %c0_144, %c0_145] : memref<10x10x64xf32, #tpu.memory_space<vmem>>, vector<10x10x64xf32>
    %216 = vector.extract_strided_slice %215 {offsets = [0, 0, 0], sizes = [8, 10, 64], strides = [1, 1, 1]} : vector<10x10x64xf32> to vector<8x10x64xf32>
    %217 = vector.extract_strided_slice %216 {offsets = [0, 0, 0], sizes = [8, 8, 64], strides = [1, 1, 1]} : vector<8x10x64xf32> to vector<8x8x64xf32>
    %218 = vector.extract_strided_slice %216 {offsets = [0, 1, 0], sizes = [8, 8, 64], strides = [1, 1, 1]} : vector<8x10x64xf32> to vector<8x8x64xf32>
    %219 = vector.extract_strided_slice %216 {offsets = [0, 2, 0], sizes = [8, 8, 64], strides = [1, 1, 1]} : vector<8x10x64xf32> to vector<8x8x64xf32>
    %220 = tpu.concatenate %217, %218, %219 in 2 : vector<8x8x64xf32>, vector<8x8x64xf32>, vector<8x8x64xf32> -> vector<8x8x192xf32>
    %221 = vector.shape_cast %220 : vector<8x8x192xf32> to vector<64x192xf32>
    %c5 = arith.constant 5 : index
    %c0_146 = arith.constant 0 : index
    %c0_147 = arith.constant 0 : index
    %c0_148 = arith.constant 0 : index
    %222 = vector.load %arg2[%c5, %c0_146, %c0_147, %c0_148] : memref<15x3x192x64xf32, #tpu.memory_space<vmem>>, vector<1x1x192x64xf32>
    %223 = vector.shape_cast %222 : vector<1x1x192x64xf32> to vector<192x64xf32>
    %cst_149 = arith.constant dense<0.000000e+00> : vector<64x64xf32>
    %224 = tpu.matmul %221, %223, %cst_149 {dimension_numbers = #tpu.dot_dimension_numbers<[1], [0], [0], [1], [0, 0, 1, 1], [], []>} : vector<64x192xf32>, vector<192x64xf32>, vector<64x64xf32> -> vector<64x64xf32>
    %225 = vector.extract_strided_slice %215 {offsets = [1, 0, 0], sizes = [8, 10, 64], strides = [1, 1, 1]} : vector<10x10x64xf32> to vector<8x10x64xf32>
    %226 = vector.extract_strided_slice %225 {offsets = [0, 0, 0], sizes = [8, 8, 64], strides = [1, 1, 1]} : vector<8x10x64xf32> to vector<8x8x64xf32>
    %227 = vector.extract_strided_slice %225 {offsets = [0, 1, 0], sizes = [8, 8, 64], strides = [1, 1, 1]} : vector<8x10x64xf32> to vector<8x8x64xf32>
    %228 = vector.extract_strided_slice %225 {offsets = [0, 2, 0], sizes = [8, 8, 64], strides = [1, 1, 1]} : vector<8x10x64xf32> to vector<8x8x64xf32>
    %229 = tpu.concatenate %226, %227, %228 in 2 : vector<8x8x64xf32>, vector<8x8x64xf32>, vector<8x8x64xf32> -> vector<8x8x192xf32>
    %230 = vector.shape_cast %229 : vector<8x8x192xf32> to vector<64x192xf32>
    %c5_150 = arith.constant 5 : index
    %c1_151 = arith.constant 1 : index
    %c0_152 = arith.constant 0 : index
    %c0_153 = arith.constant 0 : index
    %231 = vector.load %arg2[%c5_150, %c1_151, %c0_152, %c0_153] : memref<15x3x192x64xf32, #tpu.memory_space<vmem>>, vector<1x1x192x64xf32>
    %232 = vector.shape_cast %231 : vector<1x1x192x64xf32> to vector<192x64xf32>
    %cst_154 = arith.constant dense<0.000000e+00> : vector<64x64xf32>
    %233 = tpu.matmul %230, %232, %cst_154 {dimension_numbers = #tpu.dot_dimension_numbers<[1], [0], [0], [1], [0, 0, 1, 1], [], []>} : vector<64x192xf32>, vector<192x64xf32>, vector<64x64xf32> -> vector<64x64xf32>
    %234 = arith.addf %224, %233 : vector<64x64xf32>
    %235 = vector.extract_strided_slice %215 {offsets = [2, 0, 0], sizes = [8, 10, 64], strides = [1, 1, 1]} : vector<10x10x64xf32> to vector<8x10x64xf32>
    %236 = vector.extract_strided_slice %235 {offsets = [0, 0, 0], sizes = [8, 8, 64], strides = [1, 1, 1]} : vector<8x10x64xf32> to vector<8x8x64xf32>
    %237 = vector.extract_strided_slice %235 {offsets = [0, 1, 0], sizes = [8, 8, 64], strides = [1, 1, 1]} : vector<8x10x64xf32> to vector<8x8x64xf32>
    %238 = vector.extract_strided_slice %235 {offsets = [0, 2, 0], sizes = [8, 8, 64], strides = [1, 1, 1]} : vector<8x10x64xf32> to vector<8x8x64xf32>
    %239 = tpu.concatenate %236, %237, %238 in 2 : vector<8x8x64xf32>, vector<8x8x64xf32>, vector<8x8x64xf32> -> vector<8x8x192xf32>
    %240 = vector.shape_cast %239 : vector<8x8x192xf32> to vector<64x192xf32>
    %c5_155 = arith.constant 5 : index
    %c2_156 = arith.constant 2 : index
    %c0_157 = arith.constant 0 : index
    %c0_158 = arith.constant 0 : index
    %241 = vector.load %arg2[%c5_155, %c2_156, %c0_157, %c0_158] : memref<15x3x192x64xf32, #tpu.memory_space<vmem>>, vector<1x1x192x64xf32>
    %242 = vector.shape_cast %241 : vector<1x1x192x64xf32> to vector<192x64xf32>
    %cst_159 = arith.constant dense<0.000000e+00> : vector<64x64xf32>
    %243 = tpu.matmul %240, %242, %cst_159 {dimension_numbers = #tpu.dot_dimension_numbers<[1], [0], [0], [1], [0, 0, 1, 1], [], []>} : vector<64x192xf32>, vector<192x64xf32>, vector<64x64xf32> -> vector<64x64xf32>
    %244 = arith.addf %234, %243 : vector<64x64xf32>
    %c5_160 = arith.constant 5 : index
    %c0_161 = arith.constant 0 : index
    %c0_162 = arith.constant 0 : index
    %245 = vector.load %arg3[%c5_160, %c0_161, %c0_162] : memref<15x1x64xf32, #tpu.memory_space<vmem>>, vector<1x1x64xf32>
    %246 = vector.shape_cast %245 : vector<1x1x64xf32> to vector<1x64xf32>
    %247 = vector.broadcast %246 : vector<1x64xf32> to vector<64x64xf32>
    %248 = arith.mulf %244, %247 : vector<64x64xf32>
    %c5_163 = arith.constant 5 : index
    %c0_164 = arith.constant 0 : index
    %c0_165 = arith.constant 0 : index
    %249 = vector.load %arg4[%c5_163, %c0_164, %c0_165] : memref<15x1x64xf32, #tpu.memory_space<vmem>>, vector<1x1x64xf32>
    %250 = vector.shape_cast %249 : vector<1x1x64xf32> to vector<1x64xf32>
    %251 = vector.broadcast %250 : vector<1x64xf32> to vector<64x64xf32>
    %252 = arith.addf %248, %251 : vector<64x64xf32>
    %cst_166 = arith.constant 0.000000e+00 : f32
    %253 = vector.broadcast %cst_166 : f32 to vector<64x64xf32>
    %254 = arith.maximumf %252, %253 : vector<64x64xf32>
    %255 = vector.shape_cast %254 : vector<64x64xf32> to vector<8x8x64xf32>
    %c1_167 = arith.constant 1 : index
    %c1_168 = arith.constant 1 : index
    %c0_169 = arith.constant 0 : index
    %256 = vector.load %arg7[%c1_167, %c1_168, %c0_169] : memref<10x10x64xf32, #tpu.memory_space<vmem>>, vector<8x8x64xf32>
    tpu.vector_store %arg7[%c1_167, %c1_168, %c0_169], %255 {strides = array<i32>} : memref<10x10x64xf32, #tpu.memory_space<vmem>>, vector<8x8x64xf32>,
    %c0_170 = arith.constant 0 : index
    %c0_171 = arith.constant 0 : index
    %c0_172 = arith.constant 0 : index
    %257 = vector.load %arg7[%c0_170, %c0_171, %c0_172] : memref<10x10x64xf32, #tpu.memory_space<vmem>>, vector<10x10x64xf32>
    %258 = vector.extract_strided_slice %257 {offsets = [0, 0, 0], sizes = [8, 10, 64], strides = [1, 1, 1]} : vector<10x10x64xf32> to vector<8x10x64xf32>
    %259 = vector.extract_strided_slice %258 {offsets = [0, 0, 0], sizes = [8, 8, 64], strides = [1, 1, 1]} : vector<8x10x64xf32> to vector<8x8x64xf32>
    %260 = vector.extract_strided_slice %258 {offsets = [0, 1, 0], sizes = [8, 8, 64], strides = [1, 1, 1]} : vector<8x10x64xf32> to vector<8x8x64xf32>
    %261 = vector.extract_strided_slice %258 {offsets = [0, 2, 0], sizes = [8, 8, 64], strides = [1, 1, 1]} : vector<8x10x64xf32> to vector<8x8x64xf32>
    %262 = tpu.concatenate %259, %260, %261 in 2 : vector<8x8x64xf32>, vector<8x8x64xf32>, vector<8x8x64xf32> -> vector<8x8x192xf32>
    %263 = vector.shape_cast %262 : vector<8x8x192xf32> to vector<64x192xf32>
    %c6 = arith.constant 6 : index
    %c0_173 = arith.constant 0 : index
    %c0_174 = arith.constant 0 : index
    %c0_175 = arith.constant 0 : index
    %264 = vector.load %arg2[%c6, %c0_173, %c0_174, %c0_175] : memref<15x3x192x64xf32, #tpu.memory_space<vmem>>, vector<1x1x192x64xf32>
    %265 = vector.shape_cast %264 : vector<1x1x192x64xf32> to vector<192x64xf32>
    %cst_176 = arith.constant dense<0.000000e+00> : vector<64x64xf32>
    %266 = tpu.matmul %263, %265, %cst_176 {dimension_numbers = #tpu.dot_dimension_numbers<[1], [0], [0], [1], [0, 0, 1, 1], [], []>} : vector<64x192xf32>, vector<192x64xf32>, vector<64x64xf32> -> vector<64x64xf32>
    %267 = vector.extract_strided_slice %257 {offsets = [1, 0, 0], sizes = [8, 10, 64], strides = [1, 1, 1]} : vector<10x10x64xf32> to vector<8x10x64xf32>
    %268 = vector.extract_strided_slice %267 {offsets = [0, 0, 0], sizes = [8, 8, 64], strides = [1, 1, 1]} : vector<8x10x64xf32> to vector<8x8x64xf32>
    %269 = vector.extract_strided_slice %267 {offsets = [0, 1, 0], sizes = [8, 8, 64], strides = [1, 1, 1]} : vector<8x10x64xf32> to vector<8x8x64xf32>
    %270 = vector.extract_strided_slice %267 {offsets = [0, 2, 0], sizes = [8, 8, 64], strides = [1, 1, 1]} : vector<8x10x64xf32> to vector<8x8x64xf32>
    %271 = tpu.concatenate %268, %269, %270 in 2 : vector<8x8x64xf32>, vector<8x8x64xf32>, vector<8x8x64xf32> -> vector<8x8x192xf32>
    %272 = vector.shape_cast %271 : vector<8x8x192xf32> to vector<64x192xf32>
    %c6_177 = arith.constant 6 : index
    %c1_178 = arith.constant 1 : index
    %c0_179 = arith.constant 0 : index
    %c0_180 = arith.constant 0 : index
    %273 = vector.load %arg2[%c6_177, %c1_178, %c0_179, %c0_180] : memref<15x3x192x64xf32, #tpu.memory_space<vmem>>, vector<1x1x192x64xf32>
    %274 = vector.shape_cast %273 : vector<1x1x192x64xf32> to vector<192x64xf32>
    %cst_181 = arith.constant dense<0.000000e+00> : vector<64x64xf32>
    %275 = tpu.matmul %272, %274, %cst_181 {dimension_numbers = #tpu.dot_dimension_numbers<[1], [0], [0], [1], [0, 0, 1, 1], [], []>} : vector<64x192xf32>, vector<192x64xf32>, vector<64x64xf32> -> vector<64x64xf32>
    %276 = arith.addf %266, %275 : vector<64x64xf32>
    %277 = vector.extract_strided_slice %257 {offsets = [2, 0, 0], sizes = [8, 10, 64], strides = [1, 1, 1]} : vector<10x10x64xf32> to vector<8x10x64xf32>
    %278 = vector.extract_strided_slice %277 {offsets = [0, 0, 0], sizes = [8, 8, 64], strides = [1, 1, 1]} : vector<8x10x64xf32> to vector<8x8x64xf32>
    %279 = vector.extract_strided_slice %277 {offsets = [0, 1, 0], sizes = [8, 8, 64], strides = [1, 1, 1]} : vector<8x10x64xf32> to vector<8x8x64xf32>
    %280 = vector.extract_strided_slice %277 {offsets = [0, 2, 0], sizes = [8, 8, 64], strides = [1, 1, 1]} : vector<8x10x64xf32> to vector<8x8x64xf32>
    %281 = tpu.concatenate %278, %279, %280 in 2 : vector<8x8x64xf32>, vector<8x8x64xf32>, vector<8x8x64xf32> -> vector<8x8x192xf32>
    %282 = vector.shape_cast %281 : vector<8x8x192xf32> to vector<64x192xf32>
    %c6_182 = arith.constant 6 : index
    %c2_183 = arith.constant 2 : index
    %c0_184 = arith.constant 0 : index
    %c0_185 = arith.constant 0 : index
    %283 = vector.load %arg2[%c6_182, %c2_183, %c0_184, %c0_185] : memref<15x3x192x64xf32, #tpu.memory_space<vmem>>, vector<1x1x192x64xf32>
    %284 = vector.shape_cast %283 : vector<1x1x192x64xf32> to vector<192x64xf32>
    %cst_186 = arith.constant dense<0.000000e+00> : vector<64x64xf32>
    %285 = tpu.matmul %282, %284, %cst_186 {dimension_numbers = #tpu.dot_dimension_numbers<[1], [0], [0], [1], [0, 0, 1, 1], [], []>} : vector<64x192xf32>, vector<192x64xf32>, vector<64x64xf32> -> vector<64x64xf32>
    %286 = arith.addf %276, %285 : vector<64x64xf32>
    %c6_187 = arith.constant 6 : index
    %c0_188 = arith.constant 0 : index
    %c0_189 = arith.constant 0 : index
    %287 = vector.load %arg3[%c6_187, %c0_188, %c0_189] : memref<15x1x64xf32, #tpu.memory_space<vmem>>, vector<1x1x64xf32>
    %288 = vector.shape_cast %287 : vector<1x1x64xf32> to vector<1x64xf32>
    %289 = vector.broadcast %288 : vector<1x64xf32> to vector<64x64xf32>
    %290 = arith.mulf %286, %289 : vector<64x64xf32>
    %c6_190 = arith.constant 6 : index
    %c0_191 = arith.constant 0 : index
    %c0_192 = arith.constant 0 : index
    %291 = vector.load %arg4[%c6_190, %c0_191, %c0_192] : memref<15x1x64xf32, #tpu.memory_space<vmem>>, vector<1x1x64xf32>
    %292 = vector.shape_cast %291 : vector<1x1x64xf32> to vector<1x64xf32>
    %293 = vector.broadcast %292 : vector<1x64xf32> to vector<64x64xf32>
    %294 = arith.addf %290, %293 : vector<64x64xf32>
    %cst_193 = arith.constant 0.000000e+00 : f32
    %295 = vector.broadcast %cst_193 : f32 to vector<64x64xf32>
    %296 = arith.maximumf %294, %295 : vector<64x64xf32>
    %297 = vector.shape_cast %296 : vector<64x64xf32> to vector<8x8x64xf32>
    %c1_194 = arith.constant 1 : index
    %c1_195 = arith.constant 1 : index
    %c0_196 = arith.constant 0 : index
    %298 = vector.load %arg6[%c1_194, %c1_195, %c0_196] : memref<10x10x64xf32, #tpu.memory_space<vmem>>, vector<8x8x64xf32>
    tpu.vector_store %arg6[%c1_194, %c1_195, %c0_196], %297 {strides = array<i32>} : memref<10x10x64xf32, #tpu.memory_space<vmem>>, vector<8x8x64xf32>,
    %c0_197 = arith.constant 0 : index
    %c0_198 = arith.constant 0 : index
    %c0_199 = arith.constant 0 : index
    %299 = vector.load %arg6[%c0_197, %c0_198, %c0_199] : memref<10x10x64xf32, #tpu.memory_space<vmem>>, vector<10x10x64xf32>
    %300 = vector.extract_strided_slice %299 {offsets = [0, 0, 0], sizes = [8, 10, 64], strides = [1, 1, 1]} : vector<10x10x64xf32> to vector<8x10x64xf32>
    %301 = vector.extract_strided_slice %300 {offsets = [0, 0, 0], sizes = [8, 8, 64], strides = [1, 1, 1]} : vector<8x10x64xf32> to vector<8x8x64xf32>
    %302 = vector.extract_strided_slice %300 {offsets = [0, 1, 0], sizes = [8, 8, 64], strides = [1, 1, 1]} : vector<8x10x64xf32> to vector<8x8x64xf32>
    %303 = vector.extract_strided_slice %300 {offsets = [0, 2, 0], sizes = [8, 8, 64], strides = [1, 1, 1]} : vector<8x10x64xf32> to vector<8x8x64xf32>
    %304 = tpu.concatenate %301, %302, %303 in 2 : vector<8x8x64xf32>, vector<8x8x64xf32>, vector<8x8x64xf32> -> vector<8x8x192xf32>
    %305 = vector.shape_cast %304 : vector<8x8x192xf32> to vector<64x192xf32>
    %c7 = arith.constant 7 : index
    %c0_200 = arith.constant 0 : index
    %c0_201 = arith.constant 0 : index
    %c0_202 = arith.constant 0 : index
    %306 = vector.load %arg2[%c7, %c0_200, %c0_201, %c0_202] : memref<15x3x192x64xf32, #tpu.memory_space<vmem>>, vector<1x1x192x64xf32>
    %307 = vector.shape_cast %306 : vector<1x1x192x64xf32> to vector<192x64xf32>
    %cst_203 = arith.constant dense<0.000000e+00> : vector<64x64xf32>
    %308 = tpu.matmul %305, %307, %cst_203 {dimension_numbers = #tpu.dot_dimension_numbers<[1], [0], [0], [1], [0, 0, 1, 1], [], []>} : vector<64x192xf32>, vector<192x64xf32>, vector<64x64xf32> -> vector<64x64xf32>
    %309 = vector.extract_strided_slice %299 {offsets = [1, 0, 0], sizes = [8, 10, 64], strides = [1, 1, 1]} : vector<10x10x64xf32> to vector<8x10x64xf32>
    %310 = vector.extract_strided_slice %309 {offsets = [0, 0, 0], sizes = [8, 8, 64], strides = [1, 1, 1]} : vector<8x10x64xf32> to vector<8x8x64xf32>
    %311 = vector.extract_strided_slice %309 {offsets = [0, 1, 0], sizes = [8, 8, 64], strides = [1, 1, 1]} : vector<8x10x64xf32> to vector<8x8x64xf32>
    %312 = vector.extract_strided_slice %309 {offsets = [0, 2, 0], sizes = [8, 8, 64], strides = [1, 1, 1]} : vector<8x10x64xf32> to vector<8x8x64xf32>
    %313 = tpu.concatenate %310, %311, %312 in 2 : vector<8x8x64xf32>, vector<8x8x64xf32>, vector<8x8x64xf32> -> vector<8x8x192xf32>
    %314 = vector.shape_cast %313 : vector<8x8x192xf32> to vector<64x192xf32>
    %c7_204 = arith.constant 7 : index
    %c1_205 = arith.constant 1 : index
    %c0_206 = arith.constant 0 : index
    %c0_207 = arith.constant 0 : index
    %315 = vector.load %arg2[%c7_204, %c1_205, %c0_206, %c0_207] : memref<15x3x192x64xf32, #tpu.memory_space<vmem>>, vector<1x1x192x64xf32>
    %316 = vector.shape_cast %315 : vector<1x1x192x64xf32> to vector<192x64xf32>
    %cst_208 = arith.constant dense<0.000000e+00> : vector<64x64xf32>
    %317 = tpu.matmul %314, %316, %cst_208 {dimension_numbers = #tpu.dot_dimension_numbers<[1], [0], [0], [1], [0, 0, 1, 1], [], []>} : vector<64x192xf32>, vector<192x64xf32>, vector<64x64xf32> -> vector<64x64xf32>
    %318 = arith.addf %308, %317 : vector<64x64xf32>
    %319 = vector.extract_strided_slice %299 {offsets = [2, 0, 0], sizes = [8, 10, 64], strides = [1, 1, 1]} : vector<10x10x64xf32> to vector<8x10x64xf32>
    %320 = vector.extract_strided_slice %319 {offsets = [0, 0, 0], sizes = [8, 8, 64], strides = [1, 1, 1]} : vector<8x10x64xf32> to vector<8x8x64xf32>
    %321 = vector.extract_strided_slice %319 {offsets = [0, 1, 0], sizes = [8, 8, 64], strides = [1, 1, 1]} : vector<8x10x64xf32> to vector<8x8x64xf32>
    %322 = vector.extract_strided_slice %319 {offsets = [0, 2, 0], sizes = [8, 8, 64], strides = [1, 1, 1]} : vector<8x10x64xf32> to vector<8x8x64xf32>
    %323 = tpu.concatenate %320, %321, %322 in 2 : vector<8x8x64xf32>, vector<8x8x64xf32>, vector<8x8x64xf32> -> vector<8x8x192xf32>
    %324 = vector.shape_cast %323 : vector<8x8x192xf32> to vector<64x192xf32>
    %c7_209 = arith.constant 7 : index
    %c2_210 = arith.constant 2 : index
    %c0_211 = arith.constant 0 : index
    %c0_212 = arith.constant 0 : index
    %325 = vector.load %arg2[%c7_209, %c2_210, %c0_211, %c0_212] : memref<15x3x192x64xf32, #tpu.memory_space<vmem>>, vector<1x1x192x64xf32>
    %326 = vector.shape_cast %325 : vector<1x1x192x64xf32> to vector<192x64xf32>
    %cst_213 = arith.constant dense<0.000000e+00> : vector<64x64xf32>
    %327 = tpu.matmul %324, %326, %cst_213 {dimension_numbers = #tpu.dot_dimension_numbers<[1], [0], [0], [1], [0, 0, 1, 1], [], []>} : vector<64x192xf32>, vector<192x64xf32>, vector<64x64xf32> -> vector<64x64xf32>
    %328 = arith.addf %318, %327 : vector<64x64xf32>
    %c7_214 = arith.constant 7 : index
    %c0_215 = arith.constant 0 : index
    %c0_216 = arith.constant 0 : index
    %329 = vector.load %arg3[%c7_214, %c0_215, %c0_216] : memref<15x1x64xf32, #tpu.memory_space<vmem>>, vector<1x1x64xf32>
    %330 = vector.shape_cast %329 : vector<1x1x64xf32> to vector<1x64xf32>
    %331 = vector.broadcast %330 : vector<1x64xf32> to vector<64x64xf32>
    %332 = arith.mulf %328, %331 : vector<64x64xf32>
    %c7_217 = arith.constant 7 : index
    %c0_218 = arith.constant 0 : index
    %c0_219 = arith.constant 0 : index
    %333 = vector.load %arg4[%c7_217, %c0_218, %c0_219] : memref<15x1x64xf32, #tpu.memory_space<vmem>>, vector<1x1x64xf32>
    %334 = vector.shape_cast %333 : vector<1x1x64xf32> to vector<1x64xf32>
    %335 = vector.broadcast %334 : vector<1x64xf32> to vector<64x64xf32>
    %336 = arith.addf %332, %335 : vector<64x64xf32>
    %cst_220 = arith.constant 0.000000e+00 : f32
    %337 = vector.broadcast %cst_220 : f32 to vector<64x64xf32>
    %338 = arith.maximumf %336, %337 : vector<64x64xf32>
    %339 = vector.shape_cast %338 : vector<64x64xf32> to vector<8x8x64xf32>
    %c1_221 = arith.constant 1 : index
    %c1_222 = arith.constant 1 : index
    %c0_223 = arith.constant 0 : index
    %340 = vector.load %arg7[%c1_221, %c1_222, %c0_223] : memref<10x10x64xf32, #tpu.memory_space<vmem>>, vector<8x8x64xf32>
    tpu.vector_store %arg7[%c1_221, %c1_222, %c0_223], %339 {strides = array<i32>} : memref<10x10x64xf32, #tpu.memory_space<vmem>>, vector<8x8x64xf32>,
    %c0_224 = arith.constant 0 : index
    %c0_225 = arith.constant 0 : index
    %c0_226 = arith.constant 0 : index
    %341 = vector.load %arg7[%c0_224, %c0_225, %c0_226] : memref<10x10x64xf32, #tpu.memory_space<vmem>>, vector<10x10x64xf32>
    %342 = vector.extract_strided_slice %341 {offsets = [0, 0, 0], sizes = [8, 10, 64], strides = [1, 1, 1]} : vector<10x10x64xf32> to vector<8x10x64xf32>
    %343 = vector.extract_strided_slice %342 {offsets = [0, 0, 0], sizes = [8, 8, 64], strides = [1, 1, 1]} : vector<8x10x64xf32> to vector<8x8x64xf32>
    %344 = vector.extract_strided_slice %342 {offsets = [0, 1, 0], sizes = [8, 8, 64], strides = [1, 1, 1]} : vector<8x10x64xf32> to vector<8x8x64xf32>
    %345 = vector.extract_strided_slice %342 {offsets = [0, 2, 0], sizes = [8, 8, 64], strides = [1, 1, 1]} : vector<8x10x64xf32> to vector<8x8x64xf32>
    %346 = tpu.concatenate %343, %344, %345 in 2 : vector<8x8x64xf32>, vector<8x8x64xf32>, vector<8x8x64xf32> -> vector<8x8x192xf32>
    %347 = vector.shape_cast %346 : vector<8x8x192xf32> to vector<64x192xf32>
    %c8 = arith.constant 8 : index
    %c0_227 = arith.constant 0 : index
    %c0_228 = arith.constant 0 : index
    %c0_229 = arith.constant 0 : index
    %348 = vector.load %arg2[%c8, %c0_227, %c0_228, %c0_229] : memref<15x3x192x64xf32, #tpu.memory_space<vmem>>, vector<1x1x192x64xf32>
    %349 = vector.shape_cast %348 : vector<1x1x192x64xf32> to vector<192x64xf32>
    %cst_230 = arith.constant dense<0.000000e+00> : vector<64x64xf32>
    %350 = tpu.matmul %347, %349, %cst_230 {dimension_numbers = #tpu.dot_dimension_numbers<[1], [0], [0], [1], [0, 0, 1, 1], [], []>} : vector<64x192xf32>, vector<192x64xf32>, vector<64x64xf32> -> vector<64x64xf32>
    %351 = vector.extract_strided_slice %341 {offsets = [1, 0, 0], sizes = [8, 10, 64], strides = [1, 1, 1]} : vector<10x10x64xf32> to vector<8x10x64xf32>
    %352 = vector.extract_strided_slice %351 {offsets = [0, 0, 0], sizes = [8, 8, 64], strides = [1, 1, 1]} : vector<8x10x64xf32> to vector<8x8x64xf32>
    %353 = vector.extract_strided_slice %351 {offsets = [0, 1, 0], sizes = [8, 8, 64], strides = [1, 1, 1]} : vector<8x10x64xf32> to vector<8x8x64xf32>
    %354 = vector.extract_strided_slice %351 {offsets = [0, 2, 0], sizes = [8, 8, 64], strides = [1, 1, 1]} : vector<8x10x64xf32> to vector<8x8x64xf32>
    %355 = tpu.concatenate %352, %353, %354 in 2 : vector<8x8x64xf32>, vector<8x8x64xf32>, vector<8x8x64xf32> -> vector<8x8x192xf32>
    %356 = vector.shape_cast %355 : vector<8x8x192xf32> to vector<64x192xf32>
    %c8_231 = arith.constant 8 : index
    %c1_232 = arith.constant 1 : index
    %c0_233 = arith.constant 0 : index
    %c0_234 = arith.constant 0 : index
    %357 = vector.load %arg2[%c8_231, %c1_232, %c0_233, %c0_234] : memref<15x3x192x64xf32, #tpu.memory_space<vmem>>, vector<1x1x192x64xf32>
    %358 = vector.shape_cast %357 : vector<1x1x192x64xf32> to vector<192x64xf32>
    %cst_235 = arith.constant dense<0.000000e+00> : vector<64x64xf32>
    %359 = tpu.matmul %356, %358, %cst_235 {dimension_numbers = #tpu.dot_dimension_numbers<[1], [0], [0], [1], [0, 0, 1, 1], [], []>} : vector<64x192xf32>, vector<192x64xf32>, vector<64x64xf32> -> vector<64x64xf32>
    %360 = arith.addf %350, %359 : vector<64x64xf32>
    %361 = vector.extract_strided_slice %341 {offsets = [2, 0, 0], sizes = [8, 10, 64], strides = [1, 1, 1]} : vector<10x10x64xf32> to vector<8x10x64xf32>
    %362 = vector.extract_strided_slice %361 {offsets = [0, 0, 0], sizes = [8, 8, 64], strides = [1, 1, 1]} : vector<8x10x64xf32> to vector<8x8x64xf32>
    %363 = vector.extract_strided_slice %361 {offsets = [0, 1, 0], sizes = [8, 8, 64], strides = [1, 1, 1]} : vector<8x10x64xf32> to vector<8x8x64xf32>
    %364 = vector.extract_strided_slice %361 {offsets = [0, 2, 0], sizes = [8, 8, 64], strides = [1, 1, 1]} : vector<8x10x64xf32> to vector<8x8x64xf32>
    %365 = tpu.concatenate %362, %363, %364 in 2 : vector<8x8x64xf32>, vector<8x8x64xf32>, vector<8x8x64xf32> -> vector<8x8x192xf32>
    %366 = vector.shape_cast %365 : vector<8x8x192xf32> to vector<64x192xf32>
    %c8_236 = arith.constant 8 : index
    %c2_237 = arith.constant 2 : index
    %c0_238 = arith.constant 0 : index
    %c0_239 = arith.constant 0 : index
    %367 = vector.load %arg2[%c8_236, %c2_237, %c0_238, %c0_239] : memref<15x3x192x64xf32, #tpu.memory_space<vmem>>, vector<1x1x192x64xf32>
    %368 = vector.shape_cast %367 : vector<1x1x192x64xf32> to vector<192x64xf32>
    %cst_240 = arith.constant dense<0.000000e+00> : vector<64x64xf32>
    %369 = tpu.matmul %366, %368, %cst_240 {dimension_numbers = #tpu.dot_dimension_numbers<[1], [0], [0], [1], [0, 0, 1, 1], [], []>} : vector<64x192xf32>, vector<192x64xf32>, vector<64x64xf32> -> vector<64x64xf32>
    %370 = arith.addf %360, %369 : vector<64x64xf32>
    %c8_241 = arith.constant 8 : index
    %c0_242 = arith.constant 0 : index
    %c0_243 = arith.constant 0 : index
    %371 = vector.load %arg3[%c8_241, %c0_242, %c0_243] : memref<15x1x64xf32, #tpu.memory_space<vmem>>, vector<1x1x64xf32>
    %372 = vector.shape_cast %371 : vector<1x1x64xf32> to vector<1x64xf32>
    %373 = vector.broadcast %372 : vector<1x64xf32> to vector<64x64xf32>
    %374 = arith.mulf %370, %373 : vector<64x64xf32>
    %c8_244 = arith.constant 8 : index
    %c0_245 = arith.constant 0 : index
    %c0_246 = arith.constant 0 : index
    %375 = vector.load %arg4[%c8_244, %c0_245, %c0_246] : memref<15x1x64xf32, #tpu.memory_space<vmem>>, vector<1x1x64xf32>
    %376 = vector.shape_cast %375 : vector<1x1x64xf32> to vector<1x64xf32>
    %377 = vector.broadcast %376 : vector<1x64xf32> to vector<64x64xf32>
    %378 = arith.addf %374, %377 : vector<64x64xf32>
    %cst_247 = arith.constant 0.000000e+00 : f32
    %379 = vector.broadcast %cst_247 : f32 to vector<64x64xf32>
    %380 = arith.maximumf %378, %379 : vector<64x64xf32>
    %381 = vector.shape_cast %380 : vector<64x64xf32> to vector<8x8x64xf32>
    %c1_248 = arith.constant 1 : index
    %c1_249 = arith.constant 1 : index
    %c0_250 = arith.constant 0 : index
    %382 = vector.load %arg6[%c1_248, %c1_249, %c0_250] : memref<10x10x64xf32, #tpu.memory_space<vmem>>, vector<8x8x64xf32>
    tpu.vector_store %arg6[%c1_248, %c1_249, %c0_250], %381 {strides = array<i32>} : memref<10x10x64xf32, #tpu.memory_space<vmem>>, vector<8x8x64xf32>,
    %c0_251 = arith.constant 0 : index
    %c0_252 = arith.constant 0 : index
    %c0_253 = arith.constant 0 : index
    %383 = vector.load %arg6[%c0_251, %c0_252, %c0_253] : memref<10x10x64xf32, #tpu.memory_space<vmem>>, vector<10x10x64xf32>
    %384 = vector.extract_strided_slice %383 {offsets = [0, 0, 0], sizes = [8, 10, 64], strides = [1, 1, 1]} : vector<10x10x64xf32> to vector<8x10x64xf32>
    %385 = vector.extract_strided_slice %384 {offsets = [0, 0, 0], sizes = [8, 8, 64], strides = [1, 1, 1]} : vector<8x10x64xf32> to vector<8x8x64xf32>
    %386 = vector.extract_strided_slice %384 {offsets = [0, 1, 0], sizes = [8, 8, 64], strides = [1, 1, 1]} : vector<8x10x64xf32> to vector<8x8x64xf32>
    %387 = vector.extract_strided_slice %384 {offsets = [0, 2, 0], sizes = [8, 8, 64], strides = [1, 1, 1]} : vector<8x10x64xf32> to vector<8x8x64xf32>
    %388 = tpu.concatenate %385, %386, %387 in 2 : vector<8x8x64xf32>, vector<8x8x64xf32>, vector<8x8x64xf32> -> vector<8x8x192xf32>
    %389 = vector.shape_cast %388 : vector<8x8x192xf32> to vector<64x192xf32>
    %c9 = arith.constant 9 : index
    %c0_254 = arith.constant 0 : index
    %c0_255 = arith.constant 0 : index
    %c0_256 = arith.constant 0 : index
    %390 = vector.load %arg2[%c9, %c0_254, %c0_255, %c0_256] : memref<15x3x192x64xf32, #tpu.memory_space<vmem>>, vector<1x1x192x64xf32>
    %391 = vector.shape_cast %390 : vector<1x1x192x64xf32> to vector<192x64xf32>
    %cst_257 = arith.constant dense<0.000000e+00> : vector<64x64xf32>
    %392 = tpu.matmul %389, %391, %cst_257 {dimension_numbers = #tpu.dot_dimension_numbers<[1], [0], [0], [1], [0, 0, 1, 1], [], []>} : vector<64x192xf32>, vector<192x64xf32>, vector<64x64xf32> -> vector<64x64xf32>
    %393 = vector.extract_strided_slice %383 {offsets = [1, 0, 0], sizes = [8, 10, 64], strides = [1, 1, 1]} : vector<10x10x64xf32> to vector<8x10x64xf32>
    %394 = vector.extract_strided_slice %393 {offsets = [0, 0, 0], sizes = [8, 8, 64], strides = [1, 1, 1]} : vector<8x10x64xf32> to vector<8x8x64xf32>
    %395 = vector.extract_strided_slice %393 {offsets = [0, 1, 0], sizes = [8, 8, 64], strides = [1, 1, 1]} : vector<8x10x64xf32> to vector<8x8x64xf32>
    %396 = vector.extract_strided_slice %393 {offsets = [0, 2, 0], sizes = [8, 8, 64], strides = [1, 1, 1]} : vector<8x10x64xf32> to vector<8x8x64xf32>
    %397 = tpu.concatenate %394, %395, %396 in 2 : vector<8x8x64xf32>, vector<8x8x64xf32>, vector<8x8x64xf32> -> vector<8x8x192xf32>
    %398 = vector.shape_cast %397 : vector<8x8x192xf32> to vector<64x192xf32>
    %c9_258 = arith.constant 9 : index
    %c1_259 = arith.constant 1 : index
    %c0_260 = arith.constant 0 : index
    %c0_261 = arith.constant 0 : index
    %399 = vector.load %arg2[%c9_258, %c1_259, %c0_260, %c0_261] : memref<15x3x192x64xf32, #tpu.memory_space<vmem>>, vector<1x1x192x64xf32>
    %400 = vector.shape_cast %399 : vector<1x1x192x64xf32> to vector<192x64xf32>
    %cst_262 = arith.constant dense<0.000000e+00> : vector<64x64xf32>
    %401 = tpu.matmul %398, %400, %cst_262 {dimension_numbers = #tpu.dot_dimension_numbers<[1], [0], [0], [1], [0, 0, 1, 1], [], []>} : vector<64x192xf32>, vector<192x64xf32>, vector<64x64xf32> -> vector<64x64xf32>
    %402 = arith.addf %392, %401 : vector<64x64xf32>
    %403 = vector.extract_strided_slice %383 {offsets = [2, 0, 0], sizes = [8, 10, 64], strides = [1, 1, 1]} : vector<10x10x64xf32> to vector<8x10x64xf32>
    %404 = vector.extract_strided_slice %403 {offsets = [0, 0, 0], sizes = [8, 8, 64], strides = [1, 1, 1]} : vector<8x10x64xf32> to vector<8x8x64xf32>
    %405 = vector.extract_strided_slice %403 {offsets = [0, 1, 0], sizes = [8, 8, 64], strides = [1, 1, 1]} : vector<8x10x64xf32> to vector<8x8x64xf32>
    %406 = vector.extract_strided_slice %403 {offsets = [0, 2, 0], sizes = [8, 8, 64], strides = [1, 1, 1]} : vector<8x10x64xf32> to vector<8x8x64xf32>
    %407 = tpu.concatenate %404, %405, %406 in 2 : vector<8x8x64xf32>, vector<8x8x64xf32>, vector<8x8x64xf32> -> vector<8x8x192xf32>
    %408 = vector.shape_cast %407 : vector<8x8x192xf32> to vector<64x192xf32>
    %c9_263 = arith.constant 9 : index
    %c2_264 = arith.constant 2 : index
    %c0_265 = arith.constant 0 : index
    %c0_266 = arith.constant 0 : index
    %409 = vector.load %arg2[%c9_263, %c2_264, %c0_265, %c0_266] : memref<15x3x192x64xf32, #tpu.memory_space<vmem>>, vector<1x1x192x64xf32>
    %410 = vector.shape_cast %409 : vector<1x1x192x64xf32> to vector<192x64xf32>
    %cst_267 = arith.constant dense<0.000000e+00> : vector<64x64xf32>
    %411 = tpu.matmul %408, %410, %cst_267 {dimension_numbers = #tpu.dot_dimension_numbers<[1], [0], [0], [1], [0, 0, 1, 1], [], []>} : vector<64x192xf32>, vector<192x64xf32>, vector<64x64xf32> -> vector<64x64xf32>
    %412 = arith.addf %402, %411 : vector<64x64xf32>
    %c9_268 = arith.constant 9 : index
    %c0_269 = arith.constant 0 : index
    %c0_270 = arith.constant 0 : index
    %413 = vector.load %arg3[%c9_268, %c0_269, %c0_270] : memref<15x1x64xf32, #tpu.memory_space<vmem>>, vector<1x1x64xf32>
    %414 = vector.shape_cast %413 : vector<1x1x64xf32> to vector<1x64xf32>
    %415 = vector.broadcast %414 : vector<1x64xf32> to vector<64x64xf32>
    %416 = arith.mulf %412, %415 : vector<64x64xf32>
    %c9_271 = arith.constant 9 : index
    %c0_272 = arith.constant 0 : index
    %c0_273 = arith.constant 0 : index
    %417 = vector.load %arg4[%c9_271, %c0_272, %c0_273] : memref<15x1x64xf32, #tpu.memory_space<vmem>>, vector<1x1x64xf32>
    %418 = vector.shape_cast %417 : vector<1x1x64xf32> to vector<1x64xf32>
    %419 = vector.broadcast %418 : vector<1x64xf32> to vector<64x64xf32>
    %420 = arith.addf %416, %419 : vector<64x64xf32>
    %cst_274 = arith.constant 0.000000e+00 : f32
    %421 = vector.broadcast %cst_274 : f32 to vector<64x64xf32>
    %422 = arith.maximumf %420, %421 : vector<64x64xf32>
    %423 = vector.shape_cast %422 : vector<64x64xf32> to vector<8x8x64xf32>
    %c1_275 = arith.constant 1 : index
    %c1_276 = arith.constant 1 : index
    %c0_277 = arith.constant 0 : index
    %424 = vector.load %arg7[%c1_275, %c1_276, %c0_277] : memref<10x10x64xf32, #tpu.memory_space<vmem>>, vector<8x8x64xf32>
    tpu.vector_store %arg7[%c1_275, %c1_276, %c0_277], %423 {strides = array<i32>} : memref<10x10x64xf32, #tpu.memory_space<vmem>>, vector<8x8x64xf32>,
    %c0_278 = arith.constant 0 : index
    %c0_279 = arith.constant 0 : index
    %c0_280 = arith.constant 0 : index
    %425 = vector.load %arg7[%c0_278, %c0_279, %c0_280] : memref<10x10x64xf32, #tpu.memory_space<vmem>>, vector<10x10x64xf32>
    %426 = vector.extract_strided_slice %425 {offsets = [0, 0, 0], sizes = [8, 10, 64], strides = [1, 1, 1]} : vector<10x10x64xf32> to vector<8x10x64xf32>
    %427 = vector.extract_strided_slice %426 {offsets = [0, 0, 0], sizes = [8, 8, 64], strides = [1, 1, 1]} : vector<8x10x64xf32> to vector<8x8x64xf32>
    %428 = vector.extract_strided_slice %426 {offsets = [0, 1, 0], sizes = [8, 8, 64], strides = [1, 1, 1]} : vector<8x10x64xf32> to vector<8x8x64xf32>
    %429 = vector.extract_strided_slice %426 {offsets = [0, 2, 0], sizes = [8, 8, 64], strides = [1, 1, 1]} : vector<8x10x64xf32> to vector<8x8x64xf32>
    %430 = tpu.concatenate %427, %428, %429 in 2 : vector<8x8x64xf32>, vector<8x8x64xf32>, vector<8x8x64xf32> -> vector<8x8x192xf32>
    %431 = vector.shape_cast %430 : vector<8x8x192xf32> to vector<64x192xf32>
    %c10 = arith.constant 10 : index
    %c0_281 = arith.constant 0 : index
    %c0_282 = arith.constant 0 : index
    %c0_283 = arith.constant 0 : index
    %432 = vector.load %arg2[%c10, %c0_281, %c0_282, %c0_283] : memref<15x3x192x64xf32, #tpu.memory_space<vmem>>, vector<1x1x192x64xf32>
    %433 = vector.shape_cast %432 : vector<1x1x192x64xf32> to vector<192x64xf32>
    %cst_284 = arith.constant dense<0.000000e+00> : vector<64x64xf32>
    %434 = tpu.matmul %431, %433, %cst_284 {dimension_numbers = #tpu.dot_dimension_numbers<[1], [0], [0], [1], [0, 0, 1, 1], [], []>} : vector<64x192xf32>, vector<192x64xf32>, vector<64x64xf32> -> vector<64x64xf32>
    %435 = vector.extract_strided_slice %425 {offsets = [1, 0, 0], sizes = [8, 10, 64], strides = [1, 1, 1]} : vector<10x10x64xf32> to vector<8x10x64xf32>
    %436 = vector.extract_strided_slice %435 {offsets = [0, 0, 0], sizes = [8, 8, 64], strides = [1, 1, 1]} : vector<8x10x64xf32> to vector<8x8x64xf32>
    %437 = vector.extract_strided_slice %435 {offsets = [0, 1, 0], sizes = [8, 8, 64], strides = [1, 1, 1]} : vector<8x10x64xf32> to vector<8x8x64xf32>
    %438 = vector.extract_strided_slice %435 {offsets = [0, 2, 0], sizes = [8, 8, 64], strides = [1, 1, 1]} : vector<8x10x64xf32> to vector<8x8x64xf32>
    %439 = tpu.concatenate %436, %437, %438 in 2 : vector<8x8x64xf32>, vector<8x8x64xf32>, vector<8x8x64xf32> -> vector<8x8x192xf32>
    %440 = vector.shape_cast %439 : vector<8x8x192xf32> to vector<64x192xf32>
    %c10_285 = arith.constant 10 : index
    %c1_286 = arith.constant 1 : index
    %c0_287 = arith.constant 0 : index
    %c0_288 = arith.constant 0 : index
    %441 = vector.load %arg2[%c10_285, %c1_286, %c0_287, %c0_288] : memref<15x3x192x64xf32, #tpu.memory_space<vmem>>, vector<1x1x192x64xf32>
    %442 = vector.shape_cast %441 : vector<1x1x192x64xf32> to vector<192x64xf32>
    %cst_289 = arith.constant dense<0.000000e+00> : vector<64x64xf32>
    %443 = tpu.matmul %440, %442, %cst_289 {dimension_numbers = #tpu.dot_dimension_numbers<[1], [0], [0], [1], [0, 0, 1, 1], [], []>} : vector<64x192xf32>, vector<192x64xf32>, vector<64x64xf32> -> vector<64x64xf32>
    %444 = arith.addf %434, %443 : vector<64x64xf32>
    %445 = vector.extract_strided_slice %425 {offsets = [2, 0, 0], sizes = [8, 10, 64], strides = [1, 1, 1]} : vector<10x10x64xf32> to vector<8x10x64xf32>
    %446 = vector.extract_strided_slice %445 {offsets = [0, 0, 0], sizes = [8, 8, 64], strides = [1, 1, 1]} : vector<8x10x64xf32> to vector<8x8x64xf32>
    %447 = vector.extract_strided_slice %445 {offsets = [0, 1, 0], sizes = [8, 8, 64], strides = [1, 1, 1]} : vector<8x10x64xf32> to vector<8x8x64xf32>
    %448 = vector.extract_strided_slice %445 {offsets = [0, 2, 0], sizes = [8, 8, 64], strides = [1, 1, 1]} : vector<8x10x64xf32> to vector<8x8x64xf32>
    %449 = tpu.concatenate %446, %447, %448 in 2 : vector<8x8x64xf32>, vector<8x8x64xf32>, vector<8x8x64xf32> -> vector<8x8x192xf32>
    %450 = vector.shape_cast %449 : vector<8x8x192xf32> to vector<64x192xf32>
    %c10_290 = arith.constant 10 : index
    %c2_291 = arith.constant 2 : index
    %c0_292 = arith.constant 0 : index
    %c0_293 = arith.constant 0 : index
    %451 = vector.load %arg2[%c10_290, %c2_291, %c0_292, %c0_293] : memref<15x3x192x64xf32, #tpu.memory_space<vmem>>, vector<1x1x192x64xf32>
    %452 = vector.shape_cast %451 : vector<1x1x192x64xf32> to vector<192x64xf32>
    %cst_294 = arith.constant dense<0.000000e+00> : vector<64x64xf32>
    %453 = tpu.matmul %450, %452, %cst_294 {dimension_numbers = #tpu.dot_dimension_numbers<[1], [0], [0], [1], [0, 0, 1, 1], [], []>} : vector<64x192xf32>, vector<192x64xf32>, vector<64x64xf32> -> vector<64x64xf32>
    %454 = arith.addf %444, %453 : vector<64x64xf32>
    %c10_295 = arith.constant 10 : index
    %c0_296 = arith.constant 0 : index
    %c0_297 = arith.constant 0 : index
    %455 = vector.load %arg3[%c10_295, %c0_296, %c0_297] : memref<15x1x64xf32, #tpu.memory_space<vmem>>, vector<1x1x64xf32>
    %456 = vector.shape_cast %455 : vector<1x1x64xf32> to vector<1x64xf32>
    %457 = vector.broadcast %456 : vector<1x64xf32> to vector<64x64xf32>
    %458 = arith.mulf %454, %457 : vector<64x64xf32>
    %c10_298 = arith.constant 10 : index
    %c0_299 = arith.constant 0 : index
    %c0_300 = arith.constant 0 : index
    %459 = vector.load %arg4[%c10_298, %c0_299, %c0_300] : memref<15x1x64xf32, #tpu.memory_space<vmem>>, vector<1x1x64xf32>
    %460 = vector.shape_cast %459 : vector<1x1x64xf32> to vector<1x64xf32>
    %461 = vector.broadcast %460 : vector<1x64xf32> to vector<64x64xf32>
    %462 = arith.addf %458, %461 : vector<64x64xf32>
    %cst_301 = arith.constant 0.000000e+00 : f32
    %463 = vector.broadcast %cst_301 : f32 to vector<64x64xf32>
    %464 = arith.maximumf %462, %463 : vector<64x64xf32>
    %465 = vector.shape_cast %464 : vector<64x64xf32> to vector<8x8x64xf32>
    %c1_302 = arith.constant 1 : index
    %c1_303 = arith.constant 1 : index
    %c0_304 = arith.constant 0 : index
    %466 = vector.load %arg6[%c1_302, %c1_303, %c0_304] : memref<10x10x64xf32, #tpu.memory_space<vmem>>, vector<8x8x64xf32>
    tpu.vector_store %arg6[%c1_302, %c1_303, %c0_304], %465 {strides = array<i32>} : memref<10x10x64xf32, #tpu.memory_space<vmem>>, vector<8x8x64xf32>,
    %c0_305 = arith.constant 0 : index
    %c0_306 = arith.constant 0 : index
    %c0_307 = arith.constant 0 : index
    %467 = vector.load %arg6[%c0_305, %c0_306, %c0_307] : memref<10x10x64xf32, #tpu.memory_space<vmem>>, vector<10x10x64xf32>
    %468 = vector.extract_strided_slice %467 {offsets = [0, 0, 0], sizes = [8, 10, 64], strides = [1, 1, 1]} : vector<10x10x64xf32> to vector<8x10x64xf32>
    %469 = vector.extract_strided_slice %468 {offsets = [0, 0, 0], sizes = [8, 8, 64], strides = [1, 1, 1]} : vector<8x10x64xf32> to vector<8x8x64xf32>
    %470 = vector.extract_strided_slice %468 {offsets = [0, 1, 0], sizes = [8, 8, 64], strides = [1, 1, 1]} : vector<8x10x64xf32> to vector<8x8x64xf32>
    %471 = vector.extract_strided_slice %468 {offsets = [0, 2, 0], sizes = [8, 8, 64], strides = [1, 1, 1]} : vector<8x10x64xf32> to vector<8x8x64xf32>
    %472 = tpu.concatenate %469, %470, %471 in 2 : vector<8x8x64xf32>, vector<8x8x64xf32>, vector<8x8x64xf32> -> vector<8x8x192xf32>
    %473 = vector.shape_cast %472 : vector<8x8x192xf32> to vector<64x192xf32>
    %c11 = arith.constant 11 : index
    %c0_308 = arith.constant 0 : index
    %c0_309 = arith.constant 0 : index
    %c0_310 = arith.constant 0 : index
    %474 = vector.load %arg2[%c11, %c0_308, %c0_309, %c0_310] : memref<15x3x192x64xf32, #tpu.memory_space<vmem>>, vector<1x1x192x64xf32>
    %475 = vector.shape_cast %474 : vector<1x1x192x64xf32> to vector<192x64xf32>
    %cst_311 = arith.constant dense<0.000000e+00> : vector<64x64xf32>
    %476 = tpu.matmul %473, %475, %cst_311 {dimension_numbers = #tpu.dot_dimension_numbers<[1], [0], [0], [1], [0, 0, 1, 1], [], []>} : vector<64x192xf32>, vector<192x64xf32>, vector<64x64xf32> -> vector<64x64xf32>
    %477 = vector.extract_strided_slice %467 {offsets = [1, 0, 0], sizes = [8, 10, 64], strides = [1, 1, 1]} : vector<10x10x64xf32> to vector<8x10x64xf32>
    %478 = vector.extract_strided_slice %477 {offsets = [0, 0, 0], sizes = [8, 8, 64], strides = [1, 1, 1]} : vector<8x10x64xf32> to vector<8x8x64xf32>
    %479 = vector.extract_strided_slice %477 {offsets = [0, 1, 0], sizes = [8, 8, 64], strides = [1, 1, 1]} : vector<8x10x64xf32> to vector<8x8x64xf32>
    %480 = vector.extract_strided_slice %477 {offsets = [0, 2, 0], sizes = [8, 8, 64], strides = [1, 1, 1]} : vector<8x10x64xf32> to vector<8x8x64xf32>
    %481 = tpu.concatenate %478, %479, %480 in 2 : vector<8x8x64xf32>, vector<8x8x64xf32>, vector<8x8x64xf32> -> vector<8x8x192xf32>
    %482 = vector.shape_cast %481 : vector<8x8x192xf32> to vector<64x192xf32>
    %c11_312 = arith.constant 11 : index
    %c1_313 = arith.constant 1 : index
    %c0_314 = arith.constant 0 : index
    %c0_315 = arith.constant 0 : index
    %483 = vector.load %arg2[%c11_312, %c1_313, %c0_314, %c0_315] : memref<15x3x192x64xf32, #tpu.memory_space<vmem>>, vector<1x1x192x64xf32>
    %484 = vector.shape_cast %483 : vector<1x1x192x64xf32> to vector<192x64xf32>
    %cst_316 = arith.constant dense<0.000000e+00> : vector<64x64xf32>
    %485 = tpu.matmul %482, %484, %cst_316 {dimension_numbers = #tpu.dot_dimension_numbers<[1], [0], [0], [1], [0, 0, 1, 1], [], []>} : vector<64x192xf32>, vector<192x64xf32>, vector<64x64xf32> -> vector<64x64xf32>
    %486 = arith.addf %476, %485 : vector<64x64xf32>
    %487 = vector.extract_strided_slice %467 {offsets = [2, 0, 0], sizes = [8, 10, 64], strides = [1, 1, 1]} : vector<10x10x64xf32> to vector<8x10x64xf32>
    %488 = vector.extract_strided_slice %487 {offsets = [0, 0, 0], sizes = [8, 8, 64], strides = [1, 1, 1]} : vector<8x10x64xf32> to vector<8x8x64xf32>
    %489 = vector.extract_strided_slice %487 {offsets = [0, 1, 0], sizes = [8, 8, 64], strides = [1, 1, 1]} : vector<8x10x64xf32> to vector<8x8x64xf32>
    %490 = vector.extract_strided_slice %487 {offsets = [0, 2, 0], sizes = [8, 8, 64], strides = [1, 1, 1]} : vector<8x10x64xf32> to vector<8x8x64xf32>
    %491 = tpu.concatenate %488, %489, %490 in 2 : vector<8x8x64xf32>, vector<8x8x64xf32>, vector<8x8x64xf32> -> vector<8x8x192xf32>
    %492 = vector.shape_cast %491 : vector<8x8x192xf32> to vector<64x192xf32>
    %c11_317 = arith.constant 11 : index
    %c2_318 = arith.constant 2 : index
    %c0_319 = arith.constant 0 : index
    %c0_320 = arith.constant 0 : index
    %493 = vector.load %arg2[%c11_317, %c2_318, %c0_319, %c0_320] : memref<15x3x192x64xf32, #tpu.memory_space<vmem>>, vector<1x1x192x64xf32>
    %494 = vector.shape_cast %493 : vector<1x1x192x64xf32> to vector<192x64xf32>
    %cst_321 = arith.constant dense<0.000000e+00> : vector<64x64xf32>
    %495 = tpu.matmul %492, %494, %cst_321 {dimension_numbers = #tpu.dot_dimension_numbers<[1], [0], [0], [1], [0, 0, 1, 1], [], []>} : vector<64x192xf32>, vector<192x64xf32>, vector<64x64xf32> -> vector<64x64xf32>
    %496 = arith.addf %486, %495 : vector<64x64xf32>
    %c11_322 = arith.constant 11 : index
    %c0_323 = arith.constant 0 : index
    %c0_324 = arith.constant 0 : index
    %497 = vector.load %arg3[%c11_322, %c0_323, %c0_324] : memref<15x1x64xf32, #tpu.memory_space<vmem>>, vector<1x1x64xf32>
    %498 = vector.shape_cast %497 : vector<1x1x64xf32> to vector<1x64xf32>
    %499 = vector.broadcast %498 : vector<1x64xf32> to vector<64x64xf32>
    %500 = arith.mulf %496, %499 : vector<64x64xf32>
    %c11_325 = arith.constant 11 : index
    %c0_326 = arith.constant 0 : index
    %c0_327 = arith.constant 0 : index
    %501 = vector.load %arg4[%c11_325, %c0_326, %c0_327] : memref<15x1x64xf32, #tpu.memory_space<vmem>>, vector<1x1x64xf32>
    %502 = vector.shape_cast %501 : vector<1x1x64xf32> to vector<1x64xf32>
    %503 = vector.broadcast %502 : vector<1x64xf32> to vector<64x64xf32>
    %504 = arith.addf %500, %503 : vector<64x64xf32>
    %cst_328 = arith.constant 0.000000e+00 : f32
    %505 = vector.broadcast %cst_328 : f32 to vector<64x64xf32>
    %506 = arith.maximumf %504, %505 : vector<64x64xf32>
    %507 = vector.shape_cast %506 : vector<64x64xf32> to vector<8x8x64xf32>
    %c1_329 = arith.constant 1 : index
    %c1_330 = arith.constant 1 : index
    %c0_331 = arith.constant 0 : index
    %508 = vector.load %arg7[%c1_329, %c1_330, %c0_331] : memref<10x10x64xf32, #tpu.memory_space<vmem>>, vector<8x8x64xf32>
    tpu.vector_store %arg7[%c1_329, %c1_330, %c0_331], %507 {strides = array<i32>} : memref<10x10x64xf32, #tpu.memory_space<vmem>>, vector<8x8x64xf32>,
    %c0_332 = arith.constant 0 : index
    %c0_333 = arith.constant 0 : index
    %c0_334 = arith.constant 0 : index
    %509 = vector.load %arg7[%c0_332, %c0_333, %c0_334] : memref<10x10x64xf32, #tpu.memory_space<vmem>>, vector<10x10x64xf32>
    %510 = vector.extract_strided_slice %509 {offsets = [0, 0, 0], sizes = [8, 10, 64], strides = [1, 1, 1]} : vector<10x10x64xf32> to vector<8x10x64xf32>
    %511 = vector.extract_strided_slice %510 {offsets = [0, 0, 0], sizes = [8, 8, 64], strides = [1, 1, 1]} : vector<8x10x64xf32> to vector<8x8x64xf32>
    %512 = vector.extract_strided_slice %510 {offsets = [0, 1, 0], sizes = [8, 8, 64], strides = [1, 1, 1]} : vector<8x10x64xf32> to vector<8x8x64xf32>
    %513 = vector.extract_strided_slice %510 {offsets = [0, 2, 0], sizes = [8, 8, 64], strides = [1, 1, 1]} : vector<8x10x64xf32> to vector<8x8x64xf32>
    %514 = tpu.concatenate %511, %512, %513 in 2 : vector<8x8x64xf32>, vector<8x8x64xf32>, vector<8x8x64xf32> -> vector<8x8x192xf32>
    %515 = vector.shape_cast %514 : vector<8x8x192xf32> to vector<64x192xf32>
    %c12 = arith.constant 12 : index
    %c0_335 = arith.constant 0 : index
    %c0_336 = arith.constant 0 : index
    %c0_337 = arith.constant 0 : index
    %516 = vector.load %arg2[%c12, %c0_335, %c0_336, %c0_337] : memref<15x3x192x64xf32, #tpu.memory_space<vmem>>, vector<1x1x192x64xf32>
    %517 = vector.shape_cast %516 : vector<1x1x192x64xf32> to vector<192x64xf32>
    %cst_338 = arith.constant dense<0.000000e+00> : vector<64x64xf32>
    %518 = tpu.matmul %515, %517, %cst_338 {dimension_numbers = #tpu.dot_dimension_numbers<[1], [0], [0], [1], [0, 0, 1, 1], [], []>} : vector<64x192xf32>, vector<192x64xf32>, vector<64x64xf32> -> vector<64x64xf32>
    %519 = vector.extract_strided_slice %509 {offsets = [1, 0, 0], sizes = [8, 10, 64], strides = [1, 1, 1]} : vector<10x10x64xf32> to vector<8x10x64xf32>
    %520 = vector.extract_strided_slice %519 {offsets = [0, 0, 0], sizes = [8, 8, 64], strides = [1, 1, 1]} : vector<8x10x64xf32> to vector<8x8x64xf32>
    %521 = vector.extract_strided_slice %519 {offsets = [0, 1, 0], sizes = [8, 8, 64], strides = [1, 1, 1]} : vector<8x10x64xf32> to vector<8x8x64xf32>
    %522 = vector.extract_strided_slice %519 {offsets = [0, 2, 0], sizes = [8, 8, 64], strides = [1, 1, 1]} : vector<8x10x64xf32> to vector<8x8x64xf32>
    %523 = tpu.concatenate %520, %521, %522 in 2 : vector<8x8x64xf32>, vector<8x8x64xf32>, vector<8x8x64xf32> -> vector<8x8x192xf32>
    %524 = vector.shape_cast %523 : vector<8x8x192xf32> to vector<64x192xf32>
    %c12_339 = arith.constant 12 : index
    %c1_340 = arith.constant 1 : index
    %c0_341 = arith.constant 0 : index
    %c0_342 = arith.constant 0 : index
    %525 = vector.load %arg2[%c12_339, %c1_340, %c0_341, %c0_342] : memref<15x3x192x64xf32, #tpu.memory_space<vmem>>, vector<1x1x192x64xf32>
    %526 = vector.shape_cast %525 : vector<1x1x192x64xf32> to vector<192x64xf32>
    %cst_343 = arith.constant dense<0.000000e+00> : vector<64x64xf32>
    %527 = tpu.matmul %524, %526, %cst_343 {dimension_numbers = #tpu.dot_dimension_numbers<[1], [0], [0], [1], [0, 0, 1, 1], [], []>} : vector<64x192xf32>, vector<192x64xf32>, vector<64x64xf32> -> vector<64x64xf32>
    %528 = arith.addf %518, %527 : vector<64x64xf32>
    %529 = vector.extract_strided_slice %509 {offsets = [2, 0, 0], sizes = [8, 10, 64], strides = [1, 1, 1]} : vector<10x10x64xf32> to vector<8x10x64xf32>
    %530 = vector.extract_strided_slice %529 {offsets = [0, 0, 0], sizes = [8, 8, 64], strides = [1, 1, 1]} : vector<8x10x64xf32> to vector<8x8x64xf32>
    %531 = vector.extract_strided_slice %529 {offsets = [0, 1, 0], sizes = [8, 8, 64], strides = [1, 1, 1]} : vector<8x10x64xf32> to vector<8x8x64xf32>
    %532 = vector.extract_strided_slice %529 {offsets = [0, 2, 0], sizes = [8, 8, 64], strides = [1, 1, 1]} : vector<8x10x64xf32> to vector<8x8x64xf32>
    %533 = tpu.concatenate %530, %531, %532 in 2 : vector<8x8x64xf32>, vector<8x8x64xf32>, vector<8x8x64xf32> -> vector<8x8x192xf32>
    %534 = vector.shape_cast %533 : vector<8x8x192xf32> to vector<64x192xf32>
    %c12_344 = arith.constant 12 : index
    %c2_345 = arith.constant 2 : index
    %c0_346 = arith.constant 0 : index
    %c0_347 = arith.constant 0 : index
    %535 = vector.load %arg2[%c12_344, %c2_345, %c0_346, %c0_347] : memref<15x3x192x64xf32, #tpu.memory_space<vmem>>, vector<1x1x192x64xf32>
    %536 = vector.shape_cast %535 : vector<1x1x192x64xf32> to vector<192x64xf32>
    %cst_348 = arith.constant dense<0.000000e+00> : vector<64x64xf32>
    %537 = tpu.matmul %534, %536, %cst_348 {dimension_numbers = #tpu.dot_dimension_numbers<[1], [0], [0], [1], [0, 0, 1, 1], [], []>} : vector<64x192xf32>, vector<192x64xf32>, vector<64x64xf32> -> vector<64x64xf32>
    %538 = arith.addf %528, %537 : vector<64x64xf32>
    %c12_349 = arith.constant 12 : index
    %c0_350 = arith.constant 0 : index
    %c0_351 = arith.constant 0 : index
    %539 = vector.load %arg3[%c12_349, %c0_350, %c0_351] : memref<15x1x64xf32, #tpu.memory_space<vmem>>, vector<1x1x64xf32>
    %540 = vector.shape_cast %539 : vector<1x1x64xf32> to vector<1x64xf32>
    %541 = vector.broadcast %540 : vector<1x64xf32> to vector<64x64xf32>
    %542 = arith.mulf %538, %541 : vector<64x64xf32>
    %c12_352 = arith.constant 12 : index
    %c0_353 = arith.constant 0 : index
    %c0_354 = arith.constant 0 : index
    %543 = vector.load %arg4[%c12_352, %c0_353, %c0_354] : memref<15x1x64xf32, #tpu.memory_space<vmem>>, vector<1x1x64xf32>
    %544 = vector.shape_cast %543 : vector<1x1x64xf32> to vector<1x64xf32>
    %545 = vector.broadcast %544 : vector<1x64xf32> to vector<64x64xf32>
    %546 = arith.addf %542, %545 : vector<64x64xf32>
    %cst_355 = arith.constant 0.000000e+00 : f32
    %547 = vector.broadcast %cst_355 : f32 to vector<64x64xf32>
    %548 = arith.maximumf %546, %547 : vector<64x64xf32>
    %549 = vector.shape_cast %548 : vector<64x64xf32> to vector<8x8x64xf32>
    %c1_356 = arith.constant 1 : index
    %c1_357 = arith.constant 1 : index
    %c0_358 = arith.constant 0 : index
    %550 = vector.load %arg6[%c1_356, %c1_357, %c0_358] : memref<10x10x64xf32, #tpu.memory_space<vmem>>, vector<8x8x64xf32>
    tpu.vector_store %arg6[%c1_356, %c1_357, %c0_358], %549 {strides = array<i32>} : memref<10x10x64xf32, #tpu.memory_space<vmem>>, vector<8x8x64xf32>,
    %c0_359 = arith.constant 0 : index
    %c0_360 = arith.constant 0 : index
    %c0_361 = arith.constant 0 : index
    %551 = vector.load %arg6[%c0_359, %c0_360, %c0_361] : memref<10x10x64xf32, #tpu.memory_space<vmem>>, vector<10x10x64xf32>
    %552 = vector.extract_strided_slice %551 {offsets = [0, 0, 0], sizes = [8, 10, 64], strides = [1, 1, 1]} : vector<10x10x64xf32> to vector<8x10x64xf32>
    %553 = vector.extract_strided_slice %552 {offsets = [0, 0, 0], sizes = [8, 8, 64], strides = [1, 1, 1]} : vector<8x10x64xf32> to vector<8x8x64xf32>
    %554 = vector.extract_strided_slice %552 {offsets = [0, 1, 0], sizes = [8, 8, 64], strides = [1, 1, 1]} : vector<8x10x64xf32> to vector<8x8x64xf32>
    %555 = vector.extract_strided_slice %552 {offsets = [0, 2, 0], sizes = [8, 8, 64], strides = [1, 1, 1]} : vector<8x10x64xf32> to vector<8x8x64xf32>
    %556 = tpu.concatenate %553, %554, %555 in 2 : vector<8x8x64xf32>, vector<8x8x64xf32>, vector<8x8x64xf32> -> vector<8x8x192xf32>
    %557 = vector.shape_cast %556 : vector<8x8x192xf32> to vector<64x192xf32>
    %c13 = arith.constant 13 : index
    %c0_362 = arith.constant 0 : index
    %c0_363 = arith.constant 0 : index
    %c0_364 = arith.constant 0 : index
    %558 = vector.load %arg2[%c13, %c0_362, %c0_363, %c0_364] : memref<15x3x192x64xf32, #tpu.memory_space<vmem>>, vector<1x1x192x64xf32>
    %559 = vector.shape_cast %558 : vector<1x1x192x64xf32> to vector<192x64xf32>
    %cst_365 = arith.constant dense<0.000000e+00> : vector<64x64xf32>
    %560 = tpu.matmul %557, %559, %cst_365 {dimension_numbers = #tpu.dot_dimension_numbers<[1], [0], [0], [1], [0, 0, 1, 1], [], []>} : vector<64x192xf32>, vector<192x64xf32>, vector<64x64xf32> -> vector<64x64xf32>
    %561 = vector.extract_strided_slice %551 {offsets = [1, 0, 0], sizes = [8, 10, 64], strides = [1, 1, 1]} : vector<10x10x64xf32> to vector<8x10x64xf32>
    %562 = vector.extract_strided_slice %561 {offsets = [0, 0, 0], sizes = [8, 8, 64], strides = [1, 1, 1]} : vector<8x10x64xf32> to vector<8x8x64xf32>
    %563 = vector.extract_strided_slice %561 {offsets = [0, 1, 0], sizes = [8, 8, 64], strides = [1, 1, 1]} : vector<8x10x64xf32> to vector<8x8x64xf32>
    %564 = vector.extract_strided_slice %561 {offsets = [0, 2, 0], sizes = [8, 8, 64], strides = [1, 1, 1]} : vector<8x10x64xf32> to vector<8x8x64xf32>
    %565 = tpu.concatenate %562, %563, %564 in 2 : vector<8x8x64xf32>, vector<8x8x64xf32>, vector<8x8x64xf32> -> vector<8x8x192xf32>
    %566 = vector.shape_cast %565 : vector<8x8x192xf32> to vector<64x192xf32>
    %c13_366 = arith.constant 13 : index
    %c1_367 = arith.constant 1 : index
    %c0_368 = arith.constant 0 : index
    %c0_369 = arith.constant 0 : index
    %567 = vector.load %arg2[%c13_366, %c1_367, %c0_368, %c0_369] : memref<15x3x192x64xf32, #tpu.memory_space<vmem>>, vector<1x1x192x64xf32>
    %568 = vector.shape_cast %567 : vector<1x1x192x64xf32> to vector<192x64xf32>
    %cst_370 = arith.constant dense<0.000000e+00> : vector<64x64xf32>
    %569 = tpu.matmul %566, %568, %cst_370 {dimension_numbers = #tpu.dot_dimension_numbers<[1], [0], [0], [1], [0, 0, 1, 1], [], []>} : vector<64x192xf32>, vector<192x64xf32>, vector<64x64xf32> -> vector<64x64xf32>
    %570 = arith.addf %560, %569 : vector<64x64xf32>
    %571 = vector.extract_strided_slice %551 {offsets = [2, 0, 0], sizes = [8, 10, 64], strides = [1, 1, 1]} : vector<10x10x64xf32> to vector<8x10x64xf32>
    %572 = vector.extract_strided_slice %571 {offsets = [0, 0, 0], sizes = [8, 8, 64], strides = [1, 1, 1]} : vector<8x10x64xf32> to vector<8x8x64xf32>
    %573 = vector.extract_strided_slice %571 {offsets = [0, 1, 0], sizes = [8, 8, 64], strides = [1, 1, 1]} : vector<8x10x64xf32> to vector<8x8x64xf32>
    %574 = vector.extract_strided_slice %571 {offsets = [0, 2, 0], sizes = [8, 8, 64], strides = [1, 1, 1]} : vector<8x10x64xf32> to vector<8x8x64xf32>
    %575 = tpu.concatenate %572, %573, %574 in 2 : vector<8x8x64xf32>, vector<8x8x64xf32>, vector<8x8x64xf32> -> vector<8x8x192xf32>
    %576 = vector.shape_cast %575 : vector<8x8x192xf32> to vector<64x192xf32>
    %c13_371 = arith.constant 13 : index
    %c2_372 = arith.constant 2 : index
    %c0_373 = arith.constant 0 : index
    %c0_374 = arith.constant 0 : index
    %577 = vector.load %arg2[%c13_371, %c2_372, %c0_373, %c0_374] : memref<15x3x192x64xf32, #tpu.memory_space<vmem>>, vector<1x1x192x64xf32>
    %578 = vector.shape_cast %577 : vector<1x1x192x64xf32> to vector<192x64xf32>
    %cst_375 = arith.constant dense<0.000000e+00> : vector<64x64xf32>
    %579 = tpu.matmul %576, %578, %cst_375 {dimension_numbers = #tpu.dot_dimension_numbers<[1], [0], [0], [1], [0, 0, 1, 1], [], []>} : vector<64x192xf32>, vector<192x64xf32>, vector<64x64xf32> -> vector<64x64xf32>
    %580 = arith.addf %570, %579 : vector<64x64xf32>
    %c13_376 = arith.constant 13 : index
    %c0_377 = arith.constant 0 : index
    %c0_378 = arith.constant 0 : index
    %581 = vector.load %arg3[%c13_376, %c0_377, %c0_378] : memref<15x1x64xf32, #tpu.memory_space<vmem>>, vector<1x1x64xf32>
    %582 = vector.shape_cast %581 : vector<1x1x64xf32> to vector<1x64xf32>
    %583 = vector.broadcast %582 : vector<1x64xf32> to vector<64x64xf32>
    %584 = arith.mulf %580, %583 : vector<64x64xf32>
    %c13_379 = arith.constant 13 : index
    %c0_380 = arith.constant 0 : index
    %c0_381 = arith.constant 0 : index
    %585 = vector.load %arg4[%c13_379, %c0_380, %c0_381] : memref<15x1x64xf32, #tpu.memory_space<vmem>>, vector<1x1x64xf32>
    %586 = vector.shape_cast %585 : vector<1x1x64xf32> to vector<1x64xf32>
    %587 = vector.broadcast %586 : vector<1x64xf32> to vector<64x64xf32>
    %588 = arith.addf %584, %587 : vector<64x64xf32>
    %cst_382 = arith.constant 0.000000e+00 : f32
    %589 = vector.broadcast %cst_382 : f32 to vector<64x64xf32>
    %590 = arith.maximumf %588, %589 : vector<64x64xf32>
    %591 = vector.shape_cast %590 : vector<64x64xf32> to vector<8x8x64xf32>
    %c1_383 = arith.constant 1 : index
    %c1_384 = arith.constant 1 : index
    %c0_385 = arith.constant 0 : index
    %592 = vector.load %arg7[%c1_383, %c1_384, %c0_385] : memref<10x10x64xf32, #tpu.memory_space<vmem>>, vector<8x8x64xf32>
    tpu.vector_store %arg7[%c1_383, %c1_384, %c0_385], %591 {strides = array<i32>} : memref<10x10x64xf32, #tpu.memory_space<vmem>>, vector<8x8x64xf32>,
    %c0_386 = arith.constant 0 : index
    %c0_387 = arith.constant 0 : index
    %c0_388 = arith.constant 0 : index
    %593 = vector.load %arg7[%c0_386, %c0_387, %c0_388] : memref<10x10x64xf32, #tpu.memory_space<vmem>>, vector<10x10x64xf32>
    %594 = vector.extract_strided_slice %593 {offsets = [0, 0, 0], sizes = [8, 10, 64], strides = [1, 1, 1]} : vector<10x10x64xf32> to vector<8x10x64xf32>
    %595 = vector.extract_strided_slice %594 {offsets = [0, 0, 0], sizes = [8, 8, 64], strides = [1, 1, 1]} : vector<8x10x64xf32> to vector<8x8x64xf32>
    %596 = vector.extract_strided_slice %594 {offsets = [0, 1, 0], sizes = [8, 8, 64], strides = [1, 1, 1]} : vector<8x10x64xf32> to vector<8x8x64xf32>
    %597 = vector.extract_strided_slice %594 {offsets = [0, 2, 0], sizes = [8, 8, 64], strides = [1, 1, 1]} : vector<8x10x64xf32> to vector<8x8x64xf32>
    %598 = tpu.concatenate %595, %596, %597 in 2 : vector<8x8x64xf32>, vector<8x8x64xf32>, vector<8x8x64xf32> -> vector<8x8x192xf32>
    %599 = vector.shape_cast %598 : vector<8x8x192xf32> to vector<64x192xf32>
    %c14 = arith.constant 14 : index
    %c0_389 = arith.constant 0 : index
    %c0_390 = arith.constant 0 : index
    %c0_391 = arith.constant 0 : index
    %600 = vector.load %arg2[%c14, %c0_389, %c0_390, %c0_391] : memref<15x3x192x64xf32, #tpu.memory_space<vmem>>, vector<1x1x192x64xf32>
    %601 = vector.shape_cast %600 : vector<1x1x192x64xf32> to vector<192x64xf32>
    %cst_392 = arith.constant dense<0.000000e+00> : vector<64x64xf32>
    %602 = tpu.matmul %599, %601, %cst_392 {dimension_numbers = #tpu.dot_dimension_numbers<[1], [0], [0], [1], [0, 0, 1, 1], [], []>} : vector<64x192xf32>, vector<192x64xf32>, vector<64x64xf32> -> vector<64x64xf32>
    %603 = vector.extract_strided_slice %593 {offsets = [1, 0, 0], sizes = [8, 10, 64], strides = [1, 1, 1]} : vector<10x10x64xf32> to vector<8x10x64xf32>
    %604 = vector.extract_strided_slice %603 {offsets = [0, 0, 0], sizes = [8, 8, 64], strides = [1, 1, 1]} : vector<8x10x64xf32> to vector<8x8x64xf32>
    %605 = vector.extract_strided_slice %603 {offsets = [0, 1, 0], sizes = [8, 8, 64], strides = [1, 1, 1]} : vector<8x10x64xf32> to vector<8x8x64xf32>
    %606 = vector.extract_strided_slice %603 {offsets = [0, 2, 0], sizes = [8, 8, 64], strides = [1, 1, 1]} : vector<8x10x64xf32> to vector<8x8x64xf32>
    %607 = tpu.concatenate %604, %605, %606 in 2 : vector<8x8x64xf32>, vector<8x8x64xf32>, vector<8x8x64xf32> -> vector<8x8x192xf32>
    %608 = vector.shape_cast %607 : vector<8x8x192xf32> to vector<64x192xf32>
    %c14_393 = arith.constant 14 : index
    %c1_394 = arith.constant 1 : index
    %c0_395 = arith.constant 0 : index
    %c0_396 = arith.constant 0 : index
    %609 = vector.load %arg2[%c14_393, %c1_394, %c0_395, %c0_396] : memref<15x3x192x64xf32, #tpu.memory_space<vmem>>, vector<1x1x192x64xf32>
    %610 = vector.shape_cast %609 : vector<1x1x192x64xf32> to vector<192x64xf32>
    %cst_397 = arith.constant dense<0.000000e+00> : vector<64x64xf32>
    %611 = tpu.matmul %608, %610, %cst_397 {dimension_numbers = #tpu.dot_dimension_numbers<[1], [0], [0], [1], [0, 0, 1, 1], [], []>} : vector<64x192xf32>, vector<192x64xf32>, vector<64x64xf32> -> vector<64x64xf32>
    %612 = arith.addf %602, %611 : vector<64x64xf32>
    %613 = vector.extract_strided_slice %593 {offsets = [2, 0, 0], sizes = [8, 10, 64], strides = [1, 1, 1]} : vector<10x10x64xf32> to vector<8x10x64xf32>
    %614 = vector.extract_strided_slice %613 {offsets = [0, 0, 0], sizes = [8, 8, 64], strides = [1, 1, 1]} : vector<8x10x64xf32> to vector<8x8x64xf32>
    %615 = vector.extract_strided_slice %613 {offsets = [0, 1, 0], sizes = [8, 8, 64], strides = [1, 1, 1]} : vector<8x10x64xf32> to vector<8x8x64xf32>
    %616 = vector.extract_strided_slice %613 {offsets = [0, 2, 0], sizes = [8, 8, 64], strides = [1, 1, 1]} : vector<8x10x64xf32> to vector<8x8x64xf32>
    %617 = tpu.concatenate %614, %615, %616 in 2 : vector<8x8x64xf32>, vector<8x8x64xf32>, vector<8x8x64xf32> -> vector<8x8x192xf32>
    %618 = vector.shape_cast %617 : vector<8x8x192xf32> to vector<64x192xf32>
    %c14_398 = arith.constant 14 : index
    %c2_399 = arith.constant 2 : index
    %c0_400 = arith.constant 0 : index
    %c0_401 = arith.constant 0 : index
    %619 = vector.load %arg2[%c14_398, %c2_399, %c0_400, %c0_401] : memref<15x3x192x64xf32, #tpu.memory_space<vmem>>, vector<1x1x192x64xf32>
    %620 = vector.shape_cast %619 : vector<1x1x192x64xf32> to vector<192x64xf32>
    %cst_402 = arith.constant dense<0.000000e+00> : vector<64x64xf32>
    %621 = tpu.matmul %618, %620, %cst_402 {dimension_numbers = #tpu.dot_dimension_numbers<[1], [0], [0], [1], [0, 0, 1, 1], [], []>} : vector<64x192xf32>, vector<192x64xf32>, vector<64x64xf32> -> vector<64x64xf32>
    %622 = arith.addf %612, %621 : vector<64x64xf32>
    %c14_403 = arith.constant 14 : index
    %c0_404 = arith.constant 0 : index
    %c0_405 = arith.constant 0 : index
    %623 = vector.load %arg3[%c14_403, %c0_404, %c0_405] : memref<15x1x64xf32, #tpu.memory_space<vmem>>, vector<1x1x64xf32>
    %624 = vector.shape_cast %623 : vector<1x1x64xf32> to vector<1x64xf32>
    %625 = vector.broadcast %624 : vector<1x64xf32> to vector<64x64xf32>
    %626 = arith.mulf %622, %625 : vector<64x64xf32>
    %c14_406 = arith.constant 14 : index
    %c0_407 = arith.constant 0 : index
    %c0_408 = arith.constant 0 : index
    %627 = vector.load %arg4[%c14_406, %c0_407, %c0_408] : memref<15x1x64xf32, #tpu.memory_space<vmem>>, vector<1x1x64xf32>
    %628 = vector.shape_cast %627 : vector<1x1x64xf32> to vector<1x64xf32>
    %629 = vector.broadcast %628 : vector<1x64xf32> to vector<64x64xf32>
    %630 = arith.addf %626, %629 : vector<64x64xf32>
    %631 = vector.extract_strided_slice %630 {offsets = [0, 0], sizes = [64, 4], strides = [1, 1]} : vector<64x64xf32> to vector<64x4xf32>
    %632 = vector.shape_cast %631 : vector<64x4xf32> to vector<1x8x8x4xf32>
    %c0_409 = arith.constant 0 : index
    %c0_410 = arith.constant 0 : index
    %c0_411 = arith.constant 0 : index
    %c0_412 = arith.constant 0 : index
    %633 = vector.load %arg5[%c0_409, %c0_410, %c0_411, %c0_412] : memref<1x8x8x4xf32, #tpu.memory_space<vmem>>, vector<1x8x8x4xf32>
    tpu.vector_store %arg5[%c0_409, %c0_410, %c0_411, %c0_412], %632 {strides = array<i32>} : memref<1x8x8x4xf32, #tpu.memory_space<vmem>>, vector<1x8x8x4xf32>,
    return
  }
  func.func @transform_0(%arg0: i32) -> (i32, i32, i32, i32) {
    %c0_i32 = arith.constant 0 : i32
    %c0_i32_0 = arith.constant 0 : i32
    %c0_i32_1 = arith.constant 0 : i32
    %c0_i32_2 = arith.constant 0 : i32
    return %arg0, %c0_i32, %c0_i32_0, %c0_i32_1 : i32, i32, i32, i32
  }
  func.func @transform_1(%arg0: i32) -> (i32, i32, i32, i32) {
    %c0_i32 = arith.constant 0 : i32
    %c0_i32_0 = arith.constant 0 : i32
    %c0_i32_1 = arith.constant 0 : i32
    %c0_i32_2 = arith.constant 0 : i32
    %c0_i32_3 = arith.constant 0 : i32
    return %c0_i32, %c0_i32_0, %c0_i32_1, %c0_i32_2 : i32, i32, i32, i32
  }
  func.func @transform_2(%arg0: i32) -> (i32, i32, i32) {
    %c0_i32 = arith.constant 0 : i32
    %c0_i32_0 = arith.constant 0 : i32
    %c0_i32_1 = arith.constant 0 : i32
    %c0_i32_2 = arith.constant 0 : i32
    return %c0_i32, %c0_i32_0, %c0_i32_1 : i32, i32, i32
  }
  func.func @transform_3(%arg0: i32) -> (i32, i32, i32) {
    %c0_i32 = arith.constant 0 : i32
    %c0_i32_0 = arith.constant 0 : i32
    %c0_i32_1 = arith.constant 0 : i32
    %c0_i32_2 = arith.constant 0 : i32
    return %c0_i32, %c0_i32_0, %c0_i32_1 : i32, i32, i32
  }
  func.func @transform_4(%arg0: i32) -> (i32, i32, i32, i32) {
    %c0_i32 = arith.constant 0 : i32
    %c0_i32_0 = arith.constant 0 : i32
    %c0_i32_1 = arith.constant 0 : i32
    %c0_i32_2 = arith.constant 0 : i32
    return %arg0, %c0_i32, %c0_i32_0, %c0_i32_1 : i32, i32, i32, i32
  }
}

</mosaic_0001>

<llo_original>
// kernel: run_fused.1
$region0: #{run_fused.1}
  #allocation0 [shape = 'u32[]', space=smem, size = 0x4, offset = 0x4, fixed_abs, tag = 'smem constant byte address 0x4 - core index']
  #allocation1 [shape = 'u32[144,128]{1,0:T(1,128)}', space=vmem, size = 0x12000, scoped, tag = 'internal scratch']
  #allocation2 [shape = 'f32[10,10,64]{2,1,0:T(8,128)}', space=vmem, size = 0x14000, scoped, tag = 'scratch operand']
  #allocation3 [shape = 'f32[10,10,64]{2,1,0:T(8,128)}', space=vmem, size = 0x14000, scoped, tag = 'scratch operand']
  %s0 = inlined_call_operand.vmem [shape: f32[2,10,10,64], index: 0, kind: input, shape index: {}]
  %s1 = inlined_call_operand.vmem [shape: f32[15,3,192,64], index: 1, kind: input, shape index: {}]
  %s2 = inlined_call_operand.vmem [shape: f32[15,1,64], index: 2, kind: input, shape index: {}]
  %s3 = inlined_call_operand.vmem [shape: f32[15,1,64], index: 3, kind: input, shape index: {}]
  %s4 = inlined_call_operand.vmem [shape: f32[2,8,8,4], index: 4, kind: output, shape index: {}]
  %s5 = sld [smem:[#allocation0]]
  $region49: #{run_fused.1} parent=0
    _
  %s7 = ssub.s32 1, %s5
  %s8 = scalar_select 0, %s7, %s5
  loop: start=0, step=1, limit=4
  $region2: #{run_fused.1} parent=0 // loop_pre_header
    _
  $region3: #{run_fused.1} parent=0 // loop_header
    %s10 = sphi 0, %s14
    %p11 = scmp.ge.s32.totalorder %s10, 4
    %s20 = sphi 0, %s22
    %s23 = sphi 0, %s20
    %s24 = sphi 0, %s23
    %s40 = sphi 0, %s24
    %s44 = sphi 0, %s44
    %s46 = sphi 0, %s44
    %s47 = sphi 0, %s46
    %s61 = sphi 0, %s47
    %s65 = sphi 0, %s65
    %s67 = sphi 0, %s65
    %s68 = sphi 0, %s67
    %s82 = sphi 0, %s68
    %s86 = sphi 0, %s86
    %s88 = sphi 0, %s86
    %s89 = sphi 0, %s88
    %s103 = sphi 0, %s89
    %s109 = sphi 0, %s111
    %s112 = sphi 0, %s109
    %s113 = sphi 0, %s112
    %s129 = sphi 0, %s113
  $region4: #{run_fused.1} parent=0 // loop_header_branch
    %13 = sbr.rel (%p11) target = $region8
  $region5: #{run_fused.1} parent=0 // loop_body
    %s15 = ssub.s32 %s10, 1
    %s16 = ssub.s32 %s10, 2
    %s17 = sadd.s32 %s10, 1
    %s18 = ssub.s32 %s10, %s17
    %p19 = scmp.eq.s32.totalorder %s18, 0
    %s21 = sadd.s32 %s20, 1
    %s22 = scalar_select %p19, %s20, %s21
    %p25 = pneg %p19
    %p26 = scmp.eq.s32.totalorder %s10, 1
    %p27 = por %p25, %p26
    %p28 = scmp.ne.s32.totalorder %s20, %s23
    %p29 = scmp.eq.s32.totalorder %s10, 0
    %p30 = por %p28, %p29
    %p31 = scmp.ne.s32.totalorder %s20, %s23
    %p32 = scmp.eq.s32.totalorder %s15, 1
    %p33 = por %p31, %p32
    %p34 = scmp.ne.s32.totalorder %s23, %s24
    %p35 = scmp.eq.s32.totalorder %s15, 0
    %p36 = por %p34, %p35
    %p37 = scmp.ne.s32.totalorder %s23, %s24
    %p38 = scmp.eq.s32.totalorder %s16, 1
    %p39 = por %p37, %p38
    %p41 = scmp.ne.s32.totalorder %s24, %s40
    %p42 = scmp.eq.s32.totalorder %s16, 0
    %p43 = por %p41, %p42
    %s45 = sadd.s32 %s44, 1
    %p48 = scmp.eq.s32.totalorder %s10, 1
    %p49 = scmp.ne.s32.totalorder %s44, %s46
    %p50 = scmp.eq.s32.totalorder %s10, 0
    %p51 = por %p49, %p50
    %p52 = scmp.ne.s32.totalorder %s44, %s46
    %p53 = scmp.eq.s32.totalorder %s15, 1
    %p54 = por %p52, %p53
    %p55 = scmp.ne.s32.totalorder %s46, %s47
    %p56 = scmp.eq.s32.totalorder %s15, 0
    %p57 = por %p55, %p56
    %p58 = scmp.ne.s32.totalorder %s46, %s47
    %p59 = scmp.eq.s32.totalorder %s16, 1
    %p60 = por %p58, %p59
    %p62 = scmp.ne.s32.totalorder %s47, %s61
    %p63 = scmp.eq.s32.totalorder %s16, 0
    %p64 = por %p62, %p63
    %s66 = sadd.s32 %s65, 1
    %p69 = scmp.eq.s32.totalorder %s10, 1
    %p70 = scmp.ne.s32.totalorder %s65, %s67
    %p71 = scmp.eq.s32.totalorder %s10, 0
    %p72 = por %p70, %p71
    %p73 = scmp.ne.s32.totalorder %s65, %s67
    %p74 = scmp.eq.s32.totalorder %s15, 1
    %p75 = por %p73, %p74
    %p76 = scmp.ne.s32.totalorder %s67, %s68
    %p77 = scmp.eq.s32.totalorder %s15, 0
    %p78 = por %p76, %p77
    %p79 = scmp.ne.s32.totalorder %s67, %s68
    %p80 = scmp.eq.s32.totalorder %s16, 1
    %p81 = por %p79, %p80
    %p83 = scmp.ne.s32.totalorder %s68, %s82
    %p84 = scmp.eq.s32.totalorder %s16, 0
    %p85 = por %p83, %p84
    %s87 = sadd.s32 %s86, 1
    %p90 = scmp.eq.s32.totalorder %s10, 1
    %p91 = scmp.ne.s32.totalorder %s86, %s88
    %p92 = scmp.eq.s32.totalorder %s10, 0
    %p93 = por %p91, %p92
    %p94 = scmp.ne.s32.totalorder %s86, %s88
    %p95 = scmp.eq.s32.totalorder %s15, 1
    %p96 = por %p94, %p95
    %p97 = scmp.ne.s32.totalorder %s88, %s89
    %p98 = scmp.eq.s32.totalorder %s15, 0
    %p99 = por %p97, %p98
    %p100 = scmp.ne.s32.totalorder %s88, %s89
    %p101 = scmp.eq.s32.totalorder %s16, 1
    %p102 = por %p100, %p101
    %p104 = scmp.ne.s32.totalorder %s89, %s103
    %p105 = scmp.eq.s32.totalorder %s16, 0
    %p106 = por %p104, %p105
    %s107 = ssub.s32 %s10, %s17
    %p108 = scmp.eq.s32.totalorder %s107, 0
    %s110 = sadd.s32 %s109, 1
    %s111 = scalar_select %p108, %s109, %s110
    %p114 = pneg %p108
    %p115 = scmp.eq.s32.totalorder %s10, 1
    %p116 = por %p114, %p115
    %p117 = scmp.ne.s32.totalorder %s109, %s112
    %p118 = scmp.eq.s32.totalorder %s10, 0
    %p119 = por %p117, %p118
    %p120 = scmp.ne.s32.totalorder %s109, %s112
    %p121 = scmp.eq.s32.totalorder %s15, 1
    %p122 = por %p120, %p121
    %p123 = scmp.ne.s32.totalorder %s112, %s113
    %p124 = scmp.eq.s32.totalorder %s15, 0
    %p125 = por %p123, %p124
    %p126 = scmp.ne.s32.totalorder %s112, %s113
    %p127 = scmp.eq.s32.totalorder %s16, 1
    %p128 = por %p126, %p127
    %p130 = scmp.ne.s32.totalorder %s113, %s129
    %p131 = scmp.eq.s32.totalorder %s16, 0
    %p132 = por %p130, %p131
    %p133 = scmp.le.s32.totalorder 1, %s10
    %p134 = scmp.lt.s32.totalorder %s10, 3
    %p135 = pnand %p133, %p134
    %p136 = pneg %p135
    // Predicated region
    $region9: #{run_fused.1} parent=5 // pred_check
      _
    $region10: #{run_fused.1} parent=5 // pred_check_branch
      %138 = sbr.rel (%p135) target = $region12
    $region11: #{run_fused.1} parent=5 // pred_region
      %s139 = ssub.s32 %s10, 1
      // Predicated region
      $region13: #{run_fused.1} parent=11 // pred_check
        %p140 = pneg %p57
      $region14: #{run_fused.1} parent=11 // pred_check_branch
        %142 = sbr.rel (%p140) target = $region16
      $region15: #{run_fused.1} parent=11 // pred_region
        _
      $region16: #{run_fused.1} parent=11 // pred_fallthru
        _
      // Predicated region
      $region17: #{run_fused.1} parent=11 // pred_check
        %p143 = pneg %p78
      $region18: #{run_fused.1} parent=11 // pred_check_branch
        %145 = sbr.rel (%p143) target = $region20
      $region19: #{run_fused.1} parent=11 // pred_region
        _
      $region20: #{run_fused.1} parent=11 // pred_fallthru
        _
      // Predicated region
      $region21: #{run_fused.1} parent=11 // pred_check
        %p146 = pneg %p99
      $region22: #{run_fused.1} parent=11 // pred_check_branch
        %148 = sbr.rel (%p146) target = $region24
      $region23: #{run_fused.1} parent=11 // pred_region
        _
      $region24: #{run_fused.1} parent=11 // pred_fallthru
        _
    $region12: #{run_fused.1} parent=5 // pred_fallthru
      _
    %p149 = scmp.lt.s32.totalorder %s10, 2
    // Predicated region
    $region25: #{run_fused.1} parent=5 // pred_check
      %p150 = pneg %p149
    $region26: #{run_fused.1} parent=5 // pred_check_branch
      %152 = sbr.rel (%p150) target = $region28
    $region27: #{run_fused.1} parent=5 // pred_region
      // Predicated region
      $region29: #{run_fused.1} parent=27 // pred_check
        %p153 = pneg %p30
      $region30: #{run_fused.1} parent=27 // pred_check_branch
        %155 = sbr.rel (%p153) target = $region32
      $region31: #{run_fused.1} parent=27 // pred_region
        %p156 = scmp.lt.s32.totalorder %s10, 1
        %s157 = scalar_select %p156, %s10, 1
        %s158 = smul.addr %s157, 20
        %s159 = smul.addr %s158, 8
        %s160 = scalar_lea.vmem %s0, %s159
      $region32: #{run_fused.1} parent=27 // pred_fallthru
        _
    $region28: #{run_fused.1} parent=5 // pred_fallthru
      _
    %p161 = scmp.le.s32.totalorder 1, %s10
    %p162 = scmp.lt.s32.totalorder %s10, 3
    %p163 = pnand %p161, %p162
    %p164 = pneg %p163
    // Predicated region
    $region33: #{run_fused.1} parent=5 // pred_check
      _
    $region34: #{run_fused.1} parent=5 // pred_check_branch
      %166 = sbr.rel (%p163) target = $region36
    $region35: #{run_fused.1} parent=5 // pred_region
      %s167 = ssub.s32 %s10, 1
      %p168 = scmp.lt.s32.totalorder %s15, 1
      %s169 = scalar_select %p168, %s15, 1
      %s170 = smul.addr %s169, 20
      %s171 = smul.addr %s170, 8
      %s172 = scalar_lea.vmem %s0, %s171
      %p173 = pneg %p36
      %p174 = pneg %p33
      %p175 = pneg %p57
      %p176 = pneg %p54
      %p177 = pneg %p78
      %p178 = pneg %p75
      %p179 = pneg %p99
      %p180 = pneg %p96
      %p181 = pneg %p125
      %p182 = pneg %p122
      %p183 = scmp.lt.s32.totalorder %s15, 1
      %s184 = scalar_select %p183, %s15, 1
      %s185 = smul.addr %s184, 8
      %s186 = smul.addr %s185, 8
      %s187 = scalar_lea.vmem %s4, %s186
      %p188 = scmp.lt.s32.totalorder %s15, 1
      %s189 = scalar_select %p188, %s15, 1
      %s190 = smul.addr %s189, 20
      %s191 = smul.addr %s190, 8
      %s192 = scalar_lea.vmem %s0, %s191
      %p193 = scmp.lt.s32.totalorder %s15, 1
      %s194 = scalar_select %p193, %s15, 1
      %s195 = smul.addr %s194, 8
      %s196 = smul.addr %s195, 8
      %s197 = scalar_lea.vmem %s4, %s196
      %vm198 = vcmask 523264
      %199 = vst.msk [vmem:[#allocation2] sm:$0xff] %vm198, 0.0
      %vm200 = vcmask 517120
      %201 = vst.msk [vmem:[#allocation2 + $0x8] sm:$0x3] %vm200, 0.0
      %202 = vst.msk [vmem:[#allocation2 + $0x10] sm:$0xff] %vm198, 0.0
      %203 = vst.msk [vmem:[#allocation2 + $0x18] sm:$0x3] %vm200, 0.0
      %204 = vst.msk [vmem:[#allocation2 + $0x20] sm:$0xff] %vm198, 0.0
      %205 = vst.msk [vmem:[#allocation2 + $0x28] sm:$0x3] %vm200, 0.0
      %206 = vst.msk [vmem:[#allocation2 + $0x30] sm:$0xff] %vm198, 0.0
      %207 = vst.msk [vmem:[#allocation2 + $0x38] sm:$0x3] %vm200, 0.0
      %208 = vst.msk [vmem:[#allocation2 + $0x40] sm:$0xff] %vm198, 0.0
      %209 = vst.msk [vmem:[#allocation2 + $0x48] sm:$0x3] %vm200, 0.0
      %210 = vst.msk [vmem:[#allocation2 + $0x50] sm:$0xff] %vm198, 0.0
      %211 = vst.msk [vmem:[#allocation2 + $0x58] sm:$0x3] %vm200, 0.0
      %212 = vst.msk [vmem:[#allocation2 + $0x60] sm:$0xff] %vm198, 0.0
      %213 = vst.msk [vmem:[#allocation2 + $0x68] sm:$0x3] %vm200, 0.0
      %214 = vst.msk [vmem:[#allocation2 + $0x70] sm:$0xff] %vm198, 0.0
      %215 = vst.msk [vmem:[#allocation2 + $0x78] sm:$0x3] %vm200, 0.0
      %216 = vst.msk [vmem:[#allocation2 + $0x80] sm:$0xff] %vm198, 0.0
      %217 = vst.msk [vmem:[#allocation2 + $0x88] sm:$0x3] %vm200, 0.0
      %218 = vst.msk [vmem:[#allocation2 + $0x90] sm:$0xff] %vm198, 0.0
      %219 = vst.msk [vmem:[#allocation2 + $0x98] sm:$0x3] %vm200, 0.0
      %220 = vst.msk [vmem:[#allocation3] sm:$0xff] %vm198, 0.0
      %221 = vst.msk [vmem:[#allocation3 + $0x8] sm:$0x3] %vm200, 0.0
      %222 = vst.msk [vmem:[#allocation3 + $0x10] sm:$0xff] %vm198, 0.0
      %223 = vst.msk [vmem:[#allocation3 + $0x18] sm:$0x3] %vm200, 0.0
      %224 = vst.msk [vmem:[#allocation3 + $0x20] sm:$0xff] %vm198, 0.0
      %225 = vst.msk [vmem:[#allocation3 + $0x28] sm:$0x3] %vm200, 0.0
      %226 = vst.msk [vmem:[#allocation3 + $0x30] sm:$0xff] %vm198, 0.0
      %227 = vst.msk [vmem:[#allocation3 + $0x38] sm:$0x3] %vm200, 0.0
      %228 = vst.msk [vmem:[#allocation3 + $0x40] sm:$0xff] %vm198, 0.0
      %229 = vst.msk [vmem:[#allocation3 + $0x48] sm:$0x3] %vm200, 0.0
      %230 = vst.msk [vmem:[#allocation3 + $0x50] sm:$0xff] %vm198, 0.0
      %231 = vst.msk [vmem:[#allocation3 + $0x58] sm:$0x3] %vm200, 0.0
      %232 = vst.msk [vmem:[#allocation3 + $0x60] sm:$0xff] %vm198, 0.0
      %233 = vst.msk [vmem:[#allocation3 + $0x68] sm:$0x3] %vm200, 0.0
      %234 = vst.msk [vmem:[#allocation3 + $0x70] sm:$0xff] %vm198, 0.0
      %235 = vst.msk [vmem:[#allocation3 + $0x78] sm:$0x3] %vm200, 0.0
      %236 = vst.msk [vmem:[#allocation3 + $0x80] sm:$0xff] %vm198, 0.0
      %237 = vst.msk [vmem:[#allocation3 + $0x88] sm:$0x3] %vm200, 0.0
      %238 = vst.msk [vmem:[#allocation3 + $0x90] sm:$0xff] %vm198, 0.0
      %239 = vst.msk [vmem:[#allocation3 + $0x98] sm:$0x3] %vm200, 0.0
      %v240 = vld [vmem:[%s192] sm:$0xff]
      %v241 = vld [vmem:[%s192 + $0x8] sm:$0x3]
      %v242 = vld [vmem:[%s192 + $0x10] sm:$0xff]
      %v243 = vld [vmem:[%s192 + $0x18] sm:$0x3]
      %v244 = vld [vmem:[%s192 + $0x20] sm:$0xff]
      %v245 = vld [vmem:[%s192 + $0x28] sm:$0x3]
      %v246 = vld [vmem:[%s192 + $0x30] sm:$0xff]
      %v247 = vld [vmem:[%s192 + $0x38] sm:$0x3]
      %v248 = vld [vmem:[%s192 + $0x40] sm:$0xff]
      %v249 = vld [vmem:[%s192 + $0x48] sm:$0x3]
      %v250 = vld [vmem:[%s192 + $0x50] sm:$0xff]
      %v251 = vld [vmem:[%s192 + $0x58] sm:$0x3]
      %v252 = vld [vmem:[%s192 + $0x60] sm:$0xff]
      %v253 = vld [vmem:[%s192 + $0x68] sm:$0x3]
      %v254 = vld [vmem:[%s192 + $0x70] sm:$0xff]
      %v255 = vld [vmem:[%s192 + $0x78] sm:$0x3]
      %v256 = vld [vmem:[%s192 + $0x80] sm:$0xff]
      %v257 = vld [vmem:[%s192 + $0x88] sm:$0x3]
      %v258 = vld [vmem:[%s192 + $0x90] sm:$0xff]
      %v259 = vld [vmem:[%s192 + $0x98] sm:$0x3]
      %vm276 = vcmask 1046528
      %v277 = vrot.slane %v240, 1
      %v278 = vrot.slane %v241, 1
      %v279 = vsel %vm276, %v277, %v278
      %v280 = vrot.slane %v242, 1
      %v281 = vrot.slane %v243, 1
      %v282 = vsel %vm276, %v280, %v281
      %v283 = vrot.slane %v244, 1
      %v284 = vrot.slane %v245, 1
      %v285 = vsel %vm276, %v283, %v284
      %v286 = vrot.slane %v246, 1
      %v287 = vrot.slane %v247, 1
      %v288 = vsel %vm276, %v286, %v287
      %v289 = vrot.slane %v248, 1
      %v290 = vrot.slane %v249, 1
      %v291 = vsel %vm276, %v289, %v290
      %v292 = vrot.slane %v250, 1
      %v293 = vrot.slane %v251, 1
      %v294 = vsel %vm276, %v292, %v293
      %v295 = vrot.slane %v252, 1
      %v296 = vrot.slane %v253, 1
      %v297 = vsel %vm276, %v295, %v296
      %v298 = vrot.slane %v254, 1
      %v299 = vrot.slane %v255, 1
      %v300 = vsel %vm276, %v298, %v299
      %301 = vrot.lane.b32.xlu0 %v279, 64
      %v302 = vpop.permute.xlu0 %301
      %303 = vrot.lane.b32.xlu0 %v282, 64
      %v304 = vpop.permute.xlu0 %303
      %305 = vrot.lane.b32.xlu0 %v285, 64
      %v306 = vpop.permute.xlu0 %305
      %307 = vrot.lane.b32.xlu0 %v288, 64
      %v308 = vpop.permute.xlu0 %307
      %309 = vrot.lane.b32.xlu0 %v291, 64
      %v310 = vpop.permute.xlu0 %309
      %311 = vrot.lane.b32.xlu0 %v294, 64
      %v312 = vpop.permute.xlu0 %311
      %313 = vrot.lane.b32.xlu0 %v297, 64
      %v314 = vpop.permute.xlu0 %313
      %315 = vrot.lane.b32.xlu0 %v300, 64
      %v316 = vpop.permute.xlu0 %315
      %vm325 = vcmask 1045504
      %v326 = vrot.slane %v240, 2
      %v327 = vrot.slane %v241, 2
      %v328 = vsel %vm325, %v326, %v327
      %v329 = vrot.slane %v242, 2
      %v330 = vrot.slane %v243, 2
      %v331 = vsel %vm325, %v329, %v330
      %v332 = vrot.slane %v244, 2
      %v333 = vrot.slane %v245, 2
      %v334 = vsel %vm325, %v332, %v333
      %v335 = vrot.slane %v246, 2
      %v336 = vrot.slane %v247, 2
      %v337 = vsel %vm325, %v335, %v336
      %v338 = vrot.slane %v248, 2
      %v339 = vrot.slane %v249, 2
      %v340 = vsel %vm325, %v338, %v339
      %v341 = vrot.slane %v250, 2
      %v342 = vrot.slane %v251, 2
      %v343 = vsel %vm325, %v341, %v342
      %v344 = vrot.slane %v252, 2
      %v345 = vrot.slane %v253, 2
      %v346 = vsel %vm325, %v344, %v345
      %v347 = vrot.slane %v254, 2
      %v348 = vrot.slane %v255, 2
      %v349 = vsel %vm325, %v347, %v348
      %v350 = vsel %vm198, %v240, %v302
      %v351 = vsel %vm198, %v242, %v304
      %v352 = vsel %vm198, %v244, %v306
      %v353 = vsel %vm198, %v246, %v308
      %v354 = vsel %vm198, %v248, %v310
      %v355 = vsel %vm198, %v250, %v312
      %v356 = vsel %vm198, %v252, %v314
      %v357 = vsel %vm198, %v254, %v316
      %v358 = vld [vmem:[%s1] sm:$0xff]
      %v359 = vld [vmem:[%s1 + $0x8] sm:$0xff]
      %v360 = vld [vmem:[%s1 + $0x10] sm:$0xff]
      %v361 = vld [vmem:[%s1 + $0x18] sm:$0xff]
      %v362 = vld [vmem:[%s1 + $0x20] sm:$0xff]
      %v363 = vld [vmem:[%s1 + $0x28] sm:$0xff]
      %v364 = vld [vmem:[%s1 + $0x30] sm:$0xff]
      %v365 = vld [vmem:[%s1 + $0x38] sm:$0xff]
      %v366 = vld [vmem:[%s1 + $0x40] sm:$0xff]
      %v367 = vld [vmem:[%s1 + $0x48] sm:$0xff]
      %v368 = vld [vmem:[%s1 + $0x50] sm:$0xff]
      %v369 = vld [vmem:[%s1 + $0x58] sm:$0xff]
      %v370 = vld [vmem:[%s1 + $0x60] sm:$0xff]
      %v371 = vld [vmem:[%s1 + $0x68] sm:$0xff]
      %v372 = vld [vmem:[%s1 + $0x70] sm:$0xff]
      %v373 = vld [vmem:[%s1 + $0x78] sm:$0xff]
      %v374 = vld [vmem:[%s1 + $0x80] sm:$0xff]
      %v375 = vld [vmem:[%s1 + $0x88] sm:$0xff]
      %v376 = vld [vmem:[%s1 + $0x90] sm:$0xff]
      %v377 = vld [vmem:[%s1 + $0x98] sm:$0xff]
      %v378 = vld [vmem:[%s1 + $0xa0] sm:$0xff]
      %v379 = vld [vmem:[%s1 + $0xa8] sm:$0xff]
      %v380 = vld [vmem:[%s1 + $0xb0] sm:$0xff]
      %v381 = vld [vmem:[%s1 + $0xb8] sm:$0xff]
      %v384 = vrot.slane %v256, 1
      %v385 = vrot.slane %v257, 1
      %v386 = vsel %vm276, %v384, %v385
      %387 = vrot.lane.b32.xlu0 %v386, 64
      %v388 = vpop.permute.xlu0 %387
      %v390 = vrot.slane %v256, 2
      %v391 = vrot.slane %v257, 2
      %v392 = vsel %vm325, %v390, %v391
      %v393 = vsel %vm198, %v256, %v388
      %s394 = scalar_lea.vmem %s1, 192
      %v395 = vld [vmem:[%s394] sm:$0xff]
      %v396 = vld [vmem:[%s394 + $0x8] sm:$0xff]
      %v397 = vld [vmem:[%s394 + $0x10] sm:$0xff]
      %v398 = vld [vmem:[%s394 + $0x18] sm:$0xff]
      %v399 = vld [vmem:[%s394 + $0x20] sm:$0xff]
      %v400 = vld [vmem:[%s394 + $0x28] sm:$0xff]
      %v401 = vld [vmem:[%s394 + $0x30] sm:$0xff]
      %v402 = vld [vmem:[%s394 + $0x38] sm:$0xff]
      %v403 = vld [vmem:[%s394 + $0x40] sm:$0xff]
      %v404 = vld [vmem:[%s394 + $0x48] sm:$0xff]
      %v405 = vld [vmem:[%s394 + $0x50] sm:$0xff]
      %v406 = vld [vmem:[%s394 + $0x58] sm:$0xff]
      %v407 = vld [vmem:[%s394 + $0x60] sm:$0xff]
      %v408 = vld [vmem:[%s394 + $0x68] sm:$0xff]
      %v409 = vld [vmem:[%s394 + $0x70] sm:$0xff]
      %v410 = vld [vmem:[%s394 + $0x78] sm:$0xff]
      %v411 = vld [vmem:[%s394 + $0x80] sm:$0xff]
      %v412 = vld [vmem:[%s394 + $0x88] sm:$0xff]
      %v413 = vld [vmem:[%s394 + $0x90] sm:$0xff]
      %v414 = vld [vmem:[%s394 + $0x98] sm:$0xff]
      %v415 = vld [vmem:[%s394 + $0xa0] sm:$0xff]
      %v416 = vld [vmem:[%s394 + $0xa8] sm:$0xff]
      %v417 = vld [vmem:[%s394 + $0xb0] sm:$0xff]
      %v418 = vld [vmem:[%s394 + $0xb8] sm:$0xff]
      %v419 = vsel %vm198, %v331, 0
      %v421 = vsel %vm198, %v334, 0
      %v423 = vsel %vm198, %v337, 0
      %v425 = vsel %vm198, %v340, 0
      %v427 = vsel %vm198, %v343, 0
      %v429 = vsel %vm198, %v346, 0
      %v431 = vsel %vm198, %v349, 0
      %v433 = vsel %vm198, %v392, 0
      %435 = vmatprep.subr.mxu0 0.0
      %436 = vmatpush1.msra.mxu0 %v395
      %437 = vmatprep.subr.mxu0 0.0
      %438 = vmatpush1.msra.mxu0 %v396
      %439 = vmatprep.subr.mxu0 0.0
      %440 = vmatpush1.msra.mxu0 %v397
      %441 = vmatprep.subr.mxu0 0.0
      %442 = vmatpush1.msra.mxu0 %v398
      %443 = vmatprep.subr.mxu0 0.0
      %444 = vmatpush1.msra.mxu0 %v399
      %445 = vmatprep.subr.mxu0 0.0
      %446 = vmatpush1.msra.mxu0 %v400
      %447 = vmatprep.subr.mxu0 0.0
      %448 = vmatpush1.msra.mxu0 %v401
      %449 = vmatprep.subr.mxu0 0.0
      %450 = vmatpush1.msra.mxu0 %v402
      %451 = vmatprep.subr.mxu0 0.0
      %452 = vmatpush1.msra.mxu0 %v403
      %453 = vmatprep.subr.mxu0 0.0
      %454 = vmatpush1.msra.mxu0 %v404
      %455 = vmatprep.subr.mxu0 0.0
      %456 = vmatpush1.msra.mxu0 %v405
      %457 = vmatprep.subr.mxu0 0.0
      %458 = vmatpush1.msra.mxu0 %v406
      %459 = vmatprep.subr.mxu0 0.0
      %460 = vmatpush1.msra.mxu0 %v407
      %461 = vmatprep.subr.mxu0 0.0
      %462 = vmatpush1.msra.mxu0 %v408
      %463 = vmatprep.subr.mxu0 0.0
      %464 = vmatpush1.msra.mxu0 %v409
      %465 = vmatprep.subr.mxu0 0.0
      %466 = vmatpush1.msra.mxu0 %v410
      %467 = vmatprep.subr.mxu0 0.0
      %468 = vmatpush1.msra.mxu0 %v411
      %469 = vmatprep.subr.mxu0 0.0
      %470 = vmatpush1.msra.mxu0 %v412
      %471 = vmatprep.subr.mxu0 0.0
      %472 = vmatpush1.msra.mxu0 %v413
      %473 = vmatprep.subr.mxu0 0.0
      %474 = vmatpush1.msra.mxu0 %v414
      %475 = vmatprep.subr.mxu0 0.0
      %476 = vmatpush1.msra.mxu0 %v415
      %477 = vmatprep.subr.mxu0 0.0
      %478 = vmatpush1.msra.mxu0 %v416
      %479 = vmatprep.subr.mxu0 0.0
      %480 = vmatpush1.msra.mxu0 %v417
      %481 = vmatprep.subr.mxu0 0.0
      %482 = vmatpush1.msra.mxu0 %v418
      %483 = vmatprep.subr.mxu0 0.0
      %484 = vmatpush1.msra.mxu0 0.0
      %485 = vmatprep.subr.mxu0 0.0
      %486 = vmatpush1.msra.mxu0 0.0
      %487 = vmatprep.subr.mxu0 0.0
      %488 = vmatpush1.msra.mxu0 0.0
      %489 = vmatprep.subr.mxu0 0.0
      %490 = vmatpush1.msra.mxu0 0.0
      %491 = vmatprep.subr.mxu0 0.0
      %492 = vmatpush1.msra.mxu0 0.0
      %493 = vmatprep.subr.mxu0 0.0
      %494 = vmatpush1.msra.mxu0 0.0
      %495 = vmatprep.subr.mxu0 0.0
      %496 = vmatpush1.msra.mxu0 0.0
      %497 = vmatprep.subr.mxu0 0.0
      %498 = vmatpush1.msra.mxu0 0.0
      %499 = vmatprep.mubr.f32.mxu0 %v419
      %500 = vmatmul.mubr.f32.gmra.mrb[0].mxu0 %v351
      %v501 = vpop.f32.mrb[0].mxu0
      %v502 = vadd.f32 0.0, %v501
      %v503 = vpop.f32.mrb[0].mxu0
      %504 = vmatprep.mubr.f32.mxu0 %v421
      %505 = vmatmul.mubr.f32.gmra.mrb[0].mxu0 %v352
      %v506 = vpop.f32.mrb[0].mxu0
      %v507 = vadd.f32 0.0, %v506
      %v508 = vpop.f32.mrb[0].mxu0
      %509 = vmatprep.mubr.f32.mxu0 %v423
      %510 = vmatmul.mubr.f32.gmra.mrb[0].mxu0 %v353
      %v511 = vpop.f32.mrb[0].mxu0
      %v512 = vadd.f32 0.0, %v511
      %v513 = vpop.f32.mrb[0].mxu0
      %514 = vmatprep.mubr.f32.mxu0 %v425
      %515 = vmatmul.mubr.f32.gmra.mrb[0].mxu0 %v354
      %v516 = vpop.f32.mrb[0].mxu0
      %v517 = vadd.f32 0.0, %v516
      %v518 = vpop.f32.mrb[0].mxu0
      %519 = vmatprep.mubr.f32.mxu0 %v427
      %520 = vmatmul.mubr.f32.gmra.mrb[0].mxu0 %v355
      %v521 = vpop.f32.mrb[0].mxu0
      %v522 = vadd.f32 0.0, %v521
      %v523 = vpop.f32.mrb[0].mxu0
      %524 = vmatprep.mubr.f32.mxu0 %v429
      %525 = vmatmul.mubr.f32.gmra.mrb[0].mxu0 %v356
      %v526 = vpop.f32.mrb[0].mxu0
      %v527 = vadd.f32 0.0, %v526
      %v528 = vpop.f32.mrb[0].mxu0
      %529 = vmatprep.mubr.f32.mxu0 %v431
      %530 = vmatmul.mubr.f32.gmra.mrb[0].mxu0 %v357
      %v531 = vpop.f32.mrb[0].mxu0
      %v532 = vadd.f32 0.0, %v531
      %v533 = vpop.f32.mrb[0].mxu0
      %534 = vmatprep.mubr.f32.mxu0 %v433
      %535 = vmatmul.mubr.f32.gmra.mrb[0].mxu0 %v393
      %v536 = vpop.f32.mrb[0].mxu0
      %v537 = vadd.f32 0.0, %v536
      %v538 = vpop.f32.mrb[0].mxu0
      %539 = vdwg.mxu0
      %v540 = vsel %vm198, %v328, 0
      %542 = vmatprep.subr.mxu0 0.0
      %543 = vmatpush1.msra.mxu0 %v358
      %544 = vmatprep.subr.mxu0 0.0
      %545 = vmatpush1.msra.mxu0 %v359
      %546 = vmatprep.subr.mxu0 0.0
      %547 = vmatpush1.msra.mxu0 %v360
      %548 = vmatprep.subr.mxu0 0.0
      %549 = vmatpush1.msra.mxu0 %v361
      %550 = vmatprep.subr.mxu0 0.0
      %551 = vmatpush1.msra.mxu0 %v362
      %552 = vmatprep.subr.mxu0 0.0
      %553 = vmatpush1.msra.mxu0 %v363
      %554 = vmatprep.subr.mxu0 0.0
      %555 = vmatpush1.msra.mxu0 %v364
      %556 = vmatprep.subr.mxu0 0.0
      %557 = vmatpush1.msra.mxu0 %v365
      %558 = vmatprep.subr.mxu0 0.0
      %559 = vmatpush1.msra.mxu0 %v366
      %560 = vmatprep.subr.mxu0 0.0
      %561 = vmatpush1.msra.mxu0 %v367
      %562 = vmatprep.subr.mxu0 0.0
      %563 = vmatpush1.msra.mxu0 %v368
      %564 = vmatprep.subr.mxu0 0.0
      %565 = vmatpush1.msra.mxu0 %v369
      %566 = vmatprep.subr.mxu0 0.0
      %567 = vmatpush1.msra.mxu0 %v370
      %568 = vmatprep.subr.mxu0 0.0
      %569 = vmatpush1.msra.mxu0 %v371
      %570 = vmatprep.subr.mxu0 0.0
      %571 = vmatpush1.msra.mxu0 %v372
      %572 = vmatprep.subr.mxu0 0.0
      %573 = vmatpush1.msra.mxu0 %v373
      %574 = vmatprep.subr.mxu0 0.0
      %575 = vmatpush1.msra.mxu0 %v374
      %576 = vmatprep.subr.mxu0 0.0
      %577 = vmatpush1.msra.mxu0 %v375
      %578 = vmatprep.subr.mxu0 0.0
      %579 = vmatpush1.msra.mxu0 %v376
      %580 = vmatprep.subr.mxu0 0.0
      %581 = vmatpush1.msra.mxu0 %v377
      %582 = vmatprep.subr.mxu0 0.0
      %583 = vmatpush1.msra.mxu0 %v378
      %584 = vmatprep.subr.mxu0 0.0
      %585 = vmatpush1.msra.mxu0 %v379
      %586 = vmatprep.subr.mxu0 0.0
      %587 = vmatpush1.msra.mxu0 %v380
      %588 = vmatprep.subr.mxu0 0.0
      %589 = vmatpush1.msra.mxu0 %v381
      %590 = vmatprep.subr.mxu0 0.0
      %591 = vmatpush1.msra.mxu0 0.0
      %592 = vmatprep.subr.mxu0 0.0
      %593 = vmatpush1.msra.mxu0 0.0
      %594 = vmatprep.subr.mxu0 0.0
      %595 = vmatpush1.msra.mxu0 0.0
      %596 = vmatprep.subr.mxu0 0.0
      %597 = vmatpush1.msra.mxu0 0.0
      %598 = vmatprep.subr.mxu0 0.0
      %599 = vmatpush1.msra.mxu0 0.0
      %600 = vmatprep.subr.mxu0 0.0
      %601 = vmatpush1.msra.mxu0 0.0
      %602 = vmatprep.subr.mxu0 0.0
      %603 = vmatpush1.msra.mxu0 0.0
      %604 = vmatprep.subr.mxu0 0.0
      %605 = vmatpush1.msra.mxu0 0.0
      %606 = vmatprep.mubr.f32.mxu0 %v540
      %607 = vmatmul.mubr.f32.gmra.mrb[0].mxu0 %v350
      %v608 = vpop.f32.mrb[0].mxu0
      %v609 = vadd.f32 %v502, %v608
      %v610 = vpop.f32.mrb[0].mxu0
      %611 = vmatprep.mubr.f32.mxu0 %v419
      %612 = vmatmul.mubr.f32.gmra.mrb[0].mxu0 %v351
      %v613 = vpop.f32.mrb[0].mxu0
      %v614 = vadd.f32 %v507, %v613
      %v615 = vpop.f32.mrb[0].mxu0
      %616 = vmatprep.mubr.f32.mxu0 %v421
      %617 = vmatmul.mubr.f32.gmra.mrb[0].mxu0 %v352
      %v618 = vpop.f32.mrb[0].mxu0
      %v619 = vadd.f32 %v512, %v618
      %v620 = vpop.f32.mrb[0].mxu0
      %621 = vmatprep.mubr.f32.mxu0 %v423
      %622 = vmatmul.mubr.f32.gmra.mrb[0].mxu0 %v353
      %v623 = vpop.f32.mrb[0].mxu0
      %v624 = vadd.f32 %v517, %v623
      %v625 = vpop.f32.mrb[0].mxu0
      %626 = vmatprep.mubr.f32.mxu0 %v425
      %627 = vmatmul.mubr.f32.gmra.mrb[0].mxu0 %v354
      %v628 = vpop.f32.mrb[0].mxu0
      %v629 = vadd.f32 %v522, %v628
      %v630 = vpop.f32.mrb[0].mxu0
      %631 = vmatprep.mubr.f32.mxu0 %v427
      %632 = vmatmul.mubr.f32.gmra.mrb[0].mxu0 %v355
      %v633 = vpop.f32.mrb[0].mxu0
      %v634 = vadd.f32 %v527, %v633
      %v635 = vpop.f32.mrb[0].mxu0
      %636 = vmatprep.mubr.f32.mxu0 %v429
      %637 = vmatmul.mubr.f32.gmra.mrb[0].mxu0 %v356
      %v638 = vpop.f32.mrb[0].mxu0
      %v639 = vadd.f32 %v532, %v638
      %v640 = vpop.f32.mrb[0].mxu0
      %641 = vmatprep.mubr.f32.mxu0 %v431
      %642 = vmatmul.mubr.f32.gmra.mrb[0].mxu0 %v357
      %v643 = vpop.f32.mrb[0].mxu0
      %v644 = vadd.f32 %v537, %v643
      %v645 = vpop.f32.mrb[0].mxu0
      %646 = vdwg.mxu0
      %v649 = vrot.slane %v258, 1
      %v650 = vrot.slane %v259, 1
      %v651 = vsel %vm276, %v649, %v650
      %652 = vrot.lane.b32.xlu0 %v651, 64
      %v653 = vpop.permute.xlu0 %652
      %v655 = vrot.slane %v258, 2
      %v656 = vrot.slane %v259, 2
      %v657 = vsel %vm325, %v655, %v656
      %v658 = vsel %vm198, %v258, %v653
      %s659 = scalar_lea.vmem %s1, 384
      %v660 = vld [vmem:[%s659] sm:$0xff]
      %v661 = vld [vmem:[%s659 + $0x8] sm:$0xff]
      %v662 = vld [vmem:[%s659 + $0x10] sm:$0xff]
      %v663 = vld [vmem:[%s659 + $0x18] sm:$0xff]
      %v664 = vld [vmem:[%s659 + $0x20] sm:$0xff]
      %v665 = vld [vmem:[%s659 + $0x28] sm:$0xff]
      %v666 = vld [vmem:[%s659 + $0x30] sm:$0xff]
      %v667 = vld [vmem:[%s659 + $0x38] sm:$0xff]
      %v668 = vld [vmem:[%s659 + $0x40] sm:$0xff]
      %v669 = vld [vmem:[%s659 + $0x48] sm:$0xff]
      %v670 = vld [vmem:[%s659 + $0x50] sm:$0xff]
      %v671 = vld [vmem:[%s659 + $0x58] sm:$0xff]
      %v672 = vld [vmem:[%s659 + $0x60] sm:$0xff]
      %v673 = vld [vmem:[%s659 + $0x68] sm:$0xff]
      %v674 = vld [vmem:[%s659 + $0x70] sm:$0xff]
      %v675 = vld [vmem:[%s659 + $0x78] sm:$0xff]
      %v676 = vld [vmem:[%s659 + $0x80] sm:$0xff]
      %v677 = vld [vmem:[%s659 + $0x88] sm:$0xff]
      %v678 = vld [vmem:[%s659 + $0x90] sm:$0xff]
      %v679 = vld [vmem:[%s659 + $0x98] sm:$0xff]
      %v680 = vld [vmem:[%s659 + $0xa0] sm:$0xff]
      %v681 = vld [vmem:[%s659 + $0xa8] sm:$0xff]
      %v682 = vld [vmem:[%s659 + $0xb0] sm:$0xff]
      %v683 = vld [vmem:[%s659 + $0xb8] sm:$0xff]
      %v684 = vsel %vm198, %v657, 0
      %686 = vmatprep.subr.mxu0 0.0
      %687 = vmatpush1.msra.mxu0 %v660
      %688 = vmatprep.subr.mxu0 0.0
      %689 = vmatpush1.msra.mxu0 %v661
      %690 = vmatprep.subr.mxu0 0.0
      %691 = vmatpush1.msra.mxu0 %v662
      %692 = vmatprep.subr.mxu0 0.0
      %693 = vmatpush1.msra.mxu0 %v663
      %694 = vmatprep.subr.mxu0 0.0
      %695 = vmatpush1.msra.mxu0 %v664
      %696 = vmatprep.subr.mxu0 0.0
      %697 = vmatpush1.msra.mxu0 %v665
      %698 = vmatprep.subr.mxu0 0.0
      %699 = vmatpush1.msra.mxu0 %v666
      %700 = vmatprep.subr.mxu0 0.0
      %701 = vmatpush1.msra.mxu0 %v667
      %702 = vmatprep.subr.mxu0 0.0
      %703 = vmatpush1.msra.mxu0 %v668
      %704 = vmatprep.subr.mxu0 0.0
      %705 = vmatpush1.msra.mxu0 %v669
      %706 = vmatprep.subr.mxu0 0.0
      %707 = vmatpush1.msra.mxu0 %v670
      %708 = vmatprep.subr.mxu0 0.0
      %709 = vmatpush1.msra.mxu0 %v671
      %710 = vmatprep.subr.mxu0 0.0
      %711 = vmatpush1.msra.mxu0 %v672
      %712 = vmatprep.subr.mxu0 0.0
      %713 = vmatpush1.msra.mxu0 %v673
      %714 = vmatprep.subr.mxu0 0.0
      %715 = vmatpush1.msra.mxu0 %v674
      %716 = vmatprep.subr.mxu0 0.0
      %717 = vmatpush1.msra.mxu0 %v675
      %718 = vmatprep.subr.mxu0 0.0
      %719 = vmatpush1.msra.mxu0 %v676
      %720 = vmatprep.subr.mxu0 0.0
      %721 = vmatpush1.msra.mxu0 %v677
      %722 = vmatprep.subr.mxu0 0.0
      %723 = vmatpush1.msra.mxu0 %v678
      %724 = vmatprep.subr.mxu0 0.0
      %725 = vmatpush1.msra.mxu0 %v679
      %726 = vmatprep.subr.mxu0 0.0
      %727 = vmatpush1.msra.mxu0 %v680
      %728 = vmatprep.subr.mxu0 0.0
      %729 = vmatpush1.msra.mxu0 %v681
      %730 = vmatprep.subr.mxu0 0.0
      %731 = vmatpush1.msra.mxu0 %v682
      %732 = vmatprep.subr.mxu0 0.0
      %733 = vmatpush1.msra.mxu0 %v683
      %734 = vmatprep.subr.mxu0 0.0
      %735 = vmatpush1.msra.mxu0 0.0
      %736 = vmatprep.subr.mxu0 0.0
      %737 = vmatpush1.msra.mxu0 0.0
      %738 = vmatprep.subr.mxu0 0.0
      %739 = vmatpush1.msra.mxu0 0.0
      %740 = vmatprep.subr.mxu0 0.0
      %741 = vmatpush1.msra.mxu0 0.0
      %742 = vmatprep.subr.mxu0 0.0
      %743 = vmatpush1.msra.mxu0 0.0
      %744 = vmatprep.subr.mxu0 0.0
      %745 = vmatpush1.msra.mxu0 0.0
      %746 = vmatprep.subr.mxu0 0.0
      %747 = vmatpush1.msra.mxu0 0.0
      %748 = vmatprep.subr.mxu0 0.0
      %749 = vmatpush1.msra.mxu0 0.0
      %750 = vmatprep.mubr.f32.mxu0 %v421
      %751 = vmatmul.mubr.f32.gmra.mrb[0].mxu0 %v352
      %v752 = vpop.f32.mrb[0].mxu0
      %v753 = vadd.f32 0.0, %v752
      %v754 = vpop.f32.mrb[0].mxu0
      %755 = vmatprep.mubr.f32.mxu0 %v423
      %756 = vmatmul.mubr.f32.gmra.mrb[0].mxu0 %v353
      %v757 = vpop.f32.mrb[0].mxu0
      %v758 = vadd.f32 0.0, %v757
      %v759 = vpop.f32.mrb[0].mxu0
      %760 = vmatprep.mubr.f32.mxu0 %v425
      %761 = vmatmul.mubr.f32.gmra.mrb[0].mxu0 %v354
      %v762 = vpop.f32.mrb[0].mxu0
      %v763 = vadd.f32 0.0, %v762
      %v764 = vpop.f32.mrb[0].mxu0
      %765 = vmatprep.mubr.f32.mxu0 %v427
      %766 = vmatmul.mubr.f32.gmra.mrb[0].mxu0 %v355
      %v767 = vpop.f32.mrb[0].mxu0
      %v768 = vadd.f32 0.0, %v767
      %v769 = vpop.f32.mrb[0].mxu0
      %770 = vmatprep.mubr.f32.mxu0 %v429
      %771 = vmatmul.mubr.f32.gmra.mrb[0].mxu0 %v356
      %v772 = vpop.f32.mrb[0].mxu0
      %v773 = vadd.f32 0.0, %v772
      %v774 = vpop.f32.mrb[0].mxu0
      %775 = vmatprep.mubr.f32.mxu0 %v431
      %776 = vmatmul.mubr.f32.gmra.mrb[0].mxu0 %v357
      %v777 = vpop.f32.mrb[0].mxu0
      %v778 = vadd.f32 0.0, %v777
      %v779 = vpop.f32.mrb[0].mxu0
      %780 = vmatprep.mubr.f32.mxu0 %v433
      %781 = vmatmul.mubr.f32.gmra.mrb[0].mxu0 %v393
      %v782 = vpop.f32.mrb[0].mxu0
      %v783 = vadd.f32 0.0, %v782
      %v784 = vpop.f32.mrb[0].mxu0
      %785 = vmatprep.mubr.f32.mxu0 %v684
      %786 = vmatmul.mubr.f32.gmra.mrb[0].mxu0 %v658
      %v787 = vpop.f32.mrb[0].mxu0
      %v788 = vadd.f32 0.0, %v787
      %v789 = vpop.f32.mrb[0].mxu0
      %790 = vdwg.mxu0
      %v791 = vadd.f32 %v609, %v753
      %v792 = vadd.f32 %v614, %v758
      %v793 = vadd.f32 %v619, %v763
      %v794 = vadd.f32 %v624, %v768
      %v795 = vadd.f32 %v629, %v773
      %v796 = vadd.f32 %v634, %v778
      %v797 = vadd.f32 %v639, %v783
      %v798 = vadd.f32 %v644, %v788
      %v799 = vld [vmem:[%s2] sm:$0x1]
      %v801 = vlaneseq
      %v802 = vshrl.u32 %v801, 7
      %v803 = vsub.s32 0, %v802
      %v804 = vrot.slane %v799, %v803
      %v806 = vmul.f32 %v791, %v804
      %v807 = vmul.f32 %v792, %v804
      %v808 = vmul.f32 %v793, %v804
      %v809 = vmul.f32 %v794, %v804
      %v810 = vmul.f32 %v795, %v804
      %v811 = vmul.f32 %v796, %v804
      %v812 = vmul.f32 %v797, %v804
      %v813 = vmul.f32 %v798, %v804
      %v814 = vld [vmem:[%s3] sm:$0x1]
      %v816 = vlaneseq
      %v817 = vshrl.u32 %v816, 7
      %v818 = vsub.s32 0, %v817
      %v819 = vrot.slane %v814, %v818
      %v821 = vadd.f32 %v806, %v819
      %v822 = vadd.f32 %v807, %v819
      %v823 = vadd.f32 %v808, %v819
      %v824 = vadd.f32 %v809, %v819
      %v825 = vadd.f32 %v810, %v819
      %v826 = vadd.f32 %v811, %v819
      %v827 = vadd.f32 %v812, %v819
      %v828 = vadd.f32 %v813, %v819
      %v829 = vmax.f32 %v821, 0.0
      %v830 = vmax.f32 %v822, 0.0
      %v831 = vmax.f32 %v823, 0.0
      %v832 = vmax.f32 %v824, 0.0
      %v833 = vmax.f32 %v825, 0.0
      %v834 = vmax.f32 %v826, 0.0
      %v835 = vmax.f32 %v827, 0.0
      %v836 = vmax.f32 %v828, 0.0
      %s837 = scalar_lea.vmem [#allocation2], 16
      %838 = vst.msk [vmem:[%s837 + $0x1] sm:$0xff] %vm198, %v829
      %839 = vst.msk [vmem:[%s837 + $0x11] sm:$0xff] %vm198, %v830
      %840 = vst.msk [vmem:[%s837 + $0x21] sm:$0xff] %vm198, %v831
      %841 = vst.msk [vmem:[%s837 + $0x31] sm:$0xff] %vm198, %v832
      %842 = vst.msk [vmem:[%s837 + $0x41] sm:$0xff] %vm198, %v833
      %843 = vst.msk [vmem:[%s837 + $0x51] sm:$0xff] %vm198, %v834
      %844 = vst.msk [vmem:[%s837 + $0x61] sm:$0xff] %vm198, %v835
      %845 = vst.msk [vmem:[%s837 + $0x71] sm:$0xff] %vm198, %v836
      %v846 = vld [vmem:[#allocation2] sm:$0xff]
      %v847 = vld [vmem:[#allocation2 + $0x8] sm:$0x3]
      %v848 = vld [vmem:[#allocation2 + $0x10] sm:$0xff]
      %v849 = vld [vmem:[#allocation2 + $0x18] sm:$0x3]
      %v850 = vld [vmem:[#allocation2 + $0x20] sm:$0xff]
      %v851 = vld [vmem:[#allocation2 + $0x28] sm:$0x3]
      %v852 = vld [vmem:[#allocation2 + $0x30] sm:$0xff]
      %v853 = vld [vmem:[#allocation2 + $0x38] sm:$0x3]
      %v854 = vld [vmem:[#allocation2 + $0x40] sm:$0xff]
      %v855 = vld [vmem:[#allocation2 + $0x48] sm:$0x3]
      %v856 = vld [vmem:[#allocation2 + $0x50] sm:$0xff]
      %v857 = vld [vmem:[#allocation2 + $0x58] sm:$0x3]
      %v858 = vld [vmem:[#allocation2 + $0x60] sm:$0xff]
      %v859 = vld [vmem:[#allocation2 + $0x68] sm:$0x3]
      %v860 = vld [vmem:[#allocation2 + $0x70] sm:$0xff]
      %v861 = vld [vmem:[#allocation2 + $0x78] sm:$0x3]
      %v862 = vld [vmem:[#allocation2 + $0x80] sm:$0xff]
      %v863 = vld [vmem:[#allocation2 + $0x88] sm:$0x3]
      %v864 = vld [vmem:[#allocation2 + $0x90] sm:$0xff]
      %v865 = vld [vmem:[#allocation2 + $0x98] sm:$0x3]
      %v882 = vrot.slane %v846, 1
      %v883 = vrot.slane %v847, 1
      %v884 = vsel %vm276, %v882, %v883
      %v885 = vrot.slane %v848, 1
      %v886 = vrot.slane %v849, 1
      %v887 = vsel %vm276, %v885, %v886
      %v888 = vrot.slane %v850, 1
      %v889 = vrot.slane %v851, 1
      %v890 = vsel %vm276, %v888, %v889
      %v891 = vrot.slane %v852, 1
      %v892 = vrot.slane %v853, 1
      %v893 = vsel %vm276, %v891, %v892
      %v894 = vrot.slane %v854, 1
      %v895 = vrot.slane %v855, 1
      %v896 = vsel %vm276, %v894, %v895
      %v897 = vrot.slane %v856, 1
      %v898 = vrot.slane %v857, 1
      %v899 = vsel %vm276, %v897, %v898
      %v900 = vrot.slane %v858, 1
      %v901 = vrot.slane %v859, 1
      %v902 = vsel %vm276, %v900, %v901
      %v903 = vrot.slane %v860, 1
      %v904 = vrot.slane %v861, 1
      %v905 = vsel %vm276, %v903, %v904
      %906 = vrot.lane.b32.xlu0 %v884, 64
      %v907 = vpop.permute.xlu0 %906
      %908 = vrot.lane.b32.xlu0 %v887, 64
      %v909 = vpop.permute.xlu0 %908
      %910 = vrot.lane.b32.xlu0 %v890, 64
      %v911 = vpop.permute.xlu0 %910
      %912 = vrot.lane.b32.xlu0 %v893, 64
      %v913 = vpop.permute.xlu0 %912
      %914 = vrot.lane.b32.xlu0 %v896, 64
      %v915 = vpop.permute.xlu0 %914
      %916 = vrot.lane.b32.xlu0 %v899, 64
      %v917 = vpop.permute.xlu0 %916
      %918 = vrot.lane.b32.xlu0 %v902, 64
      %v919 = vpop.permute.xlu0 %918
      %920 = vrot.lane.b32.xlu0 %v905, 64
      %v921 = vpop.permute.xlu0 %920
      %v930 = vrot.slane %v846, 2
      %v931 = vrot.slane %v847, 2
      %v932 = vsel %vm325, %v930, %v931
      %v933 = vrot.slane %v848, 2
      %v934 = vrot.slane %v849, 2
      %v935 = vsel %vm325, %v933, %v934
      %v936 = vrot.slane %v850, 2
      %v937 = vrot.slane %v851, 2
      %v938 = vsel %vm325, %v936, %v937
      %v939 = vrot.slane %v852, 2
      %v940 = vrot.slane %v853, 2
      %v941 = vsel %vm325, %v939, %v940
      %v942 = vrot.slane %v854, 2
      %v943 = vrot.slane %v855, 2
      %v944 = vsel %vm325, %v942, %v943
      %v945 = vrot.slane %v856, 2
      %v946 = vrot.slane %v857, 2
      %v947 = vsel %vm325, %v945, %v946
      %v948 = vrot.slane %v858, 2
      %v949 = vrot.slane %v859, 2
      %v950 = vsel %vm325, %v948, %v949
      %v951 = vrot.slane %v860, 2
      %v952 = vrot.slane %v861, 2
      %v953 = vsel %vm325, %v951, %v952
      %v954 = vsel %vm198, %v846, %v907
      %v955 = vsel %vm198, %v848, %v909
      %v956 = vsel %vm198, %v850, %v911
      %v957 = vsel %vm198, %v852, %v913
      %v958 = vsel %vm198, %v854, %v915
      %v959 = vsel %vm198, %v856, %v917
      %v960 = vsel %vm198, %v858, %v919
      %v961 = vsel %vm198, %v860, %v921
      %s962 = scalar_lea.vmem %s1, 576
      %v963 = vld [vmem:[%s962] sm:$0xff]
      %v964 = vld [vmem:[%s962 + $0x8] sm:$0xff]
      %v965 = vld [vmem:[%s962 + $0x10] sm:$0xff]
      %v966 = vld [vmem:[%s962 + $0x18] sm:$0xff]
      %v967 = vld [vmem:[%s962 + $0x20] sm:$0xff]
      %v968 = vld [vmem:[%s962 + $0x28] sm:$0xff]
      %v969 = vld [vmem:[%s962 + $0x30] sm:$0xff]
      %v970 = vld [vmem:[%s962 + $0x38] sm:$0xff]
      %v971 = vld [vmem:[%s962 + $0x40] sm:$0xff]
      %v972 = vld [vmem:[%s962 + $0x48] sm:$0xff]
      %v973 = vld [vmem:[%s962 + $0x50] sm:$0xff]
      %v974 = vld [vmem:[%s962 + $0x58] sm:$0xff]
      %v975 = vld [vmem:[%s962 + $0x60] sm:$0xff]
      %v976 = vld [vmem:[%s962 + $0x68] sm:$0xff]
      %v977 = vld [vmem:[%s962 + $0x70] sm:$0xff]
      %v978 = vld [vmem:[%s962 + $0x78] sm:$0xff]
      %v979 = vld [vmem:[%s962 + $0x80] sm:$0xff]
      %v980 = vld [vmem:[%s962 + $0x88] sm:$0xff]
      %v981 = vld [vmem:[%s962 + $0x90] sm:$0xff]
      %v982 = vld [vmem:[%s962 + $0x98] sm:$0xff]
      %v983 = vld [vmem:[%s962 + $0xa0] sm:$0xff]
      %v984 = vld [vmem:[%s962 + $0xa8] sm:$0xff]
      %v985 = vld [vmem:[%s962 + $0xb0] sm:$0xff]
      %v986 = vld [vmem:[%s962 + $0xb8] sm:$0xff]
      %v989 = vrot.slane %v862, 1
      %v990 = vrot.slane %v863, 1
      %v991 = vsel %vm276, %v989, %v990
      %992 = vrot.lane.b32.xlu0 %v991, 64
      %v993 = vpop.permute.xlu0 %992
      %v995 = vrot.slane %v862, 2
      %v996 = vrot.slane %v863, 2
      %v997 = vsel %vm325, %v995, %v996
      %v998 = vsel %vm198, %v862, %v993
      %s999 = scalar_lea.vmem %s1, 768
      %v1000 = vld [vmem:[%s999] sm:$0xff]
      %v1001 = vld [vmem:[%s999 + $0x8] sm:$0xff]
      %v1002 = vld [vmem:[%s999 + $0x10] sm:$0xff]
      %v1003 = vld [vmem:[%s999 + $0x18] sm:$0xff]
      %v1004 = vld [vmem:[%s999 + $0x20] sm:$0xff]
      %v1005 = vld [vmem:[%s999 + $0x28] sm:$0xff]
      %v1006 = vld [vmem:[%s999 + $0x30] sm:$0xff]
      %v1007 = vld [vmem:[%s999 + $0x38] sm:$0xff]
      %v1008 = vld [vmem:[%s999 + $0x40] sm:$0xff]
      %v1009 = vld [vmem:[%s999 + $0x48] sm:$0xff]
      %v1010 = vld [vmem:[%s999 + $0x50] sm:$0xff]
      %v1011 = vld [vmem:[%s999 + $0x58] sm:$0xff]
      %v1012 = vld [vmem:[%s999 + $0x60] sm:$0xff]
      %v1013 = vld [vmem:[%s999 + $0x68] sm:$0xff]
      %v1014 = vld [vmem:[%s999 + $0x70] sm:$0xff]
      %v1015 = vld [vmem:[%s999 + $0x78] sm:$0xff]
      %v1016 = vld [vmem:[%s999 + $0x80] sm:$0xff]
      %v1017 = vld [vmem:[%s999 + $0x88] sm:$0xff]
      %v1018 = vld [vmem:[%s999 + $0x90] sm:$0xff]
      %v1019 = vld [vmem:[%s999 + $0x98] sm:$0xff]
      %v1020 = vld [vmem:[%s999 + $0xa0] sm:$0xff]
      %v1021 = vld [vmem:[%s999 + $0xa8] sm:$0xff]
      %v1022 = vld [vmem:[%s999 + $0xb0] sm:$0xff]
      %v1023 = vld [vmem:[%s999 + $0xb8] sm:$0xff]
      %v1024 = vsel %vm198, %v935, 0
      %v1026 = vsel %vm198, %v938, 0
      %v1028 = vsel %vm198, %v941, 0
      %v1030 = vsel %vm198, %v944, 0
      %v1032 = vsel %vm198, %v947, 0
      %v1034 = vsel %vm198, %v950, 0
      %v1036 = vsel %vm198, %v953, 0
      %v1038 = vsel %vm198, %v997, 0
      %1040 = vmatprep.subr.mxu0 0.0
      %1041 = vmatpush1.msra.mxu0 %v1000
      %1042 = vmatprep.subr.mxu0 0.0
      %1043 = vmatpush1.msra.mxu0 %v1001
      %1044 = vmatprep.subr.mxu0 0.0
      %1045 = vmatpush1.msra.mxu0 %v1002
      %1046 = vmatprep.subr.mxu0 0.0
      %1047 = vmatpush1.msra.mxu0 %v1003
      %1048 = vmatprep.subr.mxu0 0.0
      %1049 = vmatpush1.msra.mxu0 %v1004
      %1050 = vmatprep.subr.mxu0 0.0
      %1051 = vmatpush1.msra.mxu0 %v1005
      %1052 = vmatprep.subr.mxu0 0.0
      %1053 = vmatpush1.msra.mxu0 %v1006
      %1054 = vmatprep.subr.mxu0 0.0
      %1055 = vmatpush1.msra.mxu0 %v1007
      %1056 = vmatprep.subr.mxu0 0.0
      %1057 = vmatpush1.msra.mxu0 %v1008
      %1058 = vmatprep.subr.mxu0 0.0
      %1059 = vmatpush1.msra.mxu0 %v1009
      %1060 = vmatprep.subr.mxu0 0.0
      %1061 = vmatpush1.msra.mxu0 %v1010
      %1062 = vmatprep.subr.mxu0 0.0
      %1063 = vmatpush1.msra.mxu0 %v1011
      %1064 = vmatprep.subr.mxu0 0.0
      %1065 = vmatpush1.msra.mxu0 %v1012
      %1066 = vmatprep.subr.mxu0 0.0
      %1067 = vmatpush1.msra.mxu0 %v1013
      %1068 = vmatprep.subr.mxu0 0.0
      %1069 = vmatpush1.msra.mxu0 %v1014
      %1070 = vmatprep.subr.mxu0 0.0
      %1071 = vmatpush1.msra.mxu0 %v1015
      %1072 = vmatprep.subr.mxu0 0.0
      %1073 = vmatpush1.msra.mxu0 %v1016
      %1074 = vmatprep.subr.mxu0 0.0
      %1075 = vmatpush1.msra.mxu0 %v1017
      %1076 = vmatprep.subr.mxu0 0.0
      %1077 = vmatpush1.msra.mxu0 %v1018
      %1078 = vmatprep.subr.mxu0 0.0
      %1079 = vmatpush1.msra.mxu0 %v1019
      %1080 = vmatprep.subr.mxu0 0.0
      %1081 = vmatpush1.msra.mxu0 %v1020
      %1082 = vmatprep.subr.mxu0 0.0
      %1083 = vmatpush1.msra.mxu0 %v1021
      %1084 = vmatprep.subr.mxu0 0.0
      %1085 = vmatpush1.msra.mxu0 %v1022
      %1086 = vmatprep.subr.mxu0 0.0
      %1087 = vmatpush1.msra.mxu0 %v1023
      %1088 = vmatprep.subr.mxu0 0.0
      %1089 = vmatpush1.msra.mxu0 0.0
      %1090 = vmatprep.subr.mxu0 0.0
      %1091 = vmatpush1.msra.mxu0 0.0
      %1092 = vmatprep.subr.mxu0 0.0
      %1093 = vmatpush1.msra.mxu0 0.0
      %1094 = vmatprep.subr.mxu0 0.0
      %1095 = vmatpush1.msra.mxu0 0.0
      %1096 = vmatprep.subr.mxu0 0.0
      %1097 = vmatpush1.msra.mxu0 0.0
      %1098 = vmatprep.subr.mxu0 0.0
      %1099 = vmatpush1.msra.mxu0 0.0
      %1100 = vmatprep.subr.mxu0 0.0
      %1101 = vmatpush1.msra.mxu0 0.0
      %1102 = vmatprep.subr.mxu0 0.0
      %1103 = vmatpush1.msra.mxu0 0.0
      %1104 = vmatprep.mubr.f32.mxu0 %v1024
      %1105 = vmatmul.mubr.f32.gmra.mrb[0].mxu0 %v955
      %v1106 = vpop.f32.mrb[0].mxu0
      %v1107 = vadd.f32 0.0, %v1106
      %v1108 = vpop.f32.mrb[0].mxu0
      %1109 = vmatprep.mubr.f32.mxu0 %v1026
      %1110 = vmatmul.mubr.f32.gmra.mrb[0].mxu0 %v956
      %v1111 = vpop.f32.mrb[0].mxu0
      %v1112 = vadd.f32 0.0, %v1111
      %v1113 = vpop.f32.mrb[0].mxu0
      %1114 = vmatprep.mubr.f32.mxu0 %v1028
      %1115 = vmatmul.mubr.f32.gmra.mrb[0].mxu0 %v957
      %v1116 = vpop.f32.mrb[0].mxu0
      %v1117 = vadd.f32 0.0, %v1116
      %v1118 = vpop.f32.mrb[0].mxu0
      %1119 = vmatprep.mubr.f32.mxu0 %v1030
      %1120 = vmatmul.mubr.f32.gmra.mrb[0].mxu0 %v958
      %v1121 = vpop.f32.mrb[0].mxu0
      %v1122 = vadd.f32 0.0, %v1121
      %v1123 = vpop.f32.mrb[0].mxu0
      %1124 = vmatprep.mubr.f32.mxu0 %v1032
      %1125 = vmatmul.mubr.f32.gmra.mrb[0].mxu0 %v959
      %v1126 = vpop.f32.mrb[0].mxu0
      %v1127 = vadd.f32 0.0, %v1126
      %v1128 = vpop.f32.mrb[0].mxu0
      %1129 = vmatprep.mubr.f32.mxu0 %v1034
      %1130 = vmatmul.mubr.f32.gmra.mrb[0].mxu0 %v960
      %v1131 = vpop.f32.mrb[0].mxu0
      %v1132 = vadd.f32 0.0, %v1131
      %v1133 = vpop.f32.mrb[0].mxu0
      %1134 = vmatprep.mubr.f32.mxu0 %v1036
      %1135 = vmatmul.mubr.f32.gmra.mrb[0].mxu0 %v961
      %v1136 = vpop.f32.mrb[0].mxu0
      %v1137 = vadd.f32 0.0, %v1136
      %v1138 = vpop.f32.mrb[0].mxu0
      %1139 = vmatprep.mubr.f32.mxu0 %v1038
      %1140 = vmatmul.mubr.f32.gmra.mrb[0].mxu0 %v998
      %v1141 = vpop.f32.mrb[0].mxu0
      %v1142 = vadd.f32 0.0, %v1141
      %v1143 = vpop.f32.mrb[0].mxu0
      %1144 = vdwg.mxu0
      %v1145 = vsel %vm198, %v932, 0
      %1147 = vmatprep.subr.mxu0 0.0
      %1148 = vmatpush1.msra.mxu0 %v963
      %1149 = vmatprep.subr.mxu0 0.0
      %1150 = vmatpush1.msra.mxu0 %v964
      %1151 = vmatprep.subr.mxu0 0.0
      %1152 = vmatpush1.msra.mxu0 %v965
      %1153 = vmatprep.subr.mxu0 0.0
      %1154 = vmatpush1.msra.mxu0 %v966
      %1155 = vmatprep.subr.mxu0 0.0
      %1156 = vmatpush1.msra.mxu0 %v967
      %1157 = vmatprep.subr.mxu0 0.0
      %1158 = vmatpush1.msra.mxu0 %v968
      %1159 = vmatprep.subr.mxu0 0.0
      %1160 = vmatpush1.msra.mxu0 %v969
      %1161 = vmatprep.subr.mxu0 0.0
      %1162 = vmatpush1.msra.mxu0 %v970
      %1163 = vmatprep.subr.mxu0 0.0
      %1164 = vmatpush1.msra.mxu0 %v971
      %1165 = vmatprep.subr.mxu0 0.0
      %1166 = vmatpush1.msra.mxu0 %v972
      %1167 = vmatprep.subr.mxu0 0.0
      %1168 = vmatpush1.msra.mxu0 %v973
      %1169 = vmatprep.subr.mxu0 0.0
      %1170 = vmatpush1.msra.mxu0 %v974
      %1171 = vmatprep.subr.mxu0 0.0
      %1172 = vmatpush1.msra.mxu0 %v975
      %1173 = vmatprep.subr.mxu0 0.0
      %1174 = vmatpush1.msra.mxu0 %v976
      %1175 = vmatprep.subr.mxu0 0.0
      %1176 = vmatpush1.msra.mxu0 %v977
      %1177 = vmatprep.subr.mxu0 0.0
      %1178 = vmatpush1.msra.mxu0 %v978
      %1179 = vmatprep.subr.mxu0 0.0
      %1180 = vmatpush1.msra.mxu0 %v979
      %1181 = vmatprep.subr.mxu0 0.0
      %1182 = vmatpush1.msra.mxu0 %v980
      %1183 = vmatprep.subr.mxu0 0.0
      %1184 = vmatpush1.msra.mxu0 %v981
      %1185 = vmatprep.subr.mxu0 0.0
      %1186 = vmatpush1.msra.mxu0 %v982
      %1187 = vmatprep.subr.mxu0 0.0
      %1188 = vmatpush1.msra.mxu0 %v983
      %1189 = vmatprep.subr.mxu0 0.0
      %1190 = vmatpush1.msra.mxu0 %v984
      %1191 = vmatprep.subr.mxu0 0.0
      %1192 = vmatpush1.msra.mxu0 %v985
      %1193 = vmatprep.subr.mxu0 0.0
      %1194 = vmatpush1.msra.mxu0 %v986
      %1195 = vmatprep.subr.mxu0 0.0
      %1196 = vmatpush1.msra.mxu0 0.0
      %1197 = vmatprep.subr.mxu0 0.0
      %1198 = vmatpush1.msra.mxu0 0.0
      %1199 = vmatprep.subr.mxu0 0.0
      %1200 = vmatpush1.msra.mxu0 0.0
      %1201 = vmatprep.subr.mxu0 0.0
      %1202 = vmatpush1.msra.mxu0 0.0
      %1203 = vmatprep.subr.mxu0 0.0
      %1204 = vmatpush1.msra.mxu0 0.0
      %1205 = vmatprep.subr.mxu0 0.0
      %1206 = vmatpush1.msra.mxu0 0.0
      %1207 = vmatprep.subr.mxu0 0.0
      %1208 = vmatpush1.msra.mxu0 0.0
      %1209 = vmatprep.subr.mxu0 0.0
      %1210 = vmatpush1.msra.mxu0 0.0
      %1211 = vmatprep.mubr.f32.mxu0 %v1145
      %1212 = vmatmul.mubr.f32.gmra.mrb[0].mxu0 %v954
      %v1213 = vpop.f32.mrb[0].mxu0
      %v1214 = vadd.f32 %v1107, %v1213
      %v1215 = vpop.f32.mrb[0].mxu0
      %1216 = vmatprep.mubr.f32.mxu0 %v1024
      %1217 = vmatmul.mubr.f32.gmra.mrb[0].mxu0 %v955
      %v1218 = vpop.f32.mrb[0].mxu0
      %v1219 = vadd.f32 %v1112, %v1218
      %v1220 = vpop.f32.mrb[0].mxu0
      %1221 = vmatprep.mubr.f32.mxu0 %v1026
      %1222 = vmatmul.mubr.f32.gmra.mrb[0].mxu0 %v956
      %v1223 = vpop.f32.mrb[0].mxu0
      %v1224 = vadd.f32 %v1117, %v1223
      %v1225 = vpop.f32.mrb[0].mxu0
      %1226 = vmatprep.mubr.f32.mxu0 %v1028
      %1227 = vmatmul.mubr.f32.gmra.mrb[0].mxu0 %v957
      %v1228 = vpop.f32.mrb[0].mxu0
      %v1229 = vadd.f32 %v1122, %v1228
      %v1230 = vpop.f32.mrb[0].mxu0
      %1231 = vmatprep.mubr.f32.mxu0 %v1030
      %1232 = vmatmul.mubr.f32.gmra.mrb[0].mxu0 %v958
      %v1233 = vpop.f32.mrb[0].mxu0
      %v1234 = vadd.f32 %v1127, %v1233
      %v1235 = vpop.f32.mrb[0].mxu0
      %1236 = vmatprep.mubr.f32.mxu0 %v1032
      %1237 = vmatmul.mubr.f32.gmra.mrb[0].mxu0 %v959
      %v1238 = vpop.f32.mrb[0].mxu0
      %v1239 = vadd.f32 %v1132, %v1238
      %v1240 = vpop.f32.mrb[0].mxu0
      %1241 = vmatprep.mubr.f32.mxu0 %v1034
      %1242 = vmatmul.mubr.f32.gmra.mrb[0].mxu0 %v960
      %v1243 = vpop.f32.mrb[0].mxu0
      %v1244 = vadd.f32 %v1137, %v1243
      %v1245 = vpop.f32.mrb[0].mxu0
      %1246 = vmatprep.mubr.f32.mxu0 %v1036
      %1247 = vmatmul.mubr.f32.gmra.mrb[0].mxu0 %v961
      %v1248 = vpop.f32.mrb[0].mxu0
      %v1249 = vadd.f32 %v1142, %v1248
      %v1250 = vpop.f32.mrb[0].mxu0
      %1251 = vdwg.mxu0
      %v1254 = vrot.slane %v864, 1
      %v1255 = vrot.slane %v865, 1
      %v1256 = vsel %vm276, %v1254, %v1255
      %1257 = vrot.lane.b32.xlu0 %v1256, 64
      %v1258 = vpop.permute.xlu0 %1257
      %v1260 = vrot.slane %v864, 2
      %v1261 = vrot.slane %v865, 2
      %v1262 = vsel %vm325, %v1260, %v1261
      %v1263 = vsel %vm198, %v864, %v1258
      %s1264 = scalar_lea.vmem %s1, 960
      %v1265 = vld [vmem:[%s1264] sm:$0xff]
      %v1266 = vld [vmem:[%s1264 + $0x8] sm:$0xff]
      %v1267 = vld [vmem:[%s1264 + $0x10] sm:$0xff]
      %v1268 = vld [vmem:[%s1264 + $0x18] sm:$0xff]
      %v1269 = vld [vmem:[%s1264 + $0x20] sm:$0xff]
      %v1270 = vld [vmem:[%s1264 + $0x28] sm:$0xff]
      %v1271 = vld [vmem:[%s1264 + $0x30] sm:$0xff]
      %v1272 = vld [vmem:[%s1264 + $0x38] sm:$0xff]
      %v1273 = vld [vmem:[%s1264 + $0x40] sm:$0xff]
      %v1274 = vld [vmem:[%s1264 + $0x48] sm:$0xff]
      %v1275 = vld [vmem:[%s1264 + $0x50] sm:$0xff]
      %v1276 = vld [vmem:[%s1264 + $0x58] sm:$0xff]
      %v1277 = vld [vmem:[%s1264 + $0x60] sm:$0xff]
      %v1278 = vld [vmem:[%s1264 + $0x68] sm:$0xff]
      %v1279 = vld [vmem:[%s1264 + $0x70] sm:$0xff]
      %v1280 = vld [vmem:[%s1264 + $0x78] sm:$0xff]
      %v1281 = vld [vmem:[%s1264 + $0x80] sm:$0xff]
      %v1282 = vld [vmem:[%s1264 + $0x88] sm:$0xff]
      %v1283 = vld [vmem:[%s1264 + $0x90] sm:$0xff]
      %v1284 = vld [vmem:[%s1264 + $0x98] sm:$0xff]
      %v1285 = vld [vmem:[%s1264 + $0xa0] sm:$0xff]
      %v1286 = vld [vmem:[%s1264 + $0xa8] sm:$0xff]
      %v1287 = vld [vmem:[%s1264 + $0xb0] sm:$0xff]
      %v1288 = vld [vmem:[%s1264 + $0xb8] sm:$0xff]
      %v1289 = vsel %vm198, %v1262, 0
      %1291 = vmatprep.subr.mxu0 0.0
      %1292 = vmatpush1.msra.mxu0 %v1265
      %1293 = vmatprep.subr.mxu0 0.0
      %1294 = vmatpush1.msra.mxu0 %v1266
      %1295 = vmatprep.subr.mxu0 0.0
      %1296 = vmatpush1.msra.mxu0 %v1267
      %1297 = vmatprep.subr.mxu0 0.0
      %1298 = vmatpush1.msra.mxu0 %v1268
      %1299 = vmatprep.subr.mxu0 0.0
      %1300 = vmatpush1.msra.mxu0 %v1269
      %1301 = vmatprep.subr.mxu0 0.0
      %1302 = vmatpush1.msra.mxu0 %v1270
      %1303 = vmatprep.subr.mxu0 0.0
      %1304 = vmatpush1.msra.mxu0 %v1271
      %1305 = vmatprep.subr.mxu0 0.0
      %1306 = vmatpush1.msra.mxu0 %v1272
      %1307 = vmatprep.subr.mxu0 0.0
      %1308 = vmatpush1.msra.mxu0 %v1273
      %1309 = vmatprep.subr.mxu0 0.0
      %1310 = vmatpush1.msra.mxu0 %v1274
      %1311 = vmatprep.subr.mxu0 0.0
      %1312 = vmatpush1.msra.mxu0 %v1275
      %1313 = vmatprep.subr.mxu0 0.0
      %1314 = vmatpush1.msra.mxu0 %v1276
      %1315 = vmatprep.subr.mxu0 0.0
      %1316 = vmatpush1.msra.mxu0 %v1277
      %1317 = vmatprep.subr.mxu0 0.0
      %1318 = vmatpush1.msra.mxu0 %v1278
      %1319 = vmatprep.subr.mxu0 0.0
      %1320 = vmatpush1.msra.mxu0 %v1279
      %1321 = vmatprep.subr.mxu0 0.0
      %1322 = vmatpush1.msra.mxu0 %v1280
      %1323 = vmatprep.subr.mxu0 0.0
      %1324 = vmatpush1.msra.mxu0 %v1281
      %1325 = vmatprep.subr.mxu0 0.0
      %1326 = vmatpush1.msra.mxu0 %v1282
      %1327 = vmatprep.subr.mxu0 0.0
      %1328 = vmatpush1.msra.mxu0 %v1283
      %1329 = vmatprep.subr.mxu0 0.0
      %1330 = vmatpush1.msra.mxu0 %v1284
      %1331 = vmatprep.subr.mxu0 0.0
      %1332 = vmatpush1.msra.mxu0 %v1285
      %1333 = vmatprep.subr.mxu0 0.0
      %1334 = vmatpush1.msra.mxu0 %v1286
      %1335 = vmatprep.subr.mxu0 0.0
      %1336 = vmatpush1.msra.mxu0 %v1287
      %1337 = vmatprep.subr.mxu0 0.0
      %1338 = vmatpush1.msra.mxu0 %v1288
      %1339 = vmatprep.subr.mxu0 0.0
      %1340 = vmatpush1.msra.mxu0 0.0
      %1341 = vmatprep.subr.mxu0 0.0
      %1342 = vmatpush1.msra.mxu0 0.0
      %1343 = vmatprep.subr.mxu0 0.0
      %1344 = vmatpush1.msra.mxu0 0.0
      %1345 = vmatprep.subr.mxu0 0.0
      %1346 = vmatpush1.msra.mxu0 0.0
      %1347 = vmatprep.subr.mxu0 0.0
      %1348 = vmatpush1.msra.mxu0 0.0
      %1349 = vmatprep.subr.mxu0 0.0
      %1350 = vmatpush1.msra.mxu0 0.0
      %1351 = vmatprep.subr.mxu0 0.0
      %1352 = vmatpush1.msra.mxu0 0.0
      %1353 = vmatprep.subr.mxu0 0.0
      %1354 = vmatpush1.msra.mxu0 0.0
      %1355 = vmatprep.mubr.f32.mxu0 %v1026
      %1356 = vmatmul.mubr.f32.gmra.mrb[0].mxu0 %v956
      %v1357 = vpop.f32.mrb[0].mxu0
      %v1358 = vadd.f32 0.0, %v1357
      %v1359 = vpop.f32.mrb[0].mxu0
      %1360 = vmatprep.mubr.f32.mxu0 %v1028
      %1361 = vmatmul.mubr.f32.gmra.mrb[0].mxu0 %v957
      %v1362 = vpop.f32.mrb[0].mxu0
      %v1363 = vadd.f32 0.0, %v1362
      %v1364 = vpop.f32.mrb[0].mxu0
      %1365 = vmatprep.mubr.f32.mxu0 %v1030
      %1366 = vmatmul.mubr.f32.gmra.mrb[0].mxu0 %v958
      %v1367 = vpop.f32.mrb[0].mxu0
      %v1368 = vadd.f32 0.0, %v1367
      %v1369 = vpop.f32.mrb[0].mxu0
      %1370 = vmatprep.mubr.f32.mxu0 %v1032
      %1371 = vmatmul.mubr.f32.gmra.mrb[0].mxu0 %v959
      %v1372 = vpop.f32.mrb[0].mxu0
      %v1373 = vadd.f32 0.0, %v1372
      %v1374 = vpop.f32.mrb[0].mxu0
      %1375 = vmatprep.mubr.f32.mxu0 %v1034
      %1376 = vmatmul.mubr.f32.gmra.mrb[0].mxu0 %v960
      %v1377 = vpop.f32.mrb[0].mxu0
      %v1378 = vadd.f32 0.0, %v1377
      %v1379 = vpop.f32.mrb[0].mxu0
      %1380 = vmatprep.mubr.f32.mxu0 %v1036
      %1381 = vmatmul.mubr.f32.gmra.mrb[0].mxu0 %v961
      %v1382 = vpop.f32.mrb[0].mxu0
      %v1383 = vadd.f32 0.0, %v1382
      %v1384 = vpop.f32.mrb[0].mxu0
      %1385 = vmatprep.mubr.f32.mxu0 %v1038
      %1386 = vmatmul.mubr.f32.gmra.mrb[0].mxu0 %v998
      %v1387 = vpop.f32.mrb[0].mxu0
      %v1388 = vadd.f32 0.0, %v1387
      %v1389 = vpop.f32.mrb[0].mxu0
      %1390 = vmatprep.mubr.f32.mxu0 %v1289
      %1391 = vmatmul.mubr.f32.gmra.mrb[0].mxu0 %v1263
      %v1392 = vpop.f32.mrb[0].mxu0
      %v1393 = vadd.f32 0.0, %v1392
      %v1394 = vpop.f32.mrb[0].mxu0
      %1395 = vdwg.mxu0
      %v1396 = vadd.f32 %v1214, %v1358
      %v1397 = vadd.f32 %v1219, %v1363
      %v1398 = vadd.f32 %v1224, %v1368
      %v1399 = vadd.f32 %v1229, %v1373
      %v1400 = vadd.f32 %v1234, %v1378
      %v1401 = vadd.f32 %v1239, %v1383
      %v1402 = vadd.f32 %v1244, %v1388
      %v1403 = vadd.f32 %v1249, %v1393
      %s1404 = scalar_lea.vmem %s2, 1
      %v1405 = vld [vmem:[%s1404] sm:$0x1]
      %v1407 = vlaneseq
      %v1408 = vshrl.u32 %v1407, 7
      %v1409 = vsub.s32 0, %v1408
      %v1410 = vrot.slane %v1405, %v1409
      %v1412 = vmul.f32 %v1396, %v1410
      %v1413 = vmul.f32 %v1397, %v1410
      %v1414 = vmul.f32 %v1398, %v1410
      %v1415 = vmul.f32 %v1399, %v1410
      %v1416 = vmul.f32 %v1400, %v1410
      %v1417 = vmul.f32 %v1401, %v1410
      %v1418 = vmul.f32 %v1402, %v1410
      %v1419 = vmul.f32 %v1403, %v1410
      %s1420 = scalar_lea.vmem %s3, 1
      %v1421 = vld [vmem:[%s1420] sm:$0x1]
      %v1423 = vlaneseq
      %v1424 = vshrl.u32 %v1423, 7
      %v1425 = vsub.s32 0, %v1424
      %v1426 = vrot.slane %v1421, %v1425
      %v1428 = vadd.f32 %v1412, %v1426
      %v1429 = vadd.f32 %v1413, %v1426
      %v1430 = vadd.f32 %v1414, %v1426
      %v1431 = vadd.f32 %v1415, %v1426
      %v1432 = vadd.f32 %v1416, %v1426
      %v1433 = vadd.f32 %v1417, %v1426
      %v1434 = vadd.f32 %v1418, %v1426
      %v1435 = vadd.f32 %v1419, %v1426
      %v1436 = vmax.f32 %v1428, 0.0
      %v1437 = vmax.f32 %v1429, 0.0
      %v1438 = vmax.f32 %v1430, 0.0
      %v1439 = vmax.f32 %v1431, 0.0
      %v1440 = vmax.f32 %v1432, 0.0
      %v1441 = vmax.f32 %v1433, 0.0
      %v1442 = vmax.f32 %v1434, 0.0
      %v1443 = vmax.f32 %v1435, 0.0
      %s1444 = scalar_lea.vmem [#allocation3], 16
      %1445 = vst.msk [vmem:[%s1444 + $0x1] sm:$0xff] %vm198, %v1436
      %1446 = vst.msk [vmem:[%s1444 + $0x11] sm:$0xff] %vm198, %v1437
      %1447 = vst.msk [vmem:[%s1444 + $0x21] sm:$0xff] %vm198, %v1438
      %1448 = vst.msk [vmem:[%s1444 + $0x31] sm:$0xff] %vm198, %v1439
      %1449 = vst.msk [vmem:[%s1444 + $0x41] sm:$0xff] %vm198, %v1440
      %1450 = vst.msk [vmem:[%s1444 + $0x51] sm:$0xff] %vm198, %v1441
      %1451 = vst.msk [vmem:[%s1444 + $0x61] sm:$0xff] %vm198, %v1442
      %1452 = vst.msk [vmem:[%s1444 + $0x71] sm:$0xff] %vm198, %v1443
      %v1453 = vld [vmem:[#allocation3] sm:$0xff]
      %v1454 = vld [vmem:[#allocation3 + $0x8] sm:$0x3]
      %v1455 = vld [vmem:[#allocation3 + $0x10] sm:$0xff]
      %v1456 = vld [vmem:[#allocation3 + $0x18] sm:$0x3]
      %v1457 = vld [vmem:[#allocation3 + $0x20] sm:$0xff]
      %v1458 = vld [vmem:[#allocation3 + $0x28] sm:$0x3]
      %v1459 = vld [vmem:[#allocation3 + $0x30] sm:$0xff]
      %v1460 = vld [vmem:[#allocation3 + $0x38] sm:$0x3]
      %v1461 = vld [vmem:[#allocation3 + $0x40] sm:$0xff]
      %v1462 = vld [vmem:[#allocation3 + $0x48] sm:$0x3]
      %v1463 = vld [vmem:[#allocation3 + $0x50] sm:$0xff]
      %v1464 = vld [vmem:[#allocation3 + $0x58] sm:$0x3]
      %v1465 = vld [vmem:[#allocation3 + $0x60] sm:$0xff]
      %v1466 = vld [vmem:[#allocation3 + $0x68] sm:$0x3]
      %v1467 = vld [vmem:[#allocation3 + $0x70] sm:$0xff]
      %v1468 = vld [vmem:[#allocation3 + $0x78] sm:$0x3]
      %v1469 = vld [vmem:[#allocation3 + $0x80] sm:$0xff]
      %v1470 = vld [vmem:[#allocation3 + $0x88] sm:$0x3]
      %v1471 = vld [vmem:[#allocation3 + $0x90] sm:$0xff]
      %v1472 = vld [vmem:[#allocation3 + $0x98] sm:$0x3]
      %v1489 = vrot.slane %v1453, 1
      %v1490 = vrot.slane %v1454, 1
      %v1491 = vsel %vm276, %v1489, %v1490
      %v1492 = vrot.slane %v1455, 1
      %v1493 = vrot.slane %v1456, 1
      %v1494 = vsel %vm276, %v1492, %v1493
      %v1495 = vrot.slane %v1457, 1
      %v1496 = vrot.slane %v1458, 1
      %v1497 = vsel %vm276, %v1495, %v1496
      %v1498 = vrot.slane %v1459, 1
      %v1499 = vrot.slane %v1460, 1
      %v1500 = vsel %vm276, %v1498, %v1499
      %v1501 = vrot.slane %v1461, 1
      %v1502 = vrot.slane %v1462, 1
      %v1503 = vsel %vm276, %v1501, %v1502
      %v1504 = vrot.slane %v1463, 1
      %v1505 = vrot.slane %v1464, 1
      %v1506 = vsel %vm276, %v1504, %v1505
      %v1507 = vrot.slane %v1465, 1
      %v1508 = vrot.slane %v1466, 1
      %v1509 = vsel %vm276, %v1507, %v1508
      %v1510 = vrot.slane %v1467, 1
      %v1511 = vrot.slane %v1468, 1
      %v1512 = vsel %vm276, %v1510, %v1511
      %1513 = vrot.lane.b32.xlu0 %v1491, 64
      %v1514 = vpop.permute.xlu0 %1513
      %1515 = vrot.lane.b32.xlu0 %v1494, 64
      %v1516 = vpop.permute.xlu0 %1515
      %1517 = vrot.lane.b32.xlu0 %v1497, 64
      %v1518 = vpop.permute.xlu0 %1517
      %1519 = vrot.lane.b32.xlu0 %v1500, 64
      %v1520 = vpop.permute.xlu0 %1519
      %1521 = vrot.lane.b32.xlu0 %v1503, 64
      %v1522 = vpop.permute.xlu0 %1521
      %1523 = vrot.lane.b32.xlu0 %v1506, 64
      %v1524 = vpop.permute.xlu0 %1523
      %1525 = vrot.lane.b32.xlu0 %v1509, 64
      %v1526 = vpop.permute.xlu0 %1525
      %1527 = vrot.lane.b32.xlu0 %v1512, 64
      %v1528 = vpop.permute.xlu0 %1527
      %v1537 = vrot.slane %v1453, 2
      %v1538 = vrot.slane %v1454, 2
      %v1539 = vsel %vm325, %v1537, %v1538
      %v1540 = vrot.slane %v1455, 2
      %v1541 = vrot.slane %v1456, 2
      %v1542 = vsel %vm325, %v1540, %v1541
      %v1543 = vrot.slane %v1457, 2
      %v1544 = vrot.slane %v1458, 2
      %v1545 = vsel %vm325, %v1543, %v1544
      %v1546 = vrot.slane %v1459, 2
      %v1547 = vrot.slane %v1460, 2
      %v1548 = vsel %vm325, %v1546, %v1547
      %v1549 = vrot.slane %v1461, 2
      %v1550 = vrot.slane %v1462, 2
      %v1551 = vsel %vm325, %v1549, %v1550
      %v1552 = vrot.slane %v1463, 2
      %v1553 = vrot.slane %v1464, 2
      %v1554 = vsel %vm325, %v1552, %v1553
      %v1555 = vrot.slane %v1465, 2
      %v1556 = vrot.slane %v1466, 2
      %v1557 = vsel %vm325, %v1555, %v1556
      %v1558 = vrot.slane %v1467, 2
      %v1559 = vrot.slane %v1468, 2
      %v1560 = vsel %vm325, %v1558, %v1559
      %v1561 = vsel %vm198, %v1453, %v1514
      %v1562 = vsel %vm198, %v1455, %v1516
      %v1563 = vsel %vm198, %v1457, %v1518
      %v1564 = vsel %vm198, %v1459, %v1520
      %v1565 = vsel %vm198, %v1461, %v1522
      %v1566 = vsel %vm198, %v1463, %v1524
      %v1567 = vsel %vm198, %v1465, %v1526
      %v1568 = vsel %vm198, %v1467, %v1528
      %s1569 = scalar_lea.vmem %s1, 1152
      %v1570 = vld [vmem:[%s1569] sm:$0xff]
      %v1571 = vld [vmem:[%s1569 + $0x8] sm:$0xff]
      %v1572 = vld [vmem:[%s1569 + $0x10] sm:$0xff]
      %v1573 = vld [vmem:[%s1569 + $0x18] sm:$0xff]
      %v1574 = vld [vmem:[%s1569 + $0x20] sm:$0xff]
      %v1575 = vld [vmem:[%s1569 + $0x28] sm:$0xff]
      %v1576 = vld [vmem:[%s1569 + $0x30] sm:$0xff]
      %v1577 = vld [vmem:[%s1569 + $0x38] sm:$0xff]
      %v1578 = vld [vmem:[%s1569 + $0x40] sm:$0xff]
      %v1579 = vld [vmem:[%s1569 + $0x48] sm:$0xff]
      %v1580 = vld [vmem:[%s1569 + $0x50] sm:$0xff]
      %v1581 = vld [vmem:[%s1569 + $0x58] sm:$0xff]
      %v1582 = vld [vmem:[%s1569 + $0x60] sm:$0xff]
      %v1583 = vld [vmem:[%s1569 + $0x68] sm:$0xff]
      %v1584 = vld [vmem:[%s1569 + $0x70] sm:$0xff]
      %v1585 = vld [vmem:[%s1569 + $0x78] sm:$0xff]
      %v1586 = vld [vmem:[%s1569 + $0x80] sm:$0xff]
      %v1587 = vld [vmem:[%s1569 + $0x88] sm:$0xff]
      %v1588 = vld [vmem:[%s1569 + $0x90] sm:$0xff]
      %v1589 = vld [vmem:[%s1569 + $0x98] sm:$0xff]
      %v1590 = vld [vmem:[%s1569 + $0xa0] sm:$0xff]
      %v1591 = vld [vmem:[%s1569 + $0xa8] sm:$0xff]
      %v1592 = vld [vmem:[%s1569 + $0xb0] sm:$0xff]
      %v1593 = vld [vmem:[%s1569 + $0xb8] sm:$0xff]
      %v1596 = vrot.slane %v1469, 1
      %v1597 = vrot.slane %v1470, 1
      %v1598 = vsel %vm276, %v1596, %v1597
      %1599 = vrot.lane.b32.xlu0 %v1598, 64
      %v1600 = vpop.permute.xlu0 %1599
      %v1602 = vrot.slane %v1469, 2
      %v1603 = vrot.slane %v1470, 2
      %v1604 = vsel %vm325, %v1602, %v1603
      %v1605 = vsel %vm198, %v1469, %v1600
      %s1606 = scalar_lea.vmem %s1, 1344
      %v1607 = vld [vmem:[%s1606] sm:$0xff]
      %v1608 = vld [vmem:[%s1606 + $0x8] sm:$0xff]
      %v1609 = vld [vmem:[%s1606 + $0x10] sm:$0xff]
      %v1610 = vld [vmem:[%s1606 + $0x18] sm:$0xff]
      %v1611 = vld [vmem:[%s1606 + $0x20] sm:$0xff]
      %v1612 = vld [vmem:[%s1606 + $0x28] sm:$0xff]
      %v1613 = vld [vmem:[%s1606 + $0x30] sm:$0xff]
      %v1614 = vld [vmem:[%s1606 + $0x38] sm:$0xff]
      %v1615 = vld [vmem:[%s1606 + $0x40] sm:$0xff]
      %v1616 = vld [vmem:[%s1606 + $0x48] sm:$0xff]
      %v1617 = vld [vmem:[%s1606 + $0x50] sm:$0xff]
      %v1618 = vld [vmem:[%s1606 + $0x58] sm:$0xff]
      %v1619 = vld [vmem:[%s1606 + $0x60] sm:$0xff]
      %v1620 = vld [vmem:[%s1606 + $0x68] sm:$0xff]
      %v1621 = vld [vmem:[%s1606 + $0x70] sm:$0xff]
      %v1622 = vld [vmem:[%s1606 + $0x78] sm:$0xff]
      %v1623 = vld [vmem:[%s1606 + $0x80] sm:$0xff]
      %v1624 = vld [vmem:[%s1606 + $0x88] sm:$0xff]
      %v1625 = vld [vmem:[%s1606 + $0x90] sm:$0xff]
      %v1626 = vld [vmem:[%s1606 + $0x98] sm:$0xff]
      %v1627 = vld [vmem:[%s1606 + $0xa0] sm:$0xff]
      %v1628 = vld [vmem:[%s1606 + $0xa8] sm:$0xff]
      %v1629 = vld [vmem:[%s1606 + $0xb0] sm:$0xff]
      %v1630 = vld [vmem:[%s1606 + $0xb8] sm:$0xff]
      %v1631 = vsel %vm198, %v1542, 0
      %v1633 = vsel %vm198, %v1545, 0
      %v1635 = vsel %vm198, %v1548, 0
      %v1637 = vsel %vm198, %v1551, 0
      %v1639 = vsel %vm198, %v1554, 0
      %v1641 = vsel %vm198, %v1557, 0
      %v1643 = vsel %vm198, %v1560, 0
      %v1645 = vsel %vm198, %v1604, 0
      %1647 = vmatprep.subr.mxu0 0.0
      %1648 = vmatpush1.msra.mxu0 %v1607
      %1649 = vmatprep.subr.mxu0 0.0
      %1650 = vmatpush1.msra.mxu0 %v1608
      %1651 = vmatprep.subr.mxu0 0.0
      %1652 = vmatpush1.msra.mxu0 %v1609
      %1653 = vmatprep.subr.mxu0 0.0
      %1654 = vmatpush1.msra.mxu0 %v1610
      %1655 = vmatprep.subr.mxu0 0.0
      %1656 = vmatpush1.msra.mxu0 %v1611
      %1657 = vmatprep.subr.mxu0 0.0
      %1658 = vmatpush1.msra.mxu0 %v1612
      %1659 = vmatprep.subr.mxu0 0.0
      %1660 = vmatpush1.msra.mxu0 %v1613
      %1661 = vmatprep.subr.mxu0 0.0
      %1662 = vmatpush1.msra.mxu0 %v1614
      %1663 = vmatprep.subr.mxu0 0.0
      %1664 = vmatpush1.msra.mxu0 %v1615
      %1665 = vmatprep.subr.mxu0 0.0
      %1666 = vmatpush1.msra.mxu0 %v1616
      %1667 = vmatprep.subr.mxu0 0.0
      %1668 = vmatpush1.msra.mxu0 %v1617
      %1669 = vmatprep.subr.mxu0 0.0
      %1670 = vmatpush1.msra.mxu0 %v1618
      %1671 = vmatprep.subr.mxu0 0.0
      %1672 = vmatpush1.msra.mxu0 %v1619
      %1673 = vmatprep.subr.mxu0 0.0
      %1674 = vmatpush1.msra.mxu0 %v1620
      %1675 = vmatprep.subr.mxu0 0.0
      %1676 = vmatpush1.msra.mxu0 %v1621
      %1677 = vmatprep.subr.mxu0 0.0
      %1678 = vmatpush1.msra.mxu0 %v1622
      %1679 = vmatprep.subr.mxu0 0.0
      %1680 = vmatpush1.msra.mxu0 %v1623
      %1681 = vmatprep.subr.mxu0 0.0
      %1682 = vmatpush1.msra.mxu0 %v1624
      %1683 = vmatprep.subr.mxu0 0.0
      %1684 = vmatpush1.msra.mxu0 %v1625
      %1685 = vmatprep.subr.mxu0 0.0
      %1686 = vmatpush1.msra.mxu0 %v1626
      %1687 = vmatprep.subr.mxu0 0.0
      %1688 = vmatpush1.msra.mxu0 %v1627
      %1689 = vmatprep.subr.mxu0 0.0
      %1690 = vmatpush1.msra.mxu0 %v1628
      %1691 = vmatprep.subr.mxu0 0.0
      %1692 = vmatpush1.msra.mxu0 %v1629
      %1693 = vmatprep.subr.mxu0 0.0
      %1694 = vmatpush1.msra.mxu0 %v1630
      %1695 = vmatprep.subr.mxu0 0.0
      %1696 = vmatpush1.msra.mxu0 0.0
      %1697 = vmatprep.subr.mxu0 0.0
      %1698 = vmatpush1.msra.mxu0 0.0
      %1699 = vmatprep.subr.mxu0 0.0
      %1700 = vmatpush1.msra.mxu0 0.0
      %1701 = vmatprep.subr.mxu0 0.0
      %1702 = vmatpush1.msra.mxu0 0.0
      %1703 = vmatprep.subr.mxu0 0.0
      %1704 = vmatpush1.msra.mxu0 0.0
      %1705 = vmatprep.subr.mxu0 0.0
      %1706 = vmatpush1.msra.mxu0 0.0
      %1707 = vmatprep.subr.mxu0 0.0
      %1708 = vmatpush1.msra.mxu0 0.0
      %1709 = vmatprep.subr.mxu0 0.0
      %1710 = vmatpush1.msra.mxu0 0.0
      %1711 = vmatprep.mubr.f32.mxu0 %v1631
      %1712 = vmatmul.mubr.f32.gmra.mrb[0].mxu0 %v1562
      %v1713 = vpop.f32.mrb[0].mxu0
      %v1714 = vadd.f32 0.0, %v1713
      %v1715 = vpop.f32.mrb[0].mxu0
      %1716 = vmatprep.mubr.f32.mxu0 %v1633
      %1717 = vmatmul.mubr.f32.gmra.mrb[0].mxu0 %v1563
      %v1718 = vpop.f32.mrb[0].mxu0
      %v1719 = vadd.f32 0.0, %v1718
      %v1720 = vpop.f32.mrb[0].mxu0
      %1721 = vmatprep.mubr.f32.mxu0 %v1635
      %1722 = vmatmul.mubr.f32.gmra.mrb[0].mxu0 %v1564
      %v1723 = vpop.f32.mrb[0].mxu0
      %v1724 = vadd.f32 0.0, %v1723
      %v1725 = vpop.f32.mrb[0].mxu0
      %1726 = vmatprep.mubr.f32.mxu0 %v1637
      %1727 = vmatmul.mubr.f32.gmra.mrb[0].mxu0 %v1565
      %v1728 = vpop.f32.mrb[0].mxu0
      %v1729 = vadd.f32 0.0, %v1728
      %v1730 = vpop.f32.mrb[0].mxu0
      %1731 = vmatprep.mubr.f32.mxu0 %v1639
      %1732 = vmatmul.mubr.f32.gmra.mrb[0].mxu0 %v1566
      %v1733 = vpop.f32.mrb[0].mxu0
      %v1734 = vadd.f32 0.0, %v1733
      %v1735 = vpop.f32.mrb[0].mxu0
      %1736 = vmatprep.mubr.f32.mxu0 %v1641
      %1737 = vmatmul.mubr.f32.gmra.mrb[0].mxu0 %v1567
      %v1738 = vpop.f32.mrb[0].mxu0
      %v1739 = vadd.f32 0.0, %v1738
      %v1740 = vpop.f32.mrb[0].mxu0
      %1741 = vmatprep.mubr.f32.mxu0 %v1643
      %1742 = vmatmul.mubr.f32.gmra.mrb[0].mxu0 %v1568
      %v1743 = vpop.f32.mrb[0].mxu0
      %v1744 = vadd.f32 0.0, %v1743
      %v1745 = vpop.f32.mrb[0].mxu0
      %1746 = vmatprep.mubr.f32.mxu0 %v1645
      %1747 = vmatmul.mubr.f32.gmra.mrb[0].mxu0 %v1605
      %v1748 = vpop.f32.mrb[0].mxu0
      %v1749 = vadd.f32 0.0, %v1748
      %v1750 = vpop.f32.mrb[0].mxu0
      %1751 = vdwg.mxu0
      %v1752 = vsel %vm198, %v1539, 0
      %1754 = vmatprep.subr.mxu0 0.0
      %1755 = vmatpush1.msra.mxu0 %v1570
      %1756 = vmatprep.subr.mxu0 0.0
      %1757 = vmatpush1.msra.mxu0 %v1571
      %1758 = vmatprep.subr.mxu0 0.0
      %1759 = vmatpush1.msra.mxu0 %v1572
      %1760 = vmatprep.subr.mxu0 0.0
      %1761 = vmatpush1.msra.mxu0 %v1573
      %1762 = vmatprep.subr.mxu0 0.0
      %1763 = vmatpush1.msra.mxu0 %v1574
      %1764 = vmatprep.subr.mxu0 0.0
      %1765 = vmatpush1.msra.mxu0 %v1575
      %1766 = vmatprep.subr.mxu0 0.0
      %1767 = vmatpush1.msra.mxu0 %v1576
      %1768 = vmatprep.subr.mxu0 0.0
      %1769 = vmatpush1.msra.mxu0 %v1577
      %1770 = vmatprep.subr.mxu0 0.0
      %1771 = vmatpush1.msra.mxu0 %v1578
      %1772 = vmatprep.subr.mxu0 0.0
      %1773 = vmatpush1.msra.mxu0 %v1579
      %1774 = vmatprep.subr.mxu0 0.0
      %1775 = vmatpush1.msra.mxu0 %v1580
      %1776 = vmatprep.subr.mxu0 0.0
      %1777 = vmatpush1.msra.mxu0 %v1581
      %1778 = vmatprep.subr.mxu0 0.0
      %1779 = vmatpush1.msra.mxu0 %v1582
      %1780 = vmatprep.subr.mxu0 0.0
      %1781 = vmatpush1.msra.mxu0 %v1583
      %1782 = vmatprep.subr.mxu0 0.0
      %1783 = vmatpush1.msra.mxu0 %v1584
      %1784 = vmatprep.subr.mxu0 0.0
      %1785 = vmatpush1.msra.mxu0 %v1585
      %1786 = vmatprep.subr.mxu0 0.0
      %1787 = vmatpush1.msra.mxu0 %v1586
      %1788 = vmatprep.subr.mxu0 0.0
      %1789 = vmatpush1.msra.mxu0 %v1587
      %1790 = vmatprep.subr.mxu0 0.0
      %1791 = vmatpush1.msra.mxu0 %v1588
      %1792 = vmatprep.subr.mxu0 0.0
      %1793 = vmatpush1.msra.mxu0 %v1589
      %1794 = vmatprep.subr.mxu0 0.0
      %1795 = vmatpush1.msra.mxu0 %v1590
      %1796 = vmatprep.subr.mxu0 0.0
      %1797 = vmatpush1.msra.mxu0 %v1591
      %1798 = vmatprep.subr.mxu0 0.0
      %1799 = vmatpush1.msra.mxu0 %v1592
      %1800 = vmatprep.subr.mxu0 0.0
      %1801 = vmatpush1.msra.mxu0 %v1593
      %1802 = vmatprep.subr.mxu0 0.0
      %1803 = vmatpush1.msra.mxu0 0.0
      %1804 = vmatprep.subr.mxu0 0.0
      %1805 = vmatpush1.msra.mxu0 0.0
      %1806 = vmatprep.subr.mxu0 0.0
      %1807 = vmatpush1.msra.mxu0 0.0
      %1808 = vmatprep.subr.mxu0 0.0
      %1809 = vmatpush1.msra.mxu0 0.0
      %1810 = vmatprep.subr.mxu0 0.0
      %1811 = vmatpush1.msra.mxu0 0.0
      %1812 = vmatprep.subr.mxu0 0.0
      %1813 = vmatpush1.msra.mxu0 0.0
      %1814 = vmatprep.subr.mxu0 0.0
      %1815 = vmatpush1.msra.mxu0 0.0
      %1816 = vmatprep.subr.mxu0 0.0
      %1817 = vmatpush1.msra.mxu0 0.0
      %1818 = vmatprep.mubr.f32.mxu0 %v1752
      %1819 = vmatmul.mubr.f32.gmra.mrb[0].mxu0 %v1561
      %v1820 = vpop.f32.mrb[0].mxu0
      %v1821 = vadd.f32 %v1714, %v1820
      %v1822 = vpop.f32.mrb[0].mxu0
      %1823 = vmatprep.mubr.f32.mxu0 %v1631
      %1824 = vmatmul.mubr.f32.gmra.mrb[0].mxu0 %v1562
      %v1825 = vpop.f32.mrb[0].mxu0
      %v1826 = vadd.f32 %v1719, %v1825
      %v1827 = vpop.f32.mrb[0].mxu0
      %1828 = vmatprep.mubr.f32.mxu0 %v1633
      %1829 = vmatmul.mubr.f32.gmra.mrb[0].mxu0 %v1563
      %v1830 = vpop.f32.mrb[0].mxu0
      %v1831 = vadd.f32 %v1724, %v1830
      %v1832 = vpop.f32.mrb[0].mxu0
      %1833 = vmatprep.mubr.f32.mxu0 %v1635
      %1834 = vmatmul.mubr.f32.gmra.mrb[0].mxu0 %v1564
      %v1835 = vpop.f32.mrb[0].mxu0
      %v1836 = vadd.f32 %v1729, %v1835
      %v1837 = vpop.f32.mrb[0].mxu0
      %1838 = vmatprep.mubr.f32.mxu0 %v1637
      %1839 = vmatmul.mubr.f32.gmra.mrb[0].mxu0 %v1565
      %v1840 = vpop.f32.mrb[0].mxu0
      %v1841 = vadd.f32 %v1734, %v1840
      %v1842 = vpop.f32.mrb[0].mxu0
      %1843 = vmatprep.mubr.f32.mxu0 %v1639
      %1844 = vmatmul.mubr.f32.gmra.mrb[0].mxu0 %v1566
      %v1845 = vpop.f32.mrb[0].mxu0
      %v1846 = vadd.f32 %v1739, %v1845
      %v1847 = vpop.f32.mrb[0].mxu0
      %1848 = vmatprep.mubr.f32.mxu0 %v1641
      %1849 = vmatmul.mubr.f32.gmra.mrb[0].mxu0 %v1567
      %v1850 = vpop.f32.mrb[0].mxu0
      %v1851 = vadd.f32 %v1744, %v1850
      %v1852 = vpop.f32.mrb[0].mxu0
      %1853 = vmatprep.mubr.f32.mxu0 %v1643
      %1854 = vmatmul.mubr.f32.gmra.mrb[0].mxu0 %v1568
      %v1855 = vpop.f32.mrb[0].mxu0
      %v1856 = vadd.f32 %v1749, %v1855
      %v1857 = vpop.f32.mrb[0].mxu0
      %1858 = vdwg.mxu0
      %v1861 = vrot.slane %v1471, 1
      %v1862 = vrot.slane %v1472, 1
      %v1863 = vsel %vm276, %v1861, %v1862
      %1864 = vrot.lane.b32.xlu0 %v1863, 64
      %v1865 = vpop.permute.xlu0 %1864
      %v1867 = vrot.slane %v1471, 2
      %v1868 = vrot.slane %v1472, 2
      %v1869 = vsel %vm325, %v1867, %v1868
      %v1870 = vsel %vm198, %v1471, %v1865
      %s1871 = scalar_lea.vmem %s1, 1536
      %v1872 = vld [vmem:[%s1871] sm:$0xff]
      %v1873 = vld [vmem:[%s1871 + $0x8] sm:$0xff]
      %v1874 = vld [vmem:[%s1871 + $0x10] sm:$0xff]
      %v1875 = vld [vmem:[%s1871 + $0x18] sm:$0xff]
      %v1876 = vld [vmem:[%s1871 + $0x20] sm:$0xff]
      %v1877 = vld [vmem:[%s1871 + $0x28] sm:$0xff]
      %v1878 = vld [vmem:[%s1871 + $0x30] sm:$0xff]
      %v1879 = vld [vmem:[%s1871 + $0x38] sm:$0xff]
      %v1880 = vld [vmem:[%s1871 + $0x40] sm:$0xff]
      %v1881 = vld [vmem:[%s1871 + $0x48] sm:$0xff]
      %v1882 = vld [vmem:[%s1871 + $0x50] sm:$0xff]
      %v1883 = vld [vmem:[%s1871 + $0x58] sm:$0xff]
      %v1884 = vld [vmem:[%s1871 + $0x60] sm:$0xff]
      %v1885 = vld [vmem:[%s1871 + $0x68] sm:$0xff]
      %v1886 = vld [vmem:[%s1871 + $0x70] sm:$0xff]
      %v1887 = vld [vmem:[%s1871 + $0x78] sm:$0xff]
      %v1888 = vld [vmem:[%s1871 + $0x80] sm:$0xff]
      %v1889 = vld [vmem:[%s1871 + $0x88] sm:$0xff]
      %v1890 = vld [vmem:[%s1871 + $0x90] sm:$0xff]
      %v1891 = vld [vmem:[%s1871 + $0x98] sm:$0xff]
      %v1892 = vld [vmem:[%s1871 + $0xa0] sm:$0xff]
      %v1893 = vld [vmem:[%s1871 + $0xa8] sm:$0xff]
      %v1894 = vld [vmem:[%s1871 + $0xb0] sm:$0xff]
      %v1895 = vld [vmem:[%s1871 + $0xb8] sm:$0xff]
      %v1896 = vsel %vm198, %v1869, 0
      %1898 = vmatprep.subr.mxu0 0.0
      %1899 = vmatpush1.msra.mxu0 %v1872
      %1900 = vmatprep.subr.mxu0 0.0
      %1901 = vmatpush1.msra.mxu0 %v1873
      %1902 = vmatprep.subr.mxu0 0.0
      %1903 = vmatpush1.msra.mxu0 %v1874
      %1904 = vmatprep.subr.mxu0 0.0
      %1905 = vmatpush1.msra.mxu0 %v1875
      %1906 = vmatprep.subr.mxu0 0.0
      %1907 = vmatpush1.msra.mxu0 %v1876
      %1908 = vmatprep.subr.mxu0 0.0
      %1909 = vmatpush1.msra.mxu0 %v1877
      %1910 = vmatprep.subr.mxu0 0.0
      %1911 = vmatpush1.msra.mxu0 %v1878
      %1912 = vmatprep.subr.mxu0 0.0
      %1913 = vmatpush1.msra.mxu0 %v1879
      %1914 = vmatprep.subr.mxu0 0.0
      %1915 = vmatpush1.msra.mxu0 %v1880
      %1916 = vmatprep.subr.mxu0 0.0
      %1917 = vmatpush1.msra.mxu0 %v1881
      %1918 = vmatprep.subr.mxu0 0.0
      %1919 = vmatpush1.msra.mxu0 %v1882
      %1920 = vmatprep.subr.mxu0 0.0
      %1921 = vmatpush1.msra.mxu0 %v1883
      %1922 = vmatprep.subr.mxu0 0.0
      %1923 = vmatpush1.msra.mxu0 %v1884
      %1924 = vmatprep.subr.mxu0 0.0
      %1925 = vmatpush1.msra.mxu0 %v1885
      %1926 = vmatprep.subr.mxu0 0.0
      %1927 = vmatpush1.msra.mxu0 %v1886
      %1928 = vmatprep.subr.mxu0 0.0
      %1929 = vmatpush1.msra.mxu0 %v1887
      %1930 = vmatprep.subr.mxu0 0.0
      %1931 = vmatpush1.msra.mxu0 %v1888
      %1932 = vmatprep.subr.mxu0 0.0
      %1933 = vmatpush1.msra.mxu0 %v1889
      %1934 = vmatprep.subr.mxu0 0.0
      %1935 = vmatpush1.msra.mxu0 %v1890
      %1936 = vmatprep.subr.mxu0 0.0
      %1937 = vmatpush1.msra.mxu0 %v1891
      %1938 = vmatprep.subr.mxu0 0.0
      %1939 = vmatpush1.msra.mxu0 %v1892
      %1940 = vmatprep.subr.mxu0 0.0
      %1941 = vmatpush1.msra.mxu0 %v1893
      %1942 = vmatprep.subr.mxu0 0.0
      %1943 = vmatpush1.msra.mxu0 %v1894
      %1944 = vmatprep.subr.mxu0 0.0
      %1945 = vmatpush1.msra.mxu0 %v1895
      %1946 = vmatprep.subr.mxu0 0.0
      %1947 = vmatpush1.msra.mxu0 0.0
      %1948 = vmatprep.subr.mxu0 0.0
      %1949 = vmatpush1.msra.mxu0 0.0
      %1950 = vmatprep.subr.mxu0 0.0
      %1951 = vmatpush1.msra.mxu0 0.0
      %1952 = vmatprep.subr.mxu0 0.0
      %1953 = vmatpush1.msra.mxu0 0.0
      %1954 = vmatprep.subr.mxu0 0.0
      %1955 = vmatpush1.msra.mxu0 0.0
      %1956 = vmatprep.subr.mxu0 0.0
      %1957 = vmatpush1.msra.mxu0 0.0
      %1958 = vmatprep.subr.mxu0 0.0
      %1959 = vmatpush1.msra.mxu0 0.0
      %1960 = vmatprep.subr.mxu0 0.0
      %1961 = vmatpush1.msra.mxu0 0.0
      %1962 = vmatprep.mubr.f32.mxu0 %v1633
      %1963 = vmatmul.mubr.f32.gmra.mrb[0].mxu0 %v1563
      %v1964 = vpop.f32.mrb[0].mxu0
      %v1965 = vadd.f32 0.0, %v1964
      %v1966 = vpop.f32.mrb[0].mxu0
      %1967 = vmatprep.mubr.f32.mxu0 %v1635
      %1968 = vmatmul.mubr.f32.gmra.mrb[0].mxu0 %v1564
      %v1969 = vpop.f32.mrb[0].mxu0
      %v1970 = vadd.f32 0.0, %v1969
      %v1971 = vpop.f32.mrb[0].mxu0
      %1972 = vmatprep.mubr.f32.mxu0 %v1637
      %1973 = vmatmul.mubr.f32.gmra.mrb[0].mxu0 %v1565
      %v1974 = vpop.f32.mrb[0].mxu0
      %v1975 = vadd.f32 0.0, %v1974
      %v1976 = vpop.f32.mrb[0].mxu0
      %1977 = vmatprep.mubr.f32.mxu0 %v1639
      %1978 = vmatmul.mubr.f32.gmra.mrb[0].mxu0 %v1566
      %v1979 = vpop.f32.mrb[0].mxu0
      %v1980 = vadd.f32 0.0, %v1979
      %v1981 = vpop.f32.mrb[0].mxu0
      %1982 = vmatprep.mubr.f32.mxu0 %v1641
      %1983 = vmatmul.mubr.f32.gmra.mrb[0].mxu0 %v1567
      %v1984 = vpop.f32.mrb[0].mxu0
      %v1985 = vadd.f32 0.0, %v1984
      %v1986 = vpop.f32.mrb[0].mxu0
      %1987 = vmatprep.mubr.f32.mxu0 %v1643
      %1988 = vmatmul.mubr.f32.gmra.mrb[0].mxu0 %v1568
      %v1989 = vpop.f32.mrb[0].mxu0
      %v1990 = vadd.f32 0.0, %v1989
      %v1991 = vpop.f32.mrb[0].mxu0
      %1992 = vmatprep.mubr.f32.mxu0 %v1645
      %1993 = vmatmul.mubr.f32.gmra.mrb[0].mxu0 %v1605
      %v1994 = vpop.f32.mrb[0].mxu0
      %v1995 = vadd.f32 0.0, %v1994
      %v1996 = vpop.f32.mrb[0].mxu0
      %1997 = vmatprep.mubr.f32.mxu0 %v1896
      %1998 = vmatmul.mubr.f32.gmra.mrb[0].mxu0 %v1870
      %v1999 = vpop.f32.mrb[0].mxu0
      %v2000 = vadd.f32 0.0, %v1999
      %v2001 = vpop.f32.mrb[0].mxu0
      %2002 = vdwg.mxu0
      %v2003 = vadd.f32 %v1821, %v1965
      %v2004 = vadd.f32 %v1826, %v1970
      %v2005 = vadd.f32 %v1831, %v1975
      %v2006 = vadd.f32 %v1836, %v1980
      %v2007 = vadd.f32 %v1841, %v1985
      %v2008 = vadd.f32 %v1846, %v1990
      %v2009 = vadd.f32 %v1851, %v1995
      %v2010 = vadd.f32 %v1856, %v2000
      %s2011 = scalar_lea.vmem %s2, 2
      %v2012 = vld [vmem:[%s2011] sm:$0x1]
      %v2014 = vlaneseq
      %v2015 = vshrl.u32 %v2014, 7
      %v2016 = vsub.s32 0, %v2015
      %v2017 = vrot.slane %v2012, %v2016
      %v2019 = vmul.f32 %v2003, %v2017
      %v2020 = vmul.f32 %v2004, %v2017
      %v2021 = vmul.f32 %v2005, %v2017
      %v2022 = vmul.f32 %v2006, %v2017
      %v2023 = vmul.f32 %v2007, %v2017
      %v2024 = vmul.f32 %v2008, %v2017
      %v2025 = vmul.f32 %v2009, %v2017
      %v2026 = vmul.f32 %v2010, %v2017
      %s2027 = scalar_lea.vmem %s3, 2
      %v2028 = vld [vmem:[%s2027] sm:$0x1]
      %v2030 = vlaneseq
      %v2031 = vshrl.u32 %v2030, 7
      %v2032 = vsub.s32 0, %v2031
      %v2033 = vrot.slane %v2028, %v2032
      %v2035 = vadd.f32 %v2019, %v2033
      %v2036 = vadd.f32 %v2020, %v2033
      %v2037 = vadd.f32 %v2021, %v2033
      %v2038 = vadd.f32 %v2022, %v2033
      %v2039 = vadd.f32 %v2023, %v2033
      %v2040 = vadd.f32 %v2024, %v2033
      %v2041 = vadd.f32 %v2025, %v2033
      %v2042 = vadd.f32 %v2026, %v2033
      %v2043 = vmax.f32 %v2035, 0.0
      %v2044 = vmax.f32 %v2036, 0.0
      %v2045 = vmax.f32 %v2037, 0.0
      %v2046 = vmax.f32 %v2038, 0.0
      %v2047 = vmax.f32 %v2039, 0.0
      %v2048 = vmax.f32 %v2040, 0.0
      %v2049 = vmax.f32 %v2041, 0.0
      %v2050 = vmax.f32 %v2042, 0.0
      %2051 = vst.msk [vmem:[%s837 + $0x1] sm:$0xff] %vm198, %v2043
      %2052 = vst.msk [vmem:[%s837 + $0x11] sm:$0xff] %vm198, %v2044
      %2053 = vst.msk [vmem:[%s837 + $0x21] sm:$0xff] %vm198, %v2045
      %2054 = vst.msk [vmem:[%s837 + $0x31] sm:$0xff] %vm198, %v2046
      %2055 = vst.msk [vmem:[%s837 + $0x41] sm:$0xff] %vm198, %v2047
      %2056 = vst.msk [vmem:[%s837 + $0x51] sm:$0xff] %vm198, %v2048
      %2057 = vst.msk [vmem:[%s837 + $0x61] sm:$0xff] %vm198, %v2049
      %2058 = vst.msk [vmem:[%s837 + $0x71] sm:$0xff] %vm198, %v2050
      %v2059 = vld [vmem:[#allocation2] sm:$0xff]
      %v2060 = vld [vmem:[#allocation2 + $0x8] sm:$0x3]
      %v2061 = vld [vmem:[#allocation2 + $0x10] sm:$0xff]
      %v2062 = vld [vmem:[#allocation2 + $0x18] sm:$0x3]
      %v2063 = vld [vmem:[#allocation2 + $0x20] sm:$0xff]
      %v2064 = vld [vmem:[#allocation2 + $0x28] sm:$0x3]
      %v2065 = vld [vmem:[#allocation2 + $0x30] sm:$0xff]
      %v2066 = vld [vmem:[#allocation2 + $0x38] sm:$0x3]
      %v2067 = vld [vmem:[#allocation2 + $0x40] sm:$0xff]
      %v2068 = vld [vmem:[#allocation2 + $0x48] sm:$0x3]
      %v2069 = vld [vmem:[#allocation2 + $0x50] sm:$0xff]
      %v2070 = vld [vmem:[#allocation2 + $0x58] sm:$0x3]
      %v2071 = vld [vmem:[#allocation2 + $0x60] sm:$0xff]
      %v2072 = vld [vmem:[#allocation2 + $0x68] sm:$0x3]
      %v2073 = vld [vmem:[#allocation2 + $0x70] sm:$0xff]
      %v2074 = vld [vmem:[#allocation2 + $0x78] sm:$0x3]
      %v2075 = vld [vmem:[#allocation2 + $0x80] sm:$0xff]
      %v2076 = vld [vmem:[#allocation2 + $0x88] sm:$0x3]
      %v2077 = vld [vmem:[#allocation2 + $0x90] sm:$0xff]
      %v2078 = vld [vmem:[#allocation2 + $0x98] sm:$0x3]
      %v2095 = vrot.slane %v2059, 1
      %v2096 = vrot.slane %v2060, 1
      %v2097 = vsel %vm276, %v2095, %v2096
      %v2098 = vrot.slane %v2061, 1
      %v2099 = vrot.slane %v2062, 1
      %v2100 = vsel %vm276, %v2098, %v2099
      %v2101 = vrot.slane %v2063, 1
      %v2102 = vrot.slane %v2064, 1
      %v2103 = vsel %vm276, %v2101, %v2102
      %v2104 = vrot.slane %v2065, 1
      %v2105 = vrot.slane %v2066, 1
      %v2106 = vsel %vm276, %v2104, %v2105
      %v2107 = vrot.slane %v2067, 1
      %v2108 = vrot.slane %v2068, 1
      %v2109 = vsel %vm276, %v2107, %v2108
      %v2110 = vrot.slane %v2069, 1
      %v2111 = vrot.slane %v2070, 1
      %v2112 = vsel %vm276, %v2110, %v2111
      %v2113 = vrot.slane %v2071, 1
      %v2114 = vrot.slane %v2072, 1
      %v2115 = vsel %vm276, %v2113, %v2114
      %v2116 = vrot.slane %v2073, 1
      %v2117 = vrot.slane %v2074, 1
      %v2118 = vsel %vm276, %v2116, %v2117
      %2119 = vrot.lane.b32.xlu0 %v2097, 64
      %v2120 = vpop.permute.xlu0 %2119
      %2121 = vrot.lane.b32.xlu0 %v2100, 64
      %v2122 = vpop.permute.xlu0 %2121
      %2123 = vrot.lane.b32.xlu0 %v2103, 64
      %v2124 = vpop.permute.xlu0 %2123
      %2125 = vrot.lane.b32.xlu0 %v2106, 64
      %v2126 = vpop.permute.xlu0 %2125
      %2127 = vrot.lane.b32.xlu0 %v2109, 64
      %v2128 = vpop.permute.xlu0 %2127
      %2129 = vrot.lane.b32.xlu0 %v2112, 64
      %v2130 = vpop.permute.xlu0 %2129
      %2131 = vrot.lane.b32.xlu0 %v2115, 64
      %v2132 = vpop.permute.xlu0 %2131
      %2133 = vrot.lane.b32.xlu0 %v2118, 64
      %v2134 = vpop.permute.xlu0 %2133
      %v2143 = vrot.slane %v2059, 2
      %v2144 = vrot.slane %v2060, 2
      %v2145 = vsel %vm325, %v2143, %v2144
      %v2146 = vrot.slane %v2061, 2
      %v2147 = vrot.slane %v2062, 2
      %v2148 = vsel %vm325, %v2146, %v2147
      %v2149 = vrot.slane %v2063, 2
      %v2150 = vrot.slane %v2064, 2
      %v2151 = vsel %vm325, %v2149, %v2150
      %v2152 = vrot.slane %v2065, 2
      %v2153 = vrot.slane %v2066, 2
      %v2154 = vsel %vm325, %v2152, %v2153
      %v2155 = vrot.slane %v2067, 2
      %v2156 = vrot.slane %v2068, 2
      %v2157 = vsel %vm325, %v2155, %v2156
      %v2158 = vrot.slane %v2069, 2
      %v2159 = vrot.slane %v2070, 2
      %v2160 = vsel %vm325, %v2158, %v2159
      %v2161 = vrot.slane %v2071, 2
      %v2162 = vrot.slane %v2072, 2
      %v2163 = vsel %vm325, %v2161, %v2162
      %v2164 = vrot.slane %v2073, 2
      %v2165 = vrot.slane %v2074, 2
      %v2166 = vsel %vm325, %v2164, %v2165
      %v2167 = vsel %vm198, %v2059, %v2120
      %v2168 = vsel %vm198, %v2061, %v2122
      %v2169 = vsel %vm198, %v2063, %v2124
      %v2170 = vsel %vm198, %v2065, %v2126
      %v2171 = vsel %vm198, %v2067, %v2128
      %v2172 = vsel %vm198, %v2069, %v2130
      %v2173 = vsel %vm198, %v2071, %v2132
      %v2174 = vsel %vm198, %v2073, %v2134
      %s2175 = scalar_lea.vmem %s1, 1728
      %v2176 = vld [vmem:[%s2175] sm:$0xff]
      %v2177 = vld [vmem:[%s2175 + $0x8] sm:$0xff]
      %v2178 = vld [vmem:[%s2175 + $0x10] sm:$0xff]
      %v2179 = vld [vmem:[%s2175 + $0x18] sm:$0xff]
      %v2180 = vld [vmem:[%s2175 + $0x20] sm:$0xff]
      %v2181 = vld [vmem:[%s2175 + $0x28] sm:$0xff]
      %v2182 = vld [vmem:[%s2175 + $0x30] sm:$0xff]
      %v2183 = vld [vmem:[%s2175 + $0x38] sm:$0xff]
      %v2184 = vld [vmem:[%s2175 + $0x40] sm:$0xff]
      %v2185 = vld [vmem:[%s2175 + $0x48] sm:$0xff]
      %v2186 = vld [vmem:[%s2175 + $0x50] sm:$0xff]
      %v2187 = vld [vmem:[%s2175 + $0x58] sm:$0xff]
      %v2188 = vld [vmem:[%s2175 + $0x60] sm:$0xff]
      %v2189 = vld [vmem:[%s2175 + $0x68] sm:$0xff]
      %v2190 = vld [vmem:[%s2175 + $0x70] sm:$0xff]
      %v2191 = vld [vmem:[%s2175 + $0x78] sm:$0xff]
      %v2192 = vld [vmem:[%s2175 + $0x80] sm:$0xff]
      %v2193 = vld [vmem:[%s2175 + $0x88] sm:$0xff]
      %v2194 = vld [vmem:[%s2175 + $0x90] sm:$0xff]
      %v2195 = vld [vmem:[%s2175 + $0x98] sm:$0xff]
      %v2196 = vld [vmem:[%s2175 + $0xa0] sm:$0xff]
      %v2197 = vld [vmem:[%s2175 + $0xa8] sm:$0xff]
      %v2198 = vld [vmem:[%s2175 + $0xb0] sm:$0xff]
      %v2199 = vld [vmem:[%s2175 + $0xb8] sm:$0xff]
      %v2202 = vrot.slane %v2075, 1
      %v2203 = vrot.slane %v2076, 1
      %v2204 = vsel %vm276, %v2202, %v2203
      %2205 = vrot.lane.b32.xlu0 %v2204, 64
      %v2206 = vpop.permute.xlu0 %2205
      %v2208 = vrot.slane %v2075, 2
      %v2209 = vrot.slane %v2076, 2
      %v2210 = vsel %vm325, %v2208, %v2209
      %v2211 = vsel %vm198, %v2075, %v2206
      %s2212 = scalar_lea.vmem %s1, 1920
      %v2213 = vld [vmem:[%s2212] sm:$0xff]
      %v2214 = vld [vmem:[%s2212 + $0x8] sm:$0xff]
      %v2215 = vld [vmem:[%s2212 + $0x10] sm:$0xff]
      %v2216 = vld [vmem:[%s2212 + $0x18] sm:$0xff]
      %v2217 = vld [vmem:[%s2212 + $0x20] sm:$0xff]
      %v2218 = vld [vmem:[%s2212 + $0x28] sm:$0xff]
      %v2219 = vld [vmem:[%s2212 + $0x30] sm:$0xff]
      %v2220 = vld [vmem:[%s2212 + $0x38] sm:$0xff]
      %v2221 = vld [vmem:[%s2212 + $0x40] sm:$0xff]
      %v2222 = vld [vmem:[%s2212 + $0x48] sm:$0xff]
      %v2223 = vld [vmem:[%s2212 + $0x50] sm:$0xff]
      %v2224 = vld [vmem:[%s2212 + $0x58] sm:$0xff]
      %v2225 = vld [vmem:[%s2212 + $0x60] sm:$0xff]
      %v2226 = vld [vmem:[%s2212 + $0x68] sm:$0xff]
      %v2227 = vld [vmem:[%s2212 + $0x70] sm:$0xff]
      %v2228 = vld [vmem:[%s2212 + $0x78] sm:$0xff]
      %v2229 = vld [vmem:[%s2212 + $0x80] sm:$0xff]
      %v2230 = vld [vmem:[%s2212 + $0x88] sm:$0xff]
      %v2231 = vld [vmem:[%s2212 + $0x90] sm:$0xff]
      %v2232 = vld [vmem:[%s2212 + $0x98] sm:$0xff]
      %v2233 = vld [vmem:[%s2212 + $0xa0] sm:$0xff]
      %v2234 = vld [vmem:[%s2212 + $0xa8] sm:$0xff]
      %v2235 = vld [vmem:[%s2212 + $0xb0] sm:$0xff]
      %v2236 = vld [vmem:[%s2212 + $0xb8] sm:$0xff]
      %v2237 = vsel %vm198, %v2148, 0
      %v2239 = vsel %vm198, %v2151, 0
      %v2241 = vsel %vm198, %v2154, 0
      %v2243 = vsel %vm198, %v2157, 0
      %v2245 = vsel %vm198, %v2160, 0
      %v2247 = vsel %vm198, %v2163, 0
      %v2249 = vsel %vm198, %v2166, 0
      %v2251 = vsel %vm198, %v2210, 0
      %2253 = vmatprep.subr.mxu0 0.0
      %2254 = vmatpush1.msra.mxu0 %v2213
      %2255 = vmatprep.subr.mxu0 0.0
      %2256 = vmatpush1.msra.mxu0 %v2214
      %2257 = vmatprep.subr.mxu0 0.0
      %2258 = vmatpush1.msra.mxu0 %v2215
      %2259 = vmatprep.subr.mxu0 0.0
      %2260 = vmatpush1.msra.mxu0 %v2216
      %2261 = vmatprep.subr.mxu0 0.0
      %2262 = vmatpush1.msra.mxu0 %v2217
      %2263 = vmatprep.subr.mxu0 0.0
      %2264 = vmatpush1.msra.mxu0 %v2218
      %2265 = vmatprep.subr.mxu0 0.0
      %2266 = vmatpush1.msra.mxu0 %v2219
      %2267 = vmatprep.subr.mxu0 0.0
      %2268 = vmatpush1.msra.mxu0 %v2220
      %2269 = vmatprep.subr.mxu0 0.0
      %2270 = vmatpush1.msra.mxu0 %v2221
      %2271 = vmatprep.subr.mxu0 0.0
      %2272 = vmatpush1.msra.mxu0 %v2222
      %2273 = vmatprep.subr.mxu0 0.0
      %2274 = vmatpush1.msra.mxu0 %v2223
      %2275 = vmatprep.subr.mxu0 0.0
      %2276 = vmatpush1.msra.mxu0 %v2224
      %2277 = vmatprep.subr.mxu0 0.0
      %2278 = vmatpush1.msra.mxu0 %v2225
      %2279 = vmatprep.subr.mxu0 0.0
      %2280 = vmatpush1.msra.mxu0 %v2226
      %2281 = vmatprep.subr.mxu0 0.0
      %2282 = vmatpush1.msra.mxu0 %v2227
      %2283 = vmatprep.subr.mxu0 0.0
      %2284 = vmatpush1.msra.mxu0 %v2228
      %2285 = vmatprep.subr.mxu0 0.0
      %2286 = vmatpush1.msra.mxu0 %v2229
      %2287 = vmatprep.subr.mxu0 0.0
      %2288 = vmatpush1.msra.mxu0 %v2230
      %2289 = vmatprep.subr.mxu0 0.0
      %2290 = vmatpush1.msra.mxu0 %v2231
      %2291 = vmatprep.subr.mxu0 0.0
      %2292 = vmatpush1.msra.mxu0 %v2232
      %2293 = vmatprep.subr.mxu0 0.0
      %2294 = vmatpush1.msra.mxu0 %v2233
      %2295 = vmatprep.subr.mxu0 0.0
      %2296 = vmatpush1.msra.mxu0 %v2234
      %2297 = vmatprep.subr.mxu0 0.0
      %2298 = vmatpush1.msra.mxu0 %v2235
      %2299 = vmatprep.subr.mxu0 0.0
      %2300 = vmatpush1.msra.mxu0 %v2236
      %2301 = vmatprep.subr.mxu0 0.0
      %2302 = vmatpush1.msra.mxu0 0.0
      %2303 = vmatprep.subr.mxu0 0.0
      %2304 = vmatpush1.msra.mxu0 0.0
      %2305 = vmatprep.subr.mxu0 0.0
      %2306 = vmatpush1.msra.mxu0 0.0
      %2307 = vmatprep.subr.mxu0 0.0
      %2308 = vmatpush1.msra.mxu0 0.0
      %2309 = vmatprep.subr.mxu0 0.0
      %2310 = vmatpush1.msra.mxu0 0.0
      %2311 = vmatprep.subr.mxu0 0.0
      %2312 = vmatpush1.msra.mxu0 0.0
      %2313 = vmatprep.subr.mxu0 0.0
      %2314 = vmatpush1.msra.mxu0 0.0
      %2315 = vmatprep.subr.mxu0 0.0
      %2316 = vmatpush1.msra.mxu0 0.0
      %2317 = vmatprep.mubr.f32.mxu0 %v2237
      %2318 = vmatmul.mubr.f32.gmra.mrb[0].mxu0 %v2168
      %v2319 = vpop.f32.mrb[0].mxu0
      %v2320 = vadd.f32 0.0, %v2319
      %v2321 = vpop.f32.mrb[0].mxu0
      %2322 = vmatprep.mubr.f32.mxu0 %v2239
      %2323 = vmatmul.mubr.f32.gmra.mrb[0].mxu0 %v2169
      %v2324 = vpop.f32.mrb[0].mxu0
      %v2325 = vadd.f32 0.0, %v2324
      %v2326 = vpop.f32.mrb[0].mxu0
      %2327 = vmatprep.mubr.f32.mxu0 %v2241
      %2328 = vmatmul.mubr.f32.gmra.mrb[0].mxu0 %v2170
      %v2329 = vpop.f32.mrb[0].mxu0
      %v2330 = vadd.f32 0.0, %v2329
      %v2331 = vpop.f32.mrb[0].mxu0
      %2332 = vmatprep.mubr.f32.mxu0 %v2243
      %2333 = vmatmul.mubr.f32.gmra.mrb[0].mxu0 %v2171
      %v2334 = vpop.f32.mrb[0].mxu0
      %v2335 = vadd.f32 0.0, %v2334
      %v2336 = vpop.f32.mrb[0].mxu0
      %2337 = vmatprep.mubr.f32.mxu0 %v2245
      %2338 = vmatmul.mubr.f32.gmra.mrb[0].mxu0 %v2172
      %v2339 = vpop.f32.mrb[0].mxu0
      %v2340 = vadd.f32 0.0, %v2339
      %v2341 = vpop.f32.mrb[0].mxu0
      %2342 = vmatprep.mubr.f32.mxu0 %v2247
      %2343 = vmatmul.mubr.f32.gmra.mrb[0].mxu0 %v2173
      %v2344 = vpop.f32.mrb[0].mxu0
      %v2345 = vadd.f32 0.0, %v2344
      %v2346 = vpop.f32.mrb[0].mxu0
      %2347 = vmatprep.mubr.f32.mxu0 %v2249
      %2348 = vmatmul.mubr.f32.gmra.mrb[0].mxu0 %v2174
      %v2349 = vpop.f32.mrb[0].mxu0
      %v2350 = vadd.f32 0.0, %v2349
      %v2351 = vpop.f32.mrb[0].mxu0
      %2352 = vmatprep.mubr.f32.mxu0 %v2251
      %2353 = vmatmul.mubr.f32.gmra.mrb[0].mxu0 %v2211
      %v2354 = vpop.f32.mrb[0].mxu0
      %v2355 = vadd.f32 0.0, %v2354
      %v2356 = vpop.f32.mrb[0].mxu0
      %2357 = vdwg.mxu0
      %v2358 = vsel %vm198, %v2145, 0
      %2360 = vmatprep.subr.mxu0 0.0
      %2361 = vmatpush1.msra.mxu0 %v2176
      %2362 = vmatprep.subr.mxu0 0.0
      %2363 = vmatpush1.msra.mxu0 %v2177
      %2364 = vmatprep.subr.mxu0 0.0
      %2365 = vmatpush1.msra.mxu0 %v2178
      %2366 = vmatprep.subr.mxu0 0.0
      %2367 = vmatpush1.msra.mxu0 %v2179
      %2368 = vmatprep.subr.mxu0 0.0
      %2369 = vmatpush1.msra.mxu0 %v2180
      %2370 = vmatprep.subr.mxu0 0.0
      %2371 = vmatpush1.msra.mxu0 %v2181
      %2372 = vmatprep.subr.mxu0 0.0
      %2373 = vmatpush1.msra.mxu0 %v2182
      %2374 = vmatprep.subr.mxu0 0.0
      %2375 = vmatpush1.msra.mxu0 %v2183
      %2376 = vmatprep.subr.mxu0 0.0
      %2377 = vmatpush1.msra.mxu0 %v2184
      %2378 = vmatprep.subr.mxu0 0.0
      %2379 = vmatpush1.msra.mxu0 %v2185
      %2380 = vmatprep.subr.mxu0 0.0
      %2381 = vmatpush1.msra.mxu0 %v2186
      %2382 = vmatprep.subr.mxu0 0.0
      %2383 = vmatpush1.msra.mxu0 %v2187
      %2384 = vmatprep.subr.mxu0 0.0
      %2385 = vmatpush1.msra.mxu0 %v2188
      %2386 = vmatprep.subr.mxu0 0.0
      %2387 = vmatpush1.msra.mxu0 %v2189
      %2388 = vmatprep.subr.mxu0 0.0
      %2389 = vmatpush1.msra.mxu0 %v2190
      %2390 = vmatprep.subr.mxu0 0.0
      %2391 = vmatpush1.msra.mxu0 %v2191
      %2392 = vmatprep.subr.mxu0 0.0
      %2393 = vmatpush1.msra.mxu0 %v2192
      %2394 = vmatprep.subr.mxu0 0.0
      %2395 = vmatpush1.msra.mxu0 %v2193
      %2396 = vmatprep.subr.mxu0 0.0
      %2397 = vmatpush1.msra.mxu0 %v2194
      %2398 = vmatprep.subr.mxu0 0.0
      %2399 = vmatpush1.msra.mxu0 %v2195
      %2400 = vmatprep.subr.mxu0 0.0
      %2401 = vmatpush1.msra.mxu0 %v2196
      %2402 = vmatprep.subr.mxu0 0.0
      %2403 = vmatpush1.msra.mxu0 %v2197
      %2404 = vmatprep.subr.mxu0 0.0
      %2405 = vmatpush1.msra.mxu0 %v2198
      %2406 = vmatprep.subr.mxu0 0.0
      %2407 = vmatpush1.msra.mxu0 %v2199
      %2408 = vmatprep.subr.mxu0 0.0
      %2409 = vmatpush1.msra.mxu0 0.0
      %2410 = vmatprep.subr.mxu0 0.0
      %2411 = vmatpush1.msra.mxu0 0.0
      %2412 = vmatprep.subr.mxu0 0.0
      %2413 = vmatpush1.msra.mxu0 0.0
      %2414 = vmatprep.subr.mxu0 0.0
      %2415 = vmatpush1.msra.mxu0 0.0
      %2416 = vmatprep.subr.mxu0 0.0
      %2417 = vmatpush1.msra.mxu0 0.0
      %2418 = vmatprep.subr.mxu0 0.0
      %2419 = vmatpush1.msra.mxu0 0.0
      %2420 = vmatprep.subr.mxu0 0.0
      %2421 = vmatpush1.msra.mxu0 0.0
      %2422 = vmatprep.subr.mxu0 0.0
      %2423 = vmatpush1.msra.mxu0 0.0
      %2424 = vmatprep.mubr.f32.mxu0 %v2358
      %2425 = vmatmul.mubr.f32.gmra.mrb[0].mxu0 %v2167
      %v2426 = vpop.f32.mrb[0].mxu0
      %v2427 = vadd.f32 %v2320, %v2426
      %v2428 = vpop.f32.mrb[0].mxu0
      %2429 = vmatprep.mubr.f32.mxu0 %v2237
      %2430 = vmatmul.mubr.f32.gmra.mrb[0].mxu0 %v2168
      %v2431 = vpop.f32.mrb[0].mxu0
      %v2432 = vadd.f32 %v2325, %v2431
      %v2433 = vpop.f32.mrb[0].mxu0
      %2434 = vmatprep.mubr.f32.mxu0 %v2239
      %2435 = vmatmul.mubr.f32.gmra.mrb[0].mxu0 %v2169
      %v2436 = vpop.f32.mrb[0].mxu0
      %v2437 = vadd.f32 %v2330, %v2436
      %v2438 = vpop.f32.mrb[0].mxu0
      %2439 = vmatprep.mubr.f32.mxu0 %v2241
      %2440 = vmatmul.mubr.f32.gmra.mrb[0].mxu0 %v2170
      %v2441 = vpop.f32.mrb[0].mxu0
      %v2442 = vadd.f32 %v2335, %v2441
      %v2443 = vpop.f32.mrb[0].mxu0
      %2444 = vmatprep.mubr.f32.mxu0 %v2243
      %2445 = vmatmul.mubr.f32.gmra.mrb[0].mxu0 %v2171
      %v2446 = vpop.f32.mrb[0].mxu0
      %v2447 = vadd.f32 %v2340, %v2446
      %v2448 = vpop.f32.mrb[0].mxu0
      %2449 = vmatprep.mubr.f32.mxu0 %v2245
      %2450 = vmatmul.mubr.f32.gmra.mrb[0].mxu0 %v2172
      %v2451 = vpop.f32.mrb[0].mxu0
      %v2452 = vadd.f32 %v2345, %v2451
      %v2453 = vpop.f32.mrb[0].mxu0
      %2454 = vmatprep.mubr.f32.mxu0 %v2247
      %2455 = vmatmul.mubr.f32.gmra.mrb[0].mxu0 %v2173
      %v2456 = vpop.f32.mrb[0].mxu0
      %v2457 = vadd.f32 %v2350, %v2456
      %v2458 = vpop.f32.mrb[0].mxu0
      %2459 = vmatprep.mubr.f32.mxu0 %v2249
      %2460 = vmatmul.mubr.f32.gmra.mrb[0].mxu0 %v2174
      %v2461 = vpop.f32.mrb[0].mxu0
      %v2462 = vadd.f32 %v2355, %v2461
      %v2463 = vpop.f32.mrb[0].mxu0
      %2464 = vdwg.mxu0
      %v2467 = vrot.slane %v2077, 1
      %v2468 = vrot.slane %v2078, 1
      %v2469 = vsel %vm276, %v2467, %v2468
      %2470 = vrot.lane.b32.xlu0 %v2469, 64
      %v2471 = vpop.permute.xlu0 %2470
      %v2473 = vrot.slane %v2077, 2
      %v2474 = vrot.slane %v2078, 2
      %v2475 = vsel %vm325, %v2473, %v2474
      %v2476 = vsel %vm198, %v2077, %v2471
      %s2477 = scalar_lea.vmem %s1, 2112
      %v2478 = vld [vmem:[%s2477] sm:$0xff]
      %v2479 = vld [vmem:[%s2477 + $0x8] sm:$0xff]
      %v2480 = vld [vmem:[%s2477 + $0x10] sm:$0xff]
      %v2481 = vld [vmem:[%s2477 + $0x18] sm:$0xff]
      %v2482 = vld [vmem:[%s2477 + $0x20] sm:$0xff]
      %v2483 = vld [vmem:[%s2477 + $0x28] sm:$0xff]
      %v2484 = vld [vmem:[%s2477 + $0x30] sm:$0xff]
      %v2485 = vld [vmem:[%s2477 + $0x38] sm:$0xff]
      %v2486 = vld [vmem:[%s2477 + $0x40] sm:$0xff]
      %v2487 = vld [vmem:[%s2477 + $0x48] sm:$0xff]
      %v2488 = vld [vmem:[%s2477 + $0x50] sm:$0xff]
      %v2489 = vld [vmem:[%s2477 + $0x58] sm:$0xff]
      %v2490 = vld [vmem:[%s2477 + $0x60] sm:$0xff]
      %v2491 = vld [vmem:[%s2477 + $0x68] sm:$0xff]
      %v2492 = vld [vmem:[%s2477 + $0x70] sm:$0xff]
      %v2493 = vld [vmem:[%s2477 + $0x78] sm:$0xff]
      %v2494 = vld [vmem:[%s2477 + $0x80] sm:$0xff]
      %v2495 = vld [vmem:[%s2477 + $0x88] sm:$0xff]
      %v2496 = vld [vmem:[%s2477 + $0x90] sm:$0xff]
      %v2497 = vld [vmem:[%s2477 + $0x98] sm:$0xff]
      %v2498 = vld [vmem:[%s2477 + $0xa0] sm:$0xff]
      %v2499 = vld [vmem:[%s2477 + $0xa8] sm:$0xff]
      %v2500 = vld [vmem:[%s2477 + $0xb0] sm:$0xff]
      %v2501 = vld [vmem:[%s2477 + $0xb8] sm:$0xff]
      %v2502 = vsel %vm198, %v2475, 0
      %2504 = vmatprep.subr.mxu0 0.0
      %2505 = vmatpush1.msra.mxu0 %v2478
      %2506 = vmatprep.subr.mxu0 0.0
      %2507 = vmatpush1.msra.mxu0 %v2479
      %2508 = vmatprep.subr.mxu0 0.0
      %2509 = vmatpush1.msra.mxu0 %v2480
      %2510 = vmatprep.subr.mxu0 0.0
      %2511 = vmatpush1.msra.mxu0 %v2481
      %2512 = vmatprep.subr.mxu0 0.0
      %2513 = vmatpush1.msra.mxu0 %v2482
      %2514 = vmatprep.subr.mxu0 0.0
      %2515 = vmatpush1.msra.mxu0 %v2483
      %2516 = vmatprep.subr.mxu0 0.0
      %2517 = vmatpush1.msra.mxu0 %v2484
      %2518 = vmatprep.subr.mxu0 0.0
      %2519 = vmatpush1.msra.mxu0 %v2485
      %2520 = vmatprep.subr.mxu0 0.0
      %2521 = vmatpush1.msra.mxu0 %v2486
      %2522 = vmatprep.subr.mxu0 0.0
      %2523 = vmatpush1.msra.mxu0 %v2487
      %2524 = vmatprep.subr.mxu0 0.0
      %2525 = vmatpush1.msra.mxu0 %v2488
      %2526 = vmatprep.subr.mxu0 0.0
      %2527 = vmatpush1.msra.mxu0 %v2489
      %2528 = vmatprep.subr.mxu0 0.0
      %2529 = vmatpush1.msra.mxu0 %v2490
      %2530 = vmatprep.subr.mxu0 0.0
      %2531 = vmatpush1.msra.mxu0 %v2491
      %2532 = vmatprep.subr.mxu0 0.0
      %2533 = vmatpush1.msra.mxu0 %v2492
      %2534 = vmatprep.subr.mxu0 0.0
      %2535 = vmatpush1.msra.mxu0 %v2493
      %2536 = vmatprep.subr.mxu0 0.0
      %2537 = vmatpush1.msra.mxu0 %v2494
      %2538 = vmatprep.subr.mxu0 0.0
      %2539 = vmatpush1.msra.mxu0 %v2495
      %2540 = vmatprep.subr.mxu0 0.0
      %2541 = vmatpush1.msra.mxu0 %v2496
      %2542 = vmatprep.subr.mxu0 0.0
      %2543 = vmatpush1.msra.mxu0 %v2497
      %2544 = vmatprep.subr.mxu0 0.0
      %2545 = vmatpush1.msra.mxu0 %v2498
      %2546 = vmatprep.subr.mxu0 0.0
      %2547 = vmatpush1.msra.mxu0 %v2499
      %2548 = vmatprep.subr.mxu0 0.0
      %2549 = vmatpush1.msra.mxu0 %v2500
      %2550 = vmatprep.subr.mxu0 0.0
      %2551 = vmatpush1.msra.mxu0 %v2501
      %2552 = vmatprep.subr.mxu0 0.0
      %2553 = vmatpush1.msra.mxu0 0.0
      %2554 = vmatprep.subr.mxu0 0.0
      %2555 = vmatpush1.msra.mxu0 0.0
      %2556 = vmatprep.subr.mxu0 0.0
      %2557 = vmatpush1.msra.mxu0 0.0
      %2558 = vmatprep.subr.mxu0 0.0
      %2559 = vmatpush1.msra.mxu0 0.0
      %2560 = vmatprep.subr.mxu0 0.0
      %2561 = vmatpush1.msra.mxu0 0.0
      %2562 = vmatprep.subr.mxu0 0.0
      %2563 = vmatpush1.msra.mxu0 0.0
      %2564 = vmatprep.subr.mxu0 0.0
      %2565 = vmatpush1.msra.mxu0 0.0
      %2566 = vmatprep.subr.mxu0 0.0
      %2567 = vmatpush1.msra.mxu0 0.0
      %2568 = vmatprep.mubr.f32.mxu0 %v2239
      %2569 = vmatmul.mubr.f32.gmra.mrb[0].mxu0 %v2169
      %v2570 = vpop.f32.mrb[0].mxu0
      %v2571 = vadd.f32 0.0, %v2570
      %v2572 = vpop.f32.mrb[0].mxu0
      %2573 = vmatprep.mubr.f32.mxu0 %v2241
      %2574 = vmatmul.mubr.f32.gmra.mrb[0].mxu0 %v2170
      %v2575 = vpop.f32.mrb[0].mxu0
      %v2576 = vadd.f32 0.0, %v2575
      %v2577 = vpop.f32.mrb[0].mxu0
      %2578 = vmatprep.mubr.f32.mxu0 %v2243
      %2579 = vmatmul.mubr.f32.gmra.mrb[0].mxu0 %v2171
      %v2580 = vpop.f32.mrb[0].mxu0
      %v2581 = vadd.f32 0.0, %v2580
      %v2582 = vpop.f32.mrb[0].mxu0
      %2583 = vmatprep.mubr.f32.mxu0 %v2245
      %2584 = vmatmul.mubr.f32.gmra.mrb[0].mxu0 %v2172
      %v2585 = vpop.f32.mrb[0].mxu0
      %v2586 = vadd.f32 0.0, %v2585
      %v2587 = vpop.f32.mrb[0].mxu0
      %2588 = vmatprep.mubr.f32.mxu0 %v2247
      %2589 = vmatmul.mubr.f32.gmra.mrb[0].mxu0 %v2173
      %v2590 = vpop.f32.mrb[0].mxu0
      %v2591 = vadd.f32 0.0, %v2590
      %v2592 = vpop.f32.mrb[0].mxu0
      %2593 = vmatprep.mubr.f32.mxu0 %v2249
      %2594 = vmatmul.mubr.f32.gmra.mrb[0].mxu0 %v2174
      %v2595 = vpop.f32.mrb[0].mxu0
      %v2596 = vadd.f32 0.0, %v2595
      %v2597 = vpop.f32.mrb[0].mxu0
      %2598 = vmatprep.mubr.f32.mxu0 %v2251
      %2599 = vmatmul.mubr.f32.gmra.mrb[0].mxu0 %v2211
      %v2600 = vpop.f32.mrb[0].mxu0
      %v2601 = vadd.f32 0.0, %v2600
      %v2602 = vpop.f32.mrb[0].mxu0
      %2603 = vmatprep.mubr.f32.mxu0 %v2502
      %2604 = vmatmul.mubr.f32.gmra.mrb[0].mxu0 %v2476
      %v2605 = vpop.f32.mrb[0].mxu0
      %v2606 = vadd.f32 0.0, %v2605
      %v2607 = vpop.f32.mrb[0].mxu0
      %2608 = vdwg.mxu0
      %v2609 = vadd.f32 %v2427, %v2571
      %v2610 = vadd.f32 %v2432, %v2576
      %v2611 = vadd.f32 %v2437, %v2581
      %v2612 = vadd.f32 %v2442, %v2586
      %v2613 = vadd.f32 %v2447, %v2591
      %v2614 = vadd.f32 %v2452, %v2596
      %v2615 = vadd.f32 %v2457, %v2601
      %v2616 = vadd.f32 %v2462, %v2606
      %s2617 = scalar_lea.vmem %s2, 3
      %v2618 = vld [vmem:[%s2617] sm:$0x1]
      %v2620 = vlaneseq
      %v2621 = vshrl.u32 %v2620, 7
      %v2622 = vsub.s32 0, %v2621
      %v2623 = vrot.slane %v2618, %v2622
      %v2625 = vmul.f32 %v2609, %v2623
      %v2626 = vmul.f32 %v2610, %v2623
      %v2627 = vmul.f32 %v2611, %v2623
      %v2628 = vmul.f32 %v2612, %v2623
      %v2629 = vmul.f32 %v2613, %v2623
      %v2630 = vmul.f32 %v2614, %v2623
      %v2631 = vmul.f32 %v2615, %v2623
      %v2632 = vmul.f32 %v2616, %v2623
      %s2633 = scalar_lea.vmem %s3, 3
      %v2634 = vld [vmem:[%s2633] sm:$0x1]
      %v2636 = vlaneseq
      %v2637 = vshrl.u32 %v2636, 7
      %v2638 = vsub.s32 0, %v2637
      %v2639 = vrot.slane %v2634, %v2638
      %v2641 = vadd.f32 %v2625, %v2639
      %v2642 = vadd.f32 %v2626, %v2639
      %v2643 = vadd.f32 %v2627, %v2639
      %v2644 = vadd.f32 %v2628, %v2639
      %v2645 = vadd.f32 %v2629, %v2639
      %v2646 = vadd.f32 %v2630, %v2639
      %v2647 = vadd.f32 %v2631, %v2639
      %v2648 = vadd.f32 %v2632, %v2639
      %v2649 = vmax.f32 %v2641, 0.0
      %v2650 = vmax.f32 %v2642, 0.0
      %v2651 = vmax.f32 %v2643, 0.0
      %v2652 = vmax.f32 %v2644, 0.0
      %v2653 = vmax.f32 %v2645, 0.0
      %v2654 = vmax.f32 %v2646, 0.0
      %v2655 = vmax.f32 %v2647, 0.0
      %v2656 = vmax.f32 %v2648, 0.0
      %2657 = vst.msk [vmem:[%s1444 + $0x1] sm:$0xff] %vm198, %v2649
      %2658 = vst.msk [vmem:[%s1444 + $0x11] sm:$0xff] %vm198, %v2650
      %2659 = vst.msk [vmem:[%s1444 + $0x21] sm:$0xff] %vm198, %v2651
      %2660 = vst.msk [vmem:[%s1444 + $0x31] sm:$0xff] %vm198, %v2652
      %2661 = vst.msk [vmem:[%s1444 + $0x41] sm:$0xff] %vm198, %v2653
      %2662 = vst.msk [vmem:[%s1444 + $0x51] sm:$0xff] %vm198, %v2654
      %2663 = vst.msk [vmem:[%s1444 + $0x61] sm:$0xff] %vm198, %v2655
      %2664 = vst.msk [vmem:[%s1444 + $0x71] sm:$0xff] %vm198, %v2656
      %v2665 = vld [vmem:[#allocation3] sm:$0xff]
      %v2666 = vld [vmem:[#allocation3 + $0x8] sm:$0x3]
      %v2667 = vld [vmem:[#allocation3 + $0x10] sm:$0xff]
      %v2668 = vld [vmem:[#allocation3 + $0x18] sm:$0x3]
      %v2669 = vld [vmem:[#allocation3 + $0x20] sm:$0xff]
      %v2670 = vld [vmem:[#allocation3 + $0x28] sm:$0x3]
      %v2671 = vld [vmem:[#allocation3 + $0x30] sm:$0xff]
      %v2672 = vld [vmem:[#allocation3 + $0x38] sm:$0x3]
      %v2673 = vld [vmem:[#allocation3 + $0x40] sm:$0xff]
      %v2674 = vld [vmem:[#allocation3 + $0x48] sm:$0x3]
      %v2675 = vld [vmem:[#allocation3 + $0x50] sm:$0xff]
      %v2676 = vld [vmem:[#allocation3 + $0x58] sm:$0x3]
      %v2677 = vld [vmem:[#allocation3 + $0x60] sm:$0xff]
      %v2678 = vld [vmem:[#allocation3 + $0x68] sm:$0x3]
      %v2679 = vld [vmem:[#allocation3 + $0x70] sm:$0xff]
      %v2680 = vld [vmem:[#allocation3 + $0x78] sm:$0x3]
      %v2681 = vld [vmem:[#allocation3 + $0x80] sm:$0xff]
      %v2682 = vld [vmem:[#allocation3 + $0x88] sm:$0x3]
      %v2683 = vld [vmem:[#allocation3 + $0x90] sm:$0xff]
      %v2684 = vld [vmem:[#allocation3 + $0x98] sm:$0x3]
      %v2701 = vrot.slane %v2665, 1
      %v2702 = vrot.slane %v2666, 1
      %v2703 = vsel %vm276, %v2701, %v2702
      %v2704 = vrot.slane %v2667, 1
      %v2705 = vrot.slane %v2668, 1
      %v2706 = vsel %vm276, %v2704, %v2705
      %v2707 = vrot.slane %v2669, 1
      %v2708 = vrot.slane %v2670, 1
      %v2709 = vsel %vm276, %v2707, %v2708
      %v2710 = vrot.slane %v2671, 1
      %v2711 = vrot.slane %v2672, 1
      %v2712 = vsel %vm276, %v2710, %v2711
      %v2713 = vrot.slane %v2673, 1
      %v2714 = vrot.slane %v2674, 1
      %v2715 = vsel %vm276, %v2713, %v2714
      %v2716 = vrot.slane %v2675, 1
      %v2717 = vrot.slane %v2676, 1
      %v2718 = vsel %vm276, %v2716, %v2717
      %v2719 = vrot.slane %v2677, 1
      %v2720 = vrot.slane %v2678, 1
      %v2721 = vsel %vm276, %v2719, %v2720
      %v2722 = vrot.slane %v2679, 1
      %v2723 = vrot.slane %v2680, 1
      %v2724 = vsel %vm276, %v2722, %v2723
      %2725 = vrot.lane.b32.xlu0 %v2703, 64
      %v2726 = vpop.permute.xlu0 %2725
      %2727 = vrot.lane.b32.xlu0 %v2706, 64
      %v2728 = vpop.permute.xlu0 %2727
      %2729 = vrot.lane.b32.xlu0 %v2709, 64
      %v2730 = vpop.permute.xlu0 %2729
      %2731 = vrot.lane.b32.xlu0 %v2712, 64
      %v2732 = vpop.permute.xlu0 %2731
      %2733 = vrot.lane.b32.xlu0 %v2715, 64
      %v2734 = vpop.permute.xlu0 %2733
      %2735 = vrot.lane.b32.xlu0 %v2718, 64
      %v2736 = vpop.permute.xlu0 %2735
      %2737 = vrot.lane.b32.xlu0 %v2721, 64
      %v2738 = vpop.permute.xlu0 %2737
      %2739 = vrot.lane.b32.xlu0 %v2724, 64
      %v2740 = vpop.permute.xlu0 %2739
      %v2749 = vrot.slane %v2665, 2
      %v2750 = vrot.slane %v2666, 2
      %v2751 = vsel %vm325, %v2749, %v2750
      %v2752 = vrot.slane %v2667, 2
      %v2753 = vrot.slane %v2668, 2
      %v2754 = vsel %vm325, %v2752, %v2753
      %v2755 = vrot.slane %v2669, 2
      %v2756 = vrot.slane %v2670, 2
      %v2757 = vsel %vm325, %v2755, %v2756
      %v2758 = vrot.slane %v2671, 2
      %v2759 = vrot.slane %v2672, 2
      %v2760 = vsel %vm325, %v2758, %v2759
      %v2761 = vrot.slane %v2673, 2
      %v2762 = vrot.slane %v2674, 2
      %v2763 = vsel %vm325, %v2761, %v2762
      %v2764 = vrot.slane %v2675, 2
      %v2765 = vrot.slane %v2676, 2
      %v2766 = vsel %vm325, %v2764, %v2765
      %v2767 = vrot.slane %v2677, 2
      %v2768 = vrot.slane %v2678, 2
      %v2769 = vsel %vm325, %v2767, %v2768
      %v2770 = vrot.slane %v2679, 2
      %v2771 = vrot.slane %v2680, 2
      %v2772 = vsel %vm325, %v2770, %v2771
      %v2773 = vsel %vm198, %v2665, %v2726
      %v2774 = vsel %vm198, %v2667, %v2728
      %v2775 = vsel %vm198, %v2669, %v2730
      %v2776 = vsel %vm198, %v2671, %v2732
      %v2777 = vsel %vm198, %v2673, %v2734
      %v2778 = vsel %vm198, %v2675, %v2736
      %v2779 = vsel %vm198, %v2677, %v2738
      %v2780 = vsel %vm198, %v2679, %v2740
      %s2781 = scalar_lea.vmem %s1, 2304
      %v2782 = vld [vmem:[%s2781] sm:$0xff]
      %v2783 = vld [vmem:[%s2781 + $0x8] sm:$0xff]
      %v2784 = vld [vmem:[%s2781 + $0x10] sm:$0xff]
      %v2785 = vld [vmem:[%s2781 + $0x18] sm:$0xff]
      %v2786 = vld [vmem:[%s2781 + $0x20] sm:$0xff]
      %v2787 = vld [vmem:[%s2781 + $0x28] sm:$0xff]
      %v2788 = vld [vmem:[%s2781 + $0x30] sm:$0xff]
      %v2789 = vld [vmem:[%s2781 + $0x38] sm:$0xff]
      %v2790 = vld [vmem:[%s2781 + $0x40] sm:$0xff]
      %v2791 = vld [vmem:[%s2781 + $0x48] sm:$0xff]
      %v2792 = vld [vmem:[%s2781 + $0x50] sm:$0xff]
      %v2793 = vld [vmem:[%s2781 + $0x58] sm:$0xff]
      %v2794 = vld [vmem:[%s2781 + $0x60] sm:$0xff]
      %v2795 = vld [vmem:[%s2781 + $0x68] sm:$0xff]
      %v2796 = vld [vmem:[%s2781 + $0x70] sm:$0xff]
      %v2797 = vld [vmem:[%s2781 + $0x78] sm:$0xff]
      %v2798 = vld [vmem:[%s2781 + $0x80] sm:$0xff]
      %v2799 = vld [vmem:[%s2781 + $0x88] sm:$0xff]
      %v2800 = vld [vmem:[%s2781 + $0x90] sm:$0xff]
      %v2801 = vld [vmem:[%s2781 + $0x98] sm:$0xff]
      %v2802 = vld [vmem:[%s2781 + $0xa0] sm:$0xff]
      %v2803 = vld [vmem:[%s2781 + $0xa8] sm:$0xff]
      %v2804 = vld [vmem:[%s2781 + $0xb0] sm:$0xff]
      %v2805 = vld [vmem:[%s2781 + $0xb8] sm:$0xff]
      %v2808 = vrot.slane %v2681, 1
      %v2809 = vrot.slane %v2682, 1
      %v2810 = vsel %vm276, %v2808, %v2809
      %2811 = vrot.lane.b32.xlu0 %v2810, 64
      %v2812 = vpop.permute.xlu0 %2811
      %v2814 = vrot.slane %v2681, 2
      %v2815 = vrot.slane %v2682, 2
      %v2816 = vsel %vm325, %v2814, %v2815
      %v2817 = vsel %vm198, %v2681, %v2812
      %s2818 = scalar_lea.vmem %s1, 2496
      %v2819 = vld [vmem:[%s2818] sm:$0xff]
      %v2820 = vld [vmem:[%s2818 + $0x8] sm:$0xff]
      %v2821 = vld [vmem:[%s2818 + $0x10] sm:$0xff]
      %v2822 = vld [vmem:[%s2818 + $0x18] sm:$0xff]
      %v2823 = vld [vmem:[%s2818 + $0x20] sm:$0xff]
      %v2824 = vld [vmem:[%s2818 + $0x28] sm:$0xff]
      %v2825 = vld [vmem:[%s2818 + $0x30] sm:$0xff]
      %v2826 = vld [vmem:[%s2818 + $0x38] sm:$0xff]
      %v2827 = vld [vmem:[%s2818 + $0x40] sm:$0xff]
      %v2828 = vld [vmem:[%s2818 + $0x48] sm:$0xff]
      %v2829 = vld [vmem:[%s2818 + $0x50] sm:$0xff]
      %v2830 = vld [vmem:[%s2818 + $0x58] sm:$0xff]
      %v2831 = vld [vmem:[%s2818 + $0x60] sm:$0xff]
      %v2832 = vld [vmem:[%s2818 + $0x68] sm:$0xff]
      %v2833 = vld [vmem:[%s2818 + $0x70] sm:$0xff]
      %v2834 = vld [vmem:[%s2818 + $0x78] sm:$0xff]
      %v2835 = vld [vmem:[%s2818 + $0x80] sm:$0xff]
      %v2836 = vld [vmem:[%s2818 + $0x88] sm:$0xff]
      %v2837 = vld [vmem:[%s2818 + $0x90] sm:$0xff]
      %v2838 = vld [vmem:[%s2818 + $0x98] sm:$0xff]
      %v2839 = vld [vmem:[%s2818 + $0xa0] sm:$0xff]
      %v2840 = vld [vmem:[%s2818 + $0xa8] sm:$0xff]
      %v2841 = vld [vmem:[%s2818 + $0xb0] sm:$0xff]
      %v2842 = vld [vmem:[%s2818 + $0xb8] sm:$0xff]
      %v2843 = vsel %vm198, %v2754, 0
      %v2845 = vsel %vm198, %v2757, 0
      %v2847 = vsel %vm198, %v2760, 0
      %v2849 = vsel %vm198, %v2763, 0
      %v2851 = vsel %vm198, %v2766, 0
      %v2853 = vsel %vm198, %v2769, 0
      %v2855 = vsel %vm198, %v2772, 0
      %v2857 = vsel %vm198, %v2816, 0
      %2859 = vmatprep.subr.mxu0 0.0
      %2860 = vmatpush1.msra.mxu0 %v2819
      %2861 = vmatprep.subr.mxu0 0.0
      %2862 = vmatpush1.msra.mxu0 %v2820
      %2863 = vmatprep.subr.mxu0 0.0
      %2864 = vmatpush1.msra.mxu0 %v2821
      %2865 = vmatprep.subr.mxu0 0.0
      %2866 = vmatpush1.msra.mxu0 %v2822
      %2867 = vmatprep.subr.mxu0 0.0
      %2868 = vmatpush1.msra.mxu0 %v2823
      %2869 = vmatprep.subr.mxu0 0.0
      %2870 = vmatpush1.msra.mxu0 %v2824
      %2871 = vmatprep.subr.mxu0 0.0
      %2872 = vmatpush1.msra.mxu0 %v2825
      %2873 = vmatprep.subr.mxu0 0.0
      %2874 = vmatpush1.msra.mxu0 %v2826
      %2875 = vmatprep.subr.mxu0 0.0
      %2876 = vmatpush1.msra.mxu0 %v2827
      %2877 = vmatprep.subr.mxu0 0.0
      %2878 = vmatpush1.msra.mxu0 %v2828
      %2879 = vmatprep.subr.mxu0 0.0
      %2880 = vmatpush1.msra.mxu0 %v2829
      %2881 = vmatprep.subr.mxu0 0.0
      %2882 = vmatpush1.msra.mxu0 %v2830
      %2883 = vmatprep.subr.mxu0 0.0
      %2884 = vmatpush1.msra.mxu0 %v2831
      %2885 = vmatprep.subr.mxu0 0.0
      %2886 = vmatpush1.msra.mxu0 %v2832
      %2887 = vmatprep.subr.mxu0 0.0
      %2888 = vmatpush1.msra.mxu0 %v2833
      %2889 = vmatprep.subr.mxu0 0.0
      %2890 = vmatpush1.msra.mxu0 %v2834
      %2891 = vmatprep.subr.mxu0 0.0
      %2892 = vmatpush1.msra.mxu0 %v2835
      %2893 = vmatprep.subr.mxu0 0.0
      %2894 = vmatpush1.msra.mxu0 %v2836
      %2895 = vmatprep.subr.mxu0 0.0
      %2896 = vmatpush1.msra.mxu0 %v2837
      %2897 = vmatprep.subr.mxu0 0.0
      %2898 = vmatpush1.msra.mxu0 %v2838
      %2899 = vmatprep.subr.mxu0 0.0
      %2900 = vmatpush1.msra.mxu0 %v2839
      %2901 = vmatprep.subr.mxu0 0.0
      %2902 = vmatpush1.msra.mxu0 %v2840
      %2903 = vmatprep.subr.mxu0 0.0
      %2904 = vmatpush1.msra.mxu0 %v2841
      %2905 = vmatprep.subr.mxu0 0.0
      %2906 = vmatpush1.msra.mxu0 %v2842
      %2907 = vmatprep.subr.mxu0 0.0
      %2908 = vmatpush1.msra.mxu0 0.0
      %2909 = vmatprep.subr.mxu0 0.0
      %2910 = vmatpush1.msra.mxu0 0.0
      %2911 = vmatprep.subr.mxu0 0.0
      %2912 = vmatpush1.msra.mxu0 0.0
      %2913 = vmatprep.subr.mxu0 0.0
      %2914 = vmatpush1.msra.mxu0 0.0
      %2915 = vmatprep.subr.mxu0 0.0
      %2916 = vmatpush1.msra.mxu0 0.0
      %2917 = vmatprep.subr.mxu0 0.0
      %2918 = vmatpush1.msra.mxu0 0.0
      %2919 = vmatprep.subr.mxu0 0.0
      %2920 = vmatpush1.msra.mxu0 0.0
      %2921 = vmatprep.subr.mxu0 0.0
      %2922 = vmatpush1.msra.mxu0 0.0
      %2923 = vmatprep.mubr.f32.mxu0 %v2843
      %2924 = vmatmul.mubr.f32.gmra.mrb[0].mxu0 %v2774
      %v2925 = vpop.f32.mrb[0].mxu0
      %v2926 = vadd.f32 0.0, %v2925
      %v2927 = vpop.f32.mrb[0].mxu0
      %2928 = vmatprep.mubr.f32.mxu0 %v2845
      %2929 = vmatmul.mubr.f32.gmra.mrb[0].mxu0 %v2775
      %v2930 = vpop.f32.mrb[0].mxu0
      %v2931 = vadd.f32 0.0, %v2930
      %v2932 = vpop.f32.mrb[0].mxu0
      %2933 = vmatprep.mubr.f32.mxu0 %v2847
      %2934 = vmatmul.mubr.f32.gmra.mrb[0].mxu0 %v2776
      %v2935 = vpop.f32.mrb[0].mxu0
      %v2936 = vadd.f32 0.0, %v2935
      %v2937 = vpop.f32.mrb[0].mxu0
      %2938 = vmatprep.mubr.f32.mxu0 %v2849
      %2939 = vmatmul.mubr.f32.gmra.mrb[0].mxu0 %v2777
      %v2940 = vpop.f32.mrb[0].mxu0
      %v2941 = vadd.f32 0.0, %v2940
      %v2942 = vpop.f32.mrb[0].mxu0
      %2943 = vmatprep.mubr.f32.mxu0 %v2851
      %2944 = vmatmul.mubr.f32.gmra.mrb[0].mxu0 %v2778
      %v2945 = vpop.f32.mrb[0].mxu0
      %v2946 = vadd.f32 0.0, %v2945
      %v2947 = vpop.f32.mrb[0].mxu0
      %2948 = vmatprep.mubr.f32.mxu0 %v2853
      %2949 = vmatmul.mubr.f32.gmra.mrb[0].mxu0 %v2779
      %v2950 = vpop.f32.mrb[0].mxu0
      %v2951 = vadd.f32 0.0, %v2950
      %v2952 = vpop.f32.mrb[0].mxu0
      %2953 = vmatprep.mubr.f32.mxu0 %v2855
      %2954 = vmatmul.mubr.f32.gmra.mrb[0].mxu0 %v2780
      %v2955 = vpop.f32.mrb[0].mxu0
      %v2956 = vadd.f32 0.0, %v2955
      %v2957 = vpop.f32.mrb[0].mxu0
      %2958 = vmatprep.mubr.f32.mxu0 %v2857
      %2959 = vmatmul.mubr.f32.gmra.mrb[0].mxu0 %v2817
      %v2960 = vpop.f32.mrb[0].mxu0
      %v2961 = vadd.f32 0.0, %v2960
      %v2962 = vpop.f32.mrb[0].mxu0
      %2963 = vdwg.mxu0
      %v2964 = vsel %vm198, %v2751, 0
      %2966 = vmatprep.subr.mxu0 0.0
      %2967 = vmatpush1.msra.mxu0 %v2782
      %2968 = vmatprep.subr.mxu0 0.0
      %2969 = vmatpush1.msra.mxu0 %v2783
      %2970 = vmatprep.subr.mxu0 0.0
      %2971 = vmatpush1.msra.mxu0 %v2784
      %2972 = vmatprep.subr.mxu0 0.0
      %2973 = vmatpush1.msra.mxu0 %v2785
      %2974 = vmatprep.subr.mxu0 0.0
      %2975 = vmatpush1.msra.mxu0 %v2786
      %2976 = vmatprep.subr.mxu0 0.0
      %2977 = vmatpush1.msra.mxu0 %v2787
      %2978 = vmatprep.subr.mxu0 0.0
      %2979 = vmatpush1.msra.mxu0 %v2788
      %2980 = vmatprep.subr.mxu0 0.0
      %2981 = vmatpush1.msra.mxu0 %v2789
      %2982 = vmatprep.subr.mxu0 0.0
      %2983 = vmatpush1.msra.mxu0 %v2790
      %2984 = vmatprep.subr.mxu0 0.0
      %2985 = vmatpush1.msra.mxu0 %v2791
      %2986 = vmatprep.subr.mxu0 0.0
      %2987 = vmatpush1.msra.mxu0 %v2792
      %2988 = vmatprep.subr.mxu0 0.0
      %2989 = vmatpush1.msra.mxu0 %v2793
      %2990 = vmatprep.subr.mxu0 0.0
      %2991 = vmatpush1.msra.mxu0 %v2794
      %2992 = vmatprep.subr.mxu0 0.0
      %2993 = vmatpush1.msra.mxu0 %v2795
      %2994 = vmatprep.subr.mxu0 0.0
      %2995 = vmatpush1.msra.mxu0 %v2796
      %2996 = vmatprep.subr.mxu0 0.0
      %2997 = vmatpush1.msra.mxu0 %v2797
      %2998 = vmatprep.subr.mxu0 0.0
      %2999 = vmatpush1.msra.mxu0 %v2798
      %3000 = vmatprep.subr.mxu0 0.0
      %3001 = vmatpush1.msra.mxu0 %v2799
      %3002 = vmatprep.subr.mxu0 0.0
      %3003 = vmatpush1.msra.mxu0 %v2800
      %3004 = vmatprep.subr.mxu0 0.0
      %3005 = vmatpush1.msra.mxu0 %v2801
      %3006 = vmatprep.subr.mxu0 0.0
      %3007 = vmatpush1.msra.mxu0 %v2802
      %3008 = vmatprep.subr.mxu0 0.0
      %3009 = vmatpush1.msra.mxu0 %v2803
      %3010 = vmatprep.subr.mxu0 0.0
      %3011 = vmatpush1.msra.mxu0 %v2804
      %3012 = vmatprep.subr.mxu0 0.0
      %3013 = vmatpush1.msra.mxu0 %v2805
      %3014 = vmatprep.subr.mxu0 0.0
      %3015 = vmatpush1.msra.mxu0 0.0
      %3016 = vmatprep.subr.mxu0 0.0
      %3017 = vmatpush1.msra.mxu0 0.0
      %3018 = vmatprep.subr.mxu0 0.0
      %3019 = vmatpush1.msra.mxu0 0.0
      %3020 = vmatprep.subr.mxu0 0.0
      %3021 = vmatpush1.msra.mxu0 0.0
      %3022 = vmatprep.subr.mxu0 0.0
      %3023 = vmatpush1.msra.mxu0 0.0
      %3024 = vmatprep.subr.mxu0 0.0
      %3025 = vmatpush1.msra.mxu0 0.0
      %3026 = vmatprep.subr.mxu0 0.0
      %3027 = vmatpush1.msra.mxu0 0.0
      %3028 = vmatprep.subr.mxu0 0.0
      %3029 = vmatpush1.msra.mxu0 0.0
      %3030 = vmatprep.mubr.f32.mxu0 %v2964
      %3031 = vmatmul.mubr.f32.gmra.mrb[0].mxu0 %v2773
      %v3032 = vpop.f32.mrb[0].mxu0
      %v3033 = vadd.f32 %v2926, %v3032
      %v3034 = vpop.f32.mrb[0].mxu0
      %3035 = vmatprep.mubr.f32.mxu0 %v2843
      %3036 = vmatmul.mubr.f32.gmra.mrb[0].mxu0 %v2774
      %v3037 = vpop.f32.mrb[0].mxu0
      %v3038 = vadd.f32 %v2931, %v3037
      %v3039 = vpop.f32.mrb[0].mxu0
      %3040 = vmatprep.mubr.f32.mxu0 %v2845
      %3041 = vmatmul.mubr.f32.gmra.mrb[0].mxu0 %v2775
      %v3042 = vpop.f32.mrb[0].mxu0
      %v3043 = vadd.f32 %v2936, %v3042
      %v3044 = vpop.f32.mrb[0].mxu0
      %3045 = vmatprep.mubr.f32.mxu0 %v2847
      %3046 = vmatmul.mubr.f32.gmra.mrb[0].mxu0 %v2776
      %v3047 = vpop.f32.mrb[0].mxu0
      %v3048 = vadd.f32 %v2941, %v3047
      %v3049 = vpop.f32.mrb[0].mxu0
      %3050 = vmatprep.mubr.f32.mxu0 %v2849
      %3051 = vmatmul.mubr.f32.gmra.mrb[0].mxu0 %v2777
      %v3052 = vpop.f32.mrb[0].mxu0
      %v3053 = vadd.f32 %v2946, %v3052
      %v3054 = vpop.f32.mrb[0].mxu0
      %3055 = vmatprep.mubr.f32.mxu0 %v2851
      %3056 = vmatmul.mubr.f32.gmra.mrb[0].mxu0 %v2778
      %v3057 = vpop.f32.mrb[0].mxu0
      %v3058 = vadd.f32 %v2951, %v3057
      %v3059 = vpop.f32.mrb[0].mxu0
      %3060 = vmatprep.mubr.f32.mxu0 %v2853
      %3061 = vmatmul.mubr.f32.gmra.mrb[0].mxu0 %v2779
      %v3062 = vpop.f32.mrb[0].mxu0
      %v3063 = vadd.f32 %v2956, %v3062
      %v3064 = vpop.f32.mrb[0].mxu0
      %3065 = vmatprep.mubr.f32.mxu0 %v2855
      %3066 = vmatmul.mubr.f32.gmra.mrb[0].mxu0 %v2780
      %v3067 = vpop.f32.mrb[0].mxu0
      %v3068 = vadd.f32 %v2961, %v3067
      %v3069 = vpop.f32.mrb[0].mxu0
      %3070 = vdwg.mxu0
      %v3073 = vrot.slane %v2683, 1
      %v3074 = vrot.slane %v2684, 1
      %v3075 = vsel %vm276, %v3073, %v3074
      %3076 = vrot.lane.b32.xlu0 %v3075, 64
      %v3077 = vpop.permute.xlu0 %3076
      %v3079 = vrot.slane %v2683, 2
      %v3080 = vrot.slane %v2684, 2
      %v3081 = vsel %vm325, %v3079, %v3080
      %v3082 = vsel %vm198, %v2683, %v3077
      %s3083 = scalar_lea.vmem %s1, 2688
      %v3084 = vld [vmem:[%s3083] sm:$0xff]
      %v3085 = vld [vmem:[%s3083 + $0x8] sm:$0xff]
      %v3086 = vld [vmem:[%s3083 + $0x10] sm:$0xff]
      %v3087 = vld [vmem:[%s3083 + $0x18] sm:$0xff]
      %v3088 = vld [vmem:[%s3083 + $0x20] sm:$0xff]
      %v3089 = vld [vmem:[%s3083 + $0x28] sm:$0xff]
      %v3090 = vld [vmem:[%s3083 + $0x30] sm:$0xff]
      %v3091 = vld [vmem:[%s3083 + $0x38] sm:$0xff]
      %v3092 = vld [vmem:[%s3083 + $0x40] sm:$0xff]
      %v3093 = vld [vmem:[%s3083 + $0x48] sm:$0xff]
      %v3094 = vld [vmem:[%s3083 + $0x50] sm:$0xff]
      %v3095 = vld [vmem:[%s3083 + $0x58] sm:$0xff]
      %v3096 = vld [vmem:[%s3083 + $0x60] sm:$0xff]
      %v3097 = vld [vmem:[%s3083 + $0x68] sm:$0xff]
      %v3098 = vld [vmem:[%s3083 + $0x70] sm:$0xff]
      %v3099 = vld [vmem:[%s3083 + $0x78] sm:$0xff]
      %v3100 = vld [vmem:[%s3083 + $0x80] sm:$0xff]
      %v3101 = vld [vmem:[%s3083 + $0x88] sm:$0xff]
      %v3102 = vld [vmem:[%s3083 + $0x90] sm:$0xff]
      %v3103 = vld [vmem:[%s3083 + $0x98] sm:$0xff]
      %v3104 = vld [vmem:[%s3083 + $0xa0] sm:$0xff]
      %v3105 = vld [vmem:[%s3083 + $0xa8] sm:$0xff]
      %v3106 = vld [vmem:[%s3083 + $0xb0] sm:$0xff]
      %v3107 = vld [vmem:[%s3083 + $0xb8] sm:$0xff]
      %v3108 = vsel %vm198, %v3081, 0
      %3110 = vmatprep.subr.mxu0 0.0
      %3111 = vmatpush1.msra.mxu0 %v3084
      %3112 = vmatprep.subr.mxu0 0.0
      %3113 = vmatpush1.msra.mxu0 %v3085
      %3114 = vmatprep.subr.mxu0 0.0
      %3115 = vmatpush1.msra.mxu0 %v3086
      %3116 = vmatprep.subr.mxu0 0.0
      %3117 = vmatpush1.msra.mxu0 %v3087
      %3118 = vmatprep.subr.mxu0 0.0
      %3119 = vmatpush1.msra.mxu0 %v3088
      %3120 = vmatprep.subr.mxu0 0.0
      %3121 = vmatpush1.msra.mxu0 %v3089
      %3122 = vmatprep.subr.mxu0 0.0
      %3123 = vmatpush1.msra.mxu0 %v3090
      %3124 = vmatprep.subr.mxu0 0.0
      %3125 = vmatpush1.msra.mxu0 %v3091
      %3126 = vmatprep.subr.mxu0 0.0
      %3127 = vmatpush1.msra.mxu0 %v3092
      %3128 = vmatprep.subr.mxu0 0.0
      %3129 = vmatpush1.msra.mxu0 %v3093
      %3130 = vmatprep.subr.mxu0 0.0
      %3131 = vmatpush1.msra.mxu0 %v3094
      %3132 = vmatprep.subr.mxu0 0.0
      %3133 = vmatpush1.msra.mxu0 %v3095
      %3134 = vmatprep.subr.mxu0 0.0
      %3135 = vmatpush1.msra.mxu0 %v3096
      %3136 = vmatprep.subr.mxu0 0.0
      %3137 = vmatpush1.msra.mxu0 %v3097
      %3138 = vmatprep.subr.mxu0 0.0
      %3139 = vmatpush1.msra.mxu0 %v3098
      %3140 = vmatprep.subr.mxu0 0.0
      %3141 = vmatpush1.msra.mxu0 %v3099
      %3142 = vmatprep.subr.mxu0 0.0
      %3143 = vmatpush1.msra.mxu0 %v3100
      %3144 = vmatprep.subr.mxu0 0.0
      %3145 = vmatpush1.msra.mxu0 %v3101
      %3146 = vmatprep.subr.mxu0 0.0
      %3147 = vmatpush1.msra.mxu0 %v3102
      %3148 = vmatprep.subr.mxu0 0.0
      %3149 = vmatpush1.msra.mxu0 %v3103
      %3150 = vmatprep.subr.mxu0 0.0
      %3151 = vmatpush1.msra.mxu0 %v3104
      %3152 = vmatprep.subr.mxu0 0.0
      %3153 = vmatpush1.msra.mxu0 %v3105
      %3154 = vmatprep.subr.mxu0 0.0
      %3155 = vmatpush1.msra.mxu0 %v3106
      %3156 = vmatprep.subr.mxu0 0.0
      %3157 = vmatpush1.msra.mxu0 %v3107
      %3158 = vmatprep.subr.mxu0 0.0
      %3159 = vmatpush1.msra.mxu0 0.0
      %3160 = vmatprep.subr.mxu0 0.0
      %3161 = vmatpush1.msra.mxu0 0.0
      %3162 = vmatprep.subr.mxu0 0.0
      %3163 = vmatpush1.msra.mxu0 0.0
      %3164 = vmatprep.subr.mxu0 0.0
      %3165 = vmatpush1.msra.mxu0 0.0
      %3166 = vmatprep.subr.mxu0 0.0
      %3167 = vmatpush1.msra.mxu0 0.0
      %3168 = vmatprep.subr.mxu0 0.0
      %3169 = vmatpush1.msra.mxu0 0.0
      %3170 = vmatprep.subr.mxu0 0.0
      %3171 = vmatpush1.msra.mxu0 0.0
      %3172 = vmatprep.subr.mxu0 0.0
      %3173 = vmatpush1.msra.mxu0 0.0
      %3174 = vmatprep.mubr.f32.mxu0 %v2845
      %3175 = vmatmul.mubr.f32.gmra.mrb[0].mxu0 %v2775
      %v3176 = vpop.f32.mrb[0].mxu0
      %v3177 = vadd.f32 0.0, %v3176
      %v3178 = vpop.f32.mrb[0].mxu0
      %3179 = vmatprep.mubr.f32.mxu0 %v2847
      %3180 = vmatmul.mubr.f32.gmra.mrb[0].mxu0 %v2776
      %v3181 = vpop.f32.mrb[0].mxu0
      %v3182 = vadd.f32 0.0, %v3181
      %v3183 = vpop.f32.mrb[0].mxu0
      %3184 = vmatprep.mubr.f32.mxu0 %v2849
      %3185 = vmatmul.mubr.f32.gmra.mrb[0].mxu0 %v2777
      %v3186 = vpop.f32.mrb[0].mxu0
      %v3187 = vadd.f32 0.0, %v3186
      %v3188 = vpop.f32.mrb[0].mxu0
      %3189 = vmatprep.mubr.f32.mxu0 %v2851
      %3190 = vmatmul.mubr.f32.gmra.mrb[0].mxu0 %v2778
      %v3191 = vpop.f32.mrb[0].mxu0
      %v3192 = vadd.f32 0.0, %v3191
      %v3193 = vpop.f32.mrb[0].mxu0
      %3194 = vmatprep.mubr.f32.mxu0 %v2853
      %3195 = vmatmul.mubr.f32.gmra.mrb[0].mxu0 %v2779
      %v3196 = vpop.f32.mrb[0].mxu0
      %v3197 = vadd.f32 0.0, %v3196
      %v3198 = vpop.f32.mrb[0].mxu0
      %3199 = vmatprep.mubr.f32.mxu0 %v2855
      %3200 = vmatmul.mubr.f32.gmra.mrb[0].mxu0 %v2780
      %v3201 = vpop.f32.mrb[0].mxu0
      %v3202 = vadd.f32 0.0, %v3201
      %v3203 = vpop.f32.mrb[0].mxu0
      %3204 = vmatprep.mubr.f32.mxu0 %v2857
      %3205 = vmatmul.mubr.f32.gmra.mrb[0].mxu0 %v2817
      %v3206 = vpop.f32.mrb[0].mxu0
      %v3207 = vadd.f32 0.0, %v3206
      %v3208 = vpop.f32.mrb[0].mxu0
      %3209 = vmatprep.mubr.f32.mxu0 %v3108
      %3210 = vmatmul.mubr.f32.gmra.mrb[0].mxu0 %v3082
      %v3211 = vpop.f32.mrb[0].mxu0
      %v3212 = vadd.f32 0.0, %v3211
      %v3213 = vpop.f32.mrb[0].mxu0
      %3214 = vdwg.mxu0
      %v3215 = vadd.f32 %v3033, %v3177
      %v3216 = vadd.f32 %v3038, %v3182
      %v3217 = vadd.f32 %v3043, %v3187
      %v3218 = vadd.f32 %v3048, %v3192
      %v3219 = vadd.f32 %v3053, %v3197
      %v3220 = vadd.f32 %v3058, %v3202
      %v3221 = vadd.f32 %v3063, %v3207
      %v3222 = vadd.f32 %v3068, %v3212
      %s3223 = scalar_lea.vmem %s2, 4
      %v3224 = vld [vmem:[%s3223] sm:$0x1]
      %v3226 = vlaneseq
      %v3227 = vshrl.u32 %v3226, 7
      %v3228 = vsub.s32 0, %v3227
      %v3229 = vrot.slane %v3224, %v3228
      %v3231 = vmul.f32 %v3215, %v3229
      %v3232 = vmul.f32 %v3216, %v3229
      %v3233 = vmul.f32 %v3217, %v3229
      %v3234 = vmul.f32 %v3218, %v3229
      %v3235 = vmul.f32 %v3219, %v3229
      %v3236 = vmul.f32 %v3220, %v3229
      %v3237 = vmul.f32 %v3221, %v3229
      %v3238 = vmul.f32 %v3222, %v3229
      %s3239 = scalar_lea.vmem %s3, 4
      %v3240 = vld [vmem:[%s3239] sm:$0x1]
      %v3242 = vlaneseq
      %v3243 = vshrl.u32 %v3242, 7
      %v3244 = vsub.s32 0, %v3243
      %v3245 = vrot.slane %v3240, %v3244
      %v3247 = vadd.f32 %v3231, %v3245
      %v3248 = vadd.f32 %v3232, %v3245
      %v3249 = vadd.f32 %v3233, %v3245
      %v3250 = vadd.f32 %v3234, %v3245
      %v3251 = vadd.f32 %v3235, %v3245
      %v3252 = vadd.f32 %v3236, %v3245
      %v3253 = vadd.f32 %v3237, %v3245
      %v3254 = vadd.f32 %v3238, %v3245
      %v3255 = vmax.f32 %v3247, 0.0
      %v3256 = vmax.f32 %v3248, 0.0
      %v3257 = vmax.f32 %v3249, 0.0
      %v3258 = vmax.f32 %v3250, 0.0
      %v3259 = vmax.f32 %v3251, 0.0
      %v3260 = vmax.f32 %v3252, 0.0
      %v3261 = vmax.f32 %v3253, 0.0
      %v3262 = vmax.f32 %v3254, 0.0
      %3263 = vst.msk [vmem:[%s837 + $0x1] sm:$0xff] %vm198, %v3255
      %3264 = vst.msk [vmem:[%s837 + $0x11] sm:$0xff] %vm198, %v3256
      %3265 = vst.msk [vmem:[%s837 + $0x21] sm:$0xff] %vm198, %v3257
      %3266 = vst.msk [vmem:[%s837 + $0x31] sm:$0xff] %vm198, %v3258
      %3267 = vst.msk [vmem:[%s837 + $0x41] sm:$0xff] %vm198, %v3259
      %3268 = vst.msk [vmem:[%s837 + $0x51] sm:$0xff] %vm198, %v3260
      %3269 = vst.msk [vmem:[%s837 + $0x61] sm:$0xff] %vm198, %v3261
      %3270 = vst.msk [vmem:[%s837 + $0x71] sm:$0xff] %vm198, %v3262
      %v3271 = vld [vmem:[#allocation2] sm:$0xff]
      %v3272 = vld [vmem:[#allocation2 + $0x8] sm:$0x3]
      %v3273 = vld [vmem:[#allocation2 + $0x10] sm:$0xff]
      %v3274 = vld [vmem:[#allocation2 + $0x18] sm:$0x3]
      %v3275 = vld [vmem:[#allocation2 + $0x20] sm:$0xff]
      %v3276 = vld [vmem:[#allocation2 + $0x28] sm:$0x3]
      %v3277 = vld [vmem:[#allocation2 + $0x30] sm:$0xff]
      %v3278 = vld [vmem:[#allocation2 + $0x38] sm:$0x3]
      %v3279 = vld [vmem:[#allocation2 + $0x40] sm:$0xff]
      %v3280 = vld [vmem:[#allocation2 + $0x48] sm:$0x3]
      %v3281 = vld [vmem:[#allocation2 + $0x50] sm:$0xff]
      %v3282 = vld [vmem:[#allocation2 + $0x58] sm:$0x3]
      %v3283 = vld [vmem:[#allocation2 + $0x60] sm:$0xff]
      %v3284 = vld [vmem:[#allocation2 + $0x68] sm:$0x3]
      %v3285 = vld [vmem:[#allocation2 + $0x70] sm:$0xff]
      %v3286 = vld [vmem:[#allocation2 + $0x78] sm:$0x3]
      %v3287 = vld [vmem:[#allocation2 + $0x80] sm:$0xff]
      %v3288 = vld [vmem:[#allocation2 + $0x88] sm:$0x3]
      %v3289 = vld [vmem:[#allocation2 + $0x90] sm:$0xff]
      %v3290 = vld [vmem:[#allocation2 + $0x98] sm:$0x3]
      %v3307 = vrot.slane %v3271, 1
      %v3308 = vrot.slane %v3272, 1
      %v3309 = vsel %vm276, %v3307, %v3308
      %v3310 = vrot.slane %v3273, 1
      %v3311 = vrot.slane %v3274, 1
      %v3312 = vsel %vm276, %v3310, %v3311
      %v3313 = vrot.slane %v3275, 1
      %v3314 = vrot.slane %v3276, 1
      %v3315 = vsel %vm276, %v3313, %v3314
      %v3316 = vrot.slane %v3277, 1
      %v3317 = vrot.slane %v3278, 1
      %v3318 = vsel %vm276, %v3316, %v3317
      %v3319 = vrot.slane %v3279, 1
      %v3320 = vrot.slane %v3280, 1
      %v3321 = vsel %vm276, %v3319, %v3320
      %v3322 = vrot.slane %v3281, 1
      %v3323 = vrot.slane %v3282, 1
      %v3324 = vsel %vm276, %v3322, %v3323
      %v3325 = vrot.slane %v3283, 1
      %v3326 = vrot.slane %v3284, 1
      %v3327 = vsel %vm276, %v3325, %v3326
      %v3328 = vrot.slane %v3285, 1
      %v3329 = vrot.slane %v3286, 1
      %v3330 = vsel %vm276, %v3328, %v3329
      %3331 = vrot.lane.b32.xlu0 %v3309, 64
      %v3332 = vpop.permute.xlu0 %3331
      %3333 = vrot.lane.b32.xlu0 %v3312, 64
      %v3334 = vpop.permute.xlu0 %3333
      %3335 = vrot.lane.b32.xlu0 %v3315, 64
      %v3336 = vpop.permute.xlu0 %3335
      %3337 = vrot.lane.b32.xlu0 %v3318, 64
      %v3338 = vpop.permute.xlu0 %3337
      %3339 = vrot.lane.b32.xlu0 %v3321, 64
      %v3340 = vpop.permute.xlu0 %3339
      %3341 = vrot.lane.b32.xlu0 %v3324, 64
      %v3342 = vpop.permute.xlu0 %3341
      %3343 = vrot.lane.b32.xlu0 %v3327, 64
      %v3344 = vpop.permute.xlu0 %3343
      %3345 = vrot.lane.b32.xlu0 %v3330, 64
      %v3346 = vpop.permute.xlu0 %3345
      %v3355 = vrot.slane %v3271, 2
      %v3356 = vrot.slane %v3272, 2
      %v3357 = vsel %vm325, %v3355, %v3356
      %v3358 = vrot.slane %v3273, 2
      %v3359 = vrot.slane %v3274, 2
      %v3360 = vsel %vm325, %v3358, %v3359
      %v3361 = vrot.slane %v3275, 2
      %v3362 = vrot.slane %v3276, 2
      %v3363 = vsel %vm325, %v3361, %v3362
      %v3364 = vrot.slane %v3277, 2
      %v3365 = vrot.slane %v3278, 2
      %v3366 = vsel %vm325, %v3364, %v3365
      %v3367 = vrot.slane %v3279, 2
      %v3368 = vrot.slane %v3280, 2
      %v3369 = vsel %vm325, %v3367, %v3368
      %v3370 = vrot.slane %v3281, 2
      %v3371 = vrot.slane %v3282, 2
      %v3372 = vsel %vm325, %v3370, %v3371
      %v3373 = vrot.slane %v3283, 2
      %v3374 = vrot.slane %v3284, 2
      %v3375 = vsel %vm325, %v3373, %v3374
      %v3376 = vrot.slane %v3285, 2
      %v3377 = vrot.slane %v3286, 2
      %v3378 = vsel %vm325, %v3376, %v3377
      %v3379 = vsel %vm198, %v3271, %v3332
      %v3380 = vsel %vm198, %v3273, %v3334
      %v3381 = vsel %vm198, %v3275, %v3336
      %v3382 = vsel %vm198, %v3277, %v3338
      %v3383 = vsel %vm198, %v3279, %v3340
      %v3384 = vsel %vm198, %v3281, %v3342
      %v3385 = vsel %vm198, %v3283, %v3344
      %v3386 = vsel %vm198, %v3285, %v3346
      %s3387 = scalar_lea.vmem %s1, 2880
      %v3388 = vld [vmem:[%s3387] sm:$0xff]
      %v3389 = vld [vmem:[%s3387 + $0x8] sm:$0xff]
      %v3390 = vld [vmem:[%s3387 + $0x10] sm:$0xff]
      %v3391 = vld [vmem:[%s3387 + $0x18] sm:$0xff]
      %v3392 = vld [vmem:[%s3387 + $0x20] sm:$0xff]
      %v3393 = vld [vmem:[%s3387 + $0x28] sm:$0xff]
      %v3394 = vld [vmem:[%s3387 + $0x30] sm:$0xff]
      %v3395 = vld [vmem:[%s3387 + $0x38] sm:$0xff]
      %v3396 = vld [vmem:[%s3387 + $0x40] sm:$0xff]
      %v3397 = vld [vmem:[%s3387 + $0x48] sm:$0xff]
      %v3398 = vld [vmem:[%s3387 + $0x50] sm:$0xff]
      %v3399 = vld [vmem:[%s3387 + $0x58] sm:$0xff]
      %v3400 = vld [vmem:[%s3387 + $0x60] sm:$0xff]
      %v3401 = vld [vmem:[%s3387 + $0x68] sm:$0xff]
      %v3402 = vld [vmem:[%s3387 + $0x70] sm:$0xff]
      %v3403 = vld [vmem:[%s3387 + $0x78] sm:$0xff]
      %v3404 = vld [vmem:[%s3387 + $0x80] sm:$0xff]
      %v3405 = vld [vmem:[%s3387 + $0x88] sm:$0xff]
      %v3406 = vld [vmem:[%s3387 + $0x90] sm:$0xff]
      %v3407 = vld [vmem:[%s3387 + $0x98] sm:$0xff]
      %v3408 = vld [vmem:[%s3387 + $0xa0] sm:$0xff]
      %v3409 = vld [vmem:[%s3387 + $0xa8] sm:$0xff]
      %v3410 = vld [vmem:[%s3387 + $0xb0] sm:$0xff]
      %v3411 = vld [vmem:[%s3387 + $0xb8] sm:$0xff]
      %v3414 = vrot.slane %v3287, 1
      %v3415 = vrot.slane %v3288, 1
      %v3416 = vsel %vm276, %v3414, %v3415
      %3417 = vrot.lane.b32.xlu0 %v3416, 64
      %v3418 = vpop.permute.xlu0 %3417
      %v3420 = vrot.slane %v3287, 2
      %v3421 = vrot.slane %v3288, 2
      %v3422 = vsel %vm325, %v3420, %v3421
      %v3423 = vsel %vm198, %v3287, %v3418
      %s3424 = scalar_lea.vmem %s1, 3072
      %v3425 = vld [vmem:[%s3424] sm:$0xff]
      %v3426 = vld [vmem:[%s3424 + $0x8] sm:$0xff]
      %v3427 = vld [vmem:[%s3424 + $0x10] sm:$0xff]
      %v3428 = vld [vmem:[%s3424 + $0x18] sm:$0xff]
      %v3429 = vld [vmem:[%s3424 + $0x20] sm:$0xff]
      %v3430 = vld [vmem:[%s3424 + $0x28] sm:$0xff]
      %v3431 = vld [vmem:[%s3424 + $0x30] sm:$0xff]
      %v3432 = vld [vmem:[%s3424 + $0x38] sm:$0xff]
      %v3433 = vld [vmem:[%s3424 + $0x40] sm:$0xff]
      %v3434 = vld [vmem:[%s3424 + $0x48] sm:$0xff]
      %v3435 = vld [vmem:[%s3424 + $0x50] sm:$0xff]
      %v3436 = vld [vmem:[%s3424 + $0x58] sm:$0xff]
      %v3437 = vld [vmem:[%s3424 + $0x60] sm:$0xff]
      %v3438 = vld [vmem:[%s3424 + $0x68] sm:$0xff]
      %v3439 = vld [vmem:[%s3424 + $0x70] sm:$0xff]
      %v3440 = vld [vmem:[%s3424 + $0x78] sm:$0xff]
      %v3441 = vld [vmem:[%s3424 + $0x80] sm:$0xff]
      %v3442 = vld [vmem:[%s3424 + $0x88] sm:$0xff]
      %v3443 = vld [vmem:[%s3424 + $0x90] sm:$0xff]
      %v3444 = vld [vmem:[%s3424 + $0x98] sm:$0xff]
      %v3445 = vld [vmem:[%s3424 + $0xa0] sm:$0xff]
      %v3446 = vld [vmem:[%s3424 + $0xa8] sm:$0xff]
      %v3447 = vld [vmem:[%s3424 + $0xb0] sm:$0xff]
      %v3448 = vld [vmem:[%s3424 + $0xb8] sm:$0xff]
      %v3449 = vsel %vm198, %v3360, 0
      %v3451 = vsel %vm198, %v3363, 0
      %v3453 = vsel %vm198, %v3366, 0
      %v3455 = vsel %vm198, %v3369, 0
      %v3457 = vsel %vm198, %v3372, 0
      %v3459 = vsel %vm198, %v3375, 0
      %v3461 = vsel %vm198, %v3378, 0
      %v3463 = vsel %vm198, %v3422, 0
      %3465 = vmatprep.subr.mxu0 0.0
      %3466 = vmatpush1.msra.mxu0 %v3425
      %3467 = vmatprep.subr.mxu0 0.0
      %3468 = vmatpush1.msra.mxu0 %v3426
      %3469 = vmatprep.subr.mxu0 0.0
      %3470 = vmatpush1.msra.mxu0 %v3427
      %3471 = vmatprep.subr.mxu0 0.0
      %3472 = vmatpush1.msra.mxu0 %v3428
      %3473 = vmatprep.subr.mxu0 0.0
      %3474 = vmatpush1.msra.mxu0 %v3429
      %3475 = vmatprep.subr.mxu0 0.0
      %3476 = vmatpush1.msra.mxu0 %v3430
      %3477 = vmatprep.subr.mxu0 0.0
      %3478 = vmatpush1.msra.mxu0 %v3431
      %3479 = vmatprep.subr.mxu0 0.0
      %3480 = vmatpush1.msra.mxu0 %v3432
      %3481 = vmatprep.subr.mxu0 0.0
      %3482 = vmatpush1.msra.mxu0 %v3433
      %3483 = vmatprep.subr.mxu0 0.0
      %3484 = vmatpush1.msra.mxu0 %v3434
      %3485 = vmatprep.subr.mxu0 0.0
      %3486 = vmatpush1.msra.mxu0 %v3435
      %3487 = vmatprep.subr.mxu0 0.0
      %3488 = vmatpush1.msra.mxu0 %v3436
      %3489 = vmatprep.subr.mxu0 0.0
      %3490 = vmatpush1.msra.mxu0 %v3437
      %3491 = vmatprep.subr.mxu0 0.0
      %3492 = vmatpush1.msra.mxu0 %v3438
      %3493 = vmatprep.subr.mxu0 0.0
      %3494 = vmatpush1.msra.mxu0 %v3439
      %3495 = vmatprep.subr.mxu0 0.0
      %3496 = vmatpush1.msra.mxu0 %v3440
      %3497 = vmatprep.subr.mxu0 0.0
      %3498 = vmatpush1.msra.mxu0 %v3441
      %3499 = vmatprep.subr.mxu0 0.0
      %3500 = vmatpush1.msra.mxu0 %v3442
      %3501 = vmatprep.subr.mxu0 0.0
      %3502 = vmatpush1.msra.mxu0 %v3443
      %3503 = vmatprep.subr.mxu0 0.0
      %3504 = vmatpush1.msra.mxu0 %v3444
      %3505 = vmatprep.subr.mxu0 0.0
      %3506 = vmatpush1.msra.mxu0 %v3445
      %3507 = vmatprep.subr.mxu0 0.0
      %3508 = vmatpush1.msra.mxu0 %v3446
      %3509 = vmatprep.subr.mxu0 0.0
      %3510 = vmatpush1.msra.mxu0 %v3447
      %3511 = vmatprep.subr.mxu0 0.0
      %3512 = vmatpush1.msra.mxu0 %v3448
      %3513 = vmatprep.subr.mxu0 0.0
      %3514 = vmatpush1.msra.mxu0 0.0
      %3515 = vmatprep.subr.mxu0 0.0
      %3516 = vmatpush1.msra.mxu0 0.0
      %3517 = vmatprep.subr.mxu0 0.0
      %3518 = vmatpush1.msra.mxu0 0.0
      %3519 = vmatprep.subr.mxu0 0.0
      %3520 = vmatpush1.msra.mxu0 0.0
      %3521 = vmatprep.subr.mxu0 0.0
      %3522 = vmatpush1.msra.mxu0 0.0
      %3523 = vmatprep.subr.mxu0 0.0
      %3524 = vmatpush1.msra.mxu0 0.0
      %3525 = vmatprep.subr.mxu0 0.0
      %3526 = vmatpush1.msra.mxu0 0.0
      %3527 = vmatprep.subr.mxu0 0.0
      %3528 = vmatpush1.msra.mxu0 0.0
      %3529 = vmatprep.mubr.f32.mxu0 %v3449
      %3530 = vmatmul.mubr.f32.gmra.mrb[0].mxu0 %v3380
      %v3531 = vpop.f32.mrb[0].mxu0
      %v3532 = vadd.f32 0.0, %v3531
      %v3533 = vpop.f32.mrb[0].mxu0
      %3534 = vmatprep.mubr.f32.mxu0 %v3451
      %3535 = vmatmul.mubr.f32.gmra.mrb[0].mxu0 %v3381
      %v3536 = vpop.f32.mrb[0].mxu0
      %v3537 = vadd.f32 0.0, %v3536
      %v3538 = vpop.f32.mrb[0].mxu0
      %3539 = vmatprep.mubr.f32.mxu0 %v3453
      %3540 = vmatmul.mubr.f32.gmra.mrb[0].mxu0 %v3382
      %v3541 = vpop.f32.mrb[0].mxu0
      %v3542 = vadd.f32 0.0, %v3541
      %v3543 = vpop.f32.mrb[0].mxu0
      %3544 = vmatprep.mubr.f32.mxu0 %v3455
      %3545 = vmatmul.mubr.f32.gmra.mrb[0].mxu0 %v3383
      %v3546 = vpop.f32.mrb[0].mxu0
      %v3547 = vadd.f32 0.0, %v3546
      %v3548 = vpop.f32.mrb[0].mxu0
      %3549 = vmatprep.mubr.f32.mxu0 %v3457
      %3550 = vmatmul.mubr.f32.gmra.mrb[0].mxu0 %v3384
      %v3551 = vpop.f32.mrb[0].mxu0
      %v3552 = vadd.f32 0.0, %v3551
      %v3553 = vpop.f32.mrb[0].mxu0
      %3554 = vmatprep.mubr.f32.mxu0 %v3459
      %3555 = vmatmul.mubr.f32.gmra.mrb[0].mxu0 %v3385
      %v3556 = vpop.f32.mrb[0].mxu0
      %v3557 = vadd.f32 0.0, %v3556
      %v3558 = vpop.f32.mrb[0].mxu0
      %3559 = vmatprep.mubr.f32.mxu0 %v3461
      %3560 = vmatmul.mubr.f32.gmra.mrb[0].mxu0 %v3386
      %v3561 = vpop.f32.mrb[0].mxu0
      %v3562 = vadd.f32 0.0, %v3561
      %v3563 = vpop.f32.mrb[0].mxu0
      %3564 = vmatprep.mubr.f32.mxu0 %v3463
      %3565 = vmatmul.mubr.f32.gmra.mrb[0].mxu0 %v3423
      %v3566 = vpop.f32.mrb[0].mxu0
      %v3567 = vadd.f32 0.0, %v3566
      %v3568 = vpop.f32.mrb[0].mxu0
      %3569 = vdwg.mxu0
      %v3570 = vsel %vm198, %v3357, 0
      %3572 = vmatprep.subr.mxu0 0.0
      %3573 = vmatpush1.msra.mxu0 %v3388
      %3574 = vmatprep.subr.mxu0 0.0
      %3575 = vmatpush1.msra.mxu0 %v3389
      %3576 = vmatprep.subr.mxu0 0.0
      %3577 = vmatpush1.msra.mxu0 %v3390
      %3578 = vmatprep.subr.mxu0 0.0
      %3579 = vmatpush1.msra.mxu0 %v3391
      %3580 = vmatprep.subr.mxu0 0.0
      %3581 = vmatpush1.msra.mxu0 %v3392
      %3582 = vmatprep.subr.mxu0 0.0
      %3583 = vmatpush1.msra.mxu0 %v3393
      %3584 = vmatprep.subr.mxu0 0.0
      %3585 = vmatpush1.msra.mxu0 %v3394
      %3586 = vmatprep.subr.mxu0 0.0
      %3587 = vmatpush1.msra.mxu0 %v3395
      %3588 = vmatprep.subr.mxu0 0.0
      %3589 = vmatpush1.msra.mxu0 %v3396
      %3590 = vmatprep.subr.mxu0 0.0
      %3591 = vmatpush1.msra.mxu0 %v3397
      %3592 = vmatprep.subr.mxu0 0.0
      %3593 = vmatpush1.msra.mxu0 %v3398
      %3594 = vmatprep.subr.mxu0 0.0
      %3595 = vmatpush1.msra.mxu0 %v3399
      %3596 = vmatprep.subr.mxu0 0.0
      %3597 = vmatpush1.msra.mxu0 %v3400
      %3598 = vmatprep.subr.mxu0 0.0
      %3599 = vmatpush1.msra.mxu0 %v3401
      %3600 = vmatprep.subr.mxu0 0.0
      %3601 = vmatpush1.msra.mxu0 %v3402
      %3602 = vmatprep.subr.mxu0 0.0
      %3603 = vmatpush1.msra.mxu0 %v3403
      %3604 = vmatprep.subr.mxu0 0.0
      %3605 = vmatpush1.msra.mxu0 %v3404
      %3606 = vmatprep.subr.mxu0 0.0
      %3607 = vmatpush1.msra.mxu0 %v3405
      %3608 = vmatprep.subr.mxu0 0.0
      %3609 = vmatpush1.msra.mxu0 %v3406
      %3610 = vmatprep.subr.mxu0 0.0
      %3611 = vmatpush1.msra.mxu0 %v3407
      %3612 = vmatprep.subr.mxu0 0.0
      %3613 = vmatpush1.msra.mxu0 %v3408
      %3614 = vmatprep.subr.mxu0 0.0
      %3615 = vmatpush1.msra.mxu0 %v3409
      %3616 = vmatprep.subr.mxu0 0.0
      %3617 = vmatpush1.msra.mxu0 %v3410
      %3618 = vmatprep.subr.mxu0 0.0
      %3619 = vmatpush1.msra.mxu0 %v3411
      %3620 = vmatprep.subr.mxu0 0.0
      %3621 = vmatpush1.msra.mxu0 0.0
      %3622 = vmatprep.subr.mxu0 0.0
      %3623 = vmatpush1.msra.mxu0 0.0
      %3624 = vmatprep.subr.mxu0 0.0
      %3625 = vmatpush1.msra.mxu0 0.0
      %3626 = vmatprep.subr.mxu0 0.0
      %3627 = vmatpush1.msra.mxu0 0.0
      %3628 = vmatprep.subr.mxu0 0.0
      %3629 = vmatpush1.msra.mxu0 0.0
      %3630 = vmatprep.subr.mxu0 0.0
      %3631 = vmatpush1.msra.mxu0 0.0
      %3632 = vmatprep.subr.mxu0 0.0
      %3633 = vmatpush1.msra.mxu0 0.0
      %3634 = vmatprep.subr.mxu0 0.0
      %3635 = vmatpush1.msra.mxu0 0.0
      %3636 = vmatprep.mubr.f32.mxu0 %v3570
      %3637 = vmatmul.mubr.f32.gmra.mrb[0].mxu0 %v3379
      %v3638 = vpop.f32.mrb[0].mxu0
      %v3639 = vadd.f32 %v3532, %v3638
      %v3640 = vpop.f32.mrb[0].mxu0
      %3641 = vmatprep.mubr.f32.mxu0 %v3449
      %3642 = vmatmul.mubr.f32.gmra.mrb[0].mxu0 %v3380
      %v3643 = vpop.f32.mrb[0].mxu0
      %v3644 = vadd.f32 %v3537, %v3643
      %v3645 = vpop.f32.mrb[0].mxu0
      %3646 = vmatprep.mubr.f32.mxu0 %v3451
      %3647 = vmatmul.mubr.f32.gmra.mrb[0].mxu0 %v3381
      %v3648 = vpop.f32.mrb[0].mxu0
      %v3649 = vadd.f32 %v3542, %v3648
      %v3650 = vpop.f32.mrb[0].mxu0
      %3651 = vmatprep.mubr.f32.mxu0 %v3453
      %3652 = vmatmul.mubr.f32.gmra.mrb[0].mxu0 %v3382
      %v3653 = vpop.f32.mrb[0].mxu0
      %v3654 = vadd.f32 %v3547, %v3653
      %v3655 = vpop.f32.mrb[0].mxu0
      %3656 = vmatprep.mubr.f32.mxu0 %v3455
      %3657 = vmatmul.mubr.f32.gmra.mrb[0].mxu0 %v3383
      %v3658 = vpop.f32.mrb[0].mxu0
      %v3659 = vadd.f32 %v3552, %v3658
      %v3660 = vpop.f32.mrb[0].mxu0
      %3661 = vmatprep.mubr.f32.mxu0 %v3457
      %3662 = vmatmul.mubr.f32.gmra.mrb[0].mxu0 %v3384
      %v3663 = vpop.f32.mrb[0].mxu0
      %v3664 = vadd.f32 %v3557, %v3663
      %v3665 = vpop.f32.mrb[0].mxu0
      %3666 = vmatprep.mubr.f32.mxu0 %v3459
      %3667 = vmatmul.mubr.f32.gmra.mrb[0].mxu0 %v3385
      %v3668 = vpop.f32.mrb[0].mxu0
      %v3669 = vadd.f32 %v3562, %v3668
      %v3670 = vpop.f32.mrb[0].mxu0
      %3671 = vmatprep.mubr.f32.mxu0 %v3461
      %3672 = vmatmul.mubr.f32.gmra.mrb[0].mxu0 %v3386
      %v3673 = vpop.f32.mrb[0].mxu0
      %v3674 = vadd.f32 %v3567, %v3673
      %v3675 = vpop.f32.mrb[0].mxu0
      %3676 = vdwg.mxu0
      %v3679 = vrot.slane %v3289, 1
      %v3680 = vrot.slane %v3290, 1
      %v3681 = vsel %vm276, %v3679, %v3680
      %3682 = vrot.lane.b32.xlu0 %v3681, 64
      %v3683 = vpop.permute.xlu0 %3682
      %v3685 = vrot.slane %v3289, 2
      %v3686 = vrot.slane %v3290, 2
      %v3687 = vsel %vm325, %v3685, %v3686
      %v3688 = vsel %vm198, %v3289, %v3683
      %s3689 = scalar_lea.vmem %s1, 3264
      %v3690 = vld [vmem:[%s3689] sm:$0xff]
      %v3691 = vld [vmem:[%s3689 + $0x8] sm:$0xff]
      %v3692 = vld [vmem:[%s3689 + $0x10] sm:$0xff]
      %v3693 = vld [vmem:[%s3689 + $0x18] sm:$0xff]
      %v3694 = vld [vmem:[%s3689 + $0x20] sm:$0xff]
      %v3695 = vld [vmem:[%s3689 + $0x28] sm:$0xff]
      %v3696 = vld [vmem:[%s3689 + $0x30] sm:$0xff]
      %v3697 = vld [vmem:[%s3689 + $0x38] sm:$0xff]
      %v3698 = vld [vmem:[%s3689 + $0x40] sm:$0xff]
      %v3699 = vld [vmem:[%s3689 + $0x48] sm:$0xff]
      %v3700 = vld [vmem:[%s3689 + $0x50] sm:$0xff]
      %v3701 = vld [vmem:[%s3689 + $0x58] sm:$0xff]
      %v3702 = vld [vmem:[%s3689 + $0x60] sm:$0xff]
      %v3703 = vld [vmem:[%s3689 + $0x68] sm:$0xff]
      %v3704 = vld [vmem:[%s3689 + $0x70] sm:$0xff]
      %v3705 = vld [vmem:[%s3689 + $0x78] sm:$0xff]
      %v3706 = vld [vmem:[%s3689 + $0x80] sm:$0xff]
      %v3707 = vld [vmem:[%s3689 + $0x88] sm:$0xff]
      %v3708 = vld [vmem:[%s3689 + $0x90] sm:$0xff]
      %v3709 = vld [vmem:[%s3689 + $0x98] sm:$0xff]
      %v3710 = vld [vmem:[%s3689 + $0xa0] sm:$0xff]
      %v3711 = vld [vmem:[%s3689 + $0xa8] sm:$0xff]
      %v3712 = vld [vmem:[%s3689 + $0xb0] sm:$0xff]
      %v3713 = vld [vmem:[%s3689 + $0xb8] sm:$0xff]
      %v3714 = vsel %vm198, %v3687, 0
      %3716 = vmatprep.subr.mxu0 0.0
      %3717 = vmatpush1.msra.mxu0 %v3690
      %3718 = vmatprep.subr.mxu0 0.0
      %3719 = vmatpush1.msra.mxu0 %v3691
      %3720 = vmatprep.subr.mxu0 0.0
      %3721 = vmatpush1.msra.mxu0 %v3692
      %3722 = vmatprep.subr.mxu0 0.0
      %3723 = vmatpush1.msra.mxu0 %v3693
      %3724 = vmatprep.subr.mxu0 0.0
      %3725 = vmatpush1.msra.mxu0 %v3694
      %3726 = vmatprep.subr.mxu0 0.0
      %3727 = vmatpush1.msra.mxu0 %v3695
      %3728 = vmatprep.subr.mxu0 0.0
      %3729 = vmatpush1.msra.mxu0 %v3696
      %3730 = vmatprep.subr.mxu0 0.0
      %3731 = vmatpush1.msra.mxu0 %v3697
      %3732 = vmatprep.subr.mxu0 0.0
      %3733 = vmatpush1.msra.mxu0 %v3698
      %3734 = vmatprep.subr.mxu0 0.0
      %3735 = vmatpush1.msra.mxu0 %v3699
      %3736 = vmatprep.subr.mxu0 0.0
      %3737 = vmatpush1.msra.mxu0 %v3700
      %3738 = vmatprep.subr.mxu0 0.0
      %3739 = vmatpush1.msra.mxu0 %v3701
      %3740 = vmatprep.subr.mxu0 0.0
      %3741 = vmatpush1.msra.mxu0 %v3702
      %3742 = vmatprep.subr.mxu0 0.0
      %3743 = vmatpush1.msra.mxu0 %v3703
      %3744 = vmatprep.subr.mxu0 0.0
      %3745 = vmatpush1.msra.mxu0 %v3704
      %3746 = vmatprep.subr.mxu0 0.0
      %3747 = vmatpush1.msra.mxu0 %v3705
      %3748 = vmatprep.subr.mxu0 0.0
      %3749 = vmatpush1.msra.mxu0 %v3706
      %3750 = vmatprep.subr.mxu0 0.0
      %3751 = vmatpush1.msra.mxu0 %v3707
      %3752 = vmatprep.subr.mxu0 0.0
      %3753 = vmatpush1.msra.mxu0 %v3708
      %3754 = vmatprep.subr.mxu0 0.0
      %3755 = vmatpush1.msra.mxu0 %v3709
      %3756 = vmatprep.subr.mxu0 0.0
      %3757 = vmatpush1.msra.mxu0 %v3710
      %3758 = vmatprep.subr.mxu0 0.0
      %3759 = vmatpush1.msra.mxu0 %v3711
      %3760 = vmatprep.subr.mxu0 0.0
      %3761 = vmatpush1.msra.mxu0 %v3712
      %3762 = vmatprep.subr.mxu0 0.0
      %3763 = vmatpush1.msra.mxu0 %v3713
      %3764 = vmatprep.subr.mxu0 0.0
      %3765 = vmatpush1.msra.mxu0 0.0
      %3766 = vmatprep.subr.mxu0 0.0
      %3767 = vmatpush1.msra.mxu0 0.0
      %3768 = vmatprep.subr.mxu0 0.0
      %3769 = vmatpush1.msra.mxu0 0.0
      %3770 = vmatprep.subr.mxu0 0.0
      %3771 = vmatpush1.msra.mxu0 0.0
      %3772 = vmatprep.subr.mxu0 0.0
      %3773 = vmatpush1.msra.mxu0 0.0
      %3774 = vmatprep.subr.mxu0 0.0
      %3775 = vmatpush1.msra.mxu0 0.0
      %3776 = vmatprep.subr.mxu0 0.0
      %3777 = vmatpush1.msra.mxu0 0.0
      %3778 = vmatprep.subr.mxu0 0.0
      %3779 = vmatpush1.msra.mxu0 0.0
      %3780 = vmatprep.mubr.f32.mxu0 %v3451
      %3781 = vmatmul.mubr.f32.gmra.mrb[0].mxu0 %v3381
      %v3782 = vpop.f32.mrb[0].mxu0
      %v3783 = vadd.f32 0.0, %v3782
      %v3784 = vpop.f32.mrb[0].mxu0
      %3785 = vmatprep.mubr.f32.mxu0 %v3453
      %3786 = vmatmul.mubr.f32.gmra.mrb[0].mxu0 %v3382
      %v3787 = vpop.f32.mrb[0].mxu0
      %v3788 = vadd.f32 0.0, %v3787
      %v3789 = vpop.f32.mrb[0].mxu0
      %3790 = vmatprep.mubr.f32.mxu0 %v3455
      %3791 = vmatmul.mubr.f32.gmra.mrb[0].mxu0 %v3383
      %v3792 = vpop.f32.mrb[0].mxu0
      %v3793 = vadd.f32 0.0, %v3792
      %v3794 = vpop.f32.mrb[0].mxu0
      %3795 = vmatprep.mubr.f32.mxu0 %v3457
      %3796 = vmatmul.mubr.f32.gmra.mrb[0].mxu0 %v3384
      %v3797 = vpop.f32.mrb[0].mxu0
      %v3798 = vadd.f32 0.0, %v3797
      %v3799 = vpop.f32.mrb[0].mxu0
      %3800 = vmatprep.mubr.f32.mxu0 %v3459
      %3801 = vmatmul.mubr.f32.gmra.mrb[0].mxu0 %v3385
      %v3802 = vpop.f32.mrb[0].mxu0
      %v3803 = vadd.f32 0.0, %v3802
      %v3804 = vpop.f32.mrb[0].mxu0
      %3805 = vmatprep.mubr.f32.mxu0 %v3461
      %3806 = vmatmul.mubr.f32.gmra.mrb[0].mxu0 %v3386
      %v3807 = vpop.f32.mrb[0].mxu0
      %v3808 = vadd.f32 0.0, %v3807
      %v3809 = vpop.f32.mrb[0].mxu0
      %3810 = vmatprep.mubr.f32.mxu0 %v3463
      %3811 = vmatmul.mubr.f32.gmra.mrb[0].mxu0 %v3423
      %v3812 = vpop.f32.mrb[0].mxu0
      %v3813 = vadd.f32 0.0, %v3812
      %v3814 = vpop.f32.mrb[0].mxu0
      %3815 = vmatprep.mubr.f32.mxu0 %v3714
      %3816 = vmatmul.mubr.f32.gmra.mrb[0].mxu0 %v3688
      %v3817 = vpop.f32.mrb[0].mxu0
      %v3818 = vadd.f32 0.0, %v3817
      %v3819 = vpop.f32.mrb[0].mxu0
      %3820 = vdwg.mxu0
      %v3821 = vadd.f32 %v3639, %v3783
      %v3822 = vadd.f32 %v3644, %v3788
      %v3823 = vadd.f32 %v3649, %v3793
      %v3824 = vadd.f32 %v3654, %v3798
      %v3825 = vadd.f32 %v3659, %v3803
      %v3826 = vadd.f32 %v3664, %v3808
      %v3827 = vadd.f32 %v3669, %v3813
      %v3828 = vadd.f32 %v3674, %v3818
      %s3829 = scalar_lea.vmem %s2, 5
      %v3830 = vld [vmem:[%s3829] sm:$0x1]
      %v3832 = vlaneseq
      %v3833 = vshrl.u32 %v3832, 7
      %v3834 = vsub.s32 0, %v3833
      %v3835 = vrot.slane %v3830, %v3834
      %v3837 = vmul.f32 %v3821, %v3835
      %v3838 = vmul.f32 %v3822, %v3835
      %v3839 = vmul.f32 %v3823, %v3835
      %v3840 = vmul.f32 %v3824, %v3835
      %v3841 = vmul.f32 %v3825, %v3835
      %v3842 = vmul.f32 %v3826, %v3835
      %v3843 = vmul.f32 %v3827, %v3835
      %v3844 = vmul.f32 %v3828, %v3835
      %s3845 = scalar_lea.vmem %s3, 5
      %v3846 = vld [vmem:[%s3845] sm:$0x1]
      %v3848 = vlaneseq
      %v3849 = vshrl.u32 %v3848, 7
      %v3850 = vsub.s32 0, %v3849
      %v3851 = vrot.slane %v3846, %v3850
      %v3853 = vadd.f32 %v3837, %v3851
      %v3854 = vadd.f32 %v3838, %v3851
      %v3855 = vadd.f32 %v3839, %v3851
      %v3856 = vadd.f32 %v3840, %v3851
      %v3857 = vadd.f32 %v3841, %v3851
      %v3858 = vadd.f32 %v3842, %v3851
      %v3859 = vadd.f32 %v3843, %v3851
      %v3860 = vadd.f32 %v3844, %v3851
      %v3861 = vmax.f32 %v3853, 0.0
      %v3862 = vmax.f32 %v3854, 0.0
      %v3863 = vmax.f32 %v3855, 0.0
      %v3864 = vmax.f32 %v3856, 0.0
      %v3865 = vmax.f32 %v3857, 0.0
      %v3866 = vmax.f32 %v3858, 0.0
      %v3867 = vmax.f32 %v3859, 0.0
      %v3868 = vmax.f32 %v3860, 0.0
      %3869 = vst.msk [vmem:[%s1444 + $0x1] sm:$0xff] %vm198, %v3861
      %3870 = vst.msk [vmem:[%s1444 + $0x11] sm:$0xff] %vm198, %v3862
      %3871 = vst.msk [vmem:[%s1444 + $0x21] sm:$0xff] %vm198, %v3863
      %3872 = vst.msk [vmem:[%s1444 + $0x31] sm:$0xff] %vm198, %v3864
      %3873 = vst.msk [vmem:[%s1444 + $0x41] sm:$0xff] %vm198, %v3865
      %3874 = vst.msk [vmem:[%s1444 + $0x51] sm:$0xff] %vm198, %v3866
      %3875 = vst.msk [vmem:[%s1444 + $0x61] sm:$0xff] %vm198, %v3867
      %3876 = vst.msk [vmem:[%s1444 + $0x71] sm:$0xff] %vm198, %v3868
      %v3877 = vld [vmem:[#allocation3] sm:$0xff]
      %v3878 = vld [vmem:[#allocation3 + $0x8] sm:$0x3]
      %v3879 = vld [vmem:[#allocation3 + $0x10] sm:$0xff]
      %v3880 = vld [vmem:[#allocation3 + $0x18] sm:$0x3]
      %v3881 = vld [vmem:[#allocation3 + $0x20] sm:$0xff]
      %v3882 = vld [vmem:[#allocation3 + $0x28] sm:$0x3]
      %v3883 = vld [vmem:[#allocation3 + $0x30] sm:$0xff]
      %v3884 = vld [vmem:[#allocation3 + $0x38] sm:$0x3]
      %v3885 = vld [vmem:[#allocation3 + $0x40] sm:$0xff]
      %v3886 = vld [vmem:[#allocation3 + $0x48] sm:$0x3]
      %v3887 = vld [vmem:[#allocation3 + $0x50] sm:$0xff]
      %v3888 = vld [vmem:[#allocation3 + $0x58] sm:$0x3]
      %v3889 = vld [vmem:[#allocation3 + $0x60] sm:$0xff]
      %v3890 = vld [vmem:[#allocation3 + $0x68] sm:$0x3]
      %v3891 = vld [vmem:[#allocation3 + $0x70] sm:$0xff]
      %v3892 = vld [vmem:[#allocation3 + $0x78] sm:$0x3]
      %v3893 = vld [vmem:[#allocation3 + $0x80] sm:$0xff]
      %v3894 = vld [vmem:[#allocation3 + $0x88] sm:$0x3]
      %v3895 = vld [vmem:[#allocation3 + $0x90] sm:$0xff]
      %v3896 = vld [vmem:[#allocation3 + $0x98] sm:$0x3]
      %v3913 = vrot.slane %v3877, 1
      %v3914 = vrot.slane %v3878, 1
      %v3915 = vsel %vm276, %v3913, %v3914
      %v3916 = vrot.slane %v3879, 1
      %v3917 = vrot.slane %v3880, 1
      %v3918 = vsel %vm276, %v3916, %v3917
      %v3919 = vrot.slane %v3881, 1
      %v3920 = vrot.slane %v3882, 1
      %v3921 = vsel %vm276, %v3919, %v3920
      %v3922 = vrot.slane %v3883, 1
      %v3923 = vrot.slane %v3884, 1
      %v3924 = vsel %vm276, %v3922, %v3923
      %v3925 = vrot.slane %v3885, 1
      %v3926 = vrot.slane %v3886, 1
      %v3927 = vsel %vm276, %v3925, %v3926
      %v3928 = vrot.slane %v3887, 1
      %v3929 = vrot.slane %v3888, 1
      %v3930 = vsel %vm276, %v3928, %v3929
      %v3931 = vrot.slane %v3889, 1
      %v3932 = vrot.slane %v3890, 1
      %v3933 = vsel %vm276, %v3931, %v3932
      %v3934 = vrot.slane %v3891, 1
      %v3935 = vrot.slane %v3892, 1
      %v3936 = vsel %vm276, %v3934, %v3935
      %3937 = vrot.lane.b32.xlu0 %v3915, 64
      %v3938 = vpop.permute.xlu0 %3937
      %3939 = vrot.lane.b32.xlu0 %v3918, 64
      %v3940 = vpop.permute.xlu0 %3939
      %3941 = vrot.lane.b32.xlu0 %v3921, 64
      %v3942 = vpop.permute.xlu0 %3941
      %3943 = vrot.lane.b32.xlu0 %v3924, 64
      %v3944 = vpop.permute.xlu0 %3943
      %3945 = vrot.lane.b32.xlu0 %v3927, 64
      %v3946 = vpop.permute.xlu0 %3945
      %3947 = vrot.lane.b32.xlu0 %v3930, 64
      %v3948 = vpop.permute.xlu0 %3947
      %3949 = vrot.lane.b32.xlu0 %v3933, 64
      %v3950 = vpop.permute.xlu0 %3949
      %3951 = vrot.lane.b32.xlu0 %v3936, 64
      %v3952 = vpop.permute.xlu0 %3951
      %v3961 = vrot.slane %v3877, 2
      %v3962 = vrot.slane %v3878, 2
      %v3963 = vsel %vm325, %v3961, %v3962
      %v3964 = vrot.slane %v3879, 2
      %v3965 = vrot.slane %v3880, 2
      %v3966 = vsel %vm325, %v3964, %v3965
      %v3967 = vrot.slane %v3881, 2
      %v3968 = vrot.slane %v3882, 2
      %v3969 = vsel %vm325, %v3967, %v3968
      %v3970 = vrot.slane %v3883, 2
      %v3971 = vrot.slane %v3884, 2
      %v3972 = vsel %vm325, %v3970, %v3971
      %v3973 = vrot.slane %v3885, 2
      %v3974 = vrot.slane %v3886, 2
      %v3975 = vsel %vm325, %v3973, %v3974
      %v3976 = vrot.slane %v3887, 2
      %v3977 = vrot.slane %v3888, 2
      %v3978 = vsel %vm325, %v3976, %v3977
      %v3979 = vrot.slane %v3889, 2
      %v3980 = vrot.slane %v3890, 2
      %v3981 = vsel %vm325, %v3979, %v3980
      %v3982 = vrot.slane %v3891, 2
      %v3983 = vrot.slane %v3892, 2
      %v3984 = vsel %vm325, %v3982, %v3983
      %v3985 = vsel %vm198, %v3877, %v3938
      %v3986 = vsel %vm198, %v3879, %v3940
      %v3987 = vsel %vm198, %v3881, %v3942
      %v3988 = vsel %vm198, %v3883, %v3944
      %v3989 = vsel %vm198, %v3885, %v3946
      %v3990 = vsel %vm198, %v3887, %v3948
      %v3991 = vsel %vm198, %v3889, %v3950
      %v3992 = vsel %vm198, %v3891, %v3952
      %s3993 = scalar_lea.vmem %s1, 3456
      %v3994 = vld [vmem:[%s3993] sm:$0xff]
      %v3995 = vld [vmem:[%s3993 + $0x8] sm:$0xff]
      %v3996 = vld [vmem:[%s3993 + $0x10] sm:$0xff]
      %v3997 = vld [vmem:[%s3993 + $0x18] sm:$0xff]
      %v3998 = vld [vmem:[%s3993 + $0x20] sm:$0xff]
      %v3999 = vld [vmem:[%s3993 + $0x28] sm:$0xff]
      %v4000 = vld [vmem:[%s3993 + $0x30] sm:$0xff]
      %v4001 = vld [vmem:[%s3993 + $0x38] sm:$0xff]
      %v4002 = vld [vmem:[%s3993 + $0x40] sm:$0xff]
      %v4003 = vld [vmem:[%s3993 + $0x48] sm:$0xff]
      %v4004 = vld [vmem:[%s3993 + $0x50] sm:$0xff]
      %v4005 = vld [vmem:[%s3993 + $0x58] sm:$0xff]
      %v4006 = vld [vmem:[%s3993 + $0x60] sm:$0xff]
      %v4007 = vld [vmem:[%s3993 + $0x68] sm:$0xff]
      %v4008 = vld [vmem:[%s3993 + $0x70] sm:$0xff]
      %v4009 = vld [vmem:[%s3993 + $0x78] sm:$0xff]
      %v4010 = vld [vmem:[%s3993 + $0x80] sm:$0xff]
      %v4011 = vld [vmem:[%s3993 + $0x88] sm:$0xff]
      %v4012 = vld [vmem:[%s3993 + $0x90] sm:$0xff]
      %v4013 = vld [vmem:[%s3993 + $0x98] sm:$0xff]
      %v4014 = vld [vmem:[%s3993 + $0xa0] sm:$0xff]
      %v4015 = vld [vmem:[%s3993 + $0xa8] sm:$0xff]
      %v4016 = vld [vmem:[%s3993 + $0xb0] sm:$0xff]
      %v4017 = vld [vmem:[%s3993 + $0xb8] sm:$0xff]
      %v4020 = vrot.slane %v3893, 1
      %v4021 = vrot.slane %v3894, 1
      %v4022 = vsel %vm276, %v4020, %v4021
      %4023 = vrot.lane.b32.xlu0 %v4022, 64
      %v4024 = vpop.permute.xlu0 %4023
      %v4026 = vrot.slane %v3893, 2
      %v4027 = vrot.slane %v3894, 2
      %v4028 = vsel %vm325, %v4026, %v4027
      %v4029 = vsel %vm198, %v3893, %v4024
      %s4030 = scalar_lea.vmem %s1, 3648
      %v4031 = vld [vmem:[%s4030] sm:$0xff]
      %v4032 = vld [vmem:[%s4030 + $0x8] sm:$0xff]
      %v4033 = vld [vmem:[%s4030 + $0x10] sm:$0xff]
      %v4034 = vld [vmem:[%s4030 + $0x18] sm:$0xff]
      %v4035 = vld [vmem:[%s4030 + $0x20] sm:$0xff]
      %v4036 = vld [vmem:[%s4030 + $0x28] sm:$0xff]
      %v4037 = vld [vmem:[%s4030 + $0x30] sm:$0xff]
      %v4038 = vld [vmem:[%s4030 + $0x38] sm:$0xff]
      %v4039 = vld [vmem:[%s4030 + $0x40] sm:$0xff]
      %v4040 = vld [vmem:[%s4030 + $0x48] sm:$0xff]
      %v4041 = vld [vmem:[%s4030 + $0x50] sm:$0xff]
      %v4042 = vld [vmem:[%s4030 + $0x58] sm:$0xff]
      %v4043 = vld [vmem:[%s4030 + $0x60] sm:$0xff]
      %v4044 = vld [vmem:[%s4030 + $0x68] sm:$0xff]
      %v4045 = vld [vmem:[%s4030 + $0x70] sm:$0xff]
      %v4046 = vld [vmem:[%s4030 + $0x78] sm:$0xff]
      %v4047 = vld [vmem:[%s4030 + $0x80] sm:$0xff]
      %v4048 = vld [vmem:[%s4030 + $0x88] sm:$0xff]
      %v4049 = vld [vmem:[%s4030 + $0x90] sm:$0xff]
      %v4050 = vld [vmem:[%s4030 + $0x98] sm:$0xff]
      %v4051 = vld [vmem:[%s4030 + $0xa0] sm:$0xff]
      %v4052 = vld [vmem:[%s4030 + $0xa8] sm:$0xff]
      %v4053 = vld [vmem:[%s4030 + $0xb0] sm:$0xff]
      %v4054 = vld [vmem:[%s4030 + $0xb8] sm:$0xff]
      %v4055 = vsel %vm198, %v3966, 0
      %v4057 = vsel %vm198, %v3969, 0
      %v4059 = vsel %vm198, %v3972, 0
      %v4061 = vsel %vm198, %v3975, 0
      %v4063 = vsel %vm198, %v3978, 0
      %v4065 = vsel %vm198, %v3981, 0
      %v4067 = vsel %vm198, %v3984, 0
      %v4069 = vsel %vm198, %v4028, 0
      %4071 = vmatprep.subr.mxu0 0.0
      %4072 = vmatpush1.msra.mxu0 %v4031
      %4073 = vmatprep.subr.mxu0 0.0
      %4074 = vmatpush1.msra.mxu0 %v4032
      %4075 = vmatprep.subr.mxu0 0.0
      %4076 = vmatpush1.msra.mxu0 %v4033
      %4077 = vmatprep.subr.mxu0 0.0
      %4078 = vmatpush1.msra.mxu0 %v4034
      %4079 = vmatprep.subr.mxu0 0.0
      %4080 = vmatpush1.msra.mxu0 %v4035
      %4081 = vmatprep.subr.mxu0 0.0
      %4082 = vmatpush1.msra.mxu0 %v4036
      %4083 = vmatprep.subr.mxu0 0.0
      %4084 = vmatpush1.msra.mxu0 %v4037
      %4085 = vmatprep.subr.mxu0 0.0
      %4086 = vmatpush1.msra.mxu0 %v4038
      %4087 = vmatprep.subr.mxu0 0.0
      %4088 = vmatpush1.msra.mxu0 %v4039
      %4089 = vmatprep.subr.mxu0 0.0
      %4090 = vmatpush1.msra.mxu0 %v4040
      %4091 = vmatprep.subr.mxu0 0.0
      %4092 = vmatpush1.msra.mxu0 %v4041
      %4093 = vmatprep.subr.mxu0 0.0
      %4094 = vmatpush1.msra.mxu0 %v4042
      %4095 = vmatprep.subr.mxu0 0.0
      %4096 = vmatpush1.msra.mxu0 %v4043
      %4097 = vmatprep.subr.mxu0 0.0
      %4098 = vmatpush1.msra.mxu0 %v4044
      %4099 = vmatprep.subr.mxu0 0.0
      %4100 = vmatpush1.msra.mxu0 %v4045
      %4101 = vmatprep.subr.mxu0 0.0
      %4102 = vmatpush1.msra.mxu0 %v4046
      %4103 = vmatprep.subr.mxu0 0.0
      %4104 = vmatpush1.msra.mxu0 %v4047
      %4105 = vmatprep.subr.mxu0 0.0
      %4106 = vmatpush1.msra.mxu0 %v4048
      %4107 = vmatprep.subr.mxu0 0.0
      %4108 = vmatpush1.msra.mxu0 %v4049
      %4109 = vmatprep.subr.mxu0 0.0
      %4110 = vmatpush1.msra.mxu0 %v4050
      %4111 = vmatprep.subr.mxu0 0.0
      %4112 = vmatpush1.msra.mxu0 %v4051
      %4113 = vmatprep.subr.mxu0 0.0
      %4114 = vmatpush1.msra.mxu0 %v4052
      %4115 = vmatprep.subr.mxu0 0.0
      %4116 = vmatpush1.msra.mxu0 %v4053
      %4117 = vmatprep.subr.mxu0 0.0
      %4118 = vmatpush1.msra.mxu0 %v4054
      %4119 = vmatprep.subr.mxu0 0.0
      %4120 = vmatpush1.msra.mxu0 0.0
      %4121 = vmatprep.subr.mxu0 0.0
      %4122 = vmatpush1.msra.mxu0 0.0
      %4123 = vmatprep.subr.mxu0 0.0
      %4124 = vmatpush1.msra.mxu0 0.0
      %4125 = vmatprep.subr.mxu0 0.0
      %4126 = vmatpush1.msra.mxu0 0.0
      %4127 = vmatprep.subr.mxu0 0.0
      %4128 = vmatpush1.msra.mxu0 0.0
      %4129 = vmatprep.subr.mxu0 0.0
      %4130 = vmatpush1.msra.mxu0 0.0
      %4131 = vmatprep.subr.mxu0 0.0
      %4132 = vmatpush1.msra.mxu0 0.0
      %4133 = vmatprep.subr.mxu0 0.0
      %4134 = vmatpush1.msra.mxu0 0.0
      %4135 = vmatprep.mubr.f32.mxu0 %v4055
      %4136 = vmatmul.mubr.f32.gmra.mrb[0].mxu0 %v3986
      %v4137 = vpop.f32.mrb[0].mxu0
      %v4138 = vadd.f32 0.0, %v4137
      %v4139 = vpop.f32.mrb[0].mxu0
      %4140 = vmatprep.mubr.f32.mxu0 %v4057
      %4141 = vmatmul.mubr.f32.gmra.mrb[0].mxu0 %v3987
      %v4142 = vpop.f32.mrb[0].mxu0
      %v4143 = vadd.f32 0.0, %v4142
      %v4144 = vpop.f32.mrb[0].mxu0
      %4145 = vmatprep.mubr.f32.mxu0 %v4059
      %4146 = vmatmul.mubr.f32.gmra.mrb[0].mxu0 %v3988
      %v4147 = vpop.f32.mrb[0].mxu0
      %v4148 = vadd.f32 0.0, %v4147
      %v4149 = vpop.f32.mrb[0].mxu0
      %4150 = vmatprep.mubr.f32.mxu0 %v4061
      %4151 = vmatmul.mubr.f32.gmra.mrb[0].mxu0 %v3989
      %v4152 = vpop.f32.mrb[0].mxu0
      %v4153 = vadd.f32 0.0, %v4152
      %v4154 = vpop.f32.mrb[0].mxu0
      %4155 = vmatprep.mubr.f32.mxu0 %v4063
      %4156 = vmatmul.mubr.f32.gmra.mrb[0].mxu0 %v3990
      %v4157 = vpop.f32.mrb[0].mxu0
      %v4158 = vadd.f32 0.0, %v4157
      %v4159 = vpop.f32.mrb[0].mxu0
      %4160 = vmatprep.mubr.f32.mxu0 %v4065
      %4161 = vmatmul.mubr.f32.gmra.mrb[0].mxu0 %v3991
      %v4162 = vpop.f32.mrb[0].mxu0
      %v4163 = vadd.f32 0.0, %v4162
      %v4164 = vpop.f32.mrb[0].mxu0
      %4165 = vmatprep.mubr.f32.mxu0 %v4067
      %4166 = vmatmul.mubr.f32.gmra.mrb[0].mxu0 %v3992
      %v4167 = vpop.f32.mrb[0].mxu0
      %v4168 = vadd.f32 0.0, %v4167
      %v4169 = vpop.f32.mrb[0].mxu0
      %4170 = vmatprep.mubr.f32.mxu0 %v4069
      %4171 = vmatmul.mubr.f32.gmra.mrb[0].mxu0 %v4029
      %v4172 = vpop.f32.mrb[0].mxu0
      %v4173 = vadd.f32 0.0, %v4172
      %v4174 = vpop.f32.mrb[0].mxu0
      %4175 = vdwg.mxu0
      %v4176 = vsel %vm198, %v3963, 0
      %4178 = vmatprep.subr.mxu0 0.0
      %4179 = vmatpush1.msra.mxu0 %v3994
      %4180 = vmatprep.subr.mxu0 0.0
      %4181 = vmatpush1.msra.mxu0 %v3995
      %4182 = vmatprep.subr.mxu0 0.0
      %4183 = vmatpush1.msra.mxu0 %v3996
      %4184 = vmatprep.subr.mxu0 0.0
      %4185 = vmatpush1.msra.mxu0 %v3997
      %4186 = vmatprep.subr.mxu0 0.0
      %4187 = vmatpush1.msra.mxu0 %v3998
      %4188 = vmatprep.subr.mxu0 0.0
      %4189 = vmatpush1.msra.mxu0 %v3999
      %4190 = vmatprep.subr.mxu0 0.0
      %4191 = vmatpush1.msra.mxu0 %v4000
      %4192 = vmatprep.subr.mxu0 0.0
      %4193 = vmatpush1.msra.mxu0 %v4001
      %4194 = vmatprep.subr.mxu0 0.0
      %4195 = vmatpush1.msra.mxu0 %v4002
      %4196 = vmatprep.subr.mxu0 0.0
      %4197 = vmatpush1.msra.mxu0 %v4003
      %4198 = vmatprep.subr.mxu0 0.0
      %4199 = vmatpush1.msra.mxu0 %v4004
      %4200 = vmatprep.subr.mxu0 0.0
      %4201 = vmatpush1.msra.mxu0 %v4005
      %4202 = vmatprep.subr.mxu0 0.0
      %4203 = vmatpush1.msra.mxu0 %v4006
      %4204 = vmatprep.subr.mxu0 0.0
      %4205 = vmatpush1.msra.mxu0 %v4007
      %4206 = vmatprep.subr.mxu0 0.0
      %4207 = vmatpush1.msra.mxu0 %v4008
      %4208 = vmatprep.subr.mxu0 0.0
      %4209 = vmatpush1.msra.mxu0 %v4009
      %4210 = vmatprep.subr.mxu0 0.0
      %4211 = vmatpush1.msra.mxu0 %v4010
      %4212 = vmatprep.subr.mxu0 0.0
      %4213 = vmatpush1.msra.mxu0 %v4011
      %4214 = vmatprep.subr.mxu0 0.0
      %4215 = vmatpush1.msra.mxu0 %v4012
      %4216 = vmatprep.subr.mxu0 0.0
      %4217 = vmatpush1.msra.mxu0 %v4013
      %4218 = vmatprep.subr.mxu0 0.0
      %4219 = vmatpush1.msra.mxu0 %v4014
      %4220 = vmatprep.subr.mxu0 0.0
      %4221 = vmatpush1.msra.mxu0 %v4015
      %4222 = vmatprep.subr.mxu0 0.0
      %4223 = vmatpush1.msra.mxu0 %v4016
      %4224 = vmatprep.subr.mxu0 0.0
      %4225 = vmatpush1.msra.mxu0 %v4017
      %4226 = vmatprep.subr.mxu0 0.0
      %4227 = vmatpush1.msra.mxu0 0.0
      %4228 = vmatprep.subr.mxu0 0.0
      %4229 = vmatpush1.msra.mxu0 0.0
      %4230 = vmatprep.subr.mxu0 0.0
      %4231 = vmatpush1.msra.mxu0 0.0
      %4232 = vmatprep.subr.mxu0 0.0
      %4233 = vmatpush1.msra.mxu0 0.0
      %4234 = vmatprep.subr.mxu0 0.0
      %4235 = vmatpush1.msra.mxu0 0.0
      %4236 = vmatprep.subr.mxu0 0.0
      %4237 = vmatpush1.msra.mxu0 0.0
      %4238 = vmatprep.subr.mxu0 0.0
      %4239 = vmatpush1.msra.mxu0 0.0
      %4240 = vmatprep.subr.mxu0 0.0
      %4241 = vmatpush1.msra.mxu0 0.0
      %4242 = vmatprep.mubr.f32.mxu0 %v4176
      %4243 = vmatmul.mubr.f32.gmra.mrb[0].mxu0 %v3985
      %v4244 = vpop.f32.mrb[0].mxu0
      %v4245 = vadd.f32 %v4138, %v4244
      %v4246 = vpop.f32.mrb[0].mxu0
      %4247 = vmatprep.mubr.f32.mxu0 %v4055
      %4248 = vmatmul.mubr.f32.gmra.mrb[0].mxu0 %v3986
      %v4249 = vpop.f32.mrb[0].mxu0
      %v4250 = vadd.f32 %v4143, %v4249
      %v4251 = vpop.f32.mrb[0].mxu0
      %4252 = vmatprep.mubr.f32.mxu0 %v4057
      %4253 = vmatmul.mubr.f32.gmra.mrb[0].mxu0 %v3987
      %v4254 = vpop.f32.mrb[0].mxu0
      %v4255 = vadd.f32 %v4148, %v4254
      %v4256 = vpop.f32.mrb[0].mxu0
      %4257 = vmatprep.mubr.f32.mxu0 %v4059
      %4258 = vmatmul.mubr.f32.gmra.mrb[0].mxu0 %v3988
      %v4259 = vpop.f32.mrb[0].mxu0
      %v4260 = vadd.f32 %v4153, %v4259
      %v4261 = vpop.f32.mrb[0].mxu0
      %4262 = vmatprep.mubr.f32.mxu0 %v4061
      %4263 = vmatmul.mubr.f32.gmra.mrb[0].mxu0 %v3989
      %v4264 = vpop.f32.mrb[0].mxu0
      %v4265 = vadd.f32 %v4158, %v4264
      %v4266 = vpop.f32.mrb[0].mxu0
      %4267 = vmatprep.mubr.f32.mxu0 %v4063
      %4268 = vmatmul.mubr.f32.gmra.mrb[0].mxu0 %v3990
      %v4269 = vpop.f32.mrb[0].mxu0
      %v4270 = vadd.f32 %v4163, %v4269
      %v4271 = vpop.f32.mrb[0].mxu0
      %4272 = vmatprep.mubr.f32.mxu0 %v4065
      %4273 = vmatmul.mubr.f32.gmra.mrb[0].mxu0 %v3991
      %v4274 = vpop.f32.mrb[0].mxu0
      %v4275 = vadd.f32 %v4168, %v4274
      %v4276 = vpop.f32.mrb[0].mxu0
      %4277 = vmatprep.mubr.f32.mxu0 %v4067
      %4278 = vmatmul.mubr.f32.gmra.mrb[0].mxu0 %v3992
      %v4279 = vpop.f32.mrb[0].mxu0
      %v4280 = vadd.f32 %v4173, %v4279
      %v4281 = vpop.f32.mrb[0].mxu0
      %4282 = vdwg.mxu0
      %v4285 = vrot.slane %v3895, 1
      %v4286 = vrot.slane %v3896, 1
      %v4287 = vsel %vm276, %v4285, %v4286
      %4288 = vrot.lane.b32.xlu0 %v4287, 64
      %v4289 = vpop.permute.xlu0 %4288
      %v4291 = vrot.slane %v3895, 2
      %v4292 = vrot.slane %v3896, 2
      %v4293 = vsel %vm325, %v4291, %v4292
      %v4294 = vsel %vm198, %v3895, %v4289
      %s4295 = scalar_lea.vmem %s1, 3840
      %v4296 = vld [vmem:[%s4295] sm:$0xff]
      %v4297 = vld [vmem:[%s4295 + $0x8] sm:$0xff]
      %v4298 = vld [vmem:[%s4295 + $0x10] sm:$0xff]
      %v4299 = vld [vmem:[%s4295 + $0x18] sm:$0xff]
      %v4300 = vld [vmem:[%s4295 + $0x20] sm:$0xff]
      %v4301 = vld [vmem:[%s4295 + $0x28] sm:$0xff]
      %v4302 = vld [vmem:[%s4295 + $0x30] sm:$0xff]
      %v4303 = vld [vmem:[%s4295 + $0x38] sm:$0xff]
      %v4304 = vld [vmem:[%s4295 + $0x40] sm:$0xff]
      %v4305 = vld [vmem:[%s4295 + $0x48] sm:$0xff]
      %v4306 = vld [vmem:[%s4295 + $0x50] sm:$0xff]
      %v4307 = vld [vmem:[%s4295 + $0x58] sm:$0xff]
      %v4308 = vld [vmem:[%s4295 + $0x60] sm:$0xff]
      %v4309 = vld [vmem:[%s4295 + $0x68] sm:$0xff]
      %v4310 = vld [vmem:[%s4295 + $0x70] sm:$0xff]
      %v4311 = vld [vmem:[%s4295 + $0x78] sm:$0xff]
      %v4312 = vld [vmem:[%s4295 + $0x80] sm:$0xff]
      %v4313 = vld [vmem:[%s4295 + $0x88] sm:$0xff]
      %v4314 = vld [vmem:[%s4295 + $0x90] sm:$0xff]
      %v4315 = vld [vmem:[%s4295 + $0x98] sm:$0xff]
      %v4316 = vld [vmem:[%s4295 + $0xa0] sm:$0xff]
      %v4317 = vld [vmem:[%s4295 + $0xa8] sm:$0xff]
      %v4318 = vld [vmem:[%s4295 + $0xb0] sm:$0xff]
      %v4319 = vld [vmem:[%s4295 + $0xb8] sm:$0xff]
      %v4320 = vsel %vm198, %v4293, 0
      %4322 = vmatprep.subr.mxu0 0.0
      %4323 = vmatpush1.msra.mxu0 %v4296
      %4324 = vmatprep.subr.mxu0 0.0
      %4325 = vmatpush1.msra.mxu0 %v4297
      %4326 = vmatprep.subr.mxu0 0.0
      %4327 = vmatpush1.msra.mxu0 %v4298
      %4328 = vmatprep.subr.mxu0 0.0
      %4329 = vmatpush1.msra.mxu0 %v4299
      %4330 = vmatprep.subr.mxu0 0.0
      %4331 = vmatpush1.msra.mxu0 %v4300
      %4332 = vmatprep.subr.mxu0 0.0
      %4333 = vmatpush1.msra.mxu0 %v4301
      %4334 = vmatprep.subr.mxu0 0.0
      %4335 = vmatpush1.msra.mxu0 %v4302
      %4336 = vmatprep.subr.mxu0 0.0
      %4337 = vmatpush1.msra.mxu0 %v4303
      %4338 = vmatprep.subr.mxu0 0.0
      %4339 = vmatpush1.msra.mxu0 %v4304
      %4340 = vmatprep.subr.mxu0 0.0
      %4341 = vmatpush1.msra.mxu0 %v4305
      %4342 = vmatprep.subr.mxu0 0.0
      %4343 = vmatpush1.msra.mxu0 %v4306
      %4344 = vmatprep.subr.mxu0 0.0
      %4345 = vmatpush1.msra.mxu0 %v4307
      %4346 = vmatprep.subr.mxu0 0.0
      %4347 = vmatpush1.msra.mxu0 %v4308
      %4348 = vmatprep.subr.mxu0 0.0
      %4349 = vmatpush1.msra.mxu0 %v4309
      %4350 = vmatprep.subr.mxu0 0.0
      %4351 = vmatpush1.msra.mxu0 %v4310
      %4352 = vmatprep.subr.mxu0 0.0
      %4353 = vmatpush1.msra.mxu0 %v4311
      %4354 = vmatprep.subr.mxu0 0.0
      %4355 = vmatpush1.msra.mxu0 %v4312
      %4356 = vmatprep.subr.mxu0 0.0
      %4357 = vmatpush1.msra.mxu0 %v4313
      %4358 = vmatprep.subr.mxu0 0.0
      %4359 = vmatpush1.msra.mxu0 %v4314
      %4360 = vmatprep.subr.mxu0 0.0
      %4361 = vmatpush1.msra.mxu0 %v4315
      %4362 = vmatprep.subr.mxu0 0.0
      %4363 = vmatpush1.msra.mxu0 %v4316
      %4364 = vmatprep.subr.mxu0 0.0
      %4365 = vmatpush1.msra.mxu0 %v4317
      %4366 = vmatprep.subr.mxu0 0.0
      %4367 = vmatpush1.msra.mxu0 %v4318
      %4368 = vmatprep.subr.mxu0 0.0
      %4369 = vmatpush1.msra.mxu0 %v4319
      %4370 = vmatprep.subr.mxu0 0.0
      %4371 = vmatpush1.msra.mxu0 0.0
      %4372 = vmatprep.subr.mxu0 0.0
      %4373 = vmatpush1.msra.mxu0 0.0
      %4374 = vmatprep.subr.mxu0 0.0
      %4375 = vmatpush1.msra.mxu0 0.0
      %4376 = vmatprep.subr.mxu0 0.0
      %4377 = vmatpush1.msra.mxu0 0.0
      %4378 = vmatprep.subr.mxu0 0.0
      %4379 = vmatpush1.msra.mxu0 0.0
      %4380 = vmatprep.subr.mxu0 0.0
      %4381 = vmatpush1.msra.mxu0 0.0
      %4382 = vmatprep.subr.mxu0 0.0
      %4383 = vmatpush1.msra.mxu0 0.0
      %4384 = vmatprep.subr.mxu0 0.0
      %4385 = vmatpush1.msra.mxu0 0.0
      %4386 = vmatprep.mubr.f32.mxu0 %v4057
      %4387 = vmatmul.mubr.f32.gmra.mrb[0].mxu0 %v3987
      %v4388 = vpop.f32.mrb[0].mxu0
      %v4389 = vadd.f32 0.0, %v4388
      %v4390 = vpop.f32.mrb[0].mxu0
      %4391 = vmatprep.mubr.f32.mxu0 %v4059
      %4392 = vmatmul.mubr.f32.gmra.mrb[0].mxu0 %v3988
      %v4393 = vpop.f32.mrb[0].mxu0
      %v4394 = vadd.f32 0.0, %v4393
      %v4395 = vpop.f32.mrb[0].mxu0
      %4396 = vmatprep.mubr.f32.mxu0 %v4061
      %4397 = vmatmul.mubr.f32.gmra.mrb[0].mxu0 %v3989
      %v4398 = vpop.f32.mrb[0].mxu0
      %v4399 = vadd.f32 0.0, %v4398
      %v4400 = vpop.f32.mrb[0].mxu0
      %4401 = vmatprep.mubr.f32.mxu0 %v4063
      %4402 = vmatmul.mubr.f32.gmra.mrb[0].mxu0 %v3990
      %v4403 = vpop.f32.mrb[0].mxu0
      %v4404 = vadd.f32 0.0, %v4403
      %v4405 = vpop.f32.mrb[0].mxu0
      %4406 = vmatprep.mubr.f32.mxu0 %v4065
      %4407 = vmatmul.mubr.f32.gmra.mrb[0].mxu0 %v3991
      %v4408 = vpop.f32.mrb[0].mxu0
      %v4409 = vadd.f32 0.0, %v4408
      %v4410 = vpop.f32.mrb[0].mxu0
      %4411 = vmatprep.mubr.f32.mxu0 %v4067
      %4412 = vmatmul.mubr.f32.gmra.mrb[0].mxu0 %v3992
      %v4413 = vpop.f32.mrb[0].mxu0
      %v4414 = vadd.f32 0.0, %v4413
      %v4415 = vpop.f32.mrb[0].mxu0
      %4416 = vmatprep.mubr.f32.mxu0 %v4069
      %4417 = vmatmul.mubr.f32.gmra.mrb[0].mxu0 %v4029
      %v4418 = vpop.f32.mrb[0].mxu0
      %v4419 = vadd.f32 0.0, %v4418
      %v4420 = vpop.f32.mrb[0].mxu0
      %4421 = vmatprep.mubr.f32.mxu0 %v4320
      %4422 = vmatmul.mubr.f32.gmra.mrb[0].mxu0 %v4294
      %v4423 = vpop.f32.mrb[0].mxu0
      %v4424 = vadd.f32 0.0, %v4423
      %v4425 = vpop.f32.mrb[0].mxu0
      %4426 = vdwg.mxu0
      %v4427 = vadd.f32 %v4245, %v4389
      %v4428 = vadd.f32 %v4250, %v4394
      %v4429 = vadd.f32 %v4255, %v4399
      %v4430 = vadd.f32 %v4260, %v4404
      %v4431 = vadd.f32 %v4265, %v4409
      %v4432 = vadd.f32 %v4270, %v4414
      %v4433 = vadd.f32 %v4275, %v4419
      %v4434 = vadd.f32 %v4280, %v4424
      %s4435 = scalar_lea.vmem %s2, 6
      %v4436 = vld [vmem:[%s4435] sm:$0x1]
      %v4438 = vlaneseq
      %v4439 = vshrl.u32 %v4438, 7
      %v4440 = vsub.s32 0, %v4439
      %v4441 = vrot.slane %v4436, %v4440
      %v4443 = vmul.f32 %v4427, %v4441
      %v4444 = vmul.f32 %v4428, %v4441
      %v4445 = vmul.f32 %v4429, %v4441
      %v4446 = vmul.f32 %v4430, %v4441
      %v4447 = vmul.f32 %v4431, %v4441
      %v4448 = vmul.f32 %v4432, %v4441
      %v4449 = vmul.f32 %v4433, %v4441
      %v4450 = vmul.f32 %v4434, %v4441
      %s4451 = scalar_lea.vmem %s3, 6
      %v4452 = vld [vmem:[%s4451] sm:$0x1]
      %v4454 = vlaneseq
      %v4455 = vshrl.u32 %v4454, 7
      %v4456 = vsub.s32 0, %v4455
      %v4457 = vrot.slane %v4452, %v4456
      %v4459 = vadd.f32 %v4443, %v4457
      %v4460 = vadd.f32 %v4444, %v4457
      %v4461 = vadd.f32 %v4445, %v4457
      %v4462 = vadd.f32 %v4446, %v4457
      %v4463 = vadd.f32 %v4447, %v4457
      %v4464 = vadd.f32 %v4448, %v4457
      %v4465 = vadd.f32 %v4449, %v4457
      %v4466 = vadd.f32 %v4450, %v4457
      %v4467 = vmax.f32 %v4459, 0.0
      %v4468 = vmax.f32 %v4460, 0.0
      %v4469 = vmax.f32 %v4461, 0.0
      %v4470 = vmax.f32 %v4462, 0.0
      %v4471 = vmax.f32 %v4463, 0.0
      %v4472 = vmax.f32 %v4464, 0.0
      %v4473 = vmax.f32 %v4465, 0.0
      %v4474 = vmax.f32 %v4466, 0.0
      %4475 = vst.msk [vmem:[%s837 + $0x1] sm:$0xff] %vm198, %v4467
      %4476 = vst.msk [vmem:[%s837 + $0x11] sm:$0xff] %vm198, %v4468
      %4477 = vst.msk [vmem:[%s837 + $0x21] sm:$0xff] %vm198, %v4469
      %4478 = vst.msk [vmem:[%s837 + $0x31] sm:$0xff] %vm198, %v4470
      %4479 = vst.msk [vmem:[%s837 + $0x41] sm:$0xff] %vm198, %v4471
      %4480 = vst.msk [vmem:[%s837 + $0x51] sm:$0xff] %vm198, %v4472
      %4481 = vst.msk [vmem:[%s837 + $0x61] sm:$0xff] %vm198, %v4473
      %4482 = vst.msk [vmem:[%s837 + $0x71] sm:$0xff] %vm198, %v4474
      %v4483 = vld [vmem:[#allocation2] sm:$0xff]
      %v4484 = vld [vmem:[#allocation2 + $0x8] sm:$0x3]
      %v4485 = vld [vmem:[#allocation2 + $0x10] sm:$0xff]
      %v4486 = vld [vmem:[#allocation2 + $0x18] sm:$0x3]
      %v4487 = vld [vmem:[#allocation2 + $0x20] sm:$0xff]
      %v4488 = vld [vmem:[#allocation2 + $0x28] sm:$0x3]
      %v4489 = vld [vmem:[#allocation2 + $0x30] sm:$0xff]
      %v4490 = vld [vmem:[#allocation2 + $0x38] sm:$0x3]
      %v4491 = vld [vmem:[#allocation2 + $0x40] sm:$0xff]
      %v4492 = vld [vmem:[#allocation2 + $0x48] sm:$0x3]
      %v4493 = vld [vmem:[#allocation2 + $0x50] sm:$0xff]
      %v4494 = vld [vmem:[#allocation2 + $0x58] sm:$0x3]
      %v4495 = vld [vmem:[#allocation2 + $0x60] sm:$0xff]
      %v4496 = vld [vmem:[#allocation2 + $0x68] sm:$0x3]
      %v4497 = vld [vmem:[#allocation2 + $0x70] sm:$0xff]
      %v4498 = vld [vmem:[#allocation2 + $0x78] sm:$0x3]
      %v4499 = vld [vmem:[#allocation2 + $0x80] sm:$0xff]
      %v4500 = vld [vmem:[#allocation2 + $0x88] sm:$0x3]
      %v4501 = vld [vmem:[#allocation2 + $0x90] sm:$0xff]
      %v4502 = vld [vmem:[#allocation2 + $0x98] sm:$0x3]
      %v4519 = vrot.slane %v4483, 1
      %v4520 = vrot.slane %v4484, 1
      %v4521 = vsel %vm276, %v4519, %v4520
      %v4522 = vrot.slane %v4485, 1
      %v4523 = vrot.slane %v4486, 1
      %v4524 = vsel %vm276, %v4522, %v4523
      %v4525 = vrot.slane %v4487, 1
      %v4526 = vrot.slane %v4488, 1
      %v4527 = vsel %vm276, %v4525, %v4526
      %v4528 = vrot.slane %v4489, 1
      %v4529 = vrot.slane %v4490, 1
      %v4530 = vsel %vm276, %v4528, %v4529
      %v4531 = vrot.slane %v4491, 1
      %v4532 = vrot.slane %v4492, 1
      %v4533 = vsel %vm276, %v4531, %v4532
      %v4534 = vrot.slane %v4493, 1
      %v4535 = vrot.slane %v4494, 1
      %v4536 = vsel %vm276, %v4534, %v4535
      %v4537 = vrot.slane %v4495, 1
      %v4538 = vrot.slane %v4496, 1
      %v4539 = vsel %vm276, %v4537, %v4538
      %v4540 = vrot.slane %v4497, 1
      %v4541 = vrot.slane %v4498, 1
      %v4542 = vsel %vm276, %v4540, %v4541
      %4543 = vrot.lane.b32.xlu0 %v4521, 64
      %v4544 = vpop.permute.xlu0 %4543
      %4545 = vrot.lane.b32.xlu0 %v4524, 64
      %v4546 = vpop.permute.xlu0 %4545
      %4547 = vrot.lane.b32.xlu0 %v4527, 64
      %v4548 = vpop.permute.xlu0 %4547
      %4549 = vrot.lane.b32.xlu0 %v4530, 64
      %v4550 = vpop.permute.xlu0 %4549
      %4551 = vrot.lane.b32.xlu0 %v4533, 64
      %v4552 = vpop.permute.xlu0 %4551
      %4553 = vrot.lane.b32.xlu0 %v4536, 64
      %v4554 = vpop.permute.xlu0 %4553
      %4555 = vrot.lane.b32.xlu0 %v4539, 64
      %v4556 = vpop.permute.xlu0 %4555
      %4557 = vrot.lane.b32.xlu0 %v4542, 64
      %v4558 = vpop.permute.xlu0 %4557
      %v4567 = vrot.slane %v4483, 2
      %v4568 = vrot.slane %v4484, 2
      %v4569 = vsel %vm325, %v4567, %v4568
      %v4570 = vrot.slane %v4485, 2
      %v4571 = vrot.slane %v4486, 2
      %v4572 = vsel %vm325, %v4570, %v4571
      %v4573 = vrot.slane %v4487, 2
      %v4574 = vrot.slane %v4488, 2
      %v4575 = vsel %vm325, %v4573, %v4574
      %v4576 = vrot.slane %v4489, 2
      %v4577 = vrot.slane %v4490, 2
      %v4578 = vsel %vm325, %v4576, %v4577
      %v4579 = vrot.slane %v4491, 2
      %v4580 = vrot.slane %v4492, 2
      %v4581 = vsel %vm325, %v4579, %v4580
      %v4582 = vrot.slane %v4493, 2
      %v4583 = vrot.slane %v4494, 2
      %v4584 = vsel %vm325, %v4582, %v4583
      %v4585 = vrot.slane %v4495, 2
      %v4586 = vrot.slane %v4496, 2
      %v4587 = vsel %vm325, %v4585, %v4586
      %v4588 = vrot.slane %v4497, 2
      %v4589 = vrot.slane %v4498, 2
      %v4590 = vsel %vm325, %v4588, %v4589
      %v4591 = vsel %vm198, %v4483, %v4544
      %v4592 = vsel %vm198, %v4485, %v4546
      %v4593 = vsel %vm198, %v4487, %v4548
      %v4594 = vsel %vm198, %v4489, %v4550
      %v4595 = vsel %vm198, %v4491, %v4552
      %v4596 = vsel %vm198, %v4493, %v4554
      %v4597 = vsel %vm198, %v4495, %v4556
      %v4598 = vsel %vm198, %v4497, %v4558
      %s4599 = scalar_lea.vmem %s1, 4032
      %v4600 = vld [vmem:[%s4599] sm:$0xff]
      %v4601 = vld [vmem:[%s4599 + $0x8] sm:$0xff]
      %v4602 = vld [vmem:[%s4599 + $0x10] sm:$0xff]
      %v4603 = vld [vmem:[%s4599 + $0x18] sm:$0xff]
      %v4604 = vld [vmem:[%s4599 + $0x20] sm:$0xff]
      %v4605 = vld [vmem:[%s4599 + $0x28] sm:$0xff]
      %v4606 = vld [vmem:[%s4599 + $0x30] sm:$0xff]
      %v4607 = vld [vmem:[%s4599 + $0x38] sm:$0xff]
      %v4608 = vld [vmem:[%s4599 + $0x40] sm:$0xff]
      %v4609 = vld [vmem:[%s4599 + $0x48] sm:$0xff]
      %v4610 = vld [vmem:[%s4599 + $0x50] sm:$0xff]
      %v4611 = vld [vmem:[%s4599 + $0x58] sm:$0xff]
      %v4612 = vld [vmem:[%s4599 + $0x60] sm:$0xff]
      %v4613 = vld [vmem:[%s4599 + $0x68] sm:$0xff]
      %v4614 = vld [vmem:[%s4599 + $0x70] sm:$0xff]
      %v4615 = vld [vmem:[%s4599 + $0x78] sm:$0xff]
      %v4616 = vld [vmem:[%s4599 + $0x80] sm:$0xff]
      %v4617 = vld [vmem:[%s4599 + $0x88] sm:$0xff]
      %v4618 = vld [vmem:[%s4599 + $0x90] sm:$0xff]
      %v4619 = vld [vmem:[%s4599 + $0x98] sm:$0xff]
      %v4620 = vld [vmem:[%s4599 + $0xa0] sm:$0xff]
      %v4621 = vld [vmem:[%s4599 + $0xa8] sm:$0xff]
      %v4622 = vld [vmem:[%s4599 + $0xb0] sm:$0xff]
      %v4623 = vld [vmem:[%s4599 + $0xb8] sm:$0xff]
      %v4626 = vrot.slane %v4499, 1
      %v4627 = vrot.slane %v4500, 1
      %v4628 = vsel %vm276, %v4626, %v4627
      %4629 = vrot.lane.b32.xlu0 %v4628, 64
      %v4630 = vpop.permute.xlu0 %4629
      %v4632 = vrot.slane %v4499, 2
      %v4633 = vrot.slane %v4500, 2
      %v4634 = vsel %vm325, %v4632, %v4633
      %v4635 = vsel %vm198, %v4499, %v4630
      %s4636 = scalar_lea.vmem %s1, 4224
      %v4637 = vld [vmem:[%s4636] sm:$0xff]
      %v4638 = vld [vmem:[%s4636 + $0x8] sm:$0xff]
      %v4639 = vld [vmem:[%s4636 + $0x10] sm:$0xff]
      %v4640 = vld [vmem:[%s4636 + $0x18] sm:$0xff]
      %v4641 = vld [vmem:[%s4636 + $0x20] sm:$0xff]
      %v4642 = vld [vmem:[%s4636 + $0x28] sm:$0xff]
      %v4643 = vld [vmem:[%s4636 + $0x30] sm:$0xff]
      %v4644 = vld [vmem:[%s4636 + $0x38] sm:$0xff]
      %v4645 = vld [vmem:[%s4636 + $0x40] sm:$0xff]
      %v4646 = vld [vmem:[%s4636 + $0x48] sm:$0xff]
      %v4647 = vld [vmem:[%s4636 + $0x50] sm:$0xff]
      %v4648 = vld [vmem:[%s4636 + $0x58] sm:$0xff]
      %v4649 = vld [vmem:[%s4636 + $0x60] sm:$0xff]
      %v4650 = vld [vmem:[%s4636 + $0x68] sm:$0xff]
      %v4651 = vld [vmem:[%s4636 + $0x70] sm:$0xff]
      %v4652 = vld [vmem:[%s4636 + $0x78] sm:$0xff]
      %v4653 = vld [vmem:[%s4636 + $0x80] sm:$0xff]
      %v4654 = vld [vmem:[%s4636 + $0x88] sm:$0xff]
      %v4655 = vld [vmem:[%s4636 + $0x90] sm:$0xff]
      %v4656 = vld [vmem:[%s4636 + $0x98] sm:$0xff]
      %v4657 = vld [vmem:[%s4636 + $0xa0] sm:$0xff]
      %v4658 = vld [vmem:[%s4636 + $0xa8] sm:$0xff]
      %v4659 = vld [vmem:[%s4636 + $0xb0] sm:$0xff]
      %v4660 = vld [vmem:[%s4636 + $0xb8] sm:$0xff]
      %v4661 = vsel %vm198, %v4572, 0
      %v4663 = vsel %vm198, %v4575, 0
      %v4665 = vsel %vm198, %v4578, 0
      %v4667 = vsel %vm198, %v4581, 0
      %v4669 = vsel %vm198, %v4584, 0
      %v4671 = vsel %vm198, %v4587, 0
      %v4673 = vsel %vm198, %v4590, 0
      %v4675 = vsel %vm198, %v4634, 0
      %4677 = vmatprep.subr.mxu0 0.0
      %4678 = vmatpush1.msra.mxu0 %v4637
      %4679 = vmatprep.subr.mxu0 0.0
      %4680 = vmatpush1.msra.mxu0 %v4638
      %4681 = vmatprep.subr.mxu0 0.0
      %4682 = vmatpush1.msra.mxu0 %v4639
      %4683 = vmatprep.subr.mxu0 0.0
      %4684 = vmatpush1.msra.mxu0 %v4640
      %4685 = vmatprep.subr.mxu0 0.0
      %4686 = vmatpush1.msra.mxu0 %v4641
      %4687 = vmatprep.subr.mxu0 0.0
      %4688 = vmatpush1.msra.mxu0 %v4642
      %4689 = vmatprep.subr.mxu0 0.0
      %4690 = vmatpush1.msra.mxu0 %v4643
      %4691 = vmatprep.subr.mxu0 0.0
      %4692 = vmatpush1.msra.mxu0 %v4644
      %4693 = vmatprep.subr.mxu0 0.0
      %4694 = vmatpush1.msra.mxu0 %v4645
      %4695 = vmatprep.subr.mxu0 0.0
      %4696 = vmatpush1.msra.mxu0 %v4646
      %4697 = vmatprep.subr.mxu0 0.0
      %4698 = vmatpush1.msra.mxu0 %v4647
      %4699 = vmatprep.subr.mxu0 0.0
      %4700 = vmatpush1.msra.mxu0 %v4648
      %4701 = vmatprep.subr.mxu0 0.0
      %4702 = vmatpush1.msra.mxu0 %v4649
      %4703 = vmatprep.subr.mxu0 0.0
      %4704 = vmatpush1.msra.mxu0 %v4650
      %4705 = vmatprep.subr.mxu0 0.0
      %4706 = vmatpush1.msra.mxu0 %v4651
      %4707 = vmatprep.subr.mxu0 0.0
      %4708 = vmatpush1.msra.mxu0 %v4652
      %4709 = vmatprep.subr.mxu0 0.0
      %4710 = vmatpush1.msra.mxu0 %v4653
      %4711 = vmatprep.subr.mxu0 0.0
      %4712 = vmatpush1.msra.mxu0 %v4654
      %4713 = vmatprep.subr.mxu0 0.0
      %4714 = vmatpush1.msra.mxu0 %v4655
      %4715 = vmatprep.subr.mxu0 0.0
      %4716 = vmatpush1.msra.mxu0 %v4656
      %4717 = vmatprep.subr.mxu0 0.0
      %4718 = vmatpush1.msra.mxu0 %v4657
      %4719 = vmatprep.subr.mxu0 0.0
      %4720 = vmatpush1.msra.mxu0 %v4658
      %4721 = vmatprep.subr.mxu0 0.0
      %4722 = vmatpush1.msra.mxu0 %v4659
      %4723 = vmatprep.subr.mxu0 0.0
      %4724 = vmatpush1.msra.mxu0 %v4660
      %4725 = vmatprep.subr.mxu0 0.0
      %4726 = vmatpush1.msra.mxu0 0.0
      %4727 = vmatprep.subr.mxu0 0.0
      %4728 = vmatpush1.msra.mxu0 0.0
      %4729 = vmatprep.subr.mxu0 0.0
      %4730 = vmatpush1.msra.mxu0 0.0
      %4731 = vmatprep.subr.mxu0 0.0
      %4732 = vmatpush1.msra.mxu0 0.0
      %4733 = vmatprep.subr.mxu0 0.0
      %4734 = vmatpush1.msra.mxu0 0.0
      %4735 = vmatprep.subr.mxu0 0.0
      %4736 = vmatpush1.msra.mxu0 0.0
      %4737 = vmatprep.subr.mxu0 0.0
      %4738 = vmatpush1.msra.mxu0 0.0
      %4739 = vmatprep.subr.mxu0 0.0
      %4740 = vmatpush1.msra.mxu0 0.0
      %4741 = vmatprep.mubr.f32.mxu0 %v4661
      %4742 = vmatmul.mubr.f32.gmra.mrb[0].mxu0 %v4592
      %v4743 = vpop.f32.mrb[0].mxu0
      %v4744 = vadd.f32 0.0, %v4743
      %v4745 = vpop.f32.mrb[0].mxu0
      %4746 = vmatprep.mubr.f32.mxu0 %v4663
      %4747 = vmatmul.mubr.f32.gmra.mrb[0].mxu0 %v4593
      %v4748 = vpop.f32.mrb[0].mxu0
      %v4749 = vadd.f32 0.0, %v4748
      %v4750 = vpop.f32.mrb[0].mxu0
      %4751 = vmatprep.mubr.f32.mxu0 %v4665
      %4752 = vmatmul.mubr.f32.gmra.mrb[0].mxu0 %v4594
      %v4753 = vpop.f32.mrb[0].mxu0
      %v4754 = vadd.f32 0.0, %v4753
      %v4755 = vpop.f32.mrb[0].mxu0
      %4756 = vmatprep.mubr.f32.mxu0 %v4667
      %4757 = vmatmul.mubr.f32.gmra.mrb[0].mxu0 %v4595
      %v4758 = vpop.f32.mrb[0].mxu0
      %v4759 = vadd.f32 0.0, %v4758
      %v4760 = vpop.f32.mrb[0].mxu0
      %4761 = vmatprep.mubr.f32.mxu0 %v4669
      %4762 = vmatmul.mubr.f32.gmra.mrb[0].mxu0 %v4596
      %v4763 = vpop.f32.mrb[0].mxu0
      %v4764 = vadd.f32 0.0, %v4763
      %v4765 = vpop.f32.mrb[0].mxu0
      %4766 = vmatprep.mubr.f32.mxu0 %v4671
      %4767 = vmatmul.mubr.f32.gmra.mrb[0].mxu0 %v4597
      %v4768 = vpop.f32.mrb[0].mxu0
      %v4769 = vadd.f32 0.0, %v4768
      %v4770 = vpop.f32.mrb[0].mxu0
      %4771 = vmatprep.mubr.f32.mxu0 %v4673
      %4772 = vmatmul.mubr.f32.gmra.mrb[0].mxu0 %v4598
      %v4773 = vpop.f32.mrb[0].mxu0
      %v4774 = vadd.f32 0.0, %v4773
      %v4775 = vpop.f32.mrb[0].mxu0
      %4776 = vmatprep.mubr.f32.mxu0 %v4675
      %4777 = vmatmul.mubr.f32.gmra.mrb[0].mxu0 %v4635
      %v4778 = vpop.f32.mrb[0].mxu0
      %v4779 = vadd.f32 0.0, %v4778
      %v4780 = vpop.f32.mrb[0].mxu0
      %4781 = vdwg.mxu0
      %v4782 = vsel %vm198, %v4569, 0
      %4784 = vmatprep.subr.mxu0 0.0
      %4785 = vmatpush1.msra.mxu0 %v4600
      %4786 = vmatprep.subr.mxu0 0.0
      %4787 = vmatpush1.msra.mxu0 %v4601
      %4788 = vmatprep.subr.mxu0 0.0
      %4789 = vmatpush1.msra.mxu0 %v4602
      %4790 = vmatprep.subr.mxu0 0.0
      %4791 = vmatpush1.msra.mxu0 %v4603
      %4792 = vmatprep.subr.mxu0 0.0
      %4793 = vmatpush1.msra.mxu0 %v4604
      %4794 = vmatprep.subr.mxu0 0.0
      %4795 = vmatpush1.msra.mxu0 %v4605
      %4796 = vmatprep.subr.mxu0 0.0
      %4797 = vmatpush1.msra.mxu0 %v4606
      %4798 = vmatprep.subr.mxu0 0.0
      %4799 = vmatpush1.msra.mxu0 %v4607
      %4800 = vmatprep.subr.mxu0 0.0
      %4801 = vmatpush1.msra.mxu0 %v4608
      %4802 = vmatprep.subr.mxu0 0.0
      %4803 = vmatpush1.msra.mxu0 %v4609
      %4804 = vmatprep.subr.mxu0 0.0
      %4805 = vmatpush1.msra.mxu0 %v4610
      %4806 = vmatprep.subr.mxu0 0.0
      %4807 = vmatpush1.msra.mxu0 %v4611
      %4808 = vmatprep.subr.mxu0 0.0
      %4809 = vmatpush1.msra.mxu0 %v4612
      %4810 = vmatprep.subr.mxu0 0.0
      %4811 = vmatpush1.msra.mxu0 %v4613
      %4812 = vmatprep.subr.mxu0 0.0
      %4813 = vmatpush1.msra.mxu0 %v4614
      %4814 = vmatprep.subr.mxu0 0.0
      %4815 = vmatpush1.msra.mxu0 %v4615
      %4816 = vmatprep.subr.mxu0 0.0
      %4817 = vmatpush1.msra.mxu0 %v4616
      %4818 = vmatprep.subr.mxu0 0.0
      %4819 = vmatpush1.msra.mxu0 %v4617
      %4820 = vmatprep.subr.mxu0 0.0
      %4821 = vmatpush1.msra.mxu0 %v4618
      %4822 = vmatprep.subr.mxu0 0.0
      %4823 = vmatpush1.msra.mxu0 %v4619
      %4824 = vmatprep.subr.mxu0 0.0
      %4825 = vmatpush1.msra.mxu0 %v4620
      %4826 = vmatprep.subr.mxu0 0.0
      %4827 = vmatpush1.msra.mxu0 %v4621
      %4828 = vmatprep.subr.mxu0 0.0
      %4829 = vmatpush1.msra.mxu0 %v4622
      %4830 = vmatprep.subr.mxu0 0.0
      %4831 = vmatpush1.msra.mxu0 %v4623
      %4832 = vmatprep.subr.mxu0 0.0
      %4833 = vmatpush1.msra.mxu0 0.0
      %4834 = vmatprep.subr.mxu0 0.0
      %4835 = vmatpush1.msra.mxu0 0.0
      %4836 = vmatprep.subr.mxu0 0.0
      %4837 = vmatpush1.msra.mxu0 0.0
      %4838 = vmatprep.subr.mxu0 0.0
      %4839 = vmatpush1.msra.mxu0 0.0
      %4840 = vmatprep.subr.mxu0 0.0
      %4841 = vmatpush1.msra.mxu0 0.0
      %4842 = vmatprep.subr.mxu0 0.0
      %4843 = vmatpush1.msra.mxu0 0.0
      %4844 = vmatprep.subr.mxu0 0.0
      %4845 = vmatpush1.msra.mxu0 0.0
      %4846 = vmatprep.subr.mxu0 0.0
      %4847 = vmatpush1.msra.mxu0 0.0
      %4848 = vmatprep.mubr.f32.mxu0 %v4782
      %4849 = vmatmul.mubr.f32.gmra.mrb[0].mxu0 %v4591
      %v4850 = vpop.f32.mrb[0].mxu0
      %v4851 = vadd.f32 %v4744, %v4850
      %v4852 = vpop.f32.mrb[0].mxu0
      %4853 = vmatprep.mubr.f32.mxu0 %v4661
      %4854 = vmatmul.mubr.f32.gmra.mrb[0].mxu0 %v4592
      %v4855 = vpop.f32.mrb[0].mxu0
      %v4856 = vadd.f32 %v4749, %v4855
      %v4857 = vpop.f32.mrb[0].mxu0
      %4858 = vmatprep.mubr.f32.mxu0 %v4663
      %4859 = vmatmul.mubr.f32.gmra.mrb[0].mxu0 %v4593
      %v4860 = vpop.f32.mrb[0].mxu0
      %v4861 = vadd.f32 %v4754, %v4860
      %v4862 = vpop.f32.mrb[0].mxu0
      %4863 = vmatprep.mubr.f32.mxu0 %v4665
      %4864 = vmatmul.mubr.f32.gmra.mrb[0].mxu0 %v4594
      %v4865 = vpop.f32.mrb[0].mxu0
      %v4866 = vadd.f32 %v4759, %v4865
      %v4867 = vpop.f32.mrb[0].mxu0
      %4868 = vmatprep.mubr.f32.mxu0 %v4667
      %4869 = vmatmul.mubr.f32.gmra.mrb[0].mxu0 %v4595
      %v4870 = vpop.f32.mrb[0].mxu0
      %v4871 = vadd.f32 %v4764, %v4870
      %v4872 = vpop.f32.mrb[0].mxu0
      %4873 = vmatprep.mubr.f32.mxu0 %v4669
      %4874 = vmatmul.mubr.f32.gmra.mrb[0].mxu0 %v4596
      %v4875 = vpop.f32.mrb[0].mxu0
      %v4876 = vadd.f32 %v4769, %v4875
      %v4877 = vpop.f32.mrb[0].mxu0
      %4878 = vmatprep.mubr.f32.mxu0 %v4671
      %4879 = vmatmul.mubr.f32.gmra.mrb[0].mxu0 %v4597
      %v4880 = vpop.f32.mrb[0].mxu0
      %v4881 = vadd.f32 %v4774, %v4880
      %v4882 = vpop.f32.mrb[0].mxu0
      %4883 = vmatprep.mubr.f32.mxu0 %v4673
      %4884 = vmatmul.mubr.f32.gmra.mrb[0].mxu0 %v4598
      %v4885 = vpop.f32.mrb[0].mxu0
      %v4886 = vadd.f32 %v4779, %v4885
      %v4887 = vpop.f32.mrb[0].mxu0
      %4888 = vdwg.mxu0
      %v4891 = vrot.slane %v4501, 1
      %v4892 = vrot.slane %v4502, 1
      %v4893 = vsel %vm276, %v4891, %v4892
      %4894 = vrot.lane.b32.xlu0 %v4893, 64
      %v4895 = vpop.permute.xlu0 %4894
      %v4897 = vrot.slane %v4501, 2
      %v4898 = vrot.slane %v4502, 2
      %v4899 = vsel %vm325, %v4897, %v4898
      %v4900 = vsel %vm198, %v4501, %v4895
      %s4901 = scalar_lea.vmem %s1, 4416
      %v4902 = vld [vmem:[%s4901] sm:$0xff]
      %v4903 = vld [vmem:[%s4901 + $0x8] sm:$0xff]
      %v4904 = vld [vmem:[%s4901 + $0x10] sm:$0xff]
      %v4905 = vld [vmem:[%s4901 + $0x18] sm:$0xff]
      %v4906 = vld [vmem:[%s4901 + $0x20] sm:$0xff]
      %v4907 = vld [vmem:[%s4901 + $0x28] sm:$0xff]
      %v4908 = vld [vmem:[%s4901 + $0x30] sm:$0xff]
      %v4909 = vld [vmem:[%s4901 + $0x38] sm:$0xff]
      %v4910 = vld [vmem:[%s4901 + $0x40] sm:$0xff]
      %v4911 = vld [vmem:[%s4901 + $0x48] sm:$0xff]
      %v4912 = vld [vmem:[%s4901 + $0x50] sm:$0xff]
      %v4913 = vld [vmem:[%s4901 + $0x58] sm:$0xff]
      %v4914 = vld [vmem:[%s4901 + $0x60] sm:$0xff]
      %v4915 = vld [vmem:[%s4901 + $0x68] sm:$0xff]
      %v4916 = vld [vmem:[%s4901 + $0x70] sm:$0xff]
      %v4917 = vld [vmem:[%s4901 + $0x78] sm:$0xff]
      %v4918 = vld [vmem:[%s4901 + $0x80] sm:$0xff]
      %v4919 = vld [vmem:[%s4901 + $0x88] sm:$0xff]
      %v4920 = vld [vmem:[%s4901 + $0x90] sm:$0xff]
      %v4921 = vld [vmem:[%s4901 + $0x98] sm:$0xff]
      %v4922 = vld [vmem:[%s4901 + $0xa0] sm:$0xff]
      %v4923 = vld [vmem:[%s4901 + $0xa8] sm:$0xff]
      %v4924 = vld [vmem:[%s4901 + $0xb0] sm:$0xff]
      %v4925 = vld [vmem:[%s4901 + $0xb8] sm:$0xff]
      %v4926 = vsel %vm198, %v4899, 0
      %4928 = vmatprep.subr.mxu0 0.0
      %4929 = vmatpush1.msra.mxu0 %v4902
      %4930 = vmatprep.subr.mxu0 0.0
      %4931 = vmatpush1.msra.mxu0 %v4903
      %4932 = vmatprep.subr.mxu0 0.0
      %4933 = vmatpush1.msra.mxu0 %v4904
      %4934 = vmatprep.subr.mxu0 0.0
      %4935 = vmatpush1.msra.mxu0 %v4905
      %4936 = vmatprep.subr.mxu0 0.0
      %4937 = vmatpush1.msra.mxu0 %v4906
      %4938 = vmatprep.subr.mxu0 0.0
      %4939 = vmatpush1.msra.mxu0 %v4907
      %4940 = vmatprep.subr.mxu0 0.0
      %4941 = vmatpush1.msra.mxu0 %v4908
      %4942 = vmatprep.subr.mxu0 0.0
      %4943 = vmatpush1.msra.mxu0 %v4909
      %4944 = vmatprep.subr.mxu0 0.0
      %4945 = vmatpush1.msra.mxu0 %v4910
      %4946 = vmatprep.subr.mxu0 0.0
      %4947 = vmatpush1.msra.mxu0 %v4911
      %4948 = vmatprep.subr.mxu0 0.0
      %4949 = vmatpush1.msra.mxu0 %v4912
      %4950 = vmatprep.subr.mxu0 0.0
      %4951 = vmatpush1.msra.mxu0 %v4913
      %4952 = vmatprep.subr.mxu0 0.0
      %4953 = vmatpush1.msra.mxu0 %v4914
      %4954 = vmatprep.subr.mxu0 0.0
      %4955 = vmatpush1.msra.mxu0 %v4915
      %4956 = vmatprep.subr.mxu0 0.0
      %4957 = vmatpush1.msra.mxu0 %v4916
      %4958 = vmatprep.subr.mxu0 0.0
      %4959 = vmatpush1.msra.mxu0 %v4917
      %4960 = vmatprep.subr.mxu0 0.0
      %4961 = vmatpush1.msra.mxu0 %v4918
      %4962 = vmatprep.subr.mxu0 0.0
      %4963 = vmatpush1.msra.mxu0 %v4919
      %4964 = vmatprep.subr.mxu0 0.0
      %4965 = vmatpush1.msra.mxu0 %v4920
      %4966 = vmatprep.subr.mxu0 0.0
      %4967 = vmatpush1.msra.mxu0 %v4921
      %4968 = vmatprep.subr.mxu0 0.0
      %4969 = vmatpush1.msra.mxu0 %v4922
      %4970 = vmatprep.subr.mxu0 0.0
      %4971 = vmatpush1.msra.mxu0 %v4923
      %4972 = vmatprep.subr.mxu0 0.0
      %4973 = vmatpush1.msra.mxu0 %v4924
      %4974 = vmatprep.subr.mxu0 0.0
      %4975 = vmatpush1.msra.mxu0 %v4925
      %4976 = vmatprep.subr.mxu0 0.0
      %4977 = vmatpush1.msra.mxu0 0.0
      %4978 = vmatprep.subr.mxu0 0.0
      %4979 = vmatpush1.msra.mxu0 0.0
      %4980 = vmatprep.subr.mxu0 0.0
      %4981 = vmatpush1.msra.mxu0 0.0
      %4982 = vmatprep.subr.mxu0 0.0
      %4983 = vmatpush1.msra.mxu0 0.0
      %4984 = vmatprep.subr.mxu0 0.0
      %4985 = vmatpush1.msra.mxu0 0.0
      %4986 = vmatprep.subr.mxu0 0.0
      %4987 = vmatpush1.msra.mxu0 0.0
      %4988 = vmatprep.subr.mxu0 0.0
      %4989 = vmatpush1.msra.mxu0 0.0
      %4990 = vmatprep.subr.mxu0 0.0
      %4991 = vmatpush1.msra.mxu0 0.0
      %4992 = vmatprep.mubr.f32.mxu0 %v4663
      %4993 = vmatmul.mubr.f32.gmra.mrb[0].mxu0 %v4593
      %v4994 = vpop.f32.mrb[0].mxu0
      %v4995 = vadd.f32 0.0, %v4994
      %v4996 = vpop.f32.mrb[0].mxu0
      %4997 = vmatprep.mubr.f32.mxu0 %v4665
      %4998 = vmatmul.mubr.f32.gmra.mrb[0].mxu0 %v4594
      %v4999 = vpop.f32.mrb[0].mxu0
      %v5000 = vadd.f32 0.0, %v4999
      %v5001 = vpop.f32.mrb[0].mxu0
      %5002 = vmatprep.mubr.f32.mxu0 %v4667
      %5003 = vmatmul.mubr.f32.gmra.mrb[0].mxu0 %v4595
      %v5004 = vpop.f32.mrb[0].mxu0
      %v5005 = vadd.f32 0.0, %v5004
      %v5006 = vpop.f32.mrb[0].mxu0
      %5007 = vmatprep.mubr.f32.mxu0 %v4669
      %5008 = vmatmul.mubr.f32.gmra.mrb[0].mxu0 %v4596
      %v5009 = vpop.f32.mrb[0].mxu0
      %v5010 = vadd.f32 0.0, %v5009
      %v5011 = vpop.f32.mrb[0].mxu0
      %5012 = vmatprep.mubr.f32.mxu0 %v4671
      %5013 = vmatmul.mubr.f32.gmra.mrb[0].mxu0 %v4597
      %v5014 = vpop.f32.mrb[0].mxu0
      %v5015 = vadd.f32 0.0, %v5014
      %v5016 = vpop.f32.mrb[0].mxu0
      %5017 = vmatprep.mubr.f32.mxu0 %v4673
      %5018 = vmatmul.mubr.f32.gmra.mrb[0].mxu0 %v4598
      %v5019 = vpop.f32.mrb[0].mxu0
      %v5020 = vadd.f32 0.0, %v5019
      %v5021 = vpop.f32.mrb[0].mxu0
      %5022 = vmatprep.mubr.f32.mxu0 %v4675
      %5023 = vmatmul.mubr.f32.gmra.mrb[0].mxu0 %v4635
      %v5024 = vpop.f32.mrb[0].mxu0
      %v5025 = vadd.f32 0.0, %v5024
      %v5026 = vpop.f32.mrb[0].mxu0
      %5027 = vmatprep.mubr.f32.mxu0 %v4926
      %5028 = vmatmul.mubr.f32.gmra.mrb[0].mxu0 %v4900
      %v5029 = vpop.f32.mrb[0].mxu0
      %v5030 = vadd.f32 0.0, %v5029
      %v5031 = vpop.f32.mrb[0].mxu0
      %5032 = vdwg.mxu0
      %v5033 = vadd.f32 %v4851, %v4995
      %v5034 = vadd.f32 %v4856, %v5000
      %v5035 = vadd.f32 %v4861, %v5005
      %v5036 = vadd.f32 %v4866, %v5010
      %v5037 = vadd.f32 %v4871, %v5015
      %v5038 = vadd.f32 %v4876, %v5020
      %v5039 = vadd.f32 %v4881, %v5025
      %v5040 = vadd.f32 %v4886, %v5030
      %s5041 = scalar_lea.vmem %s2, 7
      %v5042 = vld [vmem:[%s5041] sm:$0x1]
      %v5044 = vlaneseq
      %v5045 = vshrl.u32 %v5044, 7
      %v5046 = vsub.s32 0, %v5045
      %v5047 = vrot.slane %v5042, %v5046
      %v5049 = vmul.f32 %v5033, %v5047
      %v5050 = vmul.f32 %v5034, %v5047
      %v5051 = vmul.f32 %v5035, %v5047
      %v5052 = vmul.f32 %v5036, %v5047
      %v5053 = vmul.f32 %v5037, %v5047
      %v5054 = vmul.f32 %v5038, %v5047
      %v5055 = vmul.f32 %v5039, %v5047
      %v5056 = vmul.f32 %v5040, %v5047
      %s5057 = scalar_lea.vmem %s3, 7
      %v5058 = vld [vmem:[%s5057] sm:$0x1]
      %v5060 = vlaneseq
      %v5061 = vshrl.u32 %v5060, 7
      %v5062 = vsub.s32 0, %v5061
      %v5063 = vrot.slane %v5058, %v5062
      %v5065 = vadd.f32 %v5049, %v5063
      %v5066 = vadd.f32 %v5050, %v5063
      %v5067 = vadd.f32 %v5051, %v5063
      %v5068 = vadd.f32 %v5052, %v5063
      %v5069 = vadd.f32 %v5053, %v5063
      %v5070 = vadd.f32 %v5054, %v5063
      %v5071 = vadd.f32 %v5055, %v5063
      %v5072 = vadd.f32 %v5056, %v5063
      %v5073 = vmax.f32 %v5065, 0.0
      %v5074 = vmax.f32 %v5066, 0.0
      %v5075 = vmax.f32 %v5067, 0.0
      %v5076 = vmax.f32 %v5068, 0.0
      %v5077 = vmax.f32 %v5069, 0.0
      %v5078 = vmax.f32 %v5070, 0.0
      %v5079 = vmax.f32 %v5071, 0.0
      %v5080 = vmax.f32 %v5072, 0.0
      %5081 = vst.msk [vmem:[%s1444 + $0x1] sm:$0xff] %vm198, %v5073
      %5082 = vst.msk [vmem:[%s1444 + $0x11] sm:$0xff] %vm198, %v5074
      %5083 = vst.msk [vmem:[%s1444 + $0x21] sm:$0xff] %vm198, %v5075
      %5084 = vst.msk [vmem:[%s1444 + $0x31] sm:$0xff] %vm198, %v5076
      %5085 = vst.msk [vmem:[%s1444 + $0x41] sm:$0xff] %vm198, %v5077
      %5086 = vst.msk [vmem:[%s1444 + $0x51] sm:$0xff] %vm198, %v5078
      %5087 = vst.msk [vmem:[%s1444 + $0x61] sm:$0xff] %vm198, %v5079
      %5088 = vst.msk [vmem:[%s1444 + $0x71] sm:$0xff] %vm198, %v5080
      %v5089 = vld [vmem:[#allocation3] sm:$0xff]
      %v5090 = vld [vmem:[#allocation3 + $0x8] sm:$0x3]
      %v5091 = vld [vmem:[#allocation3 + $0x10] sm:$0xff]
      %v5092 = vld [vmem:[#allocation3 + $0x18] sm:$0x3]
      %v5093 = vld [vmem:[#allocation3 + $0x20] sm:$0xff]
      %v5094 = vld [vmem:[#allocation3 + $0x28] sm:$0x3]
      %v5095 = vld [vmem:[#allocation3 + $0x30] sm:$0xff]
      %v5096 = vld [vmem:[#allocation3 + $0x38] sm:$0x3]
      %v5097 = vld [vmem:[#allocation3 + $0x40] sm:$0xff]
      %v5098 = vld [vmem:[#allocation3 + $0x48] sm:$0x3]
      %v5099 = vld [vmem:[#allocation3 + $0x50] sm:$0xff]
      %v5100 = vld [vmem:[#allocation3 + $0x58] sm:$0x3]
      %v5101 = vld [vmem:[#allocation3 + $0x60] sm:$0xff]
      %v5102 = vld [vmem:[#allocation3 + $0x68] sm:$0x3]
      %v5103 = vld [vmem:[#allocation3 + $0x70] sm:$0xff]
      %v5104 = vld [vmem:[#allocation3 + $0x78] sm:$0x3]
      %v5105 = vld [vmem:[#allocation3 + $0x80] sm:$0xff]
      %v5106 = vld [vmem:[#allocation3 + $0x88] sm:$0x3]
      %v5107 = vld [vmem:[#allocation3 + $0x90] sm:$0xff]
      %v5108 = vld [vmem:[#allocation3 + $0x98] sm:$0x3]
      %v5125 = vrot.slane %v5089, 1
      %v5126 = vrot.slane %v5090, 1
      %v5127 = vsel %vm276, %v5125, %v5126
      %v5128 = vrot.slane %v5091, 1
      %v5129 = vrot.slane %v5092, 1
      %v5130 = vsel %vm276, %v5128, %v5129
      %v5131 = vrot.slane %v5093, 1
      %v5132 = vrot.slane %v5094, 1
      %v5133 = vsel %vm276, %v5131, %v5132
      %v5134 = vrot.slane %v5095, 1
      %v5135 = vrot.slane %v5096, 1
      %v5136 = vsel %vm276, %v5134, %v5135
      %v5137 = vrot.slane %v5097, 1
      %v5138 = vrot.slane %v5098, 1
      %v5139 = vsel %vm276, %v5137, %v5138
      %v5140 = vrot.slane %v5099, 1
      %v5141 = vrot.slane %v5100, 1
      %v5142 = vsel %vm276, %v5140, %v5141
      %v5143 = vrot.slane %v5101, 1
      %v5144 = vrot.slane %v5102, 1
      %v5145 = vsel %vm276, %v5143, %v5144
      %v5146 = vrot.slane %v5103, 1
      %v5147 = vrot.slane %v5104, 1
      %v5148 = vsel %vm276, %v5146, %v5147
      %5149 = vrot.lane.b32.xlu0 %v5127, 64
      %v5150 = vpop.permute.xlu0 %5149
      %5151 = vrot.lane.b32.xlu0 %v5130, 64
      %v5152 = vpop.permute.xlu0 %5151
      %5153 = vrot.lane.b32.xlu0 %v5133, 64
      %v5154 = vpop.permute.xlu0 %5153
      %5155 = vrot.lane.b32.xlu0 %v5136, 64
      %v5156 = vpop.permute.xlu0 %5155
      %5157 = vrot.lane.b32.xlu0 %v5139, 64
      %v5158 = vpop.permute.xlu0 %5157
      %5159 = vrot.lane.b32.xlu0 %v5142, 64
      %v5160 = vpop.permute.xlu0 %5159
      %5161 = vrot.lane.b32.xlu0 %v5145, 64
      %v5162 = vpop.permute.xlu0 %5161
      %5163 = vrot.lane.b32.xlu0 %v5148, 64
      %v5164 = vpop.permute.xlu0 %5163
      %v5173 = vrot.slane %v5089, 2
      %v5174 = vrot.slane %v5090, 2
      %v5175 = vsel %vm325, %v5173, %v5174
      %v5176 = vrot.slane %v5091, 2
      %v5177 = vrot.slane %v5092, 2
      %v5178 = vsel %vm325, %v5176, %v5177
      %v5179 = vrot.slane %v5093, 2
      %v5180 = vrot.slane %v5094, 2
      %v5181 = vsel %vm325, %v5179, %v5180
      %v5182 = vrot.slane %v5095, 2
      %v5183 = vrot.slane %v5096, 2
      %v5184 = vsel %vm325, %v5182, %v5183
      %v5185 = vrot.slane %v5097, 2
      %v5186 = vrot.slane %v5098, 2
      %v5187 = vsel %vm325, %v5185, %v5186
      %v5188 = vrot.slane %v5099, 2
      %v5189 = vrot.slane %v5100, 2
      %v5190 = vsel %vm325, %v5188, %v5189
      %v5191 = vrot.slane %v5101, 2
      %v5192 = vrot.slane %v5102, 2
      %v5193 = vsel %vm325, %v5191, %v5192
      %v5194 = vrot.slane %v5103, 2
      %v5195 = vrot.slane %v5104, 2
      %v5196 = vsel %vm325, %v5194, %v5195
      %v5197 = vsel %vm198, %v5089, %v5150
      %v5198 = vsel %vm198, %v5091, %v5152
      %v5199 = vsel %vm198, %v5093, %v5154
      %v5200 = vsel %vm198, %v5095, %v5156
      %v5201 = vsel %vm198, %v5097, %v5158
      %v5202 = vsel %vm198, %v5099, %v5160
      %v5203 = vsel %vm198, %v5101, %v5162
      %v5204 = vsel %vm198, %v5103, %v5164
      %s5205 = scalar_lea.vmem %s1, 4608
      %v5206 = vld [vmem:[%s5205] sm:$0xff]
      %v5207 = vld [vmem:[%s5205 + $0x8] sm:$0xff]
      %v5208 = vld [vmem:[%s5205 + $0x10] sm:$0xff]
      %v5209 = vld [vmem:[%s5205 + $0x18] sm:$0xff]
      %v5210 = vld [vmem:[%s5205 + $0x20] sm:$0xff]
      %v5211 = vld [vmem:[%s5205 + $0x28] sm:$0xff]
      %v5212 = vld [vmem:[%s5205 + $0x30] sm:$0xff]
      %v5213 = vld [vmem:[%s5205 + $0x38] sm:$0xff]
      %v5214 = vld [vmem:[%s5205 + $0x40] sm:$0xff]
      %v5215 = vld [vmem:[%s5205 + $0x48] sm:$0xff]
      %v5216 = vld [vmem:[%s5205 + $0x50] sm:$0xff]
      %v5217 = vld [vmem:[%s5205 + $0x58] sm:$0xff]
      %v5218 = vld [vmem:[%s5205 + $0x60] sm:$0xff]
      %v5219 = vld [vmem:[%s5205 + $0x68] sm:$0xff]
      %v5220 = vld [vmem:[%s5205 + $0x70] sm:$0xff]
      %v5221 = vld [vmem:[%s5205 + $0x78] sm:$0xff]
      %v5222 = vld [vmem:[%s5205 + $0x80] sm:$0xff]
      %v5223 = vld [vmem:[%s5205 + $0x88] sm:$0xff]
      %v5224 = vld [vmem:[%s5205 + $0x90] sm:$0xff]
      %v5225 = vld [vmem:[%s5205 + $0x98] sm:$0xff]
      %v5226 = vld [vmem:[%s5205 + $0xa0] sm:$0xff]
      %v5227 = vld [vmem:[%s5205 + $0xa8] sm:$0xff]
      %v5228 = vld [vmem:[%s5205 + $0xb0] sm:$0xff]
      %v5229 = vld [vmem:[%s5205 + $0xb8] sm:$0xff]
      %v5232 = vrot.slane %v5105, 1
      %v5233 = vrot.slane %v5106, 1
      %v5234 = vsel %vm276, %v5232, %v5233
      %5235 = vrot.lane.b32.xlu0 %v5234, 64
      %v5236 = vpop.permute.xlu0 %5235
      %v5238 = vrot.slane %v5105, 2
      %v5239 = vrot.slane %v5106, 2
      %v5240 = vsel %vm325, %v5238, %v5239
      %v5241 = vsel %vm198, %v5105, %v5236
      %s5242 = scalar_lea.vmem %s1, 4800
      %v5243 = vld [vmem:[%s5242] sm:$0xff]
      %v5244 = vld [vmem:[%s5242 + $0x8] sm:$0xff]
      %v5245 = vld [vmem:[%s5242 + $0x10] sm:$0xff]
      %v5246 = vld [vmem:[%s5242 + $0x18] sm:$0xff]
      %v5247 = vld [vmem:[%s5242 + $0x20] sm:$0xff]
      %v5248 = vld [vmem:[%s5242 + $0x28] sm:$0xff]
      %v5249 = vld [vmem:[%s5242 + $0x30] sm:$0xff]
      %v5250 = vld [vmem:[%s5242 + $0x38] sm:$0xff]
      %v5251 = vld [vmem:[%s5242 + $0x40] sm:$0xff]
      %v5252 = vld [vmem:[%s5242 + $0x48] sm:$0xff]
      %v5253 = vld [vmem:[%s5242 + $0x50] sm:$0xff]
      %v5254 = vld [vmem:[%s5242 + $0x58] sm:$0xff]
      %v5255 = vld [vmem:[%s5242 + $0x60] sm:$0xff]
      %v5256 = vld [vmem:[%s5242 + $0x68] sm:$0xff]
      %v5257 = vld [vmem:[%s5242 + $0x70] sm:$0xff]
      %v5258 = vld [vmem:[%s5242 + $0x78] sm:$0xff]
      %v5259 = vld [vmem:[%s5242 + $0x80] sm:$0xff]
      %v5260 = vld [vmem:[%s5242 + $0x88] sm:$0xff]
      %v5261 = vld [vmem:[%s5242 + $0x90] sm:$0xff]
      %v5262 = vld [vmem:[%s5242 + $0x98] sm:$0xff]
      %v5263 = vld [vmem:[%s5242 + $0xa0] sm:$0xff]
      %v5264 = vld [vmem:[%s5242 + $0xa8] sm:$0xff]
      %v5265 = vld [vmem:[%s5242 + $0xb0] sm:$0xff]
      %v5266 = vld [vmem:[%s5242 + $0xb8] sm:$0xff]
      %v5267 = vsel %vm198, %v5178, 0
      %v5269 = vsel %vm198, %v5181, 0
      %v5271 = vsel %vm198, %v5184, 0
      %v5273 = vsel %vm198, %v5187, 0
      %v5275 = vsel %vm198, %v5190, 0
      %v5277 = vsel %vm198, %v5193, 0
      %v5279 = vsel %vm198, %v5196, 0
      %v5281 = vsel %vm198, %v5240, 0
      %5283 = vmatprep.subr.mxu0 0.0
      %5284 = vmatpush1.msra.mxu0 %v5243
      %5285 = vmatprep.subr.mxu0 0.0
      %5286 = vmatpush1.msra.mxu0 %v5244
      %5287 = vmatprep.subr.mxu0 0.0
      %5288 = vmatpush1.msra.mxu0 %v5245
      %5289 = vmatprep.subr.mxu0 0.0
      %5290 = vmatpush1.msra.mxu0 %v5246
      %5291 = vmatprep.subr.mxu0 0.0
      %5292 = vmatpush1.msra.mxu0 %v5247
      %5293 = vmatprep.subr.mxu0 0.0
      %5294 = vmatpush1.msra.mxu0 %v5248
      %5295 = vmatprep.subr.mxu0 0.0
      %5296 = vmatpush1.msra.mxu0 %v5249
      %5297 = vmatprep.subr.mxu0 0.0
      %5298 = vmatpush1.msra.mxu0 %v5250
      %5299 = vmatprep.subr.mxu0 0.0
      %5300 = vmatpush1.msra.mxu0 %v5251
      %5301 = vmatprep.subr.mxu0 0.0
      %5302 = vmatpush1.msra.mxu0 %v5252
      %5303 = vmatprep.subr.mxu0 0.0
      %5304 = vmatpush1.msra.mxu0 %v5253
      %5305 = vmatprep.subr.mxu0 0.0
      %5306 = vmatpush1.msra.mxu0 %v5254
      %5307 = vmatprep.subr.mxu0 0.0
      %5308 = vmatpush1.msra.mxu0 %v5255
      %5309 = vmatprep.subr.mxu0 0.0
      %5310 = vmatpush1.msra.mxu0 %v5256
      %5311 = vmatprep.subr.mxu0 0.0
      %5312 = vmatpush1.msra.mxu0 %v5257
      %5313 = vmatprep.subr.mxu0 0.0
      %5314 = vmatpush1.msra.mxu0 %v5258
      %5315 = vmatprep.subr.mxu0 0.0
      %5316 = vmatpush1.msra.mxu0 %v5259
      %5317 = vmatprep.subr.mxu0 0.0
      %5318 = vmatpush1.msra.mxu0 %v5260
      %5319 = vmatprep.subr.mxu0 0.0
      %5320 = vmatpush1.msra.mxu0 %v5261
      %5321 = vmatprep.subr.mxu0 0.0
      %5322 = vmatpush1.msra.mxu0 %v5262
      %5323 = vmatprep.subr.mxu0 0.0
      %5324 = vmatpush1.msra.mxu0 %v5263
      %5325 = vmatprep.subr.mxu0 0.0
      %5326 = vmatpush1.msra.mxu0 %v5264
      %5327 = vmatprep.subr.mxu0 0.0
      %5328 = vmatpush1.msra.mxu0 %v5265
      %5329 = vmatprep.subr.mxu0 0.0
      %5330 = vmatpush1.msra.mxu0 %v5266
      %5331 = vmatprep.subr.mxu0 0.0
      %5332 = vmatpush1.msra.mxu0 0.0
      %5333 = vmatprep.subr.mxu0 0.0
      %5334 = vmatpush1.msra.mxu0 0.0
      %5335 = vmatprep.subr.mxu0 0.0
      %5336 = vmatpush1.msra.mxu0 0.0
      %5337 = vmatprep.subr.mxu0 0.0
      %5338 = vmatpush1.msra.mxu0 0.0
      %5339 = vmatprep.subr.mxu0 0.0
      %5340 = vmatpush1.msra.mxu0 0.0
      %5341 = vmatprep.subr.mxu0 0.0
      %5342 = vmatpush1.msra.mxu0 0.0
      %5343 = vmatprep.subr.mxu0 0.0
      %5344 = vmatpush1.msra.mxu0 0.0
      %5345 = vmatprep.subr.mxu0 0.0
      %5346 = vmatpush1.msra.mxu0 0.0
      %5347 = vmatprep.mubr.f32.mxu0 %v5267
      %5348 = vmatmul.mubr.f32.gmra.mrb[0].mxu0 %v5198
      %v5349 = vpop.f32.mrb[0].mxu0
      %v5350 = vadd.f32 0.0, %v5349
      %v5351 = vpop.f32.mrb[0].mxu0
      %5352 = vmatprep.mubr.f32.mxu0 %v5269
      %5353 = vmatmul.mubr.f32.gmra.mrb[0].mxu0 %v5199
      %v5354 = vpop.f32.mrb[0].mxu0
      %v5355 = vadd.f32 0.0, %v5354
      %v5356 = vpop.f32.mrb[0].mxu0
      %5357 = vmatprep.mubr.f32.mxu0 %v5271
      %5358 = vmatmul.mubr.f32.gmra.mrb[0].mxu0 %v5200
      %v5359 = vpop.f32.mrb[0].mxu0
      %v5360 = vadd.f32 0.0, %v5359
      %v5361 = vpop.f32.mrb[0].mxu0
      %5362 = vmatprep.mubr.f32.mxu0 %v5273
      %5363 = vmatmul.mubr.f32.gmra.mrb[0].mxu0 %v5201
      %v5364 = vpop.f32.mrb[0].mxu0
      %v5365 = vadd.f32 0.0, %v5364
      %v5366 = vpop.f32.mrb[0].mxu0
      %5367 = vmatprep.mubr.f32.mxu0 %v5275
      %5368 = vmatmul.mubr.f32.gmra.mrb[0].mxu0 %v5202
      %v5369 = vpop.f32.mrb[0].mxu0
      %v5370 = vadd.f32 0.0, %v5369
      %v5371 = vpop.f32.mrb[0].mxu0
      %5372 = vmatprep.mubr.f32.mxu0 %v5277
      %5373 = vmatmul.mubr.f32.gmra.mrb[0].mxu0 %v5203
      %v5374 = vpop.f32.mrb[0].mxu0
      %v5375 = vadd.f32 0.0, %v5374
      %v5376 = vpop.f32.mrb[0].mxu0
      %5377 = vmatprep.mubr.f32.mxu0 %v5279
      %5378 = vmatmul.mubr.f32.gmra.mrb[0].mxu0 %v5204
      %v5379 = vpop.f32.mrb[0].mxu0
      %v5380 = vadd.f32 0.0, %v5379
      %v5381 = vpop.f32.mrb[0].mxu0
      %5382 = vmatprep.mubr.f32.mxu0 %v5281
      %5383 = vmatmul.mubr.f32.gmra.mrb[0].mxu0 %v5241
      %v5384 = vpop.f32.mrb[0].mxu0
      %v5385 = vadd.f32 0.0, %v5384
      %v5386 = vpop.f32.mrb[0].mxu0
      %5387 = vdwg.mxu0
      %v5388 = vsel %vm198, %v5175, 0
      %5390 = vmatprep.subr.mxu0 0.0
      %5391 = vmatpush1.msra.mxu0 %v5206
      %5392 = vmatprep.subr.mxu0 0.0
      %5393 = vmatpush1.msra.mxu0 %v5207
      %5394 = vmatprep.subr.mxu0 0.0
      %5395 = vmatpush1.msra.mxu0 %v5208
      %5396 = vmatprep.subr.mxu0 0.0
      %5397 = vmatpush1.msra.mxu0 %v5209
      %5398 = vmatprep.subr.mxu0 0.0
      %5399 = vmatpush1.msra.mxu0 %v5210
      %5400 = vmatprep.subr.mxu0 0.0
      %5401 = vmatpush1.msra.mxu0 %v5211
      %5402 = vmatprep.subr.mxu0 0.0
      %5403 = vmatpush1.msra.mxu0 %v5212
      %5404 = vmatprep.subr.mxu0 0.0
      %5405 = vmatpush1.msra.mxu0 %v5213
      %5406 = vmatprep.subr.mxu0 0.0
      %5407 = vmatpush1.msra.mxu0 %v5214
      %5408 = vmatprep.subr.mxu0 0.0
      %5409 = vmatpush1.msra.mxu0 %v5215
      %5410 = vmatprep.subr.mxu0 0.0
      %5411 = vmatpush1.msra.mxu0 %v5216
      %5412 = vmatprep.subr.mxu0 0.0
      %5413 = vmatpush1.msra.mxu0 %v5217
      %5414 = vmatprep.subr.mxu0 0.0
      %5415 = vmatpush1.msra.mxu0 %v5218
      %5416 = vmatprep.subr.mxu0 0.0
      %5417 = vmatpush1.msra.mxu0 %v5219
      %5418 = vmatprep.subr.mxu0 0.0
      %5419 = vmatpush1.msra.mxu0 %v5220
      %5420 = vmatprep.subr.mxu0 0.0
      %5421 = vmatpush1.msra.mxu0 %v5221
      %5422 = vmatprep.subr.mxu0 0.0
      %5423 = vmatpush1.msra.mxu0 %v5222
      %5424 = vmatprep.subr.mxu0 0.0
      %5425 = vmatpush1.msra.mxu0 %v5223
      %5426 = vmatprep.subr.mxu0 0.0
      %5427 = vmatpush1.msra.mxu0 %v5224
      %5428 = vmatprep.subr.mxu0 0.0
      %5429 = vmatpush1.msra.mxu0 %v5225
      %5430 = vmatprep.subr.mxu0 0.0
      %5431 = vmatpush1.msra.mxu0 %v5226
      %5432 = vmatprep.subr.mxu0 0.0
      %5433 = vmatpush1.msra.mxu0 %v5227
      %5434 = vmatprep.subr.mxu0 0.0
      %5435 = vmatpush1.msra.mxu0 %v5228
      %5436 = vmatprep.subr.mxu0 0.0
      %5437 = vmatpush1.msra.mxu0 %v5229
      %5438 = vmatprep.subr.mxu0 0.0
      %5439 = vmatpush1.msra.mxu0 0.0
      %5440 = vmatprep.subr.mxu0 0.0
      %5441 = vmatpush1.msra.mxu0 0.0
      %5442 = vmatprep.subr.mxu0 0.0
      %5443 = vmatpush1.msra.mxu0 0.0
      %5444 = vmatprep.subr.mxu0 0.0
      %5445 = vmatpush1.msra.mxu0 0.0
      %5446 = vmatprep.subr.mxu0 0.0
      %5447 = vmatpush1.msra.mxu0 0.0
      %5448 = vmatprep.subr.mxu0 0.0
      %5449 = vmatpush1.msra.mxu0 0.0
      %5450 = vmatprep.subr.mxu0 0.0
      %5451 = vmatpush1.msra.mxu0 0.0
      %5452 = vmatprep.subr.mxu0 0.0
      %5453 = vmatpush1.msra.mxu0 0.0
      %5454 = vmatprep.mubr.f32.mxu0 %v5388
      %5455 = vmatmul.mubr.f32.gmra.mrb[0].mxu0 %v5197
      %v5456 = vpop.f32.mrb[0].mxu0
      %v5457 = vadd.f32 %v5350, %v5456
      %v5458 = vpop.f32.mrb[0].mxu0
      %5459 = vmatprep.mubr.f32.mxu0 %v5267
      %5460 = vmatmul.mubr.f32.gmra.mrb[0].mxu0 %v5198
      %v5461 = vpop.f32.mrb[0].mxu0
      %v5462 = vadd.f32 %v5355, %v5461
      %v5463 = vpop.f32.mrb[0].mxu0
      %5464 = vmatprep.mubr.f32.mxu0 %v5269
      %5465 = vmatmul.mubr.f32.gmra.mrb[0].mxu0 %v5199
      %v5466 = vpop.f32.mrb[0].mxu0
      %v5467 = vadd.f32 %v5360, %v5466
      %v5468 = vpop.f32.mrb[0].mxu0
      %5469 = vmatprep.mubr.f32.mxu0 %v5271
      %5470 = vmatmul.mubr.f32.gmra.mrb[0].mxu0 %v5200
      %v5471 = vpop.f32.mrb[0].mxu0
      %v5472 = vadd.f32 %v5365, %v5471
      %v5473 = vpop.f32.mrb[0].mxu0
      %5474 = vmatprep.mubr.f32.mxu0 %v5273
      %5475 = vmatmul.mubr.f32.gmra.mrb[0].mxu0 %v5201
      %v5476 = vpop.f32.mrb[0].mxu0
      %v5477 = vadd.f32 %v5370, %v5476
      %v5478 = vpop.f32.mrb[0].mxu0
      %5479 = vmatprep.mubr.f32.mxu0 %v5275
      %5480 = vmatmul.mubr.f32.gmra.mrb[0].mxu0 %v5202
      %v5481 = vpop.f32.mrb[0].mxu0
      %v5482 = vadd.f32 %v5375, %v5481
      %v5483 = vpop.f32.mrb[0].mxu0
      %5484 = vmatprep.mubr.f32.mxu0 %v5277
      %5485 = vmatmul.mubr.f32.gmra.mrb[0].mxu0 %v5203
      %v5486 = vpop.f32.mrb[0].mxu0
      %v5487 = vadd.f32 %v5380, %v5486
      %v5488 = vpop.f32.mrb[0].mxu0
      %5489 = vmatprep.mubr.f32.mxu0 %v5279
      %5490 = vmatmul.mubr.f32.gmra.mrb[0].mxu0 %v5204
      %v5491 = vpop.f32.mrb[0].mxu0
      %v5492 = vadd.f32 %v5385, %v5491
      %v5493 = vpop.f32.mrb[0].mxu0
      %5494 = vdwg.mxu0
      %v5497 = vrot.slane %v5107, 1
      %v5498 = vrot.slane %v5108, 1
      %v5499 = vsel %vm276, %v5497, %v5498
      %5500 = vrot.lane.b32.xlu0 %v5499, 64
      %v5501 = vpop.permute.xlu0 %5500
      %v5503 = vrot.slane %v5107, 2
      %v5504 = vrot.slane %v5108, 2
      %v5505 = vsel %vm325, %v5503, %v5504
      %v5506 = vsel %vm198, %v5107, %v5501
      %s5507 = scalar_lea.vmem %s1, 4992
      %v5508 = vld [vmem:[%s5507] sm:$0xff]
      %v5509 = vld [vmem:[%s5507 + $0x8] sm:$0xff]
      %v5510 = vld [vmem:[%s5507 + $0x10] sm:$0xff]
      %v5511 = vld [vmem:[%s5507 + $0x18] sm:$0xff]
      %v5512 = vld [vmem:[%s5507 + $0x20] sm:$0xff]
      %v5513 = vld [vmem:[%s5507 + $0x28] sm:$0xff]
      %v5514 = vld [vmem:[%s5507 + $0x30] sm:$0xff]
      %v5515 = vld [vmem:[%s5507 + $0x38] sm:$0xff]
      %v5516 = vld [vmem:[%s5507 + $0x40] sm:$0xff]
      %v5517 = vld [vmem:[%s5507 + $0x48] sm:$0xff]
      %v5518 = vld [vmem:[%s5507 + $0x50] sm:$0xff]
      %v5519 = vld [vmem:[%s5507 + $0x58] sm:$0xff]
      %v5520 = vld [vmem:[%s5507 + $0x60] sm:$0xff]
      %v5521 = vld [vmem:[%s5507 + $0x68] sm:$0xff]
      %v5522 = vld [vmem:[%s5507 + $0x70] sm:$0xff]
      %v5523 = vld [vmem:[%s5507 + $0x78] sm:$0xff]
      %v5524 = vld [vmem:[%s5507 + $0x80] sm:$0xff]
      %v5525 = vld [vmem:[%s5507 + $0x88] sm:$0xff]
      %v5526 = vld [vmem:[%s5507 + $0x90] sm:$0xff]
      %v5527 = vld [vmem:[%s5507 + $0x98] sm:$0xff]
      %v5528 = vld [vmem:[%s5507 + $0xa0] sm:$0xff]
      %v5529 = vld [vmem:[%s5507 + $0xa8] sm:$0xff]
      %v5530 = vld [vmem:[%s5507 + $0xb0] sm:$0xff]
      %v5531 = vld [vmem:[%s5507 + $0xb8] sm:$0xff]
      %v5532 = vsel %vm198, %v5505, 0
      %5534 = vmatprep.subr.mxu0 0.0
      %5535 = vmatpush1.msra.mxu0 %v5508
      %5536 = vmatprep.subr.mxu0 0.0
      %5537 = vmatpush1.msra.mxu0 %v5509
      %5538 = vmatprep.subr.mxu0 0.0
      %5539 = vmatpush1.msra.mxu0 %v5510
      %5540 = vmatprep.subr.mxu0 0.0
      %5541 = vmatpush1.msra.mxu0 %v5511
      %5542 = vmatprep.subr.mxu0 0.0
      %5543 = vmatpush1.msra.mxu0 %v5512
      %5544 = vmatprep.subr.mxu0 0.0
      %5545 = vmatpush1.msra.mxu0 %v5513
      %5546 = vmatprep.subr.mxu0 0.0
      %5547 = vmatpush1.msra.mxu0 %v5514
      %5548 = vmatprep.subr.mxu0 0.0
      %5549 = vmatpush1.msra.mxu0 %v5515
      %5550 = vmatprep.subr.mxu0 0.0
      %5551 = vmatpush1.msra.mxu0 %v5516
      %5552 = vmatprep.subr.mxu0 0.0
      %5553 = vmatpush1.msra.mxu0 %v5517
      %5554 = vmatprep.subr.mxu0 0.0
      %5555 = vmatpush1.msra.mxu0 %v5518
      %5556 = vmatprep.subr.mxu0 0.0
      %5557 = vmatpush1.msra.mxu0 %v5519
      %5558 = vmatprep.subr.mxu0 0.0
      %5559 = vmatpush1.msra.mxu0 %v5520
      %5560 = vmatprep.subr.mxu0 0.0
      %5561 = vmatpush1.msra.mxu0 %v5521
      %5562 = vmatprep.subr.mxu0 0.0
      %5563 = vmatpush1.msra.mxu0 %v5522
      %5564 = vmatprep.subr.mxu0 0.0
      %5565 = vmatpush1.msra.mxu0 %v5523
      %5566 = vmatprep.subr.mxu0 0.0
      %5567 = vmatpush1.msra.mxu0 %v5524
      %5568 = vmatprep.subr.mxu0 0.0
      %5569 = vmatpush1.msra.mxu0 %v5525
      %5570 = vmatprep.subr.mxu0 0.0
      %5571 = vmatpush1.msra.mxu0 %v5526
      %5572 = vmatprep.subr.mxu0 0.0
      %5573 = vmatpush1.msra.mxu0 %v5527
      %5574 = vmatprep.subr.mxu0 0.0
      %5575 = vmatpush1.msra.mxu0 %v5528
      %5576 = vmatprep.subr.mxu0 0.0
      %5577 = vmatpush1.msra.mxu0 %v5529
      %5578 = vmatprep.subr.mxu0 0.0
      %5579 = vmatpush1.msra.mxu0 %v5530
      %5580 = vmatprep.subr.mxu0 0.0
      %5581 = vmatpush1.msra.mxu0 %v5531
      %5582 = vmatprep.subr.mxu0 0.0
      %5583 = vmatpush1.msra.mxu0 0.0
      %5584 = vmatprep.subr.mxu0 0.0
      %5585 = vmatpush1.msra.mxu0 0.0
      %5586 = vmatprep.subr.mxu0 0.0
      %5587 = vmatpush1.msra.mxu0 0.0
      %5588 = vmatprep.subr.mxu0 0.0
      %5589 = vmatpush1.msra.mxu0 0.0
      %5590 = vmatprep.subr.mxu0 0.0
      %5591 = vmatpush1.msra.mxu0 0.0
      %5592 = vmatprep.subr.mxu0 0.0
      %5593 = vmatpush1.msra.mxu0 0.0
      %5594 = vmatprep.subr.mxu0 0.0
      %5595 = vmatpush1.msra.mxu0 0.0
      %5596 = vmatprep.subr.mxu0 0.0
      %5597 = vmatpush1.msra.mxu0 0.0
      %5598 = vmatprep.mubr.f32.mxu0 %v5269
      %5599 = vmatmul.mubr.f32.gmra.mrb[0].mxu0 %v5199
      %v5600 = vpop.f32.mrb[0].mxu0
      %v5601 = vadd.f32 0.0, %v5600
      %v5602 = vpop.f32.mrb[0].mxu0
      %5603 = vmatprep.mubr.f32.mxu0 %v5271
      %5604 = vmatmul.mubr.f32.gmra.mrb[0].mxu0 %v5200
      %v5605 = vpop.f32.mrb[0].mxu0
      %v5606 = vadd.f32 0.0, %v5605
      %v5607 = vpop.f32.mrb[0].mxu0
      %5608 = vmatprep.mubr.f32.mxu0 %v5273
      %5609 = vmatmul.mubr.f32.gmra.mrb[0].mxu0 %v5201
      %v5610 = vpop.f32.mrb[0].mxu0
      %v5611 = vadd.f32 0.0, %v5610
      %v5612 = vpop.f32.mrb[0].mxu0
      %5613 = vmatprep.mubr.f32.mxu0 %v5275
      %5614 = vmatmul.mubr.f32.gmra.mrb[0].mxu0 %v5202
      %v5615 = vpop.f32.mrb[0].mxu0
      %v5616 = vadd.f32 0.0, %v5615
      %v5617 = vpop.f32.mrb[0].mxu0
      %5618 = vmatprep.mubr.f32.mxu0 %v5277
      %5619 = vmatmul.mubr.f32.gmra.mrb[0].mxu0 %v5203
      %v5620 = vpop.f32.mrb[0].mxu0
      %v5621 = vadd.f32 0.0, %v5620
      %v5622 = vpop.f32.mrb[0].mxu0
      %5623 = vmatprep.mubr.f32.mxu0 %v5279
      %5624 = vmatmul.mubr.f32.gmra.mrb[0].mxu0 %v5204
      %v5625 = vpop.f32.mrb[0].mxu0
      %v5626 = vadd.f32 0.0, %v5625
      %v5627 = vpop.f32.mrb[0].mxu0
      %5628 = vmatprep.mubr.f32.mxu0 %v5281
      %5629 = vmatmul.mubr.f32.gmra.mrb[0].mxu0 %v5241
      %v5630 = vpop.f32.mrb[0].mxu0
      %v5631 = vadd.f32 0.0, %v5630
      %v5632 = vpop.f32.mrb[0].mxu0
      %5633 = vmatprep.mubr.f32.mxu0 %v5532
      %5634 = vmatmul.mubr.f32.gmra.mrb[0].mxu0 %v5506
      %v5635 = vpop.f32.mrb[0].mxu0
      %v5636 = vadd.f32 0.0, %v5635
      %v5637 = vpop.f32.mrb[0].mxu0
      %5638 = vdwg.mxu0
      %v5639 = vadd.f32 %v5457, %v5601
      %v5640 = vadd.f32 %v5462, %v5606
      %v5641 = vadd.f32 %v5467, %v5611
      %v5642 = vadd.f32 %v5472, %v5616
      %v5643 = vadd.f32 %v5477, %v5621
      %v5644 = vadd.f32 %v5482, %v5626
      %v5645 = vadd.f32 %v5487, %v5631
      %v5646 = vadd.f32 %v5492, %v5636
      %s5647 = scalar_lea.vmem %s2, 8
      %v5648 = vld [vmem:[%s5647] sm:$0x1]
      %v5650 = vlaneseq
      %v5651 = vshrl.u32 %v5650, 7
      %v5652 = vsub.s32 0, %v5651
      %v5653 = vrot.slane %v5648, %v5652
      %v5655 = vmul.f32 %v5639, %v5653
      %v5656 = vmul.f32 %v5640, %v5653
      %v5657 = vmul.f32 %v5641, %v5653
      %v5658 = vmul.f32 %v5642, %v5653
      %v5659 = vmul.f32 %v5643, %v5653
      %v5660 = vmul.f32 %v5644, %v5653
      %v5661 = vmul.f32 %v5645, %v5653
      %v5662 = vmul.f32 %v5646, %v5653
      %s5663 = scalar_lea.vmem %s3, 8
      %v5664 = vld [vmem:[%s5663] sm:$0x1]
      %v5666 = vlaneseq
      %v5667 = vshrl.u32 %v5666, 7
      %v5668 = vsub.s32 0, %v5667
      %v5669 = vrot.slane %v5664, %v5668
      %v5671 = vadd.f32 %v5655, %v5669
      %v5672 = vadd.f32 %v5656, %v5669
      %v5673 = vadd.f32 %v5657, %v5669
      %v5674 = vadd.f32 %v5658, %v5669
      %v5675 = vadd.f32 %v5659, %v5669
      %v5676 = vadd.f32 %v5660, %v5669
      %v5677 = vadd.f32 %v5661, %v5669
      %v5678 = vadd.f32 %v5662, %v5669
      %v5679 = vmax.f32 %v5671, 0.0
      %v5680 = vmax.f32 %v5672, 0.0
      %v5681 = vmax.f32 %v5673, 0.0
      %v5682 = vmax.f32 %v5674, 0.0
      %v5683 = vmax.f32 %v5675, 0.0
      %v5684 = vmax.f32 %v5676, 0.0
      %v5685 = vmax.f32 %v5677, 0.0
      %v5686 = vmax.f32 %v5678, 0.0
      %5687 = vst.msk [vmem:[%s837 + $0x1] sm:$0xff] %vm198, %v5679
      %5688 = vst.msk [vmem:[%s837 + $0x11] sm:$0xff] %vm198, %v5680
      %5689 = vst.msk [vmem:[%s837 + $0x21] sm:$0xff] %vm198, %v5681
      %5690 = vst.msk [vmem:[%s837 + $0x31] sm:$0xff] %vm198, %v5682
      %5691 = vst.msk [vmem:[%s837 + $0x41] sm:$0xff] %vm198, %v5683
      %5692 = vst.msk [vmem:[%s837 + $0x51] sm:$0xff] %vm198, %v5684
      %5693 = vst.msk [vmem:[%s837 + $0x61] sm:$0xff] %vm198, %v5685
      %5694 = vst.msk [vmem:[%s837 + $0x71] sm:$0xff] %vm198, %v5686
      %v5695 = vld [vmem:[#allocation2] sm:$0xff]
      %v5696 = vld [vmem:[#allocation2 + $0x8] sm:$0x3]
      %v5697 = vld [vmem:[#allocation2 + $0x10] sm:$0xff]
      %v5698 = vld [vmem:[#allocation2 + $0x18] sm:$0x3]
      %v5699 = vld [vmem:[#allocation2 + $0x20] sm:$0xff]
      %v5700 = vld [vmem:[#allocation2 + $0x28] sm:$0x3]
      %v5701 = vld [vmem:[#allocation2 + $0x30] sm:$0xff]
      %v5702 = vld [vmem:[#allocation2 + $0x38] sm:$0x3]
      %v5703 = vld [vmem:[#allocation2 + $0x40] sm:$0xff]
      %v5704 = vld [vmem:[#allocation2 + $0x48] sm:$0x3]
      %v5705 = vld [vmem:[#allocation2 + $0x50] sm:$0xff]
      %v5706 = vld [vmem:[#allocation2 + $0x58] sm:$0x3]
      %v5707 = vld [vmem:[#allocation2 + $0x60] sm:$0xff]
      %v5708 = vld [vmem:[#allocation2 + $0x68] sm:$0x3]
      %v5709 = vld [vmem:[#allocation2 + $0x70] sm:$0xff]
      %v5710 = vld [vmem:[#allocation2 + $0x78] sm:$0x3]
      %v5711 = vld [vmem:[#allocation2 + $0x80] sm:$0xff]
      %v5712 = vld [vmem:[#allocation2 + $0x88] sm:$0x3]
      %v5713 = vld [vmem:[#allocation2 + $0x90] sm:$0xff]
      %v5714 = vld [vmem:[#allocation2 + $0x98] sm:$0x3]
      %v5731 = vrot.slane %v5695, 1
      %v5732 = vrot.slane %v5696, 1
      %v5733 = vsel %vm276, %v5731, %v5732
      %v5734 = vrot.slane %v5697, 1
      %v5735 = vrot.slane %v5698, 1
      %v5736 = vsel %vm276, %v5734, %v5735
      %v5737 = vrot.slane %v5699, 1
      %v5738 = vrot.slane %v5700, 1
      %v5739 = vsel %vm276, %v5737, %v5738
      %v5740 = vrot.slane %v5701, 1
      %v5741 = vrot.slane %v5702, 1
      %v5742 = vsel %vm276, %v5740, %v5741
      %v5743 = vrot.slane %v5703, 1
      %v5744 = vrot.slane %v5704, 1
      %v5745 = vsel %vm276, %v5743, %v5744
      %v5746 = vrot.slane %v5705, 1
      %v5747 = vrot.slane %v5706, 1
      %v5748 = vsel %vm276, %v5746, %v5747
      %v5749 = vrot.slane %v5707, 1
      %v5750 = vrot.slane %v5708, 1
      %v5751 = vsel %vm276, %v5749, %v5750
      %v5752 = vrot.slane %v5709, 1
      %v5753 = vrot.slane %v5710, 1
      %v5754 = vsel %vm276, %v5752, %v5753
      %5755 = vrot.lane.b32.xlu0 %v5733, 64
      %v5756 = vpop.permute.xlu0 %5755
      %5757 = vrot.lane.b32.xlu0 %v5736, 64
      %v5758 = vpop.permute.xlu0 %5757
      %5759 = vrot.lane.b32.xlu0 %v5739, 64
      %v5760 = vpop.permute.xlu0 %5759
      %5761 = vrot.lane.b32.xlu0 %v5742, 64
      %v5762 = vpop.permute.xlu0 %5761
      %5763 = vrot.lane.b32.xlu0 %v5745, 64
      %v5764 = vpop.permute.xlu0 %5763
      %5765 = vrot.lane.b32.xlu0 %v5748, 64
      %v5766 = vpop.permute.xlu0 %5765
      %5767 = vrot.lane.b32.xlu0 %v5751, 64
      %v5768 = vpop.permute.xlu0 %5767
      %5769 = vrot.lane.b32.xlu0 %v5754, 64
      %v5770 = vpop.permute.xlu0 %5769
      %v5779 = vrot.slane %v5695, 2
      %v5780 = vrot.slane %v5696, 2
      %v5781 = vsel %vm325, %v5779, %v5780
      %v5782 = vrot.slane %v5697, 2
      %v5783 = vrot.slane %v5698, 2
      %v5784 = vsel %vm325, %v5782, %v5783
      %v5785 = vrot.slane %v5699, 2
      %v5786 = vrot.slane %v5700, 2
      %v5787 = vsel %vm325, %v5785, %v5786
      %v5788 = vrot.slane %v5701, 2
      %v5789 = vrot.slane %v5702, 2
      %v5790 = vsel %vm325, %v5788, %v5789
      %v5791 = vrot.slane %v5703, 2
      %v5792 = vrot.slane %v5704, 2
      %v5793 = vsel %vm325, %v5791, %v5792
      %v5794 = vrot.slane %v5705, 2
      %v5795 = vrot.slane %v5706, 2
      %v5796 = vsel %vm325, %v5794, %v5795
      %v5797 = vrot.slane %v5707, 2
      %v5798 = vrot.slane %v5708, 2
      %v5799 = vsel %vm325, %v5797, %v5798
      %v5800 = vrot.slane %v5709, 2
      %v5801 = vrot.slane %v5710, 2
      %v5802 = vsel %vm325, %v5800, %v5801
      %v5803 = vsel %vm198, %v5695, %v5756
      %v5804 = vsel %vm198, %v5697, %v5758
      %v5805 = vsel %vm198, %v5699, %v5760
      %v5806 = vsel %vm198, %v5701, %v5762
      %v5807 = vsel %vm198, %v5703, %v5764
      %v5808 = vsel %vm198, %v5705, %v5766
      %v5809 = vsel %vm198, %v5707, %v5768
      %v5810 = vsel %vm198, %v5709, %v5770
      %s5811 = scalar_lea.vmem %s1, 5184
      %v5812 = vld [vmem:[%s5811] sm:$0xff]
      %v5813 = vld [vmem:[%s5811 + $0x8] sm:$0xff]
      %v5814 = vld [vmem:[%s5811 + $0x10] sm:$0xff]
      %v5815 = vld [vmem:[%s5811 + $0x18] sm:$0xff]
      %v5816 = vld [vmem:[%s5811 + $0x20] sm:$0xff]
      %v5817 = vld [vmem:[%s5811 + $0x28] sm:$0xff]
      %v5818 = vld [vmem:[%s5811 + $0x30] sm:$0xff]
      %v5819 = vld [vmem:[%s5811 + $0x38] sm:$0xff]
      %v5820 = vld [vmem:[%s5811 + $0x40] sm:$0xff]
      %v5821 = vld [vmem:[%s5811 + $0x48] sm:$0xff]
      %v5822 = vld [vmem:[%s5811 + $0x50] sm:$0xff]
      %v5823 = vld [vmem:[%s5811 + $0x58] sm:$0xff]
      %v5824 = vld [vmem:[%s5811 + $0x60] sm:$0xff]
      %v5825 = vld [vmem:[%s5811 + $0x68] sm:$0xff]
      %v5826 = vld [vmem:[%s5811 + $0x70] sm:$0xff]
      %v5827 = vld [vmem:[%s5811 + $0x78] sm:$0xff]
      %v5828 = vld [vmem:[%s5811 + $0x80] sm:$0xff]
      %v5829 = vld [vmem:[%s5811 + $0x88] sm:$0xff]
      %v5830 = vld [vmem:[%s5811 + $0x90] sm:$0xff]
      %v5831 = vld [vmem:[%s5811 + $0x98] sm:$0xff]
      %v5832 = vld [vmem:[%s5811 + $0xa0] sm:$0xff]
      %v5833 = vld [vmem:[%s5811 + $0xa8] sm:$0xff]
      %v5834 = vld [vmem:[%s5811 + $0xb0] sm:$0xff]
      %v5835 = vld [vmem:[%s5811 + $0xb8] sm:$0xff]
      %v5838 = vrot.slane %v5711, 1
      %v5839 = vrot.slane %v5712, 1
      %v5840 = vsel %vm276, %v5838, %v5839
      %5841 = vrot.lane.b32.xlu0 %v5840, 64
      %v5842 = vpop.permute.xlu0 %5841
      %v5844 = vrot.slane %v5711, 2
      %v5845 = vrot.slane %v5712, 2
      %v5846 = vsel %vm325, %v5844, %v5845
      %v5847 = vsel %vm198, %v5711, %v5842
      %s5848 = scalar_lea.vmem %s1, 5376
      %v5849 = vld [vmem:[%s5848] sm:$0xff]
      %v5850 = vld [vmem:[%s5848 + $0x8] sm:$0xff]
      %v5851 = vld [vmem:[%s5848 + $0x10] sm:$0xff]
      %v5852 = vld [vmem:[%s5848 + $0x18] sm:$0xff]
      %v5853 = vld [vmem:[%s5848 + $0x20] sm:$0xff]
      %v5854 = vld [vmem:[%s5848 + $0x28] sm:$0xff]
      %v5855 = vld [vmem:[%s5848 + $0x30] sm:$0xff]
      %v5856 = vld [vmem:[%s5848 + $0x38] sm:$0xff]
      %v5857 = vld [vmem:[%s5848 + $0x40] sm:$0xff]
      %v5858 = vld [vmem:[%s5848 + $0x48] sm:$0xff]
      %v5859 = vld [vmem:[%s5848 + $0x50] sm:$0xff]
      %v5860 = vld [vmem:[%s5848 + $0x58] sm:$0xff]
      %v5861 = vld [vmem:[%s5848 + $0x60] sm:$0xff]
      %v5862 = vld [vmem:[%s5848 + $0x68] sm:$0xff]
      %v5863 = vld [vmem:[%s5848 + $0x70] sm:$0xff]
      %v5864 = vld [vmem:[%s5848 + $0x78] sm:$0xff]
      %v5865 = vld [vmem:[%s5848 + $0x80] sm:$0xff]
      %v5866 = vld [vmem:[%s5848 + $0x88] sm:$0xff]
      %v5867 = vld [vmem:[%s5848 + $0x90] sm:$0xff]
      %v5868 = vld [vmem:[%s5848 + $0x98] sm:$0xff]
      %v5869 = vld [vmem:[%s5848 + $0xa0] sm:$0xff]
      %v5870 = vld [vmem:[%s5848 + $0xa8] sm:$0xff]
      %v5871 = vld [vmem:[%s5848 + $0xb0] sm:$0xff]
      %v5872 = vld [vmem:[%s5848 + $0xb8] sm:$0xff]
      %v5873 = vsel %vm198, %v5784, 0
      %v5875 = vsel %vm198, %v5787, 0
      %v5877 = vsel %vm198, %v5790, 0
      %v5879 = vsel %vm198, %v5793, 0
      %v5881 = vsel %vm198, %v5796, 0
      %v5883 = vsel %vm198, %v5799, 0
      %v5885 = vsel %vm198, %v5802, 0
      %v5887 = vsel %vm198, %v5846, 0
      %5889 = vmatprep.subr.mxu0 0.0
      %5890 = vmatpush1.msra.mxu0 %v5849
      %5891 = vmatprep.subr.mxu0 0.0
      %5892 = vmatpush1.msra.mxu0 %v5850
      %5893 = vmatprep.subr.mxu0 0.0
      %5894 = vmatpush1.msra.mxu0 %v5851
      %5895 = vmatprep.subr.mxu0 0.0
      %5896 = vmatpush1.msra.mxu0 %v5852
      %5897 = vmatprep.subr.mxu0 0.0
      %5898 = vmatpush1.msra.mxu0 %v5853
      %5899 = vmatprep.subr.mxu0 0.0
      %5900 = vmatpush1.msra.mxu0 %v5854
      %5901 = vmatprep.subr.mxu0 0.0
      %5902 = vmatpush1.msra.mxu0 %v5855
      %5903 = vmatprep.subr.mxu0 0.0
      %5904 = vmatpush1.msra.mxu0 %v5856
      %5905 = vmatprep.subr.mxu0 0.0
      %5906 = vmatpush1.msra.mxu0 %v5857
      %5907 = vmatprep.subr.mxu0 0.0
      %5908 = vmatpush1.msra.mxu0 %v5858
      %5909 = vmatprep.subr.mxu0 0.0
      %5910 = vmatpush1.msra.mxu0 %v5859
      %5911 = vmatprep.subr.mxu0 0.0
      %5912 = vmatpush1.msra.mxu0 %v5860
      %5913 = vmatprep.subr.mxu0 0.0
      %5914 = vmatpush1.msra.mxu0 %v5861
      %5915 = vmatprep.subr.mxu0 0.0
      %5916 = vmatpush1.msra.mxu0 %v5862
      %5917 = vmatprep.subr.mxu0 0.0
      %5918 = vmatpush1.msra.mxu0 %v5863
      %5919 = vmatprep.subr.mxu0 0.0
      %5920 = vmatpush1.msra.mxu0 %v5864
      %5921 = vmatprep.subr.mxu0 0.0
      %5922 = vmatpush1.msra.mxu0 %v5865
      %5923 = vmatprep.subr.mxu0 0.0
      %5924 = vmatpush1.msra.mxu0 %v5866
      %5925 = vmatprep.subr.mxu0 0.0
      %5926 = vmatpush1.msra.mxu0 %v5867
      %5927 = vmatprep.subr.mxu0 0.0
      %5928 = vmatpush1.msra.mxu0 %v5868
      %5929 = vmatprep.subr.mxu0 0.0
      %5930 = vmatpush1.msra.mxu0 %v5869
      %5931 = vmatprep.subr.mxu0 0.0
      %5932 = vmatpush1.msra.mxu0 %v5870
      %5933 = vmatprep.subr.mxu0 0.0
      %5934 = vmatpush1.msra.mxu0 %v5871
      %5935 = vmatprep.subr.mxu0 0.0
      %5936 = vmatpush1.msra.mxu0 %v5872
      %5937 = vmatprep.subr.mxu0 0.0
      %5938 = vmatpush1.msra.mxu0 0.0
      %5939 = vmatprep.subr.mxu0 0.0
      %5940 = vmatpush1.msra.mxu0 0.0
      %5941 = vmatprep.subr.mxu0 0.0
      %5942 = vmatpush1.msra.mxu0 0.0
      %5943 = vmatprep.subr.mxu0 0.0
      %5944 = vmatpush1.msra.mxu0 0.0
      %5945 = vmatprep.subr.mxu0 0.0
      %5946 = vmatpush1.msra.mxu0 0.0
      %5947 = vmatprep.subr.mxu0 0.0
      %5948 = vmatpush1.msra.mxu0 0.0
      %5949 = vmatprep.subr.mxu0 0.0
      %5950 = vmatpush1.msra.mxu0 0.0
      %5951 = vmatprep.subr.mxu0 0.0
      %5952 = vmatpush1.msra.mxu0 0.0
      %5953 = vmatprep.mubr.f32.mxu0 %v5873
      %5954 = vmatmul.mubr.f32.gmra.mrb[0].mxu0 %v5804
      %v5955 = vpop.f32.mrb[0].mxu0
      %v5956 = vadd.f32 0.0, %v5955
      %v5957 = vpop.f32.mrb[0].mxu0
      %5958 = vmatprep.mubr.f32.mxu0 %v5875
      %5959 = vmatmul.mubr.f32.gmra.mrb[0].mxu0 %v5805
      %v5960 = vpop.f32.mrb[0].mxu0
      %v5961 = vadd.f32 0.0, %v5960
      %v5962 = vpop.f32.mrb[0].mxu0
      %5963 = vmatprep.mubr.f32.mxu0 %v5877
      %5964 = vmatmul.mubr.f32.gmra.mrb[0].mxu0 %v5806
      %v5965 = vpop.f32.mrb[0].mxu0
      %v5966 = vadd.f32 0.0, %v5965
      %v5967 = vpop.f32.mrb[0].mxu0
      %5968 = vmatprep.mubr.f32.mxu0 %v5879
      %5969 = vmatmul.mubr.f32.gmra.mrb[0].mxu0 %v5807
      %v5970 = vpop.f32.mrb[0].mxu0
      %v5971 = vadd.f32 0.0, %v5970
      %v5972 = vpop.f32.mrb[0].mxu0
      %5973 = vmatprep.mubr.f32.mxu0 %v5881
      %5974 = vmatmul.mubr.f32.gmra.mrb[0].mxu0 %v5808
      %v5975 = vpop.f32.mrb[0].mxu0
      %v5976 = vadd.f32 0.0, %v5975
      %v5977 = vpop.f32.mrb[0].mxu0
      %5978 = vmatprep.mubr.f32.mxu0 %v5883
      %5979 = vmatmul.mubr.f32.gmra.mrb[0].mxu0 %v5809
      %v5980 = vpop.f32.mrb[0].mxu0
      %v5981 = vadd.f32 0.0, %v5980
      %v5982 = vpop.f32.mrb[0].mxu0
      %5983 = vmatprep.mubr.f32.mxu0 %v5885
      %5984 = vmatmul.mubr.f32.gmra.mrb[0].mxu0 %v5810
      %v5985 = vpop.f32.mrb[0].mxu0
      %v5986 = vadd.f32 0.0, %v5985
      %v5987 = vpop.f32.mrb[0].mxu0
      %5988 = vmatprep.mubr.f32.mxu0 %v5887
      %5989 = vmatmul.mubr.f32.gmra.mrb[0].mxu0 %v5847
      %v5990 = vpop.f32.mrb[0].mxu0
      %v5991 = vadd.f32 0.0, %v5990
      %v5992 = vpop.f32.mrb[0].mxu0
      %5993 = vdwg.mxu0
      %v5994 = vsel %vm198, %v5781, 0
      %5996 = vmatprep.subr.mxu0 0.0
      %5997 = vmatpush1.msra.mxu0 %v5812
      %5998 = vmatprep.subr.mxu0 0.0
      %5999 = vmatpush1.msra.mxu0 %v5813
      %6000 = vmatprep.subr.mxu0 0.0
      %6001 = vmatpush1.msra.mxu0 %v5814
      %6002 = vmatprep.subr.mxu0 0.0
      %6003 = vmatpush1.msra.mxu0 %v5815
      %6004 = vmatprep.subr.mxu0 0.0
      %6005 = vmatpush1.msra.mxu0 %v5816
      %6006 = vmatprep.subr.mxu0 0.0
      %6007 = vmatpush1.msra.mxu0 %v5817
      %6008 = vmatprep.subr.mxu0 0.0
      %6009 = vmatpush1.msra.mxu0 %v5818
      %6010 = vmatprep.subr.mxu0 0.0
      %6011 = vmatpush1.msra.mxu0 %v5819
      %6012 = vmatprep.subr.mxu0 0.0
      %6013 = vmatpush1.msra.mxu0 %v5820
      %6014 = vmatprep.subr.mxu0 0.0
      %6015 = vmatpush1.msra.mxu0 %v5821
      %6016 = vmatprep.subr.mxu0 0.0
      %6017 = vmatpush1.msra.mxu0 %v5822
      %6018 = vmatprep.subr.mxu0 0.0
      %6019 = vmatpush1.msra.mxu0 %v5823
      %6020 = vmatprep.subr.mxu0 0.0
      %6021 = vmatpush1.msra.mxu0 %v5824
      %6022 = vmatprep.subr.mxu0 0.0
      %6023 = vmatpush1.msra.mxu0 %v5825
      %6024 = vmatprep.subr.mxu0 0.0
      %6025 = vmatpush1.msra.mxu0 %v5826
      %6026 = vmatprep.subr.mxu0 0.0
      %6027 = vmatpush1.msra.mxu0 %v5827
      %6028 = vmatprep.subr.mxu0 0.0
      %6029 = vmatpush1.msra.mxu0 %v5828
      %6030 = vmatprep.subr.mxu0 0.0
      %6031 = vmatpush1.msra.mxu0 %v5829
      %6032 = vmatprep.subr.mxu0 0.0
      %6033 = vmatpush1.msra.mxu0 %v5830
      %6034 = vmatprep.subr.mxu0 0.0
      %6035 = vmatpush1.msra.mxu0 %v5831
      %6036 = vmatprep.subr.mxu0 0.0
      %6037 = vmatpush1.msra.mxu0 %v5832
      %6038 = vmatprep.subr.mxu0 0.0
      %6039 = vmatpush1.msra.mxu0 %v5833
      %6040 = vmatprep.subr.mxu0 0.0
      %6041 = vmatpush1.msra.mxu0 %v5834
      %6042 = vmatprep.subr.mxu0 0.0
      %6043 = vmatpush1.msra.mxu0 %v5835
      %6044 = vmatprep.subr.mxu0 0.0
      %6045 = vmatpush1.msra.mxu0 0.0
      %6046 = vmatprep.subr.mxu0 0.0
      %6047 = vmatpush1.msra.mxu0 0.0
      %6048 = vmatprep.subr.mxu0 0.0
      %6049 = vmatpush1.msra.mxu0 0.0
      %6050 = vmatprep.subr.mxu0 0.0
      %6051 = vmatpush1.msra.mxu0 0.0
      %6052 = vmatprep.subr.mxu0 0.0
      %6053 = vmatpush1.msra.mxu0 0.0
      %6054 = vmatprep.subr.mxu0 0.0
      %6055 = vmatpush1.msra.mxu0 0.0
      %6056 = vmatprep.subr.mxu0 0.0
      %6057 = vmatpush1.msra.mxu0 0.0
      %6058 = vmatprep.subr.mxu0 0.0
      %6059 = vmatpush1.msra.mxu0 0.0
      %6060 = vmatprep.mubr.f32.mxu0 %v5994
      %6061 = vmatmul.mubr.f32.gmra.mrb[0].mxu0 %v5803
      %v6062 = vpop.f32.mrb[0].mxu0
      %v6063 = vadd.f32 %v5956, %v6062
      %v6064 = vpop.f32.mrb[0].mxu0
      %6065 = vmatprep.mubr.f32.mxu0 %v5873
      %6066 = vmatmul.mubr.f32.gmra.mrb[0].mxu0 %v5804
      %v6067 = vpop.f32.mrb[0].mxu0
      %v6068 = vadd.f32 %v5961, %v6067
      %v6069 = vpop.f32.mrb[0].mxu0
      %6070 = vmatprep.mubr.f32.mxu0 %v5875
      %6071 = vmatmul.mubr.f32.gmra.mrb[0].mxu0 %v5805
      %v6072 = vpop.f32.mrb[0].mxu0
      %v6073 = vadd.f32 %v5966, %v6072
      %v6074 = vpop.f32.mrb[0].mxu0
      %6075 = vmatprep.mubr.f32.mxu0 %v5877
      %6076 = vmatmul.mubr.f32.gmra.mrb[0].mxu0 %v5806
      %v6077 = vpop.f32.mrb[0].mxu0
      %v6078 = vadd.f32 %v5971, %v6077
      %v6079 = vpop.f32.mrb[0].mxu0
      %6080 = vmatprep.mubr.f32.mxu0 %v5879
      %6081 = vmatmul.mubr.f32.gmra.mrb[0].mxu0 %v5807
      %v6082 = vpop.f32.mrb[0].mxu0
      %v6083 = vadd.f32 %v5976, %v6082
      %v6084 = vpop.f32.mrb[0].mxu0
      %6085 = vmatprep.mubr.f32.mxu0 %v5881
      %6086 = vmatmul.mubr.f32.gmra.mrb[0].mxu0 %v5808
      %v6087 = vpop.f32.mrb[0].mxu0
      %v6088 = vadd.f32 %v5981, %v6087
      %v6089 = vpop.f32.mrb[0].mxu0
      %6090 = vmatprep.mubr.f32.mxu0 %v5883
      %6091 = vmatmul.mubr.f32.gmra.mrb[0].mxu0 %v5809
      %v6092 = vpop.f32.mrb[0].mxu0
      %v6093 = vadd.f32 %v5986, %v6092
      %v6094 = vpop.f32.mrb[0].mxu0
      %6095 = vmatprep.mubr.f32.mxu0 %v5885
      %6096 = vmatmul.mubr.f32.gmra.mrb[0].mxu0 %v5810
      %v6097 = vpop.f32.mrb[0].mxu0
      %v6098 = vadd.f32 %v5991, %v6097
      %v6099 = vpop.f32.mrb[0].mxu0
      %6100 = vdwg.mxu0
      %v6103 = vrot.slane %v5713, 1
      %v6104 = vrot.slane %v5714, 1
      %v6105 = vsel %vm276, %v6103, %v6104
      %6106 = vrot.lane.b32.xlu0 %v6105, 64
      %v6107 = vpop.permute.xlu0 %6106
      %v6109 = vrot.slane %v5713, 2
      %v6110 = vrot.slane %v5714, 2
      %v6111 = vsel %vm325, %v6109, %v6110
      %v6112 = vsel %vm198, %v5713, %v6107
      %s6113 = scalar_lea.vmem %s1, 5568
      %v6114 = vld [vmem:[%s6113] sm:$0xff]
      %v6115 = vld [vmem:[%s6113 + $0x8] sm:$0xff]
      %v6116 = vld [vmem:[%s6113 + $0x10] sm:$0xff]
      %v6117 = vld [vmem:[%s6113 + $0x18] sm:$0xff]
      %v6118 = vld [vmem:[%s6113 + $0x20] sm:$0xff]
      %v6119 = vld [vmem:[%s6113 + $0x28] sm:$0xff]
      %v6120 = vld [vmem:[%s6113 + $0x30] sm:$0xff]
      %v6121 = vld [vmem:[%s6113 + $0x38] sm:$0xff]
      %v6122 = vld [vmem:[%s6113 + $0x40] sm:$0xff]
      %v6123 = vld [vmem:[%s6113 + $0x48] sm:$0xff]
      %v6124 = vld [vmem:[%s6113 + $0x50] sm:$0xff]
      %v6125 = vld [vmem:[%s6113 + $0x58] sm:$0xff]
      %v6126 = vld [vmem:[%s6113 + $0x60] sm:$0xff]
      %v6127 = vld [vmem:[%s6113 + $0x68] sm:$0xff]
      %v6128 = vld [vmem:[%s6113 + $0x70] sm:$0xff]
      %v6129 = vld [vmem:[%s6113 + $0x78] sm:$0xff]
      %v6130 = vld [vmem:[%s6113 + $0x80] sm:$0xff]
      %v6131 = vld [vmem:[%s6113 + $0x88] sm:$0xff]
      %v6132 = vld [vmem:[%s6113 + $0x90] sm:$0xff]
      %v6133 = vld [vmem:[%s6113 + $0x98] sm:$0xff]
      %v6134 = vld [vmem:[%s6113 + $0xa0] sm:$0xff]
      %v6135 = vld [vmem:[%s6113 + $0xa8] sm:$0xff]
      %v6136 = vld [vmem:[%s6113 + $0xb0] sm:$0xff]
      %v6137 = vld [vmem:[%s6113 + $0xb8] sm:$0xff]
      %v6138 = vsel %vm198, %v6111, 0
      %6140 = vmatprep.subr.mxu0 0.0
      %6141 = vmatpush1.msra.mxu0 %v6114
      %6142 = vmatprep.subr.mxu0 0.0
      %6143 = vmatpush1.msra.mxu0 %v6115
      %6144 = vmatprep.subr.mxu0 0.0
      %6145 = vmatpush1.msra.mxu0 %v6116
      %6146 = vmatprep.subr.mxu0 0.0
      %6147 = vmatpush1.msra.mxu0 %v6117
      %6148 = vmatprep.subr.mxu0 0.0
      %6149 = vmatpush1.msra.mxu0 %v6118
      %6150 = vmatprep.subr.mxu0 0.0
      %6151 = vmatpush1.msra.mxu0 %v6119
      %6152 = vmatprep.subr.mxu0 0.0
      %6153 = vmatpush1.msra.mxu0 %v6120
      %6154 = vmatprep.subr.mxu0 0.0
      %6155 = vmatpush1.msra.mxu0 %v6121
      %6156 = vmatprep.subr.mxu0 0.0
      %6157 = vmatpush1.msra.mxu0 %v6122
      %6158 = vmatprep.subr.mxu0 0.0
      %6159 = vmatpush1.msra.mxu0 %v6123
      %6160 = vmatprep.subr.mxu0 0.0
      %6161 = vmatpush1.msra.mxu0 %v6124
      %6162 = vmatprep.subr.mxu0 0.0
      %6163 = vmatpush1.msra.mxu0 %v6125
      %6164 = vmatprep.subr.mxu0 0.0
      %6165 = vmatpush1.msra.mxu0 %v6126
      %6166 = vmatprep.subr.mxu0 0.0
      %6167 = vmatpush1.msra.mxu0 %v6127
      %6168 = vmatprep.subr.mxu0 0.0
      %6169 = vmatpush1.msra.mxu0 %v6128
      %6170 = vmatprep.subr.mxu0 0.0
      %6171 = vmatpush1.msra.mxu0 %v6129
      %6172 = vmatprep.subr.mxu0 0.0
      %6173 = vmatpush1.msra.mxu0 %v6130
      %6174 = vmatprep.subr.mxu0 0.0
      %6175 = vmatpush1.msra.mxu0 %v6131
      %6176 = vmatprep.subr.mxu0 0.0
      %6177 = vmatpush1.msra.mxu0 %v6132
      %6178 = vmatprep.subr.mxu0 0.0
      %6179 = vmatpush1.msra.mxu0 %v6133
      %6180 = vmatprep.subr.mxu0 0.0
      %6181 = vmatpush1.msra.mxu0 %v6134
      %6182 = vmatprep.subr.mxu0 0.0
      %6183 = vmatpush1.msra.mxu0 %v6135
      %6184 = vmatprep.subr.mxu0 0.0
      %6185 = vmatpush1.msra.mxu0 %v6136
      %6186 = vmatprep.subr.mxu0 0.0
      %6187 = vmatpush1.msra.mxu0 %v6137
      %6188 = vmatprep.subr.mxu0 0.0
      %6189 = vmatpush1.msra.mxu0 0.0
      %6190 = vmatprep.subr.mxu0 0.0
      %6191 = vmatpush1.msra.mxu0 0.0
      %6192 = vmatprep.subr.mxu0 0.0
      %6193 = vmatpush1.msra.mxu0 0.0
      %6194 = vmatprep.subr.mxu0 0.0
      %6195 = vmatpush1.msra.mxu0 0.0
      %6196 = vmatprep.subr.mxu0 0.0
      %6197 = vmatpush1.msra.mxu0 0.0
      %6198 = vmatprep.subr.mxu0 0.0
      %6199 = vmatpush1.msra.mxu0 0.0
      %6200 = vmatprep.subr.mxu0 0.0
      %6201 = vmatpush1.msra.mxu0 0.0
      %6202 = vmatprep.subr.mxu0 0.0
      %6203 = vmatpush1.msra.mxu0 0.0
      %6204 = vmatprep.mubr.f32.mxu0 %v5875
      %6205 = vmatmul.mubr.f32.gmra.mrb[0].mxu0 %v5805
      %v6206 = vpop.f32.mrb[0].mxu0
      %v6207 = vadd.f32 0.0, %v6206
      %v6208 = vpop.f32.mrb[0].mxu0
      %6209 = vmatprep.mubr.f32.mxu0 %v5877
      %6210 = vmatmul.mubr.f32.gmra.mrb[0].mxu0 %v5806
      %v6211 = vpop.f32.mrb[0].mxu0
      %v6212 = vadd.f32 0.0, %v6211
      %v6213 = vpop.f32.mrb[0].mxu0
      %6214 = vmatprep.mubr.f32.mxu0 %v5879
      %6215 = vmatmul.mubr.f32.gmra.mrb[0].mxu0 %v5807
      %v6216 = vpop.f32.mrb[0].mxu0
      %v6217 = vadd.f32 0.0, %v6216
      %v6218 = vpop.f32.mrb[0].mxu0
      %6219 = vmatprep.mubr.f32.mxu0 %v5881
      %6220 = vmatmul.mubr.f32.gmra.mrb[0].mxu0 %v5808
      %v6221 = vpop.f32.mrb[0].mxu0
      %v6222 = vadd.f32 0.0, %v6221
      %v6223 = vpop.f32.mrb[0].mxu0
      %6224 = vmatprep.mubr.f32.mxu0 %v5883
      %6225 = vmatmul.mubr.f32.gmra.mrb[0].mxu0 %v5809
      %v6226 = vpop.f32.mrb[0].mxu0
      %v6227 = vadd.f32 0.0, %v6226
      %v6228 = vpop.f32.mrb[0].mxu0
      %6229 = vmatprep.mubr.f32.mxu0 %v5885
      %6230 = vmatmul.mubr.f32.gmra.mrb[0].mxu0 %v5810
      %v6231 = vpop.f32.mrb[0].mxu0
      %v6232 = vadd.f32 0.0, %v6231
      %v6233 = vpop.f32.mrb[0].mxu0
      %6234 = vmatprep.mubr.f32.mxu0 %v5887
      %6235 = vmatmul.mubr.f32.gmra.mrb[0].mxu0 %v5847
      %v6236 = vpop.f32.mrb[0].mxu0
      %v6237 = vadd.f32 0.0, %v6236
      %v6238 = vpop.f32.mrb[0].mxu0
      %6239 = vmatprep.mubr.f32.mxu0 %v6138
      %6240 = vmatmul.mubr.f32.gmra.mrb[0].mxu0 %v6112
      %v6241 = vpop.f32.mrb[0].mxu0
      %v6242 = vadd.f32 0.0, %v6241
      %v6243 = vpop.f32.mrb[0].mxu0
      %6244 = vdwg.mxu0
      %v6245 = vadd.f32 %v6063, %v6207
      %v6246 = vadd.f32 %v6068, %v6212
      %v6247 = vadd.f32 %v6073, %v6217
      %v6248 = vadd.f32 %v6078, %v6222
      %v6249 = vadd.f32 %v6083, %v6227
      %v6250 = vadd.f32 %v6088, %v6232
      %v6251 = vadd.f32 %v6093, %v6237
      %v6252 = vadd.f32 %v6098, %v6242
      %s6253 = scalar_lea.vmem %s2, 9
      %v6254 = vld [vmem:[%s6253] sm:$0x1]
      %v6256 = vlaneseq
      %v6257 = vshrl.u32 %v6256, 7
      %v6258 = vsub.s32 0, %v6257
      %v6259 = vrot.slane %v6254, %v6258
      %v6261 = vmul.f32 %v6245, %v6259
      %v6262 = vmul.f32 %v6246, %v6259
      %v6263 = vmul.f32 %v6247, %v6259
      %v6264 = vmul.f32 %v6248, %v6259
      %v6265 = vmul.f32 %v6249, %v6259
      %v6266 = vmul.f32 %v6250, %v6259
      %v6267 = vmul.f32 %v6251, %v6259
      %v6268 = vmul.f32 %v6252, %v6259
      %s6269 = scalar_lea.vmem %s3, 9
      %v6270 = vld [vmem:[%s6269] sm:$0x1]
      %v6272 = vlaneseq
      %v6273 = vshrl.u32 %v6272, 7
      %v6274 = vsub.s32 0, %v6273
      %v6275 = vrot.slane %v6270, %v6274
      %v6277 = vadd.f32 %v6261, %v6275
      %v6278 = vadd.f32 %v6262, %v6275
      %v6279 = vadd.f32 %v6263, %v6275
      %v6280 = vadd.f32 %v6264, %v6275
      %v6281 = vadd.f32 %v6265, %v6275
      %v6282 = vadd.f32 %v6266, %v6275
      %v6283 = vadd.f32 %v6267, %v6275
      %v6284 = vadd.f32 %v6268, %v6275
      %v6285 = vmax.f32 %v6277, 0.0
      %v6286 = vmax.f32 %v6278, 0.0
      %v6287 = vmax.f32 %v6279, 0.0
      %v6288 = vmax.f32 %v6280, 0.0
      %v6289 = vmax.f32 %v6281, 0.0
      %v6290 = vmax.f32 %v6282, 0.0
      %v6291 = vmax.f32 %v6283, 0.0
      %v6292 = vmax.f32 %v6284, 0.0
      %6293 = vst.msk [vmem:[%s1444 + $0x1] sm:$0xff] %vm198, %v6285
      %6294 = vst.msk [vmem:[%s1444 + $0x11] sm:$0xff] %vm198, %v6286
      %6295 = vst.msk [vmem:[%s1444 + $0x21] sm:$0xff] %vm198, %v6287
      %6296 = vst.msk [vmem:[%s1444 + $0x31] sm:$0xff] %vm198, %v6288
      %6297 = vst.msk [vmem:[%s1444 + $0x41] sm:$0xff] %vm198, %v6289
      %6298 = vst.msk [vmem:[%s1444 + $0x51] sm:$0xff] %vm198, %v6290
      %6299 = vst.msk [vmem:[%s1444 + $0x61] sm:$0xff] %vm198, %v6291
      %6300 = vst.msk [vmem:[%s1444 + $0x71] sm:$0xff] %vm198, %v6292
      %v6301 = vld [vmem:[#allocation3] sm:$0xff]
      %v6302 = vld [vmem:[#allocation3 + $0x8] sm:$0x3]
      %v6303 = vld [vmem:[#allocation3 + $0x10] sm:$0xff]
      %v6304 = vld [vmem:[#allocation3 + $0x18] sm:$0x3]
      %v6305 = vld [vmem:[#allocation3 + $0x20] sm:$0xff]
      %v6306 = vld [vmem:[#allocation3 + $0x28] sm:$0x3]
      %v6307 = vld [vmem:[#allocation3 + $0x30] sm:$0xff]
      %v6308 = vld [vmem:[#allocation3 + $0x38] sm:$0x3]
      %v6309 = vld [vmem:[#allocation3 + $0x40] sm:$0xff]
      %v6310 = vld [vmem:[#allocation3 + $0x48] sm:$0x3]
      %v6311 = vld [vmem:[#allocation3 + $0x50] sm:$0xff]
      %v6312 = vld [vmem:[#allocation3 + $0x58] sm:$0x3]
      %v6313 = vld [vmem:[#allocation3 + $0x60] sm:$0xff]
      %v6314 = vld [vmem:[#allocation3 + $0x68] sm:$0x3]
      %v6315 = vld [vmem:[#allocation3 + $0x70] sm:$0xff]
      %v6316 = vld [vmem:[#allocation3 + $0x78] sm:$0x3]
      %v6317 = vld [vmem:[#allocation3 + $0x80] sm:$0xff]
      %v6318 = vld [vmem:[#allocation3 + $0x88] sm:$0x3]
      %v6319 = vld [vmem:[#allocation3 + $0x90] sm:$0xff]
      %v6320 = vld [vmem:[#allocation3 + $0x98] sm:$0x3]
      %v6337 = vrot.slane %v6301, 1
      %v6338 = vrot.slane %v6302, 1
      %v6339 = vsel %vm276, %v6337, %v6338
      %v6340 = vrot.slane %v6303, 1
      %v6341 = vrot.slane %v6304, 1
      %v6342 = vsel %vm276, %v6340, %v6341
      %v6343 = vrot.slane %v6305, 1
      %v6344 = vrot.slane %v6306, 1
      %v6345 = vsel %vm276, %v6343, %v6344
      %v6346 = vrot.slane %v6307, 1
      %v6347 = vrot.slane %v6308, 1
      %v6348 = vsel %vm276, %v6346, %v6347
      %v6349 = vrot.slane %v6309, 1
      %v6350 = vrot.slane %v6310, 1
      %v6351 = vsel %vm276, %v6349, %v6350
      %v6352 = vrot.slane %v6311, 1
      %v6353 = vrot.slane %v6312, 1
      %v6354 = vsel %vm276, %v6352, %v6353
      %v6355 = vrot.slane %v6313, 1
      %v6356 = vrot.slane %v6314, 1
      %v6357 = vsel %vm276, %v6355, %v6356
      %v6358 = vrot.slane %v6315, 1
      %v6359 = vrot.slane %v6316, 1
      %v6360 = vsel %vm276, %v6358, %v6359
      %6361 = vrot.lane.b32.xlu0 %v6339, 64
      %v6362 = vpop.permute.xlu0 %6361
      %6363 = vrot.lane.b32.xlu0 %v6342, 64
      %v6364 = vpop.permute.xlu0 %6363
      %6365 = vrot.lane.b32.xlu0 %v6345, 64
      %v6366 = vpop.permute.xlu0 %6365
      %6367 = vrot.lane.b32.xlu0 %v6348, 64
      %v6368 = vpop.permute.xlu0 %6367
      %6369 = vrot.lane.b32.xlu0 %v6351, 64
      %v6370 = vpop.permute.xlu0 %6369
      %6371 = vrot.lane.b32.xlu0 %v6354, 64
      %v6372 = vpop.permute.xlu0 %6371
      %6373 = vrot.lane.b32.xlu0 %v6357, 64
      %v6374 = vpop.permute.xlu0 %6373
      %6375 = vrot.lane.b32.xlu0 %v6360, 64
      %v6376 = vpop.permute.xlu0 %6375
      %v6385 = vrot.slane %v6301, 2
      %v6386 = vrot.slane %v6302, 2
      %v6387 = vsel %vm325, %v6385, %v6386
      %v6388 = vrot.slane %v6303, 2
      %v6389 = vrot.slane %v6304, 2
      %v6390 = vsel %vm325, %v6388, %v6389
      %v6391 = vrot.slane %v6305, 2
      %v6392 = vrot.slane %v6306, 2
      %v6393 = vsel %vm325, %v6391, %v6392
      %v6394 = vrot.slane %v6307, 2
      %v6395 = vrot.slane %v6308, 2
      %v6396 = vsel %vm325, %v6394, %v6395
      %v6397 = vrot.slane %v6309, 2
      %v6398 = vrot.slane %v6310, 2
      %v6399 = vsel %vm325, %v6397, %v6398
      %v6400 = vrot.slane %v6311, 2
      %v6401 = vrot.slane %v6312, 2
      %v6402 = vsel %vm325, %v6400, %v6401
      %v6403 = vrot.slane %v6313, 2
      %v6404 = vrot.slane %v6314, 2
      %v6405 = vsel %vm325, %v6403, %v6404
      %v6406 = vrot.slane %v6315, 2
      %v6407 = vrot.slane %v6316, 2
      %v6408 = vsel %vm325, %v6406, %v6407
      %v6409 = vsel %vm198, %v6301, %v6362
      %v6410 = vsel %vm198, %v6303, %v6364
      %v6411 = vsel %vm198, %v6305, %v6366
      %v6412 = vsel %vm198, %v6307, %v6368
      %v6413 = vsel %vm198, %v6309, %v6370
      %v6414 = vsel %vm198, %v6311, %v6372
      %v6415 = vsel %vm198, %v6313, %v6374
      %v6416 = vsel %vm198, %v6315, %v6376
      %s6417 = scalar_lea.vmem %s1, 5760
      %v6418 = vld [vmem:[%s6417] sm:$0xff]
      %v6419 = vld [vmem:[%s6417 + $0x8] sm:$0xff]
      %v6420 = vld [vmem:[%s6417 + $0x10] sm:$0xff]
      %v6421 = vld [vmem:[%s6417 + $0x18] sm:$0xff]
      %v6422 = vld [vmem:[%s6417 + $0x20] sm:$0xff]
      %v6423 = vld [vmem:[%s6417 + $0x28] sm:$0xff]
      %v6424 = vld [vmem:[%s6417 + $0x30] sm:$0xff]
      %v6425 = vld [vmem:[%s6417 + $0x38] sm:$0xff]
      %v6426 = vld [vmem:[%s6417 + $0x40] sm:$0xff]
      %v6427 = vld [vmem:[%s6417 + $0x48] sm:$0xff]
      %v6428 = vld [vmem:[%s6417 + $0x50] sm:$0xff]
      %v6429 = vld [vmem:[%s6417 + $0x58] sm:$0xff]
      %v6430 = vld [vmem:[%s6417 + $0x60] sm:$0xff]
      %v6431 = vld [vmem:[%s6417 + $0x68] sm:$0xff]
      %v6432 = vld [vmem:[%s6417 + $0x70] sm:$0xff]
      %v6433 = vld [vmem:[%s6417 + $0x78] sm:$0xff]
      %v6434 = vld [vmem:[%s6417 + $0x80] sm:$0xff]
      %v6435 = vld [vmem:[%s6417 + $0x88] sm:$0xff]
      %v6436 = vld [vmem:[%s6417 + $0x90] sm:$0xff]
      %v6437 = vld [vmem:[%s6417 + $0x98] sm:$0xff]
      %v6438 = vld [vmem:[%s6417 + $0xa0] sm:$0xff]
      %v6439 = vld [vmem:[%s6417 + $0xa8] sm:$0xff]
      %v6440 = vld [vmem:[%s6417 + $0xb0] sm:$0xff]
      %v6441 = vld [vmem:[%s6417 + $0xb8] sm:$0xff]
      %v6444 = vrot.slane %v6317, 1
      %v6445 = vrot.slane %v6318, 1
      %v6446 = vsel %vm276, %v6444, %v6445
      %6447 = vrot.lane.b32.xlu0 %v6446, 64
      %v6448 = vpop.permute.xlu0 %6447
      %v6450 = vrot.slane %v6317, 2
      %v6451 = vrot.slane %v6318, 2
      %v6452 = vsel %vm325, %v6450, %v6451
      %v6453 = vsel %vm198, %v6317, %v6448
      %s6454 = scalar_lea.vmem %s1, 5952
      %v6455 = vld [vmem:[%s6454] sm:$0xff]
      %v6456 = vld [vmem:[%s6454 + $0x8] sm:$0xff]
      %v6457 = vld [vmem:[%s6454 + $0x10] sm:$0xff]
      %v6458 = vld [vmem:[%s6454 + $0x18] sm:$0xff]
      %v6459 = vld [vmem:[%s6454 + $0x20] sm:$0xff]
      %v6460 = vld [vmem:[%s6454 + $0x28] sm:$0xff]
      %v6461 = vld [vmem:[%s6454 + $0x30] sm:$0xff]
      %v6462 = vld [vmem:[%s6454 + $0x38] sm:$0xff]
      %v6463 = vld [vmem:[%s6454 + $0x40] sm:$0xff]
      %v6464 = vld [vmem:[%s6454 + $0x48] sm:$0xff]
      %v6465 = vld [vmem:[%s6454 + $0x50] sm:$0xff]
      %v6466 = vld [vmem:[%s6454 + $0x58] sm:$0xff]
      %v6467 = vld [vmem:[%s6454 + $0x60] sm:$0xff]
      %v6468 = vld [vmem:[%s6454 + $0x68] sm:$0xff]
      %v6469 = vld [vmem:[%s6454 + $0x70] sm:$0xff]
      %v6470 = vld [vmem:[%s6454 + $0x78] sm:$0xff]
      %v6471 = vld [vmem:[%s6454 + $0x80] sm:$0xff]
      %v6472 = vld [vmem:[%s6454 + $0x88] sm:$0xff]
      %v6473 = vld [vmem:[%s6454 + $0x90] sm:$0xff]
      %v6474 = vld [vmem:[%s6454 + $0x98] sm:$0xff]
      %v6475 = vld [vmem:[%s6454 + $0xa0] sm:$0xff]
      %v6476 = vld [vmem:[%s6454 + $0xa8] sm:$0xff]
      %v6477 = vld [vmem:[%s6454 + $0xb0] sm:$0xff]
      %v6478 = vld [vmem:[%s6454 + $0xb8] sm:$0xff]
      %v6479 = vsel %vm198, %v6390, 0
      %v6481 = vsel %vm198, %v6393, 0
      %v6483 = vsel %vm198, %v6396, 0
      %v6485 = vsel %vm198, %v6399, 0
      %v6487 = vsel %vm198, %v6402, 0
      %v6489 = vsel %vm198, %v6405, 0
      %v6491 = vsel %vm198, %v6408, 0
      %v6493 = vsel %vm198, %v6452, 0
      %6495 = vmatprep.subr.mxu0 0.0
      %6496 = vmatpush1.msra.mxu0 %v6455
      %6497 = vmatprep.subr.mxu0 0.0
      %6498 = vmatpush1.msra.mxu0 %v6456
      %6499 = vmatprep.subr.mxu0 0.0
      %6500 = vmatpush1.msra.mxu0 %v6457
      %6501 = vmatprep.subr.mxu0 0.0
      %6502 = vmatpush1.msra.mxu0 %v6458
      %6503 = vmatprep.subr.mxu0 0.0
      %6504 = vmatpush1.msra.mxu0 %v6459
      %6505 = vmatprep.subr.mxu0 0.0
      %6506 = vmatpush1.msra.mxu0 %v6460
      %6507 = vmatprep.subr.mxu0 0.0
      %6508 = vmatpush1.msra.mxu0 %v6461
      %6509 = vmatprep.subr.mxu0 0.0
      %6510 = vmatpush1.msra.mxu0 %v6462
      %6511 = vmatprep.subr.mxu0 0.0
      %6512 = vmatpush1.msra.mxu0 %v6463
      %6513 = vmatprep.subr.mxu0 0.0
      %6514 = vmatpush1.msra.mxu0 %v6464
      %6515 = vmatprep.subr.mxu0 0.0
      %6516 = vmatpush1.msra.mxu0 %v6465
      %6517 = vmatprep.subr.mxu0 0.0
      %6518 = vmatpush1.msra.mxu0 %v6466
      %6519 = vmatprep.subr.mxu0 0.0
      %6520 = vmatpush1.msra.mxu0 %v6467
      %6521 = vmatprep.subr.mxu0 0.0
      %6522 = vmatpush1.msra.mxu0 %v6468
      %6523 = vmatprep.subr.mxu0 0.0
      %6524 = vmatpush1.msra.mxu0 %v6469
      %6525 = vmatprep.subr.mxu0 0.0
      %6526 = vmatpush1.msra.mxu0 %v6470
      %6527 = vmatprep.subr.mxu0 0.0
      %6528 = vmatpush1.msra.mxu0 %v6471
      %6529 = vmatprep.subr.mxu0 0.0
      %6530 = vmatpush1.msra.mxu0 %v6472
      %6531 = vmatprep.subr.mxu0 0.0
      %6532 = vmatpush1.msra.mxu0 %v6473
      %6533 = vmatprep.subr.mxu0 0.0
      %6534 = vmatpush1.msra.mxu0 %v6474
      %6535 = vmatprep.subr.mxu0 0.0
      %6536 = vmatpush1.msra.mxu0 %v6475
      %6537 = vmatprep.subr.mxu0 0.0
      %6538 = vmatpush1.msra.mxu0 %v6476
      %6539 = vmatprep.subr.mxu0 0.0
      %6540 = vmatpush1.msra.mxu0 %v6477
      %6541 = vmatprep.subr.mxu0 0.0
      %6542 = vmatpush1.msra.mxu0 %v6478
      %6543 = vmatprep.subr.mxu0 0.0
      %6544 = vmatpush1.msra.mxu0 0.0
      %6545 = vmatprep.subr.mxu0 0.0
      %6546 = vmatpush1.msra.mxu0 0.0
      %6547 = vmatprep.subr.mxu0 0.0
      %6548 = vmatpush1.msra.mxu0 0.0
      %6549 = vmatprep.subr.mxu0 0.0
      %6550 = vmatpush1.msra.mxu0 0.0
      %6551 = vmatprep.subr.mxu0 0.0
      %6552 = vmatpush1.msra.mxu0 0.0
      %6553 = vmatprep.subr.mxu0 0.0
      %6554 = vmatpush1.msra.mxu0 0.0
      %6555 = vmatprep.subr.mxu0 0.0
      %6556 = vmatpush1.msra.mxu0 0.0
      %6557 = vmatprep.subr.mxu0 0.0
      %6558 = vmatpush1.msra.mxu0 0.0
      %6559 = vmatprep.mubr.f32.mxu0 %v6479
      %6560 = vmatmul.mubr.f32.gmra.mrb[0].mxu0 %v6410
      %v6561 = vpop.f32.mrb[0].mxu0
      %v6562 = vadd.f32 0.0, %v6561
      %v6563 = vpop.f32.mrb[0].mxu0
      %6564 = vmatprep.mubr.f32.mxu0 %v6481
      %6565 = vmatmul.mubr.f32.gmra.mrb[0].mxu0 %v6411
      %v6566 = vpop.f32.mrb[0].mxu0
      %v6567 = vadd.f32 0.0, %v6566
      %v6568 = vpop.f32.mrb[0].mxu0
      %6569 = vmatprep.mubr.f32.mxu0 %v6483
      %6570 = vmatmul.mubr.f32.gmra.mrb[0].mxu0 %v6412
      %v6571 = vpop.f32.mrb[0].mxu0
      %v6572 = vadd.f32 0.0, %v6571
      %v6573 = vpop.f32.mrb[0].mxu0
      %6574 = vmatprep.mubr.f32.mxu0 %v6485
      %6575 = vmatmul.mubr.f32.gmra.mrb[0].mxu0 %v6413
      %v6576 = vpop.f32.mrb[0].mxu0
      %v6577 = vadd.f32 0.0, %v6576
      %v6578 = vpop.f32.mrb[0].mxu0
      %6579 = vmatprep.mubr.f32.mxu0 %v6487
      %6580 = vmatmul.mubr.f32.gmra.mrb[0].mxu0 %v6414
      %v6581 = vpop.f32.mrb[0].mxu0
      %v6582 = vadd.f32 0.0, %v6581
      %v6583 = vpop.f32.mrb[0].mxu0
      %6584 = vmatprep.mubr.f32.mxu0 %v6489
      %6585 = vmatmul.mubr.f32.gmra.mrb[0].mxu0 %v6415
      %v6586 = vpop.f32.mrb[0].mxu0
      %v6587 = vadd.f32 0.0, %v6586
      %v6588 = vpop.f32.mrb[0].mxu0
      %6589 = vmatprep.mubr.f32.mxu0 %v6491
      %6590 = vmatmul.mubr.f32.gmra.mrb[0].mxu0 %v6416
      %v6591 = vpop.f32.mrb[0].mxu0
      %v6592 = vadd.f32 0.0, %v6591
      %v6593 = vpop.f32.mrb[0].mxu0
      %6594 = vmatprep.mubr.f32.mxu0 %v6493
      %6595 = vmatmul.mubr.f32.gmra.mrb[0].mxu0 %v6453
      %v6596 = vpop.f32.mrb[0].mxu0
      %v6597 = vadd.f32 0.0, %v6596
      %v6598 = vpop.f32.mrb[0].mxu0
      %6599 = vdwg.mxu0
      %v6600 = vsel %vm198, %v6387, 0
      %6602 = vmatprep.subr.mxu0 0.0
      %6603 = vmatpush1.msra.mxu0 %v6418
      %6604 = vmatprep.subr.mxu0 0.0
      %6605 = vmatpush1.msra.mxu0 %v6419
      %6606 = vmatprep.subr.mxu0 0.0
      %6607 = vmatpush1.msra.mxu0 %v6420
      %6608 = vmatprep.subr.mxu0 0.0
      %6609 = vmatpush1.msra.mxu0 %v6421
      %6610 = vmatprep.subr.mxu0 0.0
      %6611 = vmatpush1.msra.mxu0 %v6422
      %6612 = vmatprep.subr.mxu0 0.0
      %6613 = vmatpush1.msra.mxu0 %v6423
      %6614 = vmatprep.subr.mxu0 0.0
      %6615 = vmatpush1.msra.mxu0 %v6424
      %6616 = vmatprep.subr.mxu0 0.0
      %6617 = vmatpush1.msra.mxu0 %v6425
      %6618 = vmatprep.subr.mxu0 0.0
      %6619 = vmatpush1.msra.mxu0 %v6426
      %6620 = vmatprep.subr.mxu0 0.0
      %6621 = vmatpush1.msra.mxu0 %v6427
      %6622 = vmatprep.subr.mxu0 0.0
      %6623 = vmatpush1.msra.mxu0 %v6428
      %6624 = vmatprep.subr.mxu0 0.0
      %6625 = vmatpush1.msra.mxu0 %v6429
      %6626 = vmatprep.subr.mxu0 0.0
      %6627 = vmatpush1.msra.mxu0 %v6430
      %6628 = vmatprep.subr.mxu0 0.0
      %6629 = vmatpush1.msra.mxu0 %v6431
      %6630 = vmatprep.subr.mxu0 0.0
      %6631 = vmatpush1.msra.mxu0 %v6432
      %6632 = vmatprep.subr.mxu0 0.0
      %6633 = vmatpush1.msra.mxu0 %v6433
      %6634 = vmatprep.subr.mxu0 0.0
      %6635 = vmatpush1.msra.mxu0 %v6434
      %6636 = vmatprep.subr.mxu0 0.0
      %6637 = vmatpush1.msra.mxu0 %v6435
      %6638 = vmatprep.subr.mxu0 0.0
      %6639 = vmatpush1.msra.mxu0 %v6436
      %6640 = vmatprep.subr.mxu0 0.0
      %6641 = vmatpush1.msra.mxu0 %v6437
      %6642 = vmatprep.subr.mxu0 0.0
      %6643 = vmatpush1.msra.mxu0 %v6438
      %6644 = vmatprep.subr.mxu0 0.0
      %6645 = vmatpush1.msra.mxu0 %v6439
      %6646 = vmatprep.subr.mxu0 0.0
      %6647 = vmatpush1.msra.mxu0 %v6440
      %6648 = vmatprep.subr.mxu0 0.0
      %6649 = vmatpush1.msra.mxu0 %v6441
      %6650 = vmatprep.subr.mxu0 0.0
      %6651 = vmatpush1.msra.mxu0 0.0
      %6652 = vmatprep.subr.mxu0 0.0
      %6653 = vmatpush1.msra.mxu0 0.0
      %6654 = vmatprep.subr.mxu0 0.0
      %6655 = vmatpush1.msra.mxu0 0.0
      %6656 = vmatprep.subr.mxu0 0.0
      %6657 = vmatpush1.msra.mxu0 0.0
      %6658 = vmatprep.subr.mxu0 0.0
      %6659 = vmatpush1.msra.mxu0 0.0
      %6660 = vmatprep.subr.mxu0 0.0
      %6661 = vmatpush1.msra.mxu0 0.0
      %6662 = vmatprep.subr.mxu0 0.0
      %6663 = vmatpush1.msra.mxu0 0.0
      %6664 = vmatprep.subr.mxu0 0.0
      %6665 = vmatpush1.msra.mxu0 0.0
      %6666 = vmatprep.mubr.f32.mxu0 %v6600
      %6667 = vmatmul.mubr.f32.gmra.mrb[0].mxu0 %v6409
      %v6668 = vpop.f32.mrb[0].mxu0
      %v6669 = vadd.f32 %v6562, %v6668
      %v6670 = vpop.f32.mrb[0].mxu0
      %6671 = vmatprep.mubr.f32.mxu0 %v6479
      %6672 = vmatmul.mubr.f32.gmra.mrb[0].mxu0 %v6410
      %v6673 = vpop.f32.mrb[0].mxu0
      %v6674 = vadd.f32 %v6567, %v6673
      %v6675 = vpop.f32.mrb[0].mxu0
      %6676 = vmatprep.mubr.f32.mxu0 %v6481
      %6677 = vmatmul.mubr.f32.gmra.mrb[0].mxu0 %v6411
      %v6678 = vpop.f32.mrb[0].mxu0
      %v6679 = vadd.f32 %v6572, %v6678
      %v6680 = vpop.f32.mrb[0].mxu0
      %6681 = vmatprep.mubr.f32.mxu0 %v6483
      %6682 = vmatmul.mubr.f32.gmra.mrb[0].mxu0 %v6412
      %v6683 = vpop.f32.mrb[0].mxu0
      %v6684 = vadd.f32 %v6577, %v6683
      %v6685 = vpop.f32.mrb[0].mxu0
      %6686 = vmatprep.mubr.f32.mxu0 %v6485
      %6687 = vmatmul.mubr.f32.gmra.mrb[0].mxu0 %v6413
      %v6688 = vpop.f32.mrb[0].mxu0
      %v6689 = vadd.f32 %v6582, %v6688
      %v6690 = vpop.f32.mrb[0].mxu0
      %6691 = vmatprep.mubr.f32.mxu0 %v6487
      %6692 = vmatmul.mubr.f32.gmra.mrb[0].mxu0 %v6414
      %v6693 = vpop.f32.mrb[0].mxu0
      %v6694 = vadd.f32 %v6587, %v6693
      %v6695 = vpop.f32.mrb[0].mxu0
      %6696 = vmatprep.mubr.f32.mxu0 %v6489
      %6697 = vmatmul.mubr.f32.gmra.mrb[0].mxu0 %v6415
      %v6698 = vpop.f32.mrb[0].mxu0
      %v6699 = vadd.f32 %v6592, %v6698
      %v6700 = vpop.f32.mrb[0].mxu0
      %6701 = vmatprep.mubr.f32.mxu0 %v6491
      %6702 = vmatmul.mubr.f32.gmra.mrb[0].mxu0 %v6416
      %v6703 = vpop.f32.mrb[0].mxu0
      %v6704 = vadd.f32 %v6597, %v6703
      %v6705 = vpop.f32.mrb[0].mxu0
      %6706 = vdwg.mxu0
      %v6709 = vrot.slane %v6319, 1
      %v6710 = vrot.slane %v6320, 1
      %v6711 = vsel %vm276, %v6709, %v6710
      %6712 = vrot.lane.b32.xlu0 %v6711, 64
      %v6713 = vpop.permute.xlu0 %6712
      %v6715 = vrot.slane %v6319, 2
      %v6716 = vrot.slane %v6320, 2
      %v6717 = vsel %vm325, %v6715, %v6716
      %v6718 = vsel %vm198, %v6319, %v6713
      %s6719 = scalar_lea.vmem %s1, 6144
      %v6720 = vld [vmem:[%s6719] sm:$0xff]
      %v6721 = vld [vmem:[%s6719 + $0x8] sm:$0xff]
      %v6722 = vld [vmem:[%s6719 + $0x10] sm:$0xff]
      %v6723 = vld [vmem:[%s6719 + $0x18] sm:$0xff]
      %v6724 = vld [vmem:[%s6719 + $0x20] sm:$0xff]
      %v6725 = vld [vmem:[%s6719 + $0x28] sm:$0xff]
      %v6726 = vld [vmem:[%s6719 + $0x30] sm:$0xff]
      %v6727 = vld [vmem:[%s6719 + $0x38] sm:$0xff]
      %v6728 = vld [vmem:[%s6719 + $0x40] sm:$0xff]
      %v6729 = vld [vmem:[%s6719 + $0x48] sm:$0xff]
      %v6730 = vld [vmem:[%s6719 + $0x50] sm:$0xff]
      %v6731 = vld [vmem:[%s6719 + $0x58] sm:$0xff]
      %v6732 = vld [vmem:[%s6719 + $0x60] sm:$0xff]
      %v6733 = vld [vmem:[%s6719 + $0x68] sm:$0xff]
      %v6734 = vld [vmem:[%s6719 + $0x70] sm:$0xff]
      %v6735 = vld [vmem:[%s6719 + $0x78] sm:$0xff]
      %v6736 = vld [vmem:[%s6719 + $0x80] sm:$0xff]
      %v6737 = vld [vmem:[%s6719 + $0x88] sm:$0xff]
      %v6738 = vld [vmem:[%s6719 + $0x90] sm:$0xff]
      %v6739 = vld [vmem:[%s6719 + $0x98] sm:$0xff]
      %v6740 = vld [vmem:[%s6719 + $0xa0] sm:$0xff]
      %v6741 = vld [vmem:[%s6719 + $0xa8] sm:$0xff]
      %v6742 = vld [vmem:[%s6719 + $0xb0] sm:$0xff]
      %v6743 = vld [vmem:[%s6719 + $0xb8] sm:$0xff]
      %v6744 = vsel %vm198, %v6717, 0
      %6746 = vmatprep.subr.mxu0 0.0
      %6747 = vmatpush1.msra.mxu0 %v6720
      %6748 = vmatprep.subr.mxu0 0.0
      %6749 = vmatpush1.msra.mxu0 %v6721
      %6750 = vmatprep.subr.mxu0 0.0
      %6751 = vmatpush1.msra.mxu0 %v6722
      %6752 = vmatprep.subr.mxu0 0.0
      %6753 = vmatpush1.msra.mxu0 %v6723
      %6754 = vmatprep.subr.mxu0 0.0
      %6755 = vmatpush1.msra.mxu0 %v6724
      %6756 = vmatprep.subr.mxu0 0.0
      %6757 = vmatpush1.msra.mxu0 %v6725
      %6758 = vmatprep.subr.mxu0 0.0
      %6759 = vmatpush1.msra.mxu0 %v6726
      %6760 = vmatprep.subr.mxu0 0.0
      %6761 = vmatpush1.msra.mxu0 %v6727
      %6762 = vmatprep.subr.mxu0 0.0
      %6763 = vmatpush1.msra.mxu0 %v6728
      %6764 = vmatprep.subr.mxu0 0.0
      %6765 = vmatpush1.msra.mxu0 %v6729
      %6766 = vmatprep.subr.mxu0 0.0
      %6767 = vmatpush1.msra.mxu0 %v6730
      %6768 = vmatprep.subr.mxu0 0.0
      %6769 = vmatpush1.msra.mxu0 %v6731
      %6770 = vmatprep.subr.mxu0 0.0
      %6771 = vmatpush1.msra.mxu0 %v6732
      %6772 = vmatprep.subr.mxu0 0.0
      %6773 = vmatpush1.msra.mxu0 %v6733
      %6774 = vmatprep.subr.mxu0 0.0
      %6775 = vmatpush1.msra.mxu0 %v6734
      %6776 = vmatprep.subr.mxu0 0.0
      %6777 = vmatpush1.msra.mxu0 %v6735
      %6778 = vmatprep.subr.mxu0 0.0
      %6779 = vmatpush1.msra.mxu0 %v6736
      %6780 = vmatprep.subr.mxu0 0.0
      %6781 = vmatpush1.msra.mxu0 %v6737
      %6782 = vmatprep.subr.mxu0 0.0
      %6783 = vmatpush1.msra.mxu0 %v6738
      %6784 = vmatprep.subr.mxu0 0.0
      %6785 = vmatpush1.msra.mxu0 %v6739
      %6786 = vmatprep.subr.mxu0 0.0
      %6787 = vmatpush1.msra.mxu0 %v6740
      %6788 = vmatprep.subr.mxu0 0.0
      %6789 = vmatpush1.msra.mxu0 %v6741
      %6790 = vmatprep.subr.mxu0 0.0
      %6791 = vmatpush1.msra.mxu0 %v6742
      %6792 = vmatprep.subr.mxu0 0.0
      %6793 = vmatpush1.msra.mxu0 %v6743
      %6794 = vmatprep.subr.mxu0 0.0
      %6795 = vmatpush1.msra.mxu0 0.0
      %6796 = vmatprep.subr.mxu0 0.0
      %6797 = vmatpush1.msra.mxu0 0.0
      %6798 = vmatprep.subr.mxu0 0.0
      %6799 = vmatpush1.msra.mxu0 0.0
      %6800 = vmatprep.subr.mxu0 0.0
      %6801 = vmatpush1.msra.mxu0 0.0
      %6802 = vmatprep.subr.mxu0 0.0
      %6803 = vmatpush1.msra.mxu0 0.0
      %6804 = vmatprep.subr.mxu0 0.0
      %6805 = vmatpush1.msra.mxu0 0.0
      %6806 = vmatprep.subr.mxu0 0.0
      %6807 = vmatpush1.msra.mxu0 0.0
      %6808 = vmatprep.subr.mxu0 0.0
      %6809 = vmatpush1.msra.mxu0 0.0
      %6810 = vmatprep.mubr.f32.mxu0 %v6481
      %6811 = vmatmul.mubr.f32.gmra.mrb[0].mxu0 %v6411
      %v6812 = vpop.f32.mrb[0].mxu0
      %v6813 = vadd.f32 0.0, %v6812
      %v6814 = vpop.f32.mrb[0].mxu0
      %6815 = vmatprep.mubr.f32.mxu0 %v6483
      %6816 = vmatmul.mubr.f32.gmra.mrb[0].mxu0 %v6412
      %v6817 = vpop.f32.mrb[0].mxu0
      %v6818 = vadd.f32 0.0, %v6817
      %v6819 = vpop.f32.mrb[0].mxu0
      %6820 = vmatprep.mubr.f32.mxu0 %v6485
      %6821 = vmatmul.mubr.f32.gmra.mrb[0].mxu0 %v6413
      %v6822 = vpop.f32.mrb[0].mxu0
      %v6823 = vadd.f32 0.0, %v6822
      %v6824 = vpop.f32.mrb[0].mxu0
      %6825 = vmatprep.mubr.f32.mxu0 %v6487
      %6826 = vmatmul.mubr.f32.gmra.mrb[0].mxu0 %v6414
      %v6827 = vpop.f32.mrb[0].mxu0
      %v6828 = vadd.f32 0.0, %v6827
      %v6829 = vpop.f32.mrb[0].mxu0
      %6830 = vmatprep.mubr.f32.mxu0 %v6489
      %6831 = vmatmul.mubr.f32.gmra.mrb[0].mxu0 %v6415
      %v6832 = vpop.f32.mrb[0].mxu0
      %v6833 = vadd.f32 0.0, %v6832
      %v6834 = vpop.f32.mrb[0].mxu0
      %6835 = vmatprep.mubr.f32.mxu0 %v6491
      %6836 = vmatmul.mubr.f32.gmra.mrb[0].mxu0 %v6416
      %v6837 = vpop.f32.mrb[0].mxu0
      %v6838 = vadd.f32 0.0, %v6837
      %v6839 = vpop.f32.mrb[0].mxu0
      %6840 = vmatprep.mubr.f32.mxu0 %v6493
      %6841 = vmatmul.mubr.f32.gmra.mrb[0].mxu0 %v6453
      %v6842 = vpop.f32.mrb[0].mxu0
      %v6843 = vadd.f32 0.0, %v6842
      %v6844 = vpop.f32.mrb[0].mxu0
      %6845 = vmatprep.mubr.f32.mxu0 %v6744
      %6846 = vmatmul.mubr.f32.gmra.mrb[0].mxu0 %v6718
      %v6847 = vpop.f32.mrb[0].mxu0
      %v6848 = vadd.f32 0.0, %v6847
      %v6849 = vpop.f32.mrb[0].mxu0
      %6850 = vdwg.mxu0
      %v6851 = vadd.f32 %v6669, %v6813
      %v6852 = vadd.f32 %v6674, %v6818
      %v6853 = vadd.f32 %v6679, %v6823
      %v6854 = vadd.f32 %v6684, %v6828
      %v6855 = vadd.f32 %v6689, %v6833
      %v6856 = vadd.f32 %v6694, %v6838
      %v6857 = vadd.f32 %v6699, %v6843
      %v6858 = vadd.f32 %v6704, %v6848
      %s6859 = scalar_lea.vmem %s2, 10
      %v6860 = vld [vmem:[%s6859] sm:$0x1]
      %v6862 = vlaneseq
      %v6863 = vshrl.u32 %v6862, 7
      %v6864 = vsub.s32 0, %v6863
      %v6865 = vrot.slane %v6860, %v6864
      %v6867 = vmul.f32 %v6851, %v6865
      %v6868 = vmul.f32 %v6852, %v6865
      %v6869 = vmul.f32 %v6853, %v6865
      %v6870 = vmul.f32 %v6854, %v6865
      %v6871 = vmul.f32 %v6855, %v6865
      %v6872 = vmul.f32 %v6856, %v6865
      %v6873 = vmul.f32 %v6857, %v6865
      %v6874 = vmul.f32 %v6858, %v6865
      %s6875 = scalar_lea.vmem %s3, 10
      %v6876 = vld [vmem:[%s6875] sm:$0x1]
      %v6878 = vlaneseq
      %v6879 = vshrl.u32 %v6878, 7
      %v6880 = vsub.s32 0, %v6879
      %v6881 = vrot.slane %v6876, %v6880
      %v6883 = vadd.f32 %v6867, %v6881
      %v6884 = vadd.f32 %v6868, %v6881
      %v6885 = vadd.f32 %v6869, %v6881
      %v6886 = vadd.f32 %v6870, %v6881
      %v6887 = vadd.f32 %v6871, %v6881
      %v6888 = vadd.f32 %v6872, %v6881
      %v6889 = vadd.f32 %v6873, %v6881
      %v6890 = vadd.f32 %v6874, %v6881
      %v6891 = vmax.f32 %v6883, 0.0
      %v6892 = vmax.f32 %v6884, 0.0
      %v6893 = vmax.f32 %v6885, 0.0
      %v6894 = vmax.f32 %v6886, 0.0
      %v6895 = vmax.f32 %v6887, 0.0
      %v6896 = vmax.f32 %v6888, 0.0
      %v6897 = vmax.f32 %v6889, 0.0
      %v6898 = vmax.f32 %v6890, 0.0
      %6899 = vst.msk [vmem:[%s837 + $0x1] sm:$0xff] %vm198, %v6891
      %6900 = vst.msk [vmem:[%s837 + $0x11] sm:$0xff] %vm198, %v6892
      %6901 = vst.msk [vmem:[%s837 + $0x21] sm:$0xff] %vm198, %v6893
      %6902 = vst.msk [vmem:[%s837 + $0x31] sm:$0xff] %vm198, %v6894
      %6903 = vst.msk [vmem:[%s837 + $0x41] sm:$0xff] %vm198, %v6895
      %6904 = vst.msk [vmem:[%s837 + $0x51] sm:$0xff] %vm198, %v6896
      %6905 = vst.msk [vmem:[%s837 + $0x61] sm:$0xff] %vm198, %v6897
      %6906 = vst.msk [vmem:[%s837 + $0x71] sm:$0xff] %vm198, %v6898
      %v6907 = vld [vmem:[#allocation2] sm:$0xff]
      %v6908 = vld [vmem:[#allocation2 + $0x8] sm:$0x3]
      %v6909 = vld [vmem:[#allocation2 + $0x10] sm:$0xff]
      %v6910 = vld [vmem:[#allocation2 + $0x18] sm:$0x3]
      %v6911 = vld [vmem:[#allocation2 + $0x20] sm:$0xff]
      %v6912 = vld [vmem:[#allocation2 + $0x28] sm:$0x3]
      %v6913 = vld [vmem:[#allocation2 + $0x30] sm:$0xff]
      %v6914 = vld [vmem:[#allocation2 + $0x38] sm:$0x3]
      %v6915 = vld [vmem:[#allocation2 + $0x40] sm:$0xff]
      %v6916 = vld [vmem:[#allocation2 + $0x48] sm:$0x3]
      %v6917 = vld [vmem:[#allocation2 + $0x50] sm:$0xff]
      %v6918 = vld [vmem:[#allocation2 + $0x58] sm:$0x3]
      %v6919 = vld [vmem:[#allocation2 + $0x60] sm:$0xff]
      %v6920 = vld [vmem:[#allocation2 + $0x68] sm:$0x3]
      %v6921 = vld [vmem:[#allocation2 + $0x70] sm:$0xff]
      %v6922 = vld [vmem:[#allocation2 + $0x78] sm:$0x3]
      %v6923 = vld [vmem:[#allocation2 + $0x80] sm:$0xff]
      %v6924 = vld [vmem:[#allocation2 + $0x88] sm:$0x3]
      %v6925 = vld [vmem:[#allocation2 + $0x90] sm:$0xff]
      %v6926 = vld [vmem:[#allocation2 + $0x98] sm:$0x3]
      %v6943 = vrot.slane %v6907, 1
      %v6944 = vrot.slane %v6908, 1
      %v6945 = vsel %vm276, %v6943, %v6944
      %v6946 = vrot.slane %v6909, 1
      %v6947 = vrot.slane %v6910, 1
      %v6948 = vsel %vm276, %v6946, %v6947
      %v6949 = vrot.slane %v6911, 1
      %v6950 = vrot.slane %v6912, 1
      %v6951 = vsel %vm276, %v6949, %v6950
      %v6952 = vrot.slane %v6913, 1
      %v6953 = vrot.slane %v6914, 1
      %v6954 = vsel %vm276, %v6952, %v6953
      %v6955 = vrot.slane %v6915, 1
      %v6956 = vrot.slane %v6916, 1
      %v6957 = vsel %vm276, %v6955, %v6956
      %v6958 = vrot.slane %v6917, 1
      %v6959 = vrot.slane %v6918, 1
      %v6960 = vsel %vm276, %v6958, %v6959
      %v6961 = vrot.slane %v6919, 1
      %v6962 = vrot.slane %v6920, 1
      %v6963 = vsel %vm276, %v6961, %v6962
      %v6964 = vrot.slane %v6921, 1
      %v6965 = vrot.slane %v6922, 1
      %v6966 = vsel %vm276, %v6964, %v6965
      %6967 = vrot.lane.b32.xlu0 %v6945, 64
      %v6968 = vpop.permute.xlu0 %6967
      %6969 = vrot.lane.b32.xlu0 %v6948, 64
      %v6970 = vpop.permute.xlu0 %6969
      %6971 = vrot.lane.b32.xlu0 %v6951, 64
      %v6972 = vpop.permute.xlu0 %6971
      %6973 = vrot.lane.b32.xlu0 %v6954, 64
      %v6974 = vpop.permute.xlu0 %6973
      %6975 = vrot.lane.b32.xlu0 %v6957, 64
      %v6976 = vpop.permute.xlu0 %6975
      %6977 = vrot.lane.b32.xlu0 %v6960, 64
      %v6978 = vpop.permute.xlu0 %6977
      %6979 = vrot.lane.b32.xlu0 %v6963, 64
      %v6980 = vpop.permute.xlu0 %6979
      %6981 = vrot.lane.b32.xlu0 %v6966, 64
      %v6982 = vpop.permute.xlu0 %6981
      %v6991 = vrot.slane %v6907, 2
      %v6992 = vrot.slane %v6908, 2
      %v6993 = vsel %vm325, %v6991, %v6992
      %v6994 = vrot.slane %v6909, 2
      %v6995 = vrot.slane %v6910, 2
      %v6996 = vsel %vm325, %v6994, %v6995
      %v6997 = vrot.slane %v6911, 2
      %v6998 = vrot.slane %v6912, 2
      %v6999 = vsel %vm325, %v6997, %v6998
      %v7000 = vrot.slane %v6913, 2
      %v7001 = vrot.slane %v6914, 2
      %v7002 = vsel %vm325, %v7000, %v7001
      %v7003 = vrot.slane %v6915, 2
      %v7004 = vrot.slane %v6916, 2
      %v7005 = vsel %vm325, %v7003, %v7004
      %v7006 = vrot.slane %v6917, 2
      %v7007 = vrot.slane %v6918, 2
      %v7008 = vsel %vm325, %v7006, %v7007
      %v7009 = vrot.slane %v6919, 2
      %v7010 = vrot.slane %v6920, 2
      %v7011 = vsel %vm325, %v7009, %v7010
      %v7012 = vrot.slane %v6921, 2
      %v7013 = vrot.slane %v6922, 2
      %v7014 = vsel %vm325, %v7012, %v7013
      %v7015 = vsel %vm198, %v6907, %v6968
      %v7016 = vsel %vm198, %v6909, %v6970
      %v7017 = vsel %vm198, %v6911, %v6972
      %v7018 = vsel %vm198, %v6913, %v6974
      %v7019 = vsel %vm198, %v6915, %v6976
      %v7020 = vsel %vm198, %v6917, %v6978
      %v7021 = vsel %vm198, %v6919, %v6980
      %v7022 = vsel %vm198, %v6921, %v6982
      %s7023 = scalar_lea.vmem %s1, 6336
      %v7024 = vld [vmem:[%s7023] sm:$0xff]
      %v7025 = vld [vmem:[%s7023 + $0x8] sm:$0xff]
      %v7026 = vld [vmem:[%s7023 + $0x10] sm:$0xff]
      %v7027 = vld [vmem:[%s7023 + $0x18] sm:$0xff]
      %v7028 = vld [vmem:[%s7023 + $0x20] sm:$0xff]
      %v7029 = vld [vmem:[%s7023 + $0x28] sm:$0xff]
      %v7030 = vld [vmem:[%s7023 + $0x30] sm:$0xff]
      %v7031 = vld [vmem:[%s7023 + $0x38] sm:$0xff]
      %v7032 = vld [vmem:[%s7023 + $0x40] sm:$0xff]
      %v7033 = vld [vmem:[%s7023 + $0x48] sm:$0xff]
      %v7034 = vld [vmem:[%s7023 + $0x50] sm:$0xff]
      %v7035 = vld [vmem:[%s7023 + $0x58] sm:$0xff]
      %v7036 = vld [vmem:[%s7023 + $0x60] sm:$0xff]
      %v7037 = vld [vmem:[%s7023 + $0x68] sm:$0xff]
      %v7038 = vld [vmem:[%s7023 + $0x70] sm:$0xff]
      %v7039 = vld [vmem:[%s7023 + $0x78] sm:$0xff]
      %v7040 = vld [vmem:[%s7023 + $0x80] sm:$0xff]
      %v7041 = vld [vmem:[%s7023 + $0x88] sm:$0xff]
      %v7042 = vld [vmem:[%s7023 + $0x90] sm:$0xff]
      %v7043 = vld [vmem:[%s7023 + $0x98] sm:$0xff]
      %v7044 = vld [vmem:[%s7023 + $0xa0] sm:$0xff]
      %v7045 = vld [vmem:[%s7023 + $0xa8] sm:$0xff]
      %v7046 = vld [vmem:[%s7023 + $0xb0] sm:$0xff]
      %v7047 = vld [vmem:[%s7023 + $0xb8] sm:$0xff]
      %v7050 = vrot.slane %v6923, 1
      %v7051 = vrot.slane %v6924, 1
      %v7052 = vsel %vm276, %v7050, %v7051
      %7053 = vrot.lane.b32.xlu0 %v7052, 64
      %v7054 = vpop.permute.xlu0 %7053
      %v7056 = vrot.slane %v6923, 2
      %v7057 = vrot.slane %v6924, 2
      %v7058 = vsel %vm325, %v7056, %v7057
      %v7059 = vsel %vm198, %v6923, %v7054
      %s7060 = scalar_lea.vmem %s1, 6528
      %v7061 = vld [vmem:[%s7060] sm:$0xff]
      %v7062 = vld [vmem:[%s7060 + $0x8] sm:$0xff]
      %v7063 = vld [vmem:[%s7060 + $0x10] sm:$0xff]
      %v7064 = vld [vmem:[%s7060 + $0x18] sm:$0xff]
      %v7065 = vld [vmem:[%s7060 + $0x20] sm:$0xff]
      %v7066 = vld [vmem:[%s7060 + $0x28] sm:$0xff]
      %v7067 = vld [vmem:[%s7060 + $0x30] sm:$0xff]
      %v7068 = vld [vmem:[%s7060 + $0x38] sm:$0xff]
      %v7069 = vld [vmem:[%s7060 + $0x40] sm:$0xff]
      %v7070 = vld [vmem:[%s7060 + $0x48] sm:$0xff]
      %v7071 = vld [vmem:[%s7060 + $0x50] sm:$0xff]
      %v7072 = vld [vmem:[%s7060 + $0x58] sm:$0xff]
      %v7073 = vld [vmem:[%s7060 + $0x60] sm:$0xff]
      %v7074 = vld [vmem:[%s7060 + $0x68] sm:$0xff]
      %v7075 = vld [vmem:[%s7060 + $0x70] sm:$0xff]
      %v7076 = vld [vmem:[%s7060 + $0x78] sm:$0xff]
      %v7077 = vld [vmem:[%s7060 + $0x80] sm:$0xff]
      %v7078 = vld [vmem:[%s7060 + $0x88] sm:$0xff]
      %v7079 = vld [vmem:[%s7060 + $0x90] sm:$0xff]
      %v7080 = vld [vmem:[%s7060 + $0x98] sm:$0xff]
      %v7081 = vld [vmem:[%s7060 + $0xa0] sm:$0xff]
      %v7082 = vld [vmem:[%s7060 + $0xa8] sm:$0xff]
      %v7083 = vld [vmem:[%s7060 + $0xb0] sm:$0xff]
      %v7084 = vld [vmem:[%s7060 + $0xb8] sm:$0xff]
      %v7085 = vsel %vm198, %v6996, 0
      %v7087 = vsel %vm198, %v6999, 0
      %v7089 = vsel %vm198, %v7002, 0
      %v7091 = vsel %vm198, %v7005, 0
      %v7093 = vsel %vm198, %v7008, 0
      %v7095 = vsel %vm198, %v7011, 0
      %v7097 = vsel %vm198, %v7014, 0
      %v7099 = vsel %vm198, %v7058, 0
      %7101 = vmatprep.subr.mxu0 0.0
      %7102 = vmatpush1.msra.mxu0 %v7061
      %7103 = vmatprep.subr.mxu0 0.0
      %7104 = vmatpush1.msra.mxu0 %v7062
      %7105 = vmatprep.subr.mxu0 0.0
      %7106 = vmatpush1.msra.mxu0 %v7063
      %7107 = vmatprep.subr.mxu0 0.0
      %7108 = vmatpush1.msra.mxu0 %v7064
      %7109 = vmatprep.subr.mxu0 0.0
      %7110 = vmatpush1.msra.mxu0 %v7065
      %7111 = vmatprep.subr.mxu0 0.0
      %7112 = vmatpush1.msra.mxu0 %v7066
      %7113 = vmatprep.subr.mxu0 0.0
      %7114 = vmatpush1.msra.mxu0 %v7067
      %7115 = vmatprep.subr.mxu0 0.0
      %7116 = vmatpush1.msra.mxu0 %v7068
      %7117 = vmatprep.subr.mxu0 0.0
      %7118 = vmatpush1.msra.mxu0 %v7069
      %7119 = vmatprep.subr.mxu0 0.0
      %7120 = vmatpush1.msra.mxu0 %v7070
      %7121 = vmatprep.subr.mxu0 0.0
      %7122 = vmatpush1.msra.mxu0 %v7071
      %7123 = vmatprep.subr.mxu0 0.0
      %7124 = vmatpush1.msra.mxu0 %v7072
      %7125 = vmatprep.subr.mxu0 0.0
      %7126 = vmatpush1.msra.mxu0 %v7073
      %7127 = vmatprep.subr.mxu0 0.0
      %7128 = vmatpush1.msra.mxu0 %v7074
      %7129 = vmatprep.subr.mxu0 0.0
      %7130 = vmatpush1.msra.mxu0 %v7075
      %7131 = vmatprep.subr.mxu0 0.0
      %7132 = vmatpush1.msra.mxu0 %v7076
      %7133 = vmatprep.subr.mxu0 0.0
      %7134 = vmatpush1.msra.mxu0 %v7077
      %7135 = vmatprep.subr.mxu0 0.0
      %7136 = vmatpush1.msra.mxu0 %v7078
      %7137 = vmatprep.subr.mxu0 0.0
      %7138 = vmatpush1.msra.mxu0 %v7079
      %7139 = vmatprep.subr.mxu0 0.0
      %7140 = vmatpush1.msra.mxu0 %v7080
      %7141 = vmatprep.subr.mxu0 0.0
      %7142 = vmatpush1.msra.mxu0 %v7081
      %7143 = vmatprep.subr.mxu0 0.0
      %7144 = vmatpush1.msra.mxu0 %v7082
      %7145 = vmatprep.subr.mxu0 0.0
      %7146 = vmatpush1.msra.mxu0 %v7083
      %7147 = vmatprep.subr.mxu0 0.0
      %7148 = vmatpush1.msra.mxu0 %v7084
      %7149 = vmatprep.subr.mxu0 0.0
      %7150 = vmatpush1.msra.mxu0 0.0
      %7151 = vmatprep.subr.mxu0 0.0
      %7152 = vmatpush1.msra.mxu0 0.0
      %7153 = vmatprep.subr.mxu0 0.0
      %7154 = vmatpush1.msra.mxu0 0.0
      %7155 = vmatprep.subr.mxu0 0.0
      %7156 = vmatpush1.msra.mxu0 0.0
      %7157 = vmatprep.subr.mxu0 0.0
      %7158 = vmatpush1.msra.mxu0 0.0
      %7159 = vmatprep.subr.mxu0 0.0
      %7160 = vmatpush1.msra.mxu0 0.0
      %7161 = vmatprep.subr.mxu0 0.0
      %7162 = vmatpush1.msra.mxu0 0.0
      %7163 = vmatprep.subr.mxu0 0.0
      %7164 = vmatpush1.msra.mxu0 0.0
      %7165 = vmatprep.mubr.f32.mxu0 %v7085
      %7166 = vmatmul.mubr.f32.gmra.mrb[0].mxu0 %v7016
      %v7167 = vpop.f32.mrb[0].mxu0
      %v7168 = vadd.f32 0.0, %v7167
      %v7169 = vpop.f32.mrb[0].mxu0
      %7170 = vmatprep.mubr.f32.mxu0 %v7087
      %7171 = vmatmul.mubr.f32.gmra.mrb[0].mxu0 %v7017
      %v7172 = vpop.f32.mrb[0].mxu0
      %v7173 = vadd.f32 0.0, %v7172
      %v7174 = vpop.f32.mrb[0].mxu0
      %7175 = vmatprep.mubr.f32.mxu0 %v7089
      %7176 = vmatmul.mubr.f32.gmra.mrb[0].mxu0 %v7018
      %v7177 = vpop.f32.mrb[0].mxu0
      %v7178 = vadd.f32 0.0, %v7177
      %v7179 = vpop.f32.mrb[0].mxu0
      %7180 = vmatprep.mubr.f32.mxu0 %v7091
      %7181 = vmatmul.mubr.f32.gmra.mrb[0].mxu0 %v7019
      %v7182 = vpop.f32.mrb[0].mxu0
      %v7183 = vadd.f32 0.0, %v7182
      %v7184 = vpop.f32.mrb[0].mxu0
      %7185 = vmatprep.mubr.f32.mxu0 %v7093
      %7186 = vmatmul.mubr.f32.gmra.mrb[0].mxu0 %v7020
      %v7187 = vpop.f32.mrb[0].mxu0
      %v7188 = vadd.f32 0.0, %v7187
      %v7189 = vpop.f32.mrb[0].mxu0
      %7190 = vmatprep.mubr.f32.mxu0 %v7095
      %7191 = vmatmul.mubr.f32.gmra.mrb[0].mxu0 %v7021
      %v7192 = vpop.f32.mrb[0].mxu0
      %v7193 = vadd.f32 0.0, %v7192
      %v7194 = vpop.f32.mrb[0].mxu0
      %7195 = vmatprep.mubr.f32.mxu0 %v7097
      %7196 = vmatmul.mubr.f32.gmra.mrb[0].mxu0 %v7022
      %v7197 = vpop.f32.mrb[0].mxu0
      %v7198 = vadd.f32 0.0, %v7197
      %v7199 = vpop.f32.mrb[0].mxu0
      %7200 = vmatprep.mubr.f32.mxu0 %v7099
      %7201 = vmatmul.mubr.f32.gmra.mrb[0].mxu0 %v7059
      %v7202 = vpop.f32.mrb[0].mxu0
      %v7203 = vadd.f32 0.0, %v7202
      %v7204 = vpop.f32.mrb[0].mxu0
      %7205 = vdwg.mxu0
      %v7206 = vsel %vm198, %v6993, 0
      %7208 = vmatprep.subr.mxu0 0.0
      %7209 = vmatpush1.msra.mxu0 %v7024
      %7210 = vmatprep.subr.mxu0 0.0
      %7211 = vmatpush1.msra.mxu0 %v7025
      %7212 = vmatprep.subr.mxu0 0.0
      %7213 = vmatpush1.msra.mxu0 %v7026
      %7214 = vmatprep.subr.mxu0 0.0
      %7215 = vmatpush1.msra.mxu0 %v7027
      %7216 = vmatprep.subr.mxu0 0.0
      %7217 = vmatpush1.msra.mxu0 %v7028
      %7218 = vmatprep.subr.mxu0 0.0
      %7219 = vmatpush1.msra.mxu0 %v7029
      %7220 = vmatprep.subr.mxu0 0.0
      %7221 = vmatpush1.msra.mxu0 %v7030
      %7222 = vmatprep.subr.mxu0 0.0
      %7223 = vmatpush1.msra.mxu0 %v7031
      %7224 = vmatprep.subr.mxu0 0.0
      %7225 = vmatpush1.msra.mxu0 %v7032
      %7226 = vmatprep.subr.mxu0 0.0
      %7227 = vmatpush1.msra.mxu0 %v7033
      %7228 = vmatprep.subr.mxu0 0.0
      %7229 = vmatpush1.msra.mxu0 %v7034
      %7230 = vmatprep.subr.mxu0 0.0
      %7231 = vmatpush1.msra.mxu0 %v7035
      %7232 = vmatprep.subr.mxu0 0.0
      %7233 = vmatpush1.msra.mxu0 %v7036
      %7234 = vmatprep.subr.mxu0 0.0
      %7235 = vmatpush1.msra.mxu0 %v7037
      %7236 = vmatprep.subr.mxu0 0.0
      %7237 = vmatpush1.msra.mxu0 %v7038
      %7238 = vmatprep.subr.mxu0 0.0
      %7239 = vmatpush1.msra.mxu0 %v7039
      %7240 = vmatprep.subr.mxu0 0.0
      %7241 = vmatpush1.msra.mxu0 %v7040
      %7242 = vmatprep.subr.mxu0 0.0
      %7243 = vmatpush1.msra.mxu0 %v7041
      %7244 = vmatprep.subr.mxu0 0.0
      %7245 = vmatpush1.msra.mxu0 %v7042
      %7246 = vmatprep.subr.mxu0 0.0
      %7247 = vmatpush1.msra.mxu0 %v7043
      %7248 = vmatprep.subr.mxu0 0.0
      %7249 = vmatpush1.msra.mxu0 %v7044
      %7250 = vmatprep.subr.mxu0 0.0
      %7251 = vmatpush1.msra.mxu0 %v7045
      %7252 = vmatprep.subr.mxu0 0.0
      %7253 = vmatpush1.msra.mxu0 %v7046
      %7254 = vmatprep.subr.mxu0 0.0
      %7255 = vmatpush1.msra.mxu0 %v7047
      %7256 = vmatprep.subr.mxu0 0.0
      %7257 = vmatpush1.msra.mxu0 0.0
      %7258 = vmatprep.subr.mxu0 0.0
      %7259 = vmatpush1.msra.mxu0 0.0
      %7260 = vmatprep.subr.mxu0 0.0
      %7261 = vmatpush1.msra.mxu0 0.0
      %7262 = vmatprep.subr.mxu0 0.0
      %7263 = vmatpush1.msra.mxu0 0.0
      %7264 = vmatprep.subr.mxu0 0.0
      %7265 = vmatpush1.msra.mxu0 0.0
      %7266 = vmatprep.subr.mxu0 0.0
      %7267 = vmatpush1.msra.mxu0 0.0
      %7268 = vmatprep.subr.mxu0 0.0
      %7269 = vmatpush1.msra.mxu0 0.0
      %7270 = vmatprep.subr.mxu0 0.0
      %7271 = vmatpush1.msra.mxu0 0.0
      %7272 = vmatprep.mubr.f32.mxu0 %v7206
      %7273 = vmatmul.mubr.f32.gmra.mrb[0].mxu0 %v7015
      %v7274 = vpop.f32.mrb[0].mxu0
      %v7275 = vadd.f32 %v7168, %v7274
      %v7276 = vpop.f32.mrb[0].mxu0
      %7277 = vmatprep.mubr.f32.mxu0 %v7085
      %7278 = vmatmul.mubr.f32.gmra.mrb[0].mxu0 %v7016
      %v7279 = vpop.f32.mrb[0].mxu0
      %v7280 = vadd.f32 %v7173, %v7279
      %v7281 = vpop.f32.mrb[0].mxu0
      %7282 = vmatprep.mubr.f32.mxu0 %v7087
      %7283 = vmatmul.mubr.f32.gmra.mrb[0].mxu0 %v7017
      %v7284 = vpop.f32.mrb[0].mxu0
      %v7285 = vadd.f32 %v7178, %v7284
      %v7286 = vpop.f32.mrb[0].mxu0
      %7287 = vmatprep.mubr.f32.mxu0 %v7089
      %7288 = vmatmul.mubr.f32.gmra.mrb[0].mxu0 %v7018
      %v7289 = vpop.f32.mrb[0].mxu0
      %v7290 = vadd.f32 %v7183, %v7289
      %v7291 = vpop.f32.mrb[0].mxu0
      %7292 = vmatprep.mubr.f32.mxu0 %v7091
      %7293 = vmatmul.mubr.f32.gmra.mrb[0].mxu0 %v7019
      %v7294 = vpop.f32.mrb[0].mxu0
      %v7295 = vadd.f32 %v7188, %v7294
      %v7296 = vpop.f32.mrb[0].mxu0
      %7297 = vmatprep.mubr.f32.mxu0 %v7093
      %7298 = vmatmul.mubr.f32.gmra.mrb[0].mxu0 %v7020
      %v7299 = vpop.f32.mrb[0].mxu0
      %v7300 = vadd.f32 %v7193, %v7299
      %v7301 = vpop.f32.mrb[0].mxu0
      %7302 = vmatprep.mubr.f32.mxu0 %v7095
      %7303 = vmatmul.mubr.f32.gmra.mrb[0].mxu0 %v7021
      %v7304 = vpop.f32.mrb[0].mxu0
      %v7305 = vadd.f32 %v7198, %v7304
      %v7306 = vpop.f32.mrb[0].mxu0
      %7307 = vmatprep.mubr.f32.mxu0 %v7097
      %7308 = vmatmul.mubr.f32.gmra.mrb[0].mxu0 %v7022
      %v7309 = vpop.f32.mrb[0].mxu0
      %v7310 = vadd.f32 %v7203, %v7309
      %v7311 = vpop.f32.mrb[0].mxu0
      %7312 = vdwg.mxu0
      %v7315 = vrot.slane %v6925, 1
      %v7316 = vrot.slane %v6926, 1
      %v7317 = vsel %vm276, %v7315, %v7316
      %7318 = vrot.lane.b32.xlu0 %v7317, 64
      %v7319 = vpop.permute.xlu0 %7318
      %v7321 = vrot.slane %v6925, 2
      %v7322 = vrot.slane %v6926, 2
      %v7323 = vsel %vm325, %v7321, %v7322
      %v7324 = vsel %vm198, %v6925, %v7319
      %s7325 = scalar_lea.vmem %s1, 6720
      %v7326 = vld [vmem:[%s7325] sm:$0xff]
      %v7327 = vld [vmem:[%s7325 + $0x8] sm:$0xff]
      %v7328 = vld [vmem:[%s7325 + $0x10] sm:$0xff]
      %v7329 = vld [vmem:[%s7325 + $0x18] sm:$0xff]
      %v7330 = vld [vmem:[%s7325 + $0x20] sm:$0xff]
      %v7331 = vld [vmem:[%s7325 + $0x28] sm:$0xff]
      %v7332 = vld [vmem:[%s7325 + $0x30] sm:$0xff]
      %v7333 = vld [vmem:[%s7325 + $0x38] sm:$0xff]
      %v7334 = vld [vmem:[%s7325 + $0x40] sm:$0xff]
      %v7335 = vld [vmem:[%s7325 + $0x48] sm:$0xff]
      %v7336 = vld [vmem:[%s7325 + $0x50] sm:$0xff]
      %v7337 = vld [vmem:[%s7325 + $0x58] sm:$0xff]
      %v7338 = vld [vmem:[%s7325 + $0x60] sm:$0xff]
      %v7339 = vld [vmem:[%s7325 + $0x68] sm:$0xff]
      %v7340 = vld [vmem:[%s7325 + $0x70] sm:$0xff]
      %v7341 = vld [vmem:[%s7325 + $0x78] sm:$0xff]
      %v7342 = vld [vmem:[%s7325 + $0x80] sm:$0xff]
      %v7343 = vld [vmem:[%s7325 + $0x88] sm:$0xff]
      %v7344 = vld [vmem:[%s7325 + $0x90] sm:$0xff]
      %v7345 = vld [vmem:[%s7325 + $0x98] sm:$0xff]
      %v7346 = vld [vmem:[%s7325 + $0xa0] sm:$0xff]
      %v7347 = vld [vmem:[%s7325 + $0xa8] sm:$0xff]
      %v7348 = vld [vmem:[%s7325 + $0xb0] sm:$0xff]
      %v7349 = vld [vmem:[%s7325 + $0xb8] sm:$0xff]
      %v7350 = vsel %vm198, %v7323, 0
      %7352 = vmatprep.subr.mxu0 0.0
      %7353 = vmatpush1.msra.mxu0 %v7326
      %7354 = vmatprep.subr.mxu0 0.0
      %7355 = vmatpush1.msra.mxu0 %v7327
      %7356 = vmatprep.subr.mxu0 0.0
      %7357 = vmatpush1.msra.mxu0 %v7328
      %7358 = vmatprep.subr.mxu0 0.0
      %7359 = vmatpush1.msra.mxu0 %v7329
      %7360 = vmatprep.subr.mxu0 0.0
      %7361 = vmatpush1.msra.mxu0 %v7330
      %7362 = vmatprep.subr.mxu0 0.0
      %7363 = vmatpush1.msra.mxu0 %v7331
      %7364 = vmatprep.subr.mxu0 0.0
      %7365 = vmatpush1.msra.mxu0 %v7332
      %7366 = vmatprep.subr.mxu0 0.0
      %7367 = vmatpush1.msra.mxu0 %v7333
      %7368 = vmatprep.subr.mxu0 0.0
      %7369 = vmatpush1.msra.mxu0 %v7334
      %7370 = vmatprep.subr.mxu0 0.0
      %7371 = vmatpush1.msra.mxu0 %v7335
      %7372 = vmatprep.subr.mxu0 0.0
      %7373 = vmatpush1.msra.mxu0 %v7336
      %7374 = vmatprep.subr.mxu0 0.0
      %7375 = vmatpush1.msra.mxu0 %v7337
      %7376 = vmatprep.subr.mxu0 0.0
      %7377 = vmatpush1.msra.mxu0 %v7338
      %7378 = vmatprep.subr.mxu0 0.0
      %7379 = vmatpush1.msra.mxu0 %v7339
      %7380 = vmatprep.subr.mxu0 0.0
      %7381 = vmatpush1.msra.mxu0 %v7340
      %7382 = vmatprep.subr.mxu0 0.0
      %7383 = vmatpush1.msra.mxu0 %v7341
      %7384 = vmatprep.subr.mxu0 0.0
      %7385 = vmatpush1.msra.mxu0 %v7342
      %7386 = vmatprep.subr.mxu0 0.0
      %7387 = vmatpush1.msra.mxu0 %v7343
      %7388 = vmatprep.subr.mxu0 0.0
      %7389 = vmatpush1.msra.mxu0 %v7344
      %7390 = vmatprep.subr.mxu0 0.0
      %7391 = vmatpush1.msra.mxu0 %v7345
      %7392 = vmatprep.subr.mxu0 0.0
      %7393 = vmatpush1.msra.mxu0 %v7346
      %7394 = vmatprep.subr.mxu0 0.0
      %7395 = vmatpush1.msra.mxu0 %v7347
      %7396 = vmatprep.subr.mxu0 0.0
      %7397 = vmatpush1.msra.mxu0 %v7348
      %7398 = vmatprep.subr.mxu0 0.0
      %7399 = vmatpush1.msra.mxu0 %v7349
      %7400 = vmatprep.subr.mxu0 0.0
      %7401 = vmatpush1.msra.mxu0 0.0
      %7402 = vmatprep.subr.mxu0 0.0
      %7403 = vmatpush1.msra.mxu0 0.0
      %7404 = vmatprep.subr.mxu0 0.0
      %7405 = vmatpush1.msra.mxu0 0.0
      %7406 = vmatprep.subr.mxu0 0.0
      %7407 = vmatpush1.msra.mxu0 0.0
      %7408 = vmatprep.subr.mxu0 0.0
      %7409 = vmatpush1.msra.mxu0 0.0
      %7410 = vmatprep.subr.mxu0 0.0
      %7411 = vmatpush1.msra.mxu0 0.0
      %7412 = vmatprep.subr.mxu0 0.0
      %7413 = vmatpush1.msra.mxu0 0.0
      %7414 = vmatprep.subr.mxu0 0.0
      %7415 = vmatpush1.msra.mxu0 0.0
      %7416 = vmatprep.mubr.f32.mxu0 %v7087
      %7417 = vmatmul.mubr.f32.gmra.mrb[0].mxu0 %v7017
      %v7418 = vpop.f32.mrb[0].mxu0
      %v7419 = vadd.f32 0.0, %v7418
      %v7420 = vpop.f32.mrb[0].mxu0
      %7421 = vmatprep.mubr.f32.mxu0 %v7089
      %7422 = vmatmul.mubr.f32.gmra.mrb[0].mxu0 %v7018
      %v7423 = vpop.f32.mrb[0].mxu0
      %v7424 = vadd.f32 0.0, %v7423
      %v7425 = vpop.f32.mrb[0].mxu0
      %7426 = vmatprep.mubr.f32.mxu0 %v7091
      %7427 = vmatmul.mubr.f32.gmra.mrb[0].mxu0 %v7019
      %v7428 = vpop.f32.mrb[0].mxu0
      %v7429 = vadd.f32 0.0, %v7428
      %v7430 = vpop.f32.mrb[0].mxu0
      %7431 = vmatprep.mubr.f32.mxu0 %v7093
      %7432 = vmatmul.mubr.f32.gmra.mrb[0].mxu0 %v7020
      %v7433 = vpop.f32.mrb[0].mxu0
      %v7434 = vadd.f32 0.0, %v7433
      %v7435 = vpop.f32.mrb[0].mxu0
      %7436 = vmatprep.mubr.f32.mxu0 %v7095
      %7437 = vmatmul.mubr.f32.gmra.mrb[0].mxu0 %v7021
      %v7438 = vpop.f32.mrb[0].mxu0
      %v7439 = vadd.f32 0.0, %v7438
      %v7440 = vpop.f32.mrb[0].mxu0
      %7441 = vmatprep.mubr.f32.mxu0 %v7097
      %7442 = vmatmul.mubr.f32.gmra.mrb[0].mxu0 %v7022
      %v7443 = vpop.f32.mrb[0].mxu0
      %v7444 = vadd.f32 0.0, %v7443
      %v7445 = vpop.f32.mrb[0].mxu0
      %7446 = vmatprep.mubr.f32.mxu0 %v7099
      %7447 = vmatmul.mubr.f32.gmra.mrb[0].mxu0 %v7059
      %v7448 = vpop.f32.mrb[0].mxu0
      %v7449 = vadd.f32 0.0, %v7448
      %v7450 = vpop.f32.mrb[0].mxu0
      %7451 = vmatprep.mubr.f32.mxu0 %v7350
      %7452 = vmatmul.mubr.f32.gmra.mrb[0].mxu0 %v7324
      %v7453 = vpop.f32.mrb[0].mxu0
      %v7454 = vadd.f32 0.0, %v7453
      %v7455 = vpop.f32.mrb[0].mxu0
      %7456 = vdwg.mxu0
      %v7457 = vadd.f32 %v7275, %v7419
      %v7458 = vadd.f32 %v7280, %v7424
      %v7459 = vadd.f32 %v7285, %v7429
      %v7460 = vadd.f32 %v7290, %v7434
      %v7461 = vadd.f32 %v7295, %v7439
      %v7462 = vadd.f32 %v7300, %v7444
      %v7463 = vadd.f32 %v7305, %v7449
      %v7464 = vadd.f32 %v7310, %v7454
      %s7465 = scalar_lea.vmem %s2, 11
      %v7466 = vld [vmem:[%s7465] sm:$0x1]
      %v7468 = vlaneseq
      %v7469 = vshrl.u32 %v7468, 7
      %v7470 = vsub.s32 0, %v7469
      %v7471 = vrot.slane %v7466, %v7470
      %v7473 = vmul.f32 %v7457, %v7471
      %v7474 = vmul.f32 %v7458, %v7471
      %v7475 = vmul.f32 %v7459, %v7471
      %v7476 = vmul.f32 %v7460, %v7471
      %v7477 = vmul.f32 %v7461, %v7471
      %v7478 = vmul.f32 %v7462, %v7471
      %v7479 = vmul.f32 %v7463, %v7471
      %v7480 = vmul.f32 %v7464, %v7471
      %s7481 = scalar_lea.vmem %s3, 11
      %v7482 = vld [vmem:[%s7481] sm:$0x1]
      %v7484 = vlaneseq
      %v7485 = vshrl.u32 %v7484, 7
      %v7486 = vsub.s32 0, %v7485
      %v7487 = vrot.slane %v7482, %v7486
      %v7489 = vadd.f32 %v7473, %v7487
      %v7490 = vadd.f32 %v7474, %v7487
      %v7491 = vadd.f32 %v7475, %v7487
      %v7492 = vadd.f32 %v7476, %v7487
      %v7493 = vadd.f32 %v7477, %v7487
      %v7494 = vadd.f32 %v7478, %v7487
      %v7495 = vadd.f32 %v7479, %v7487
      %v7496 = vadd.f32 %v7480, %v7487
      %v7497 = vmax.f32 %v7489, 0.0
      %v7498 = vmax.f32 %v7490, 0.0
      %v7499 = vmax.f32 %v7491, 0.0
      %v7500 = vmax.f32 %v7492, 0.0
      %v7501 = vmax.f32 %v7493, 0.0
      %v7502 = vmax.f32 %v7494, 0.0
      %v7503 = vmax.f32 %v7495, 0.0
      %v7504 = vmax.f32 %v7496, 0.0
      %7505 = vst.msk [vmem:[%s1444 + $0x1] sm:$0xff] %vm198, %v7497
      %7506 = vst.msk [vmem:[%s1444 + $0x11] sm:$0xff] %vm198, %v7498
      %7507 = vst.msk [vmem:[%s1444 + $0x21] sm:$0xff] %vm198, %v7499
      %7508 = vst.msk [vmem:[%s1444 + $0x31] sm:$0xff] %vm198, %v7500
      %7509 = vst.msk [vmem:[%s1444 + $0x41] sm:$0xff] %vm198, %v7501
      %7510 = vst.msk [vmem:[%s1444 + $0x51] sm:$0xff] %vm198, %v7502
      %7511 = vst.msk [vmem:[%s1444 + $0x61] sm:$0xff] %vm198, %v7503
      %7512 = vst.msk [vmem:[%s1444 + $0x71] sm:$0xff] %vm198, %v7504
      %v7513 = vld [vmem:[#allocation3] sm:$0xff]
      %v7514 = vld [vmem:[#allocation3 + $0x8] sm:$0x3]
      %v7515 = vld [vmem:[#allocation3 + $0x10] sm:$0xff]
      %v7516 = vld [vmem:[#allocation3 + $0x18] sm:$0x3]
      %v7517 = vld [vmem:[#allocation3 + $0x20] sm:$0xff]
      %v7518 = vld [vmem:[#allocation3 + $0x28] sm:$0x3]
      %v7519 = vld [vmem:[#allocation3 + $0x30] sm:$0xff]
      %v7520 = vld [vmem:[#allocation3 + $0x38] sm:$0x3]
      %v7521 = vld [vmem:[#allocation3 + $0x40] sm:$0xff]
      %v7522 = vld [vmem:[#allocation3 + $0x48] sm:$0x3]
      %v7523 = vld [vmem:[#allocation3 + $0x50] sm:$0xff]
      %v7524 = vld [vmem:[#allocation3 + $0x58] sm:$0x3]
      %v7525 = vld [vmem:[#allocation3 + $0x60] sm:$0xff]
      %v7526 = vld [vmem:[#allocation3 + $0x68] sm:$0x3]
      %v7527 = vld [vmem:[#allocation3 + $0x70] sm:$0xff]
      %v7528 = vld [vmem:[#allocation3 + $0x78] sm:$0x3]
      %v7529 = vld [vmem:[#allocation3 + $0x80] sm:$0xff]
      %v7530 = vld [vmem:[#allocation3 + $0x88] sm:$0x3]
      %v7531 = vld [vmem:[#allocation3 + $0x90] sm:$0xff]
      %v7532 = vld [vmem:[#allocation3 + $0x98] sm:$0x3]
      %v7549 = vrot.slane %v7513, 1
      %v7550 = vrot.slane %v7514, 1
      %v7551 = vsel %vm276, %v7549, %v7550
      %v7552 = vrot.slane %v7515, 1
      %v7553 = vrot.slane %v7516, 1
      %v7554 = vsel %vm276, %v7552, %v7553
      %v7555 = vrot.slane %v7517, 1
      %v7556 = vrot.slane %v7518, 1
      %v7557 = vsel %vm276, %v7555, %v7556
      %v7558 = vrot.slane %v7519, 1
      %v7559 = vrot.slane %v7520, 1
      %v7560 = vsel %vm276, %v7558, %v7559
      %v7561 = vrot.slane %v7521, 1
      %v7562 = vrot.slane %v7522, 1
      %v7563 = vsel %vm276, %v7561, %v7562
      %v7564 = vrot.slane %v7523, 1
      %v7565 = vrot.slane %v7524, 1
      %v7566 = vsel %vm276, %v7564, %v7565
      %v7567 = vrot.slane %v7525, 1
      %v7568 = vrot.slane %v7526, 1
      %v7569 = vsel %vm276, %v7567, %v7568
      %v7570 = vrot.slane %v7527, 1
      %v7571 = vrot.slane %v7528, 1
      %v7572 = vsel %vm276, %v7570, %v7571
      %7573 = vrot.lane.b32.xlu0 %v7551, 64
      %v7574 = vpop.permute.xlu0 %7573
      %7575 = vrot.lane.b32.xlu0 %v7554, 64
      %v7576 = vpop.permute.xlu0 %7575
      %7577 = vrot.lane.b32.xlu0 %v7557, 64
      %v7578 = vpop.permute.xlu0 %7577
      %7579 = vrot.lane.b32.xlu0 %v7560, 64
      %v7580 = vpop.permute.xlu0 %7579
      %7581 = vrot.lane.b32.xlu0 %v7563, 64
      %v7582 = vpop.permute.xlu0 %7581
      %7583 = vrot.lane.b32.xlu0 %v7566, 64
      %v7584 = vpop.permute.xlu0 %7583
      %7585 = vrot.lane.b32.xlu0 %v7569, 64
      %v7586 = vpop.permute.xlu0 %7585
      %7587 = vrot.lane.b32.xlu0 %v7572, 64
      %v7588 = vpop.permute.xlu0 %7587
      %v7597 = vrot.slane %v7513, 2
      %v7598 = vrot.slane %v7514, 2
      %v7599 = vsel %vm325, %v7597, %v7598
      %v7600 = vrot.slane %v7515, 2
      %v7601 = vrot.slane %v7516, 2
      %v7602 = vsel %vm325, %v7600, %v7601
      %v7603 = vrot.slane %v7517, 2
      %v7604 = vrot.slane %v7518, 2
      %v7605 = vsel %vm325, %v7603, %v7604
      %v7606 = vrot.slane %v7519, 2
      %v7607 = vrot.slane %v7520, 2
      %v7608 = vsel %vm325, %v7606, %v7607
      %v7609 = vrot.slane %v7521, 2
      %v7610 = vrot.slane %v7522, 2
      %v7611 = vsel %vm325, %v7609, %v7610
      %v7612 = vrot.slane %v7523, 2
      %v7613 = vrot.slane %v7524, 2
      %v7614 = vsel %vm325, %v7612, %v7613
      %v7615 = vrot.slane %v7525, 2
      %v7616 = vrot.slane %v7526, 2
      %v7617 = vsel %vm325, %v7615, %v7616
      %v7618 = vrot.slane %v7527, 2
      %v7619 = vrot.slane %v7528, 2
      %v7620 = vsel %vm325, %v7618, %v7619
      %v7621 = vsel %vm198, %v7513, %v7574
      %v7622 = vsel %vm198, %v7515, %v7576
      %v7623 = vsel %vm198, %v7517, %v7578
      %v7624 = vsel %vm198, %v7519, %v7580
      %v7625 = vsel %vm198, %v7521, %v7582
      %v7626 = vsel %vm198, %v7523, %v7584
      %v7627 = vsel %vm198, %v7525, %v7586
      %v7628 = vsel %vm198, %v7527, %v7588
      %s7629 = scalar_lea.vmem %s1, 6912
      %v7630 = vld [vmem:[%s7629] sm:$0xff]
      %v7631 = vld [vmem:[%s7629 + $0x8] sm:$0xff]
      %v7632 = vld [vmem:[%s7629 + $0x10] sm:$0xff]
      %v7633 = vld [vmem:[%s7629 + $0x18] sm:$0xff]
      %v7634 = vld [vmem:[%s7629 + $0x20] sm:$0xff]
      %v7635 = vld [vmem:[%s7629 + $0x28] sm:$0xff]
      %v7636 = vld [vmem:[%s7629 + $0x30] sm:$0xff]
      %v7637 = vld [vmem:[%s7629 + $0x38] sm:$0xff]
      %v7638 = vld [vmem:[%s7629 + $0x40] sm:$0xff]
      %v7639 = vld [vmem:[%s7629 + $0x48] sm:$0xff]
      %v7640 = vld [vmem:[%s7629 + $0x50] sm:$0xff]
      %v7641 = vld [vmem:[%s7629 + $0x58] sm:$0xff]
      %v7642 = vld [vmem:[%s7629 + $0x60] sm:$0xff]
      %v7643 = vld [vmem:[%s7629 + $0x68] sm:$0xff]
      %v7644 = vld [vmem:[%s7629 + $0x70] sm:$0xff]
      %v7645 = vld [vmem:[%s7629 + $0x78] sm:$0xff]
      %v7646 = vld [vmem:[%s7629 + $0x80] sm:$0xff]
      %v7647 = vld [vmem:[%s7629 + $0x88] sm:$0xff]
      %v7648 = vld [vmem:[%s7629 + $0x90] sm:$0xff]
      %v7649 = vld [vmem:[%s7629 + $0x98] sm:$0xff]
      %v7650 = vld [vmem:[%s7629 + $0xa0] sm:$0xff]
      %v7651 = vld [vmem:[%s7629 + $0xa8] sm:$0xff]
      %v7652 = vld [vmem:[%s7629 + $0xb0] sm:$0xff]
      %v7653 = vld [vmem:[%s7629 + $0xb8] sm:$0xff]
      %v7656 = vrot.slane %v7529, 1
      %v7657 = vrot.slane %v7530, 1
      %v7658 = vsel %vm276, %v7656, %v7657
      %7659 = vrot.lane.b32.xlu0 %v7658, 64
      %v7660 = vpop.permute.xlu0 %7659
      %v7662 = vrot.slane %v7529, 2
      %v7663 = vrot.slane %v7530, 2
      %v7664 = vsel %vm325, %v7662, %v7663
      %v7665 = vsel %vm198, %v7529, %v7660
      %s7666 = scalar_lea.vmem %s1, 7104
      %v7667 = vld [vmem:[%s7666] sm:$0xff]
      %v7668 = vld [vmem:[%s7666 + $0x8] sm:$0xff]
      %v7669 = vld [vmem:[%s7666 + $0x10] sm:$0xff]
      %v7670 = vld [vmem:[%s7666 + $0x18] sm:$0xff]
      %v7671 = vld [vmem:[%s7666 + $0x20] sm:$0xff]
      %v7672 = vld [vmem:[%s7666 + $0x28] sm:$0xff]
      %v7673 = vld [vmem:[%s7666 + $0x30] sm:$0xff]
      %v7674 = vld [vmem:[%s7666 + $0x38] sm:$0xff]
      %v7675 = vld [vmem:[%s7666 + $0x40] sm:$0xff]
      %v7676 = vld [vmem:[%s7666 + $0x48] sm:$0xff]
      %v7677 = vld [vmem:[%s7666 + $0x50] sm:$0xff]
      %v7678 = vld [vmem:[%s7666 + $0x58] sm:$0xff]
      %v7679 = vld [vmem:[%s7666 + $0x60] sm:$0xff]
      %v7680 = vld [vmem:[%s7666 + $0x68] sm:$0xff]
      %v7681 = vld [vmem:[%s7666 + $0x70] sm:$0xff]
      %v7682 = vld [vmem:[%s7666 + $0x78] sm:$0xff]
      %v7683 = vld [vmem:[%s7666 + $0x80] sm:$0xff]
      %v7684 = vld [vmem:[%s7666 + $0x88] sm:$0xff]
      %v7685 = vld [vmem:[%s7666 + $0x90] sm:$0xff]
      %v7686 = vld [vmem:[%s7666 + $0x98] sm:$0xff]
      %v7687 = vld [vmem:[%s7666 + $0xa0] sm:$0xff]
      %v7688 = vld [vmem:[%s7666 + $0xa8] sm:$0xff]
      %v7689 = vld [vmem:[%s7666 + $0xb0] sm:$0xff]
      %v7690 = vld [vmem:[%s7666 + $0xb8] sm:$0xff]
      %v7691 = vsel %vm198, %v7602, 0
      %v7693 = vsel %vm198, %v7605, 0
      %v7695 = vsel %vm198, %v7608, 0
      %v7697 = vsel %vm198, %v7611, 0
      %v7699 = vsel %vm198, %v7614, 0
      %v7701 = vsel %vm198, %v7617, 0
      %v7703 = vsel %vm198, %v7620, 0
      %v7705 = vsel %vm198, %v7664, 0
      %7707 = vmatprep.subr.mxu0 0.0
      %7708 = vmatpush1.msra.mxu0 %v7667
      %7709 = vmatprep.subr.mxu0 0.0
      %7710 = vmatpush1.msra.mxu0 %v7668
      %7711 = vmatprep.subr.mxu0 0.0
      %7712 = vmatpush1.msra.mxu0 %v7669
      %7713 = vmatprep.subr.mxu0 0.0
      %7714 = vmatpush1.msra.mxu0 %v7670
      %7715 = vmatprep.subr.mxu0 0.0
      %7716 = vmatpush1.msra.mxu0 %v7671
      %7717 = vmatprep.subr.mxu0 0.0
      %7718 = vmatpush1.msra.mxu0 %v7672
      %7719 = vmatprep.subr.mxu0 0.0
      %7720 = vmatpush1.msra.mxu0 %v7673
      %7721 = vmatprep.subr.mxu0 0.0
      %7722 = vmatpush1.msra.mxu0 %v7674
      %7723 = vmatprep.subr.mxu0 0.0
      %7724 = vmatpush1.msra.mxu0 %v7675
      %7725 = vmatprep.subr.mxu0 0.0
      %7726 = vmatpush1.msra.mxu0 %v7676
      %7727 = vmatprep.subr.mxu0 0.0
      %7728 = vmatpush1.msra.mxu0 %v7677
      %7729 = vmatprep.subr.mxu0 0.0
      %7730 = vmatpush1.msra.mxu0 %v7678
      %7731 = vmatprep.subr.mxu0 0.0
      %7732 = vmatpush1.msra.mxu0 %v7679
      %7733 = vmatprep.subr.mxu0 0.0
      %7734 = vmatpush1.msra.mxu0 %v7680
      %7735 = vmatprep.subr.mxu0 0.0
      %7736 = vmatpush1.msra.mxu0 %v7681
      %7737 = vmatprep.subr.mxu0 0.0
      %7738 = vmatpush1.msra.mxu0 %v7682
      %7739 = vmatprep.subr.mxu0 0.0
      %7740 = vmatpush1.msra.mxu0 %v7683
      %7741 = vmatprep.subr.mxu0 0.0
      %7742 = vmatpush1.msra.mxu0 %v7684
      %7743 = vmatprep.subr.mxu0 0.0
      %7744 = vmatpush1.msra.mxu0 %v7685
      %7745 = vmatprep.subr.mxu0 0.0
      %7746 = vmatpush1.msra.mxu0 %v7686
      %7747 = vmatprep.subr.mxu0 0.0
      %7748 = vmatpush1.msra.mxu0 %v7687
      %7749 = vmatprep.subr.mxu0 0.0
      %7750 = vmatpush1.msra.mxu0 %v7688
      %7751 = vmatprep.subr.mxu0 0.0
      %7752 = vmatpush1.msra.mxu0 %v7689
      %7753 = vmatprep.subr.mxu0 0.0
      %7754 = vmatpush1.msra.mxu0 %v7690
      %7755 = vmatprep.subr.mxu0 0.0
      %7756 = vmatpush1.msra.mxu0 0.0
      %7757 = vmatprep.subr.mxu0 0.0
      %7758 = vmatpush1.msra.mxu0 0.0
      %7759 = vmatprep.subr.mxu0 0.0
      %7760 = vmatpush1.msra.mxu0 0.0
      %7761 = vmatprep.subr.mxu0 0.0
      %7762 = vmatpush1.msra.mxu0 0.0
      %7763 = vmatprep.subr.mxu0 0.0
      %7764 = vmatpush1.msra.mxu0 0.0
      %7765 = vmatprep.subr.mxu0 0.0
      %7766 = vmatpush1.msra.mxu0 0.0
      %7767 = vmatprep.subr.mxu0 0.0
      %7768 = vmatpush1.msra.mxu0 0.0
      %7769 = vmatprep.subr.mxu0 0.0
      %7770 = vmatpush1.msra.mxu0 0.0
      %7771 = vmatprep.mubr.f32.mxu0 %v7691
      %7772 = vmatmul.mubr.f32.gmra.mrb[0].mxu0 %v7622
      %v7773 = vpop.f32.mrb[0].mxu0
      %v7774 = vadd.f32 0.0, %v7773
      %v7775 = vpop.f32.mrb[0].mxu0
      %7776 = vmatprep.mubr.f32.mxu0 %v7693
      %7777 = vmatmul.mubr.f32.gmra.mrb[0].mxu0 %v7623
      %v7778 = vpop.f32.mrb[0].mxu0
      %v7779 = vadd.f32 0.0, %v7778
      %v7780 = vpop.f32.mrb[0].mxu0
      %7781 = vmatprep.mubr.f32.mxu0 %v7695
      %7782 = vmatmul.mubr.f32.gmra.mrb[0].mxu0 %v7624
      %v7783 = vpop.f32.mrb[0].mxu0
      %v7784 = vadd.f32 0.0, %v7783
      %v7785 = vpop.f32.mrb[0].mxu0
      %7786 = vmatprep.mubr.f32.mxu0 %v7697
      %7787 = vmatmul.mubr.f32.gmra.mrb[0].mxu0 %v7625
      %v7788 = vpop.f32.mrb[0].mxu0
      %v7789 = vadd.f32 0.0, %v7788
      %v7790 = vpop.f32.mrb[0].mxu0
      %7791 = vmatprep.mubr.f32.mxu0 %v7699
      %7792 = vmatmul.mubr.f32.gmra.mrb[0].mxu0 %v7626
      %v7793 = vpop.f32.mrb[0].mxu0
      %v7794 = vadd.f32 0.0, %v7793
      %v7795 = vpop.f32.mrb[0].mxu0
      %7796 = vmatprep.mubr.f32.mxu0 %v7701
      %7797 = vmatmul.mubr.f32.gmra.mrb[0].mxu0 %v7627
      %v7798 = vpop.f32.mrb[0].mxu0
      %v7799 = vadd.f32 0.0, %v7798
      %v7800 = vpop.f32.mrb[0].mxu0
      %7801 = vmatprep.mubr.f32.mxu0 %v7703
      %7802 = vmatmul.mubr.f32.gmra.mrb[0].mxu0 %v7628
      %v7803 = vpop.f32.mrb[0].mxu0
      %v7804 = vadd.f32 0.0, %v7803
      %v7805 = vpop.f32.mrb[0].mxu0
      %7806 = vmatprep.mubr.f32.mxu0 %v7705
      %7807 = vmatmul.mubr.f32.gmra.mrb[0].mxu0 %v7665
      %v7808 = vpop.f32.mrb[0].mxu0
      %v7809 = vadd.f32 0.0, %v7808
      %v7810 = vpop.f32.mrb[0].mxu0
      %7811 = vdwg.mxu0
      %v7812 = vsel %vm198, %v7599, 0
      %7814 = vmatprep.subr.mxu0 0.0
      %7815 = vmatpush1.msra.mxu0 %v7630
      %7816 = vmatprep.subr.mxu0 0.0
      %7817 = vmatpush1.msra.mxu0 %v7631
      %7818 = vmatprep.subr.mxu0 0.0
      %7819 = vmatpush1.msra.mxu0 %v7632
      %7820 = vmatprep.subr.mxu0 0.0
      %7821 = vmatpush1.msra.mxu0 %v7633
      %7822 = vmatprep.subr.mxu0 0.0
      %7823 = vmatpush1.msra.mxu0 %v7634
      %7824 = vmatprep.subr.mxu0 0.0
      %7825 = vmatpush1.msra.mxu0 %v7635
      %7826 = vmatprep.subr.mxu0 0.0
      %7827 = vmatpush1.msra.mxu0 %v7636
      %7828 = vmatprep.subr.mxu0 0.0
      %7829 = vmatpush1.msra.mxu0 %v7637
      %7830 = vmatprep.subr.mxu0 0.0
      %7831 = vmatpush1.msra.mxu0 %v7638
      %7832 = vmatprep.subr.mxu0 0.0
      %7833 = vmatpush1.msra.mxu0 %v7639
      %7834 = vmatprep.subr.mxu0 0.0
      %7835 = vmatpush1.msra.mxu0 %v7640
      %7836 = vmatprep.subr.mxu0 0.0
      %7837 = vmatpush1.msra.mxu0 %v7641
      %7838 = vmatprep.subr.mxu0 0.0
      %7839 = vmatpush1.msra.mxu0 %v7642
      %7840 = vmatprep.subr.mxu0 0.0
      %7841 = vmatpush1.msra.mxu0 %v7643
      %7842 = vmatprep.subr.mxu0 0.0
      %7843 = vmatpush1.msra.mxu0 %v7644
      %7844 = vmatprep.subr.mxu0 0.0
      %7845 = vmatpush1.msra.mxu0 %v7645
      %7846 = vmatprep.subr.mxu0 0.0
      %7847 = vmatpush1.msra.mxu0 %v7646
      %7848 = vmatprep.subr.mxu0 0.0
      %7849 = vmatpush1.msra.mxu0 %v7647
      %7850 = vmatprep.subr.mxu0 0.0
      %7851 = vmatpush1.msra.mxu0 %v7648
      %7852 = vmatprep.subr.mxu0 0.0
      %7853 = vmatpush1.msra.mxu0 %v7649
      %7854 = vmatprep.subr.mxu0 0.0
      %7855 = vmatpush1.msra.mxu0 %v7650
      %7856 = vmatprep.subr.mxu0 0.0
      %7857 = vmatpush1.msra.mxu0 %v7651
      %7858 = vmatprep.subr.mxu0 0.0
      %7859 = vmatpush1.msra.mxu0 %v7652
      %7860 = vmatprep.subr.mxu0 0.0
      %7861 = vmatpush1.msra.mxu0 %v7653
      %7862 = vmatprep.subr.mxu0 0.0
      %7863 = vmatpush1.msra.mxu0 0.0
      %7864 = vmatprep.subr.mxu0 0.0
      %7865 = vmatpush1.msra.mxu0 0.0
      %7866 = vmatprep.subr.mxu0 0.0
      %7867 = vmatpush1.msra.mxu0 0.0
      %7868 = vmatprep.subr.mxu0 0.0
      %7869 = vmatpush1.msra.mxu0 0.0
      %7870 = vmatprep.subr.mxu0 0.0
      %7871 = vmatpush1.msra.mxu0 0.0
      %7872 = vmatprep.subr.mxu0 0.0
      %7873 = vmatpush1.msra.mxu0 0.0
      %7874 = vmatprep.subr.mxu0 0.0
      %7875 = vmatpush1.msra.mxu0 0.0
      %7876 = vmatprep.subr.mxu0 0.0
      %7877 = vmatpush1.msra.mxu0 0.0
      %7878 = vmatprep.mubr.f32.mxu0 %v7812
      %7879 = vmatmul.mubr.f32.gmra.mrb[0].mxu0 %v7621
      %v7880 = vpop.f32.mrb[0].mxu0
      %v7881 = vadd.f32 %v7774, %v7880
      %v7882 = vpop.f32.mrb[0].mxu0
      %7883 = vmatprep.mubr.f32.mxu0 %v7691
      %7884 = vmatmul.mubr.f32.gmra.mrb[0].mxu0 %v7622
      %v7885 = vpop.f32.mrb[0].mxu0
      %v7886 = vadd.f32 %v7779, %v7885
      %v7887 = vpop.f32.mrb[0].mxu0
      %7888 = vmatprep.mubr.f32.mxu0 %v7693
      %7889 = vmatmul.mubr.f32.gmra.mrb[0].mxu0 %v7623
      %v7890 = vpop.f32.mrb[0].mxu0
      %v7891 = vadd.f32 %v7784, %v7890
      %v7892 = vpop.f32.mrb[0].mxu0
      %7893 = vmatprep.mubr.f32.mxu0 %v7695
      %7894 = vmatmul.mubr.f32.gmra.mrb[0].mxu0 %v7624
      %v7895 = vpop.f32.mrb[0].mxu0
      %v7896 = vadd.f32 %v7789, %v7895
      %v7897 = vpop.f32.mrb[0].mxu0
      %7898 = vmatprep.mubr.f32.mxu0 %v7697
      %7899 = vmatmul.mubr.f32.gmra.mrb[0].mxu0 %v7625
      %v7900 = vpop.f32.mrb[0].mxu0
      %v7901 = vadd.f32 %v7794, %v7900
      %v7902 = vpop.f32.mrb[0].mxu0
      %7903 = vmatprep.mubr.f32.mxu0 %v7699
      %7904 = vmatmul.mubr.f32.gmra.mrb[0].mxu0 %v7626
      %v7905 = vpop.f32.mrb[0].mxu0
      %v7906 = vadd.f32 %v7799, %v7905
      %v7907 = vpop.f32.mrb[0].mxu0
      %7908 = vmatprep.mubr.f32.mxu0 %v7701
      %7909 = vmatmul.mubr.f32.gmra.mrb[0].mxu0 %v7627
      %v7910 = vpop.f32.mrb[0].mxu0
      %v7911 = vadd.f32 %v7804, %v7910
      %v7912 = vpop.f32.mrb[0].mxu0
      %7913 = vmatprep.mubr.f32.mxu0 %v7703
      %7914 = vmatmul.mubr.f32.gmra.mrb[0].mxu0 %v7628
      %v7915 = vpop.f32.mrb[0].mxu0
      %v7916 = vadd.f32 %v7809, %v7915
      %v7917 = vpop.f32.mrb[0].mxu0
      %7918 = vdwg.mxu0
      %v7921 = vrot.slane %v7531, 1
      %v7922 = vrot.slane %v7532, 1
      %v7923 = vsel %vm276, %v7921, %v7922
      %7924 = vrot.lane.b32.xlu0 %v7923, 64
      %v7925 = vpop.permute.xlu0 %7924
      %v7927 = vrot.slane %v7531, 2
      %v7928 = vrot.slane %v7532, 2
      %v7929 = vsel %vm325, %v7927, %v7928
      %v7930 = vsel %vm198, %v7531, %v7925
      %s7931 = scalar_lea.vmem %s1, 7296
      %v7932 = vld [vmem:[%s7931] sm:$0xff]
      %v7933 = vld [vmem:[%s7931 + $0x8] sm:$0xff]
      %v7934 = vld [vmem:[%s7931 + $0x10] sm:$0xff]
      %v7935 = vld [vmem:[%s7931 + $0x18] sm:$0xff]
      %v7936 = vld [vmem:[%s7931 + $0x20] sm:$0xff]
      %v7937 = vld [vmem:[%s7931 + $0x28] sm:$0xff]
      %v7938 = vld [vmem:[%s7931 + $0x30] sm:$0xff]
      %v7939 = vld [vmem:[%s7931 + $0x38] sm:$0xff]
      %v7940 = vld [vmem:[%s7931 + $0x40] sm:$0xff]
      %v7941 = vld [vmem:[%s7931 + $0x48] sm:$0xff]
      %v7942 = vld [vmem:[%s7931 + $0x50] sm:$0xff]
      %v7943 = vld [vmem:[%s7931 + $0x58] sm:$0xff]
      %v7944 = vld [vmem:[%s7931 + $0x60] sm:$0xff]
      %v7945 = vld [vmem:[%s7931 + $0x68] sm:$0xff]
      %v7946 = vld [vmem:[%s7931 + $0x70] sm:$0xff]
      %v7947 = vld [vmem:[%s7931 + $0x78] sm:$0xff]
      %v7948 = vld [vmem:[%s7931 + $0x80] sm:$0xff]
      %v7949 = vld [vmem:[%s7931 + $0x88] sm:$0xff]
      %v7950 = vld [vmem:[%s7931 + $0x90] sm:$0xff]
      %v7951 = vld [vmem:[%s7931 + $0x98] sm:$0xff]
      %v7952 = vld [vmem:[%s7931 + $0xa0] sm:$0xff]
      %v7953 = vld [vmem:[%s7931 + $0xa8] sm:$0xff]
      %v7954 = vld [vmem:[%s7931 + $0xb0] sm:$0xff]
      %v7955 = vld [vmem:[%s7931 + $0xb8] sm:$0xff]
      %v7956 = vsel %vm198, %v7929, 0
      %7958 = vmatprep.subr.mxu0 0.0
      %7959 = vmatpush1.msra.mxu0 %v7932
      %7960 = vmatprep.subr.mxu0 0.0
      %7961 = vmatpush1.msra.mxu0 %v7933
      %7962 = vmatprep.subr.mxu0 0.0
      %7963 = vmatpush1.msra.mxu0 %v7934
      %7964 = vmatprep.subr.mxu0 0.0
      %7965 = vmatpush1.msra.mxu0 %v7935
      %7966 = vmatprep.subr.mxu0 0.0
      %7967 = vmatpush1.msra.mxu0 %v7936
      %7968 = vmatprep.subr.mxu0 0.0
      %7969 = vmatpush1.msra.mxu0 %v7937
      %7970 = vmatprep.subr.mxu0 0.0
      %7971 = vmatpush1.msra.mxu0 %v7938
      %7972 = vmatprep.subr.mxu0 0.0
      %7973 = vmatpush1.msra.mxu0 %v7939
      %7974 = vmatprep.subr.mxu0 0.0
      %7975 = vmatpush1.msra.mxu0 %v7940
      %7976 = vmatprep.subr.mxu0 0.0
      %7977 = vmatpush1.msra.mxu0 %v7941
      %7978 = vmatprep.subr.mxu0 0.0
      %7979 = vmatpush1.msra.mxu0 %v7942
      %7980 = vmatprep.subr.mxu0 0.0
      %7981 = vmatpush1.msra.mxu0 %v7943
      %7982 = vmatprep.subr.mxu0 0.0
      %7983 = vmatpush1.msra.mxu0 %v7944
      %7984 = vmatprep.subr.mxu0 0.0
      %7985 = vmatpush1.msra.mxu0 %v7945
      %7986 = vmatprep.subr.mxu0 0.0
      %7987 = vmatpush1.msra.mxu0 %v7946
      %7988 = vmatprep.subr.mxu0 0.0
      %7989 = vmatpush1.msra.mxu0 %v7947
      %7990 = vmatprep.subr.mxu0 0.0
      %7991 = vmatpush1.msra.mxu0 %v7948
      %7992 = vmatprep.subr.mxu0 0.0
      %7993 = vmatpush1.msra.mxu0 %v7949
      %7994 = vmatprep.subr.mxu0 0.0
      %7995 = vmatpush1.msra.mxu0 %v7950
      %7996 = vmatprep.subr.mxu0 0.0
      %7997 = vmatpush1.msra.mxu0 %v7951
      %7998 = vmatprep.subr.mxu0 0.0
      %7999 = vmatpush1.msra.mxu0 %v7952
      %8000 = vmatprep.subr.mxu0 0.0
      %8001 = vmatpush1.msra.mxu0 %v7953
      %8002 = vmatprep.subr.mxu0 0.0
      %8003 = vmatpush1.msra.mxu0 %v7954
      %8004 = vmatprep.subr.mxu0 0.0
      %8005 = vmatpush1.msra.mxu0 %v7955
      %8006 = vmatprep.subr.mxu0 0.0
      %8007 = vmatpush1.msra.mxu0 0.0
      %8008 = vmatprep.subr.mxu0 0.0
      %8009 = vmatpush1.msra.mxu0 0.0
      %8010 = vmatprep.subr.mxu0 0.0
      %8011 = vmatpush1.msra.mxu0 0.0
      %8012 = vmatprep.subr.mxu0 0.0
      %8013 = vmatpush1.msra.mxu0 0.0
      %8014 = vmatprep.subr.mxu0 0.0
      %8015 = vmatpush1.msra.mxu0 0.0
      %8016 = vmatprep.subr.mxu0 0.0
      %8017 = vmatpush1.msra.mxu0 0.0
      %8018 = vmatprep.subr.mxu0 0.0
      %8019 = vmatpush1.msra.mxu0 0.0
      %8020 = vmatprep.subr.mxu0 0.0
      %8021 = vmatpush1.msra.mxu0 0.0
      %8022 = vmatprep.mubr.f32.mxu0 %v7693
      %8023 = vmatmul.mubr.f32.gmra.mrb[0].mxu0 %v7623
      %v8024 = vpop.f32.mrb[0].mxu0
      %v8025 = vadd.f32 0.0, %v8024
      %v8026 = vpop.f32.mrb[0].mxu0
      %8027 = vmatprep.mubr.f32.mxu0 %v7695
      %8028 = vmatmul.mubr.f32.gmra.mrb[0].mxu0 %v7624
      %v8029 = vpop.f32.mrb[0].mxu0
      %v8030 = vadd.f32 0.0, %v8029
      %v8031 = vpop.f32.mrb[0].mxu0
      %8032 = vmatprep.mubr.f32.mxu0 %v7697
      %8033 = vmatmul.mubr.f32.gmra.mrb[0].mxu0 %v7625
      %v8034 = vpop.f32.mrb[0].mxu0
      %v8035 = vadd.f32 0.0, %v8034
      %v8036 = vpop.f32.mrb[0].mxu0
      %8037 = vmatprep.mubr.f32.mxu0 %v7699
      %8038 = vmatmul.mubr.f32.gmra.mrb[0].mxu0 %v7626
      %v8039 = vpop.f32.mrb[0].mxu0
      %v8040 = vadd.f32 0.0, %v8039
      %v8041 = vpop.f32.mrb[0].mxu0
      %8042 = vmatprep.mubr.f32.mxu0 %v7701
      %8043 = vmatmul.mubr.f32.gmra.mrb[0].mxu0 %v7627
      %v8044 = vpop.f32.mrb[0].mxu0
      %v8045 = vadd.f32 0.0, %v8044
      %v8046 = vpop.f32.mrb[0].mxu0
      %8047 = vmatprep.mubr.f32.mxu0 %v7703
      %8048 = vmatmul.mubr.f32.gmra.mrb[0].mxu0 %v7628
      %v8049 = vpop.f32.mrb[0].mxu0
      %v8050 = vadd.f32 0.0, %v8049
      %v8051 = vpop.f32.mrb[0].mxu0
      %8052 = vmatprep.mubr.f32.mxu0 %v7705
      %8053 = vmatmul.mubr.f32.gmra.mrb[0].mxu0 %v7665
      %v8054 = vpop.f32.mrb[0].mxu0
      %v8055 = vadd.f32 0.0, %v8054
      %v8056 = vpop.f32.mrb[0].mxu0
      %8057 = vmatprep.mubr.f32.mxu0 %v7956
      %8058 = vmatmul.mubr.f32.gmra.mrb[0].mxu0 %v7930
      %v8059 = vpop.f32.mrb[0].mxu0
      %v8060 = vadd.f32 0.0, %v8059
      %v8061 = vpop.f32.mrb[0].mxu0
      %8062 = vdwg.mxu0
      %v8063 = vadd.f32 %v7881, %v8025
      %v8064 = vadd.f32 %v7886, %v8030
      %v8065 = vadd.f32 %v7891, %v8035
      %v8066 = vadd.f32 %v7896, %v8040
      %v8067 = vadd.f32 %v7901, %v8045
      %v8068 = vadd.f32 %v7906, %v8050
      %v8069 = vadd.f32 %v7911, %v8055
      %v8070 = vadd.f32 %v7916, %v8060
      %s8071 = scalar_lea.vmem %s2, 12
      %v8072 = vld [vmem:[%s8071] sm:$0x1]
      %v8074 = vlaneseq
      %v8075 = vshrl.u32 %v8074, 7
      %v8076 = vsub.s32 0, %v8075
      %v8077 = vrot.slane %v8072, %v8076
      %v8079 = vmul.f32 %v8063, %v8077
      %v8080 = vmul.f32 %v8064, %v8077
      %v8081 = vmul.f32 %v8065, %v8077
      %v8082 = vmul.f32 %v8066, %v8077
      %v8083 = vmul.f32 %v8067, %v8077
      %v8084 = vmul.f32 %v8068, %v8077
      %v8085 = vmul.f32 %v8069, %v8077
      %v8086 = vmul.f32 %v8070, %v8077
      %s8087 = scalar_lea.vmem %s3, 12
      %v8088 = vld [vmem:[%s8087] sm:$0x1]
      %v8090 = vlaneseq
      %v8091 = vshrl.u32 %v8090, 7
      %v8092 = vsub.s32 0, %v8091
      %v8093 = vrot.slane %v8088, %v8092
      %v8095 = vadd.f32 %v8079, %v8093
      %v8096 = vadd.f32 %v8080, %v8093
      %v8097 = vadd.f32 %v8081, %v8093
      %v8098 = vadd.f32 %v8082, %v8093
      %v8099 = vadd.f32 %v8083, %v8093
      %v8100 = vadd.f32 %v8084, %v8093
      %v8101 = vadd.f32 %v8085, %v8093
      %v8102 = vadd.f32 %v8086, %v8093
      %v8103 = vmax.f32 %v8095, 0.0
      %v8104 = vmax.f32 %v8096, 0.0
      %v8105 = vmax.f32 %v8097, 0.0
      %v8106 = vmax.f32 %v8098, 0.0
      %v8107 = vmax.f32 %v8099, 0.0
      %v8108 = vmax.f32 %v8100, 0.0
      %v8109 = vmax.f32 %v8101, 0.0
      %v8110 = vmax.f32 %v8102, 0.0
      %8111 = vst.msk [vmem:[%s837 + $0x1] sm:$0xff] %vm198, %v8103
      %8112 = vst.msk [vmem:[%s837 + $0x11] sm:$0xff] %vm198, %v8104
      %8113 = vst.msk [vmem:[%s837 + $0x21] sm:$0xff] %vm198, %v8105
      %8114 = vst.msk [vmem:[%s837 + $0x31] sm:$0xff] %vm198, %v8106
      %8115 = vst.msk [vmem:[%s837 + $0x41] sm:$0xff] %vm198, %v8107
      %8116 = vst.msk [vmem:[%s837 + $0x51] sm:$0xff] %vm198, %v8108
      %8117 = vst.msk [vmem:[%s837 + $0x61] sm:$0xff] %vm198, %v8109
      %8118 = vst.msk [vmem:[%s837 + $0x71] sm:$0xff] %vm198, %v8110
      %v8119 = vld [vmem:[#allocation2] sm:$0xff]
      %v8120 = vld [vmem:[#allocation2 + $0x8] sm:$0x3]
      %v8121 = vld [vmem:[#allocation2 + $0x10] sm:$0xff]
      %v8122 = vld [vmem:[#allocation2 + $0x18] sm:$0x3]
      %v8123 = vld [vmem:[#allocation2 + $0x20] sm:$0xff]
      %v8124 = vld [vmem:[#allocation2 + $0x28] sm:$0x3]
      %v8125 = vld [vmem:[#allocation2 + $0x30] sm:$0xff]
      %v8126 = vld [vmem:[#allocation2 + $0x38] sm:$0x3]
      %v8127 = vld [vmem:[#allocation2 + $0x40] sm:$0xff]
      %v8128 = vld [vmem:[#allocation2 + $0x48] sm:$0x3]
      %v8129 = vld [vmem:[#allocation2 + $0x50] sm:$0xff]
      %v8130 = vld [vmem:[#allocation2 + $0x58] sm:$0x3]
      %v8131 = vld [vmem:[#allocation2 + $0x60] sm:$0xff]
      %v8132 = vld [vmem:[#allocation2 + $0x68] sm:$0x3]
      %v8133 = vld [vmem:[#allocation2 + $0x70] sm:$0xff]
      %v8134 = vld [vmem:[#allocation2 + $0x78] sm:$0x3]
      %v8135 = vld [vmem:[#allocation2 + $0x80] sm:$0xff]
      %v8136 = vld [vmem:[#allocation2 + $0x88] sm:$0x3]
      %v8137 = vld [vmem:[#allocation2 + $0x90] sm:$0xff]
      %v8138 = vld [vmem:[#allocation2 + $0x98] sm:$0x3]
      %v8155 = vrot.slane %v8119, 1
      %v8156 = vrot.slane %v8120, 1
      %v8157 = vsel %vm276, %v8155, %v8156
      %v8158 = vrot.slane %v8121, 1
      %v8159 = vrot.slane %v8122, 1
      %v8160 = vsel %vm276, %v8158, %v8159
      %v8161 = vrot.slane %v8123, 1
      %v8162 = vrot.slane %v8124, 1
      %v8163 = vsel %vm276, %v8161, %v8162
      %v8164 = vrot.slane %v8125, 1
      %v8165 = vrot.slane %v8126, 1
      %v8166 = vsel %vm276, %v8164, %v8165
      %v8167 = vrot.slane %v8127, 1
      %v8168 = vrot.slane %v8128, 1
      %v8169 = vsel %vm276, %v8167, %v8168
      %v8170 = vrot.slane %v8129, 1
      %v8171 = vrot.slane %v8130, 1
      %v8172 = vsel %vm276, %v8170, %v8171
      %v8173 = vrot.slane %v8131, 1
      %v8174 = vrot.slane %v8132, 1
      %v8175 = vsel %vm276, %v8173, %v8174
      %v8176 = vrot.slane %v8133, 1
      %v8177 = vrot.slane %v8134, 1
      %v8178 = vsel %vm276, %v8176, %v8177
      %8179 = vrot.lane.b32.xlu0 %v8157, 64
      %v8180 = vpop.permute.xlu0 %8179
      %8181 = vrot.lane.b32.xlu0 %v8160, 64
      %v8182 = vpop.permute.xlu0 %8181
      %8183 = vrot.lane.b32.xlu0 %v8163, 64
      %v8184 = vpop.permute.xlu0 %8183
      %8185 = vrot.lane.b32.xlu0 %v8166, 64
      %v8186 = vpop.permute.xlu0 %8185
      %8187 = vrot.lane.b32.xlu0 %v8169, 64
      %v8188 = vpop.permute.xlu0 %8187
      %8189 = vrot.lane.b32.xlu0 %v8172, 64
      %v8190 = vpop.permute.xlu0 %8189
      %8191 = vrot.lane.b32.xlu0 %v8175, 64
      %v8192 = vpop.permute.xlu0 %8191
      %8193 = vrot.lane.b32.xlu0 %v8178, 64
      %v8194 = vpop.permute.xlu0 %8193
      %v8203 = vrot.slane %v8119, 2
      %v8204 = vrot.slane %v8120, 2
      %v8205 = vsel %vm325, %v8203, %v8204
      %v8206 = vrot.slane %v8121, 2
      %v8207 = vrot.slane %v8122, 2
      %v8208 = vsel %vm325, %v8206, %v8207
      %v8209 = vrot.slane %v8123, 2
      %v8210 = vrot.slane %v8124, 2
      %v8211 = vsel %vm325, %v8209, %v8210
      %v8212 = vrot.slane %v8125, 2
      %v8213 = vrot.slane %v8126, 2
      %v8214 = vsel %vm325, %v8212, %v8213
      %v8215 = vrot.slane %v8127, 2
      %v8216 = vrot.slane %v8128, 2
      %v8217 = vsel %vm325, %v8215, %v8216
      %v8218 = vrot.slane %v8129, 2
      %v8219 = vrot.slane %v8130, 2
      %v8220 = vsel %vm325, %v8218, %v8219
      %v8221 = vrot.slane %v8131, 2
      %v8222 = vrot.slane %v8132, 2
      %v8223 = vsel %vm325, %v8221, %v8222
      %v8224 = vrot.slane %v8133, 2
      %v8225 = vrot.slane %v8134, 2
      %v8226 = vsel %vm325, %v8224, %v8225
      %v8227 = vsel %vm198, %v8119, %v8180
      %v8228 = vsel %vm198, %v8121, %v8182
      %v8229 = vsel %vm198, %v8123, %v8184
      %v8230 = vsel %vm198, %v8125, %v8186
      %v8231 = vsel %vm198, %v8127, %v8188
      %v8232 = vsel %vm198, %v8129, %v8190
      %v8233 = vsel %vm198, %v8131, %v8192
      %v8234 = vsel %vm198, %v8133, %v8194
      %s8235 = scalar_lea.vmem %s1, 7488
      %v8236 = vld [vmem:[%s8235] sm:$0xff]
      %v8237 = vld [vmem:[%s8235 + $0x8] sm:$0xff]
      %v8238 = vld [vmem:[%s8235 + $0x10] sm:$0xff]
      %v8239 = vld [vmem:[%s8235 + $0x18] sm:$0xff]
      %v8240 = vld [vmem:[%s8235 + $0x20] sm:$0xff]
      %v8241 = vld [vmem:[%s8235 + $0x28] sm:$0xff]
      %v8242 = vld [vmem:[%s8235 + $0x30] sm:$0xff]
      %v8243 = vld [vmem:[%s8235 + $0x38] sm:$0xff]
      %v8244 = vld [vmem:[%s8235 + $0x40] sm:$0xff]
      %v8245 = vld [vmem:[%s8235 + $0x48] sm:$0xff]
      %v8246 = vld [vmem:[%s8235 + $0x50] sm:$0xff]
      %v8247 = vld [vmem:[%s8235 + $0x58] sm:$0xff]
      %v8248 = vld [vmem:[%s8235 + $0x60] sm:$0xff]
      %v8249 = vld [vmem:[%s8235 + $0x68] sm:$0xff]
      %v8250 = vld [vmem:[%s8235 + $0x70] sm:$0xff]
      %v8251 = vld [vmem:[%s8235 + $0x78] sm:$0xff]
      %v8252 = vld [vmem:[%s8235 + $0x80] sm:$0xff]
      %v8253 = vld [vmem:[%s8235 + $0x88] sm:$0xff]
      %v8254 = vld [vmem:[%s8235 + $0x90] sm:$0xff]
      %v8255 = vld [vmem:[%s8235 + $0x98] sm:$0xff]
      %v8256 = vld [vmem:[%s8235 + $0xa0] sm:$0xff]
      %v8257 = vld [vmem:[%s8235 + $0xa8] sm:$0xff]
      %v8258 = vld [vmem:[%s8235 + $0xb0] sm:$0xff]
      %v8259 = vld [vmem:[%s8235 + $0xb8] sm:$0xff]
      %v8262 = vrot.slane %v8135, 1
      %v8263 = vrot.slane %v8136, 1
      %v8264 = vsel %vm276, %v8262, %v8263
      %8265 = vrot.lane.b32.xlu0 %v8264, 64
      %v8266 = vpop.permute.xlu0 %8265
      %v8268 = vrot.slane %v8135, 2
      %v8269 = vrot.slane %v8136, 2
      %v8270 = vsel %vm325, %v8268, %v8269
      %v8271 = vsel %vm198, %v8135, %v8266
      %s8272 = scalar_lea.vmem %s1, 7680
      %v8273 = vld [vmem:[%s8272] sm:$0xff]
      %v8274 = vld [vmem:[%s8272 + $0x8] sm:$0xff]
      %v8275 = vld [vmem:[%s8272 + $0x10] sm:$0xff]
      %v8276 = vld [vmem:[%s8272 + $0x18] sm:$0xff]
      %v8277 = vld [vmem:[%s8272 + $0x20] sm:$0xff]
      %v8278 = vld [vmem:[%s8272 + $0x28] sm:$0xff]
      %v8279 = vld [vmem:[%s8272 + $0x30] sm:$0xff]
      %v8280 = vld [vmem:[%s8272 + $0x38] sm:$0xff]
      %v8281 = vld [vmem:[%s8272 + $0x40] sm:$0xff]
      %v8282 = vld [vmem:[%s8272 + $0x48] sm:$0xff]
      %v8283 = vld [vmem:[%s8272 + $0x50] sm:$0xff]
      %v8284 = vld [vmem:[%s8272 + $0x58] sm:$0xff]
      %v8285 = vld [vmem:[%s8272 + $0x60] sm:$0xff]
      %v8286 = vld [vmem:[%s8272 + $0x68] sm:$0xff]
      %v8287 = vld [vmem:[%s8272 + $0x70] sm:$0xff]
      %v8288 = vld [vmem:[%s8272 + $0x78] sm:$0xff]
      %v8289 = vld [vmem:[%s8272 + $0x80] sm:$0xff]
      %v8290 = vld [vmem:[%s8272 + $0x88] sm:$0xff]
      %v8291 = vld [vmem:[%s8272 + $0x90] sm:$0xff]
      %v8292 = vld [vmem:[%s8272 + $0x98] sm:$0xff]
      %v8293 = vld [vmem:[%s8272 + $0xa0] sm:$0xff]
      %v8294 = vld [vmem:[%s8272 + $0xa8] sm:$0xff]
      %v8295 = vld [vmem:[%s8272 + $0xb0] sm:$0xff]
      %v8296 = vld [vmem:[%s8272 + $0xb8] sm:$0xff]
      %v8297 = vsel %vm198, %v8208, 0
      %v8299 = vsel %vm198, %v8211, 0
      %v8301 = vsel %vm198, %v8214, 0
      %v8303 = vsel %vm198, %v8217, 0
      %v8305 = vsel %vm198, %v8220, 0
      %v8307 = vsel %vm198, %v8223, 0
      %v8309 = vsel %vm198, %v8226, 0
      %v8311 = vsel %vm198, %v8270, 0
      %8313 = vmatprep.subr.mxu0 0.0
      %8314 = vmatpush1.msra.mxu0 %v8273
      %8315 = vmatprep.subr.mxu0 0.0
      %8316 = vmatpush1.msra.mxu0 %v8274
      %8317 = vmatprep.subr.mxu0 0.0
      %8318 = vmatpush1.msra.mxu0 %v8275
      %8319 = vmatprep.subr.mxu0 0.0
      %8320 = vmatpush1.msra.mxu0 %v8276
      %8321 = vmatprep.subr.mxu0 0.0
      %8322 = vmatpush1.msra.mxu0 %v8277
      %8323 = vmatprep.subr.mxu0 0.0
      %8324 = vmatpush1.msra.mxu0 %v8278
      %8325 = vmatprep.subr.mxu0 0.0
      %8326 = vmatpush1.msra.mxu0 %v8279
      %8327 = vmatprep.subr.mxu0 0.0
      %8328 = vmatpush1.msra.mxu0 %v8280
      %8329 = vmatprep.subr.mxu0 0.0
      %8330 = vmatpush1.msra.mxu0 %v8281
      %8331 = vmatprep.subr.mxu0 0.0
      %8332 = vmatpush1.msra.mxu0 %v8282
      %8333 = vmatprep.subr.mxu0 0.0
      %8334 = vmatpush1.msra.mxu0 %v8283
      %8335 = vmatprep.subr.mxu0 0.0
      %8336 = vmatpush1.msra.mxu0 %v8284
      %8337 = vmatprep.subr.mxu0 0.0
      %8338 = vmatpush1.msra.mxu0 %v8285
      %8339 = vmatprep.subr.mxu0 0.0
      %8340 = vmatpush1.msra.mxu0 %v8286
      %8341 = vmatprep.subr.mxu0 0.0
      %8342 = vmatpush1.msra.mxu0 %v8287
      %8343 = vmatprep.subr.mxu0 0.0
      %8344 = vmatpush1.msra.mxu0 %v8288
      %8345 = vmatprep.subr.mxu0 0.0
      %8346 = vmatpush1.msra.mxu0 %v8289
      %8347 = vmatprep.subr.mxu0 0.0
      %8348 = vmatpush1.msra.mxu0 %v8290
      %8349 = vmatprep.subr.mxu0 0.0
      %8350 = vmatpush1.msra.mxu0 %v8291
      %8351 = vmatprep.subr.mxu0 0.0
      %8352 = vmatpush1.msra.mxu0 %v8292
      %8353 = vmatprep.subr.mxu0 0.0
      %8354 = vmatpush1.msra.mxu0 %v8293
      %8355 = vmatprep.subr.mxu0 0.0
      %8356 = vmatpush1.msra.mxu0 %v8294
      %8357 = vmatprep.subr.mxu0 0.0
      %8358 = vmatpush1.msra.mxu0 %v8295
      %8359 = vmatprep.subr.mxu0 0.0
      %8360 = vmatpush1.msra.mxu0 %v8296
      %8361 = vmatprep.subr.mxu0 0.0
      %8362 = vmatpush1.msra.mxu0 0.0
      %8363 = vmatprep.subr.mxu0 0.0
      %8364 = vmatpush1.msra.mxu0 0.0
      %8365 = vmatprep.subr.mxu0 0.0
      %8366 = vmatpush1.msra.mxu0 0.0
      %8367 = vmatprep.subr.mxu0 0.0
      %8368 = vmatpush1.msra.mxu0 0.0
      %8369 = vmatprep.subr.mxu0 0.0
      %8370 = vmatpush1.msra.mxu0 0.0
      %8371 = vmatprep.subr.mxu0 0.0
      %8372 = vmatpush1.msra.mxu0 0.0
      %8373 = vmatprep.subr.mxu0 0.0
      %8374 = vmatpush1.msra.mxu0 0.0
      %8375 = vmatprep.subr.mxu0 0.0
      %8376 = vmatpush1.msra.mxu0 0.0
      %8377 = vmatprep.mubr.f32.mxu0 %v8297
      %8378 = vmatmul.mubr.f32.gmra.mrb[0].mxu0 %v8228
      %v8379 = vpop.f32.mrb[0].mxu0
      %v8380 = vadd.f32 0.0, %v8379
      %v8381 = vpop.f32.mrb[0].mxu0
      %8382 = vmatprep.mubr.f32.mxu0 %v8299
      %8383 = vmatmul.mubr.f32.gmra.mrb[0].mxu0 %v8229
      %v8384 = vpop.f32.mrb[0].mxu0
      %v8385 = vadd.f32 0.0, %v8384
      %v8386 = vpop.f32.mrb[0].mxu0
      %8387 = vmatprep.mubr.f32.mxu0 %v8301
      %8388 = vmatmul.mubr.f32.gmra.mrb[0].mxu0 %v8230
      %v8389 = vpop.f32.mrb[0].mxu0
      %v8390 = vadd.f32 0.0, %v8389
      %v8391 = vpop.f32.mrb[0].mxu0
      %8392 = vmatprep.mubr.f32.mxu0 %v8303
      %8393 = vmatmul.mubr.f32.gmra.mrb[0].mxu0 %v8231
      %v8394 = vpop.f32.mrb[0].mxu0
      %v8395 = vadd.f32 0.0, %v8394
      %v8396 = vpop.f32.mrb[0].mxu0
      %8397 = vmatprep.mubr.f32.mxu0 %v8305
      %8398 = vmatmul.mubr.f32.gmra.mrb[0].mxu0 %v8232
      %v8399 = vpop.f32.mrb[0].mxu0
      %v8400 = vadd.f32 0.0, %v8399
      %v8401 = vpop.f32.mrb[0].mxu0
      %8402 = vmatprep.mubr.f32.mxu0 %v8307
      %8403 = vmatmul.mubr.f32.gmra.mrb[0].mxu0 %v8233
      %v8404 = vpop.f32.mrb[0].mxu0
      %v8405 = vadd.f32 0.0, %v8404
      %v8406 = vpop.f32.mrb[0].mxu0
      %8407 = vmatprep.mubr.f32.mxu0 %v8309
      %8408 = vmatmul.mubr.f32.gmra.mrb[0].mxu0 %v8234
      %v8409 = vpop.f32.mrb[0].mxu0
      %v8410 = vadd.f32 0.0, %v8409
      %v8411 = vpop.f32.mrb[0].mxu0
      %8412 = vmatprep.mubr.f32.mxu0 %v8311
      %8413 = vmatmul.mubr.f32.gmra.mrb[0].mxu0 %v8271
      %v8414 = vpop.f32.mrb[0].mxu0
      %v8415 = vadd.f32 0.0, %v8414
      %v8416 = vpop.f32.mrb[0].mxu0
      %8417 = vdwg.mxu0
      %v8418 = vsel %vm198, %v8205, 0
      %8420 = vmatprep.subr.mxu0 0.0
      %8421 = vmatpush1.msra.mxu0 %v8236
      %8422 = vmatprep.subr.mxu0 0.0
      %8423 = vmatpush1.msra.mxu0 %v8237
      %8424 = vmatprep.subr.mxu0 0.0
      %8425 = vmatpush1.msra.mxu0 %v8238
      %8426 = vmatprep.subr.mxu0 0.0
      %8427 = vmatpush1.msra.mxu0 %v8239
      %8428 = vmatprep.subr.mxu0 0.0
      %8429 = vmatpush1.msra.mxu0 %v8240
      %8430 = vmatprep.subr.mxu0 0.0
      %8431 = vmatpush1.msra.mxu0 %v8241
      %8432 = vmatprep.subr.mxu0 0.0
      %8433 = vmatpush1.msra.mxu0 %v8242
      %8434 = vmatprep.subr.mxu0 0.0
      %8435 = vmatpush1.msra.mxu0 %v8243
      %8436 = vmatprep.subr.mxu0 0.0
      %8437 = vmatpush1.msra.mxu0 %v8244
      %8438 = vmatprep.subr.mxu0 0.0
      %8439 = vmatpush1.msra.mxu0 %v8245
      %8440 = vmatprep.subr.mxu0 0.0
      %8441 = vmatpush1.msra.mxu0 %v8246
      %8442 = vmatprep.subr.mxu0 0.0
      %8443 = vmatpush1.msra.mxu0 %v8247
      %8444 = vmatprep.subr.mxu0 0.0
      %8445 = vmatpush1.msra.mxu0 %v8248
      %8446 = vmatprep.subr.mxu0 0.0
      %8447 = vmatpush1.msra.mxu0 %v8249
      %8448 = vmatprep.subr.mxu0 0.0
      %8449 = vmatpush1.msra.mxu0 %v8250
      %8450 = vmatprep.subr.mxu0 0.0
      %8451 = vmatpush1.msra.mxu0 %v8251
      %8452 = vmatprep.subr.mxu0 0.0
      %8453 = vmatpush1.msra.mxu0 %v8252
      %8454 = vmatprep.subr.mxu0 0.0
      %8455 = vmatpush1.msra.mxu0 %v8253
      %8456 = vmatprep.subr.mxu0 0.0
      %8457 = vmatpush1.msra.mxu0 %v8254
      %8458 = vmatprep.subr.mxu0 0.0
      %8459 = vmatpush1.msra.mxu0 %v8255
      %8460 = vmatprep.subr.mxu0 0.0
      %8461 = vmatpush1.msra.mxu0 %v8256
      %8462 = vmatprep.subr.mxu0 0.0
      %8463 = vmatpush1.msra.mxu0 %v8257
      %8464 = vmatprep.subr.mxu0 0.0
      %8465 = vmatpush1.msra.mxu0 %v8258
      %8466 = vmatprep.subr.mxu0 0.0
      %8467 = vmatpush1.msra.mxu0 %v8259
      %8468 = vmatprep.subr.mxu0 0.0
      %8469 = vmatpush1.msra.mxu0 0.0
      %8470 = vmatprep.subr.mxu0 0.0
      %8471 = vmatpush1.msra.mxu0 0.0
      %8472 = vmatprep.subr.mxu0 0.0
      %8473 = vmatpush1.msra.mxu0 0.0
      %8474 = vmatprep.subr.mxu0 0.0
      %8475 = vmatpush1.msra.mxu0 0.0
      %8476 = vmatprep.subr.mxu0 0.0
      %8477 = vmatpush1.msra.mxu0 0.0
      %8478 = vmatprep.subr.mxu0 0.0
      %8479 = vmatpush1.msra.mxu0 0.0
      %8480 = vmatprep.subr.mxu0 0.0
      %8481 = vmatpush1.msra.mxu0 0.0
      %8482 = vmatprep.subr.mxu0 0.0
      %8483 = vmatpush1.msra.mxu0 0.0
      %8484 = vmatprep.mubr.f32.mxu0 %v8418
      %8485 = vmatmul.mubr.f32.gmra.mrb[0].mxu0 %v8227
      %v8486 = vpop.f32.mrb[0].mxu0
      %v8487 = vadd.f32 %v8380, %v8486
      %v8488 = vpop.f32.mrb[0].mxu0
      %8489 = vmatprep.mubr.f32.mxu0 %v8297
      %8490 = vmatmul.mubr.f32.gmra.mrb[0].mxu0 %v8228
      %v8491 = vpop.f32.mrb[0].mxu0
      %v8492 = vadd.f32 %v8385, %v8491
      %v8493 = vpop.f32.mrb[0].mxu0
      %8494 = vmatprep.mubr.f32.mxu0 %v8299
      %8495 = vmatmul.mubr.f32.gmra.mrb[0].mxu0 %v8229
      %v8496 = vpop.f32.mrb[0].mxu0
      %v8497 = vadd.f32 %v8390, %v8496
      %v8498 = vpop.f32.mrb[0].mxu0
      %8499 = vmatprep.mubr.f32.mxu0 %v8301
      %8500 = vmatmul.mubr.f32.gmra.mrb[0].mxu0 %v8230
      %v8501 = vpop.f32.mrb[0].mxu0
      %v8502 = vadd.f32 %v8395, %v8501
      %v8503 = vpop.f32.mrb[0].mxu0
      %8504 = vmatprep.mubr.f32.mxu0 %v8303
      %8505 = vmatmul.mubr.f32.gmra.mrb[0].mxu0 %v8231
      %v8506 = vpop.f32.mrb[0].mxu0
      %v8507 = vadd.f32 %v8400, %v8506
      %v8508 = vpop.f32.mrb[0].mxu0
      %8509 = vmatprep.mubr.f32.mxu0 %v8305
      %8510 = vmatmul.mubr.f32.gmra.mrb[0].mxu0 %v8232
      %v8511 = vpop.f32.mrb[0].mxu0
      %v8512 = vadd.f32 %v8405, %v8511
      %v8513 = vpop.f32.mrb[0].mxu0
      %8514 = vmatprep.mubr.f32.mxu0 %v8307
      %8515 = vmatmul.mubr.f32.gmra.mrb[0].mxu0 %v8233
      %v8516 = vpop.f32.mrb[0].mxu0
      %v8517 = vadd.f32 %v8410, %v8516
      %v8518 = vpop.f32.mrb[0].mxu0
      %8519 = vmatprep.mubr.f32.mxu0 %v8309
      %8520 = vmatmul.mubr.f32.gmra.mrb[0].mxu0 %v8234
      %v8521 = vpop.f32.mrb[0].mxu0
      %v8522 = vadd.f32 %v8415, %v8521
      %v8523 = vpop.f32.mrb[0].mxu0
      %8524 = vdwg.mxu0
      %v8527 = vrot.slane %v8137, 1
      %v8528 = vrot.slane %v8138, 1
      %v8529 = vsel %vm276, %v8527, %v8528
      %8530 = vrot.lane.b32.xlu0 %v8529, 64
      %v8531 = vpop.permute.xlu0 %8530
      %v8533 = vrot.slane %v8137, 2
      %v8534 = vrot.slane %v8138, 2
      %v8535 = vsel %vm325, %v8533, %v8534
      %v8536 = vsel %vm198, %v8137, %v8531
      %s8537 = scalar_lea.vmem %s1, 7872
      %v8538 = vld [vmem:[%s8537] sm:$0xff]
      %v8539 = vld [vmem:[%s8537 + $0x8] sm:$0xff]
      %v8540 = vld [vmem:[%s8537 + $0x10] sm:$0xff]
      %v8541 = vld [vmem:[%s8537 + $0x18] sm:$0xff]
      %v8542 = vld [vmem:[%s8537 + $0x20] sm:$0xff]
      %v8543 = vld [vmem:[%s8537 + $0x28] sm:$0xff]
      %v8544 = vld [vmem:[%s8537 + $0x30] sm:$0xff]
      %v8545 = vld [vmem:[%s8537 + $0x38] sm:$0xff]
      %v8546 = vld [vmem:[%s8537 + $0x40] sm:$0xff]
      %v8547 = vld [vmem:[%s8537 + $0x48] sm:$0xff]
      %v8548 = vld [vmem:[%s8537 + $0x50] sm:$0xff]
      %v8549 = vld [vmem:[%s8537 + $0x58] sm:$0xff]
      %v8550 = vld [vmem:[%s8537 + $0x60] sm:$0xff]
      %v8551 = vld [vmem:[%s8537 + $0x68] sm:$0xff]
      %v8552 = vld [vmem:[%s8537 + $0x70] sm:$0xff]
      %v8553 = vld [vmem:[%s8537 + $0x78] sm:$0xff]
      %v8554 = vld [vmem:[%s8537 + $0x80] sm:$0xff]
      %v8555 = vld [vmem:[%s8537 + $0x88] sm:$0xff]
      %v8556 = vld [vmem:[%s8537 + $0x90] sm:$0xff]
      %v8557 = vld [vmem:[%s8537 + $0x98] sm:$0xff]
      %v8558 = vld [vmem:[%s8537 + $0xa0] sm:$0xff]
      %v8559 = vld [vmem:[%s8537 + $0xa8] sm:$0xff]
      %v8560 = vld [vmem:[%s8537 + $0xb0] sm:$0xff]
      %v8561 = vld [vmem:[%s8537 + $0xb8] sm:$0xff]
      %v8562 = vsel %vm198, %v8535, 0
      %8564 = vmatprep.subr.mxu0 0.0
      %8565 = vmatpush1.msra.mxu0 %v8538
      %8566 = vmatprep.subr.mxu0 0.0
      %8567 = vmatpush1.msra.mxu0 %v8539
      %8568 = vmatprep.subr.mxu0 0.0
      %8569 = vmatpush1.msra.mxu0 %v8540
      %8570 = vmatprep.subr.mxu0 0.0
      %8571 = vmatpush1.msra.mxu0 %v8541
      %8572 = vmatprep.subr.mxu0 0.0
      %8573 = vmatpush1.msra.mxu0 %v8542
      %8574 = vmatprep.subr.mxu0 0.0
      %8575 = vmatpush1.msra.mxu0 %v8543
      %8576 = vmatprep.subr.mxu0 0.0
      %8577 = vmatpush1.msra.mxu0 %v8544
      %8578 = vmatprep.subr.mxu0 0.0
      %8579 = vmatpush1.msra.mxu0 %v8545
      %8580 = vmatprep.subr.mxu0 0.0
      %8581 = vmatpush1.msra.mxu0 %v8546
      %8582 = vmatprep.subr.mxu0 0.0
      %8583 = vmatpush1.msra.mxu0 %v8547
      %8584 = vmatprep.subr.mxu0 0.0
      %8585 = vmatpush1.msra.mxu0 %v8548
      %8586 = vmatprep.subr.mxu0 0.0
      %8587 = vmatpush1.msra.mxu0 %v8549
      %8588 = vmatprep.subr.mxu0 0.0
      %8589 = vmatpush1.msra.mxu0 %v8550
      %8590 = vmatprep.subr.mxu0 0.0
      %8591 = vmatpush1.msra.mxu0 %v8551
      %8592 = vmatprep.subr.mxu0 0.0
      %8593 = vmatpush1.msra.mxu0 %v8552
      %8594 = vmatprep.subr.mxu0 0.0
      %8595 = vmatpush1.msra.mxu0 %v8553
      %8596 = vmatprep.subr.mxu0 0.0
      %8597 = vmatpush1.msra.mxu0 %v8554
      %8598 = vmatprep.subr.mxu0 0.0
      %8599 = vmatpush1.msra.mxu0 %v8555
      %8600 = vmatprep.subr.mxu0 0.0
      %8601 = vmatpush1.msra.mxu0 %v8556
      %8602 = vmatprep.subr.mxu0 0.0
      %8603 = vmatpush1.msra.mxu0 %v8557
      %8604 = vmatprep.subr.mxu0 0.0
      %8605 = vmatpush1.msra.mxu0 %v8558
      %8606 = vmatprep.subr.mxu0 0.0
      %8607 = vmatpush1.msra.mxu0 %v8559
      %8608 = vmatprep.subr.mxu0 0.0
      %8609 = vmatpush1.msra.mxu0 %v8560
      %8610 = vmatprep.subr.mxu0 0.0
      %8611 = vmatpush1.msra.mxu0 %v8561
      %8612 = vmatprep.subr.mxu0 0.0
      %8613 = vmatpush1.msra.mxu0 0.0
      %8614 = vmatprep.subr.mxu0 0.0
      %8615 = vmatpush1.msra.mxu0 0.0
      %8616 = vmatprep.subr.mxu0 0.0
      %8617 = vmatpush1.msra.mxu0 0.0
      %8618 = vmatprep.subr.mxu0 0.0
      %8619 = vmatpush1.msra.mxu0 0.0
      %8620 = vmatprep.subr.mxu0 0.0
      %8621 = vmatpush1.msra.mxu0 0.0
      %8622 = vmatprep.subr.mxu0 0.0
      %8623 = vmatpush1.msra.mxu0 0.0
      %8624 = vmatprep.subr.mxu0 0.0
      %8625 = vmatpush1.msra.mxu0 0.0
      %8626 = vmatprep.subr.mxu0 0.0
      %8627 = vmatpush1.msra.mxu0 0.0
      %8628 = vmatprep.mubr.f32.mxu0 %v8299
      %8629 = vmatmul.mubr.f32.gmra.mrb[0].mxu0 %v8229
      %v8630 = vpop.f32.mrb[0].mxu0
      %v8631 = vadd.f32 0.0, %v8630
      %v8632 = vpop.f32.mrb[0].mxu0
      %8633 = vmatprep.mubr.f32.mxu0 %v8301
      %8634 = vmatmul.mubr.f32.gmra.mrb[0].mxu0 %v8230
      %v8635 = vpop.f32.mrb[0].mxu0
      %v8636 = vadd.f32 0.0, %v8635
      %v8637 = vpop.f32.mrb[0].mxu0
      %8638 = vmatprep.mubr.f32.mxu0 %v8303
      %8639 = vmatmul.mubr.f32.gmra.mrb[0].mxu0 %v8231
      %v8640 = vpop.f32.mrb[0].mxu0
      %v8641 = vadd.f32 0.0, %v8640
      %v8642 = vpop.f32.mrb[0].mxu0
      %8643 = vmatprep.mubr.f32.mxu0 %v8305
      %8644 = vmatmul.mubr.f32.gmra.mrb[0].mxu0 %v8232
      %v8645 = vpop.f32.mrb[0].mxu0
      %v8646 = vadd.f32 0.0, %v8645
      %v8647 = vpop.f32.mrb[0].mxu0
      %8648 = vmatprep.mubr.f32.mxu0 %v8307
      %8649 = vmatmul.mubr.f32.gmra.mrb[0].mxu0 %v8233
      %v8650 = vpop.f32.mrb[0].mxu0
      %v8651 = vadd.f32 0.0, %v8650
      %v8652 = vpop.f32.mrb[0].mxu0
      %8653 = vmatprep.mubr.f32.mxu0 %v8309
      %8654 = vmatmul.mubr.f32.gmra.mrb[0].mxu0 %v8234
      %v8655 = vpop.f32.mrb[0].mxu0
      %v8656 = vadd.f32 0.0, %v8655
      %v8657 = vpop.f32.mrb[0].mxu0
      %8658 = vmatprep.mubr.f32.mxu0 %v8311
      %8659 = vmatmul.mubr.f32.gmra.mrb[0].mxu0 %v8271
      %v8660 = vpop.f32.mrb[0].mxu0
      %v8661 = vadd.f32 0.0, %v8660
      %v8662 = vpop.f32.mrb[0].mxu0
      %8663 = vmatprep.mubr.f32.mxu0 %v8562
      %8664 = vmatmul.mubr.f32.gmra.mrb[0].mxu0 %v8536
      %v8665 = vpop.f32.mrb[0].mxu0
      %v8666 = vadd.f32 0.0, %v8665
      %v8667 = vpop.f32.mrb[0].mxu0
      %8668 = vdwg.mxu0
      %v8669 = vadd.f32 %v8487, %v8631
      %v8670 = vadd.f32 %v8492, %v8636
      %v8671 = vadd.f32 %v8497, %v8641
      %v8672 = vadd.f32 %v8502, %v8646
      %v8673 = vadd.f32 %v8507, %v8651
      %v8674 = vadd.f32 %v8512, %v8656
      %v8675 = vadd.f32 %v8517, %v8661
      %v8676 = vadd.f32 %v8522, %v8666
      %s8677 = scalar_lea.vmem %s2, 13
      %v8678 = vld [vmem:[%s8677] sm:$0x1]
      %v8680 = vlaneseq
      %v8681 = vshrl.u32 %v8680, 7
      %v8682 = vsub.s32 0, %v8681
      %v8683 = vrot.slane %v8678, %v8682
      %v8685 = vmul.f32 %v8669, %v8683
      %v8686 = vmul.f32 %v8670, %v8683
      %v8687 = vmul.f32 %v8671, %v8683
      %v8688 = vmul.f32 %v8672, %v8683
      %v8689 = vmul.f32 %v8673, %v8683
      %v8690 = vmul.f32 %v8674, %v8683
      %v8691 = vmul.f32 %v8675, %v8683
      %v8692 = vmul.f32 %v8676, %v8683
      %s8693 = scalar_lea.vmem %s3, 13
      %v8694 = vld [vmem:[%s8693] sm:$0x1]
      %v8696 = vlaneseq
      %v8697 = vshrl.u32 %v8696, 7
      %v8698 = vsub.s32 0, %v8697
      %v8699 = vrot.slane %v8694, %v8698
      %v8701 = vadd.f32 %v8685, %v8699
      %v8702 = vadd.f32 %v8686, %v8699
      %v8703 = vadd.f32 %v8687, %v8699
      %v8704 = vadd.f32 %v8688, %v8699
      %v8705 = vadd.f32 %v8689, %v8699
      %v8706 = vadd.f32 %v8690, %v8699
      %v8707 = vadd.f32 %v8691, %v8699
      %v8708 = vadd.f32 %v8692, %v8699
      %v8709 = vmax.f32 %v8701, 0.0
      %v8710 = vmax.f32 %v8702, 0.0
      %v8711 = vmax.f32 %v8703, 0.0
      %v8712 = vmax.f32 %v8704, 0.0
      %v8713 = vmax.f32 %v8705, 0.0
      %v8714 = vmax.f32 %v8706, 0.0
      %v8715 = vmax.f32 %v8707, 0.0
      %v8716 = vmax.f32 %v8708, 0.0
      %8717 = vst.msk [vmem:[%s1444 + $0x1] sm:$0xff] %vm198, %v8709
      %8718 = vst.msk [vmem:[%s1444 + $0x11] sm:$0xff] %vm198, %v8710
      %8719 = vst.msk [vmem:[%s1444 + $0x21] sm:$0xff] %vm198, %v8711
      %8720 = vst.msk [vmem:[%s1444 + $0x31] sm:$0xff] %vm198, %v8712
      %8721 = vst.msk [vmem:[%s1444 + $0x41] sm:$0xff] %vm198, %v8713
      %8722 = vst.msk [vmem:[%s1444 + $0x51] sm:$0xff] %vm198, %v8714
      %8723 = vst.msk [vmem:[%s1444 + $0x61] sm:$0xff] %vm198, %v8715
      %8724 = vst.msk [vmem:[%s1444 + $0x71] sm:$0xff] %vm198, %v8716
      %v8725 = vld [vmem:[#allocation3] sm:$0xff]
      %v8726 = vld [vmem:[#allocation3 + $0x8] sm:$0x3]
      %v8727 = vld [vmem:[#allocation3 + $0x10] sm:$0xff]
      %v8728 = vld [vmem:[#allocation3 + $0x18] sm:$0x3]
      %v8729 = vld [vmem:[#allocation3 + $0x20] sm:$0xff]
      %v8730 = vld [vmem:[#allocation3 + $0x28] sm:$0x3]
      %v8731 = vld [vmem:[#allocation3 + $0x30] sm:$0xff]
      %v8732 = vld [vmem:[#allocation3 + $0x38] sm:$0x3]
      %v8733 = vld [vmem:[#allocation3 + $0x40] sm:$0xff]
      %v8734 = vld [vmem:[#allocation3 + $0x48] sm:$0x3]
      %v8735 = vld [vmem:[#allocation3 + $0x50] sm:$0xff]
      %v8736 = vld [vmem:[#allocation3 + $0x58] sm:$0x3]
      %v8737 = vld [vmem:[#allocation3 + $0x60] sm:$0xff]
      %v8738 = vld [vmem:[#allocation3 + $0x68] sm:$0x3]
      %v8739 = vld [vmem:[#allocation3 + $0x70] sm:$0xff]
      %v8740 = vld [vmem:[#allocation3 + $0x78] sm:$0x3]
      %v8741 = vld [vmem:[#allocation3 + $0x80] sm:$0xff]
      %v8742 = vld [vmem:[#allocation3 + $0x88] sm:$0x3]
      %v8743 = vld [vmem:[#allocation3 + $0x90] sm:$0xff]
      %v8744 = vld [vmem:[#allocation3 + $0x98] sm:$0x3]
      %v8761 = vrot.slane %v8725, 1
      %v8762 = vrot.slane %v8726, 1
      %v8763 = vsel %vm276, %v8761, %v8762
      %v8764 = vrot.slane %v8727, 1
      %v8765 = vrot.slane %v8728, 1
      %v8766 = vsel %vm276, %v8764, %v8765
      %v8767 = vrot.slane %v8729, 1
      %v8768 = vrot.slane %v8730, 1
      %v8769 = vsel %vm276, %v8767, %v8768
      %v8770 = vrot.slane %v8731, 1
      %v8771 = vrot.slane %v8732, 1
      %v8772 = vsel %vm276, %v8770, %v8771
      %v8773 = vrot.slane %v8733, 1
      %v8774 = vrot.slane %v8734, 1
      %v8775 = vsel %vm276, %v8773, %v8774
      %v8776 = vrot.slane %v8735, 1
      %v8777 = vrot.slane %v8736, 1
      %v8778 = vsel %vm276, %v8776, %v8777
      %v8779 = vrot.slane %v8737, 1
      %v8780 = vrot.slane %v8738, 1
      %v8781 = vsel %vm276, %v8779, %v8780
      %v8782 = vrot.slane %v8739, 1
      %v8783 = vrot.slane %v8740, 1
      %v8784 = vsel %vm276, %v8782, %v8783
      %8785 = vrot.lane.b32.xlu0 %v8763, 64
      %v8786 = vpop.permute.xlu0 %8785
      %8787 = vrot.lane.b32.xlu0 %v8766, 64
      %v8788 = vpop.permute.xlu0 %8787
      %8789 = vrot.lane.b32.xlu0 %v8769, 64
      %v8790 = vpop.permute.xlu0 %8789
      %8791 = vrot.lane.b32.xlu0 %v8772, 64
      %v8792 = vpop.permute.xlu0 %8791
      %8793 = vrot.lane.b32.xlu0 %v8775, 64
      %v8794 = vpop.permute.xlu0 %8793
      %8795 = vrot.lane.b32.xlu0 %v8778, 64
      %v8796 = vpop.permute.xlu0 %8795
      %8797 = vrot.lane.b32.xlu0 %v8781, 64
      %v8798 = vpop.permute.xlu0 %8797
      %8799 = vrot.lane.b32.xlu0 %v8784, 64
      %v8800 = vpop.permute.xlu0 %8799
      %v8809 = vrot.slane %v8725, 2
      %v8810 = vrot.slane %v8726, 2
      %v8811 = vsel %vm325, %v8809, %v8810
      %v8812 = vrot.slane %v8727, 2
      %v8813 = vrot.slane %v8728, 2
      %v8814 = vsel %vm325, %v8812, %v8813
      %v8815 = vrot.slane %v8729, 2
      %v8816 = vrot.slane %v8730, 2
      %v8817 = vsel %vm325, %v8815, %v8816
      %v8818 = vrot.slane %v8731, 2
      %v8819 = vrot.slane %v8732, 2
      %v8820 = vsel %vm325, %v8818, %v8819
      %v8821 = vrot.slane %v8733, 2
      %v8822 = vrot.slane %v8734, 2
      %v8823 = vsel %vm325, %v8821, %v8822
      %v8824 = vrot.slane %v8735, 2
      %v8825 = vrot.slane %v8736, 2
      %v8826 = vsel %vm325, %v8824, %v8825
      %v8827 = vrot.slane %v8737, 2
      %v8828 = vrot.slane %v8738, 2
      %v8829 = vsel %vm325, %v8827, %v8828
      %v8830 = vrot.slane %v8739, 2
      %v8831 = vrot.slane %v8740, 2
      %v8832 = vsel %vm325, %v8830, %v8831
      %v8833 = vsel %vm198, %v8725, %v8786
      %v8834 = vsel %vm198, %v8727, %v8788
      %v8835 = vsel %vm198, %v8729, %v8790
      %v8836 = vsel %vm198, %v8731, %v8792
      %v8837 = vsel %vm198, %v8733, %v8794
      %v8838 = vsel %vm198, %v8735, %v8796
      %v8839 = vsel %vm198, %v8737, %v8798
      %v8840 = vsel %vm198, %v8739, %v8800
      %s8841 = scalar_lea.vmem %s1, 8064
      %v8842 = vld [vmem:[%s8841] sm:$0xff]
      %v8843 = vld [vmem:[%s8841 + $0x8] sm:$0xff]
      %v8844 = vld [vmem:[%s8841 + $0x10] sm:$0xff]
      %v8845 = vld [vmem:[%s8841 + $0x18] sm:$0xff]
      %v8846 = vld [vmem:[%s8841 + $0x20] sm:$0xff]
      %v8847 = vld [vmem:[%s8841 + $0x28] sm:$0xff]
      %v8848 = vld [vmem:[%s8841 + $0x30] sm:$0xff]
      %v8849 = vld [vmem:[%s8841 + $0x38] sm:$0xff]
      %v8850 = vld [vmem:[%s8841 + $0x40] sm:$0xff]
      %v8851 = vld [vmem:[%s8841 + $0x48] sm:$0xff]
      %v8852 = vld [vmem:[%s8841 + $0x50] sm:$0xff]
      %v8853 = vld [vmem:[%s8841 + $0x58] sm:$0xff]
      %v8854 = vld [vmem:[%s8841 + $0x60] sm:$0xff]
      %v8855 = vld [vmem:[%s8841 + $0x68] sm:$0xff]
      %v8856 = vld [vmem:[%s8841 + $0x70] sm:$0xff]
      %v8857 = vld [vmem:[%s8841 + $0x78] sm:$0xff]
      %v8858 = vld [vmem:[%s8841 + $0x80] sm:$0xff]
      %v8859 = vld [vmem:[%s8841 + $0x88] sm:$0xff]
      %v8860 = vld [vmem:[%s8841 + $0x90] sm:$0xff]
      %v8861 = vld [vmem:[%s8841 + $0x98] sm:$0xff]
      %v8862 = vld [vmem:[%s8841 + $0xa0] sm:$0xff]
      %v8863 = vld [vmem:[%s8841 + $0xa8] sm:$0xff]
      %v8864 = vld [vmem:[%s8841 + $0xb0] sm:$0xff]
      %v8865 = vld [vmem:[%s8841 + $0xb8] sm:$0xff]
      %v8868 = vrot.slane %v8741, 1
      %v8869 = vrot.slane %v8742, 1
      %v8870 = vsel %vm276, %v8868, %v8869
      %8871 = vrot.lane.b32.xlu0 %v8870, 64
      %v8872 = vpop.permute.xlu0 %8871
      %v8874 = vrot.slane %v8741, 2
      %v8875 = vrot.slane %v8742, 2
      %v8876 = vsel %vm325, %v8874, %v8875
      %v8877 = vsel %vm198, %v8741, %v8872
      %s8878 = scalar_lea.vmem %s1, 8256
      %v8879 = vld [vmem:[%s8878] sm:$0xff]
      %v8880 = vld [vmem:[%s8878 + $0x8] sm:$0xff]
      %v8881 = vld [vmem:[%s8878 + $0x10] sm:$0xff]
      %v8882 = vld [vmem:[%s8878 + $0x18] sm:$0xff]
      %v8883 = vld [vmem:[%s8878 + $0x20] sm:$0xff]
      %v8884 = vld [vmem:[%s8878 + $0x28] sm:$0xff]
      %v8885 = vld [vmem:[%s8878 + $0x30] sm:$0xff]
      %v8886 = vld [vmem:[%s8878 + $0x38] sm:$0xff]
      %v8887 = vld [vmem:[%s8878 + $0x40] sm:$0xff]
      %v8888 = vld [vmem:[%s8878 + $0x48] sm:$0xff]
      %v8889 = vld [vmem:[%s8878 + $0x50] sm:$0xff]
      %v8890 = vld [vmem:[%s8878 + $0x58] sm:$0xff]
      %v8891 = vld [vmem:[%s8878 + $0x60] sm:$0xff]
      %v8892 = vld [vmem:[%s8878 + $0x68] sm:$0xff]
      %v8893 = vld [vmem:[%s8878 + $0x70] sm:$0xff]
      %v8894 = vld [vmem:[%s8878 + $0x78] sm:$0xff]
      %v8895 = vld [vmem:[%s8878 + $0x80] sm:$0xff]
      %v8896 = vld [vmem:[%s8878 + $0x88] sm:$0xff]
      %v8897 = vld [vmem:[%s8878 + $0x90] sm:$0xff]
      %v8898 = vld [vmem:[%s8878 + $0x98] sm:$0xff]
      %v8899 = vld [vmem:[%s8878 + $0xa0] sm:$0xff]
      %v8900 = vld [vmem:[%s8878 + $0xa8] sm:$0xff]
      %v8901 = vld [vmem:[%s8878 + $0xb0] sm:$0xff]
      %v8902 = vld [vmem:[%s8878 + $0xb8] sm:$0xff]
      %v8903 = vsel %vm198, %v8814, 0
      %v8905 = vsel %vm198, %v8817, 0
      %v8907 = vsel %vm198, %v8820, 0
      %v8909 = vsel %vm198, %v8823, 0
      %v8911 = vsel %vm198, %v8826, 0
      %v8913 = vsel %vm198, %v8829, 0
      %v8915 = vsel %vm198, %v8832, 0
      %v8917 = vsel %vm198, %v8876, 0
      %8919 = vmatprep.subr.mxu0 0.0
      %8920 = vmatpush1.msra.mxu0 %v8879
      %8921 = vmatprep.subr.mxu0 0.0
      %8922 = vmatpush1.msra.mxu0 %v8880
      %8923 = vmatprep.subr.mxu0 0.0
      %8924 = vmatpush1.msra.mxu0 %v8881
      %8925 = vmatprep.subr.mxu0 0.0
      %8926 = vmatpush1.msra.mxu0 %v8882
      %8927 = vmatprep.subr.mxu0 0.0
      %8928 = vmatpush1.msra.mxu0 %v8883
      %8929 = vmatprep.subr.mxu0 0.0
      %8930 = vmatpush1.msra.mxu0 %v8884
      %8931 = vmatprep.subr.mxu0 0.0
      %8932 = vmatpush1.msra.mxu0 %v8885
      %8933 = vmatprep.subr.mxu0 0.0
      %8934 = vmatpush1.msra.mxu0 %v8886
      %8935 = vmatprep.subr.mxu0 0.0
      %8936 = vmatpush1.msra.mxu0 %v8887
      %8937 = vmatprep.subr.mxu0 0.0
      %8938 = vmatpush1.msra.mxu0 %v8888
      %8939 = vmatprep.subr.mxu0 0.0
      %8940 = vmatpush1.msra.mxu0 %v8889
      %8941 = vmatprep.subr.mxu0 0.0
      %8942 = vmatpush1.msra.mxu0 %v8890
      %8943 = vmatprep.subr.mxu0 0.0
      %8944 = vmatpush1.msra.mxu0 %v8891
      %8945 = vmatprep.subr.mxu0 0.0
      %8946 = vmatpush1.msra.mxu0 %v8892
      %8947 = vmatprep.subr.mxu0 0.0
      %8948 = vmatpush1.msra.mxu0 %v8893
      %8949 = vmatprep.subr.mxu0 0.0
      %8950 = vmatpush1.msra.mxu0 %v8894
      %8951 = vmatprep.subr.mxu0 0.0
      %8952 = vmatpush1.msra.mxu0 %v8895
      %8953 = vmatprep.subr.mxu0 0.0
      %8954 = vmatpush1.msra.mxu0 %v8896
      %8955 = vmatprep.subr.mxu0 0.0
      %8956 = vmatpush1.msra.mxu0 %v8897
      %8957 = vmatprep.subr.mxu0 0.0
      %8958 = vmatpush1.msra.mxu0 %v8898
      %8959 = vmatprep.subr.mxu0 0.0
      %8960 = vmatpush1.msra.mxu0 %v8899
      %8961 = vmatprep.subr.mxu0 0.0
      %8962 = vmatpush1.msra.mxu0 %v8900
      %8963 = vmatprep.subr.mxu0 0.0
      %8964 = vmatpush1.msra.mxu0 %v8901
      %8965 = vmatprep.subr.mxu0 0.0
      %8966 = vmatpush1.msra.mxu0 %v8902
      %8967 = vmatprep.subr.mxu0 0.0
      %8968 = vmatpush1.msra.mxu0 0.0
      %8969 = vmatprep.subr.mxu0 0.0
      %8970 = vmatpush1.msra.mxu0 0.0
      %8971 = vmatprep.subr.mxu0 0.0
      %8972 = vmatpush1.msra.mxu0 0.0
      %8973 = vmatprep.subr.mxu0 0.0
      %8974 = vmatpush1.msra.mxu0 0.0
      %8975 = vmatprep.subr.mxu0 0.0
      %8976 = vmatpush1.msra.mxu0 0.0
      %8977 = vmatprep.subr.mxu0 0.0
      %8978 = vmatpush1.msra.mxu0 0.0
      %8979 = vmatprep.subr.mxu0 0.0
      %8980 = vmatpush1.msra.mxu0 0.0
      %8981 = vmatprep.subr.mxu0 0.0
      %8982 = vmatpush1.msra.mxu0 0.0
      %8983 = vmatprep.mubr.f32.mxu0 %v8903
      %8984 = vmatmul.mubr.f32.gmra.mrb[0].mxu0 %v8834
      %v8985 = vpop.f32.mrb[0].mxu0
      %v8986 = vadd.f32 0.0, %v8985
      %v8987 = vpop.f32.mrb[0].mxu0
      %8988 = vmatprep.mubr.f32.mxu0 %v8905
      %8989 = vmatmul.mubr.f32.gmra.mrb[0].mxu0 %v8835
      %v8990 = vpop.f32.mrb[0].mxu0
      %v8991 = vadd.f32 0.0, %v8990
      %v8992 = vpop.f32.mrb[0].mxu0
      %8993 = vmatprep.mubr.f32.mxu0 %v8907
      %8994 = vmatmul.mubr.f32.gmra.mrb[0].mxu0 %v8836
      %v8995 = vpop.f32.mrb[0].mxu0
      %v8996 = vadd.f32 0.0, %v8995
      %v8997 = vpop.f32.mrb[0].mxu0
      %8998 = vmatprep.mubr.f32.mxu0 %v8909
      %8999 = vmatmul.mubr.f32.gmra.mrb[0].mxu0 %v8837
      %v9000 = vpop.f32.mrb[0].mxu0
      %v9001 = vadd.f32 0.0, %v9000
      %v9002 = vpop.f32.mrb[0].mxu0
      %9003 = vmatprep.mubr.f32.mxu0 %v8911
      %9004 = vmatmul.mubr.f32.gmra.mrb[0].mxu0 %v8838
      %v9005 = vpop.f32.mrb[0].mxu0
      %v9006 = vadd.f32 0.0, %v9005
      %v9007 = vpop.f32.mrb[0].mxu0
      %9008 = vmatprep.mubr.f32.mxu0 %v8913
      %9009 = vmatmul.mubr.f32.gmra.mrb[0].mxu0 %v8839
      %v9010 = vpop.f32.mrb[0].mxu0
      %v9011 = vadd.f32 0.0, %v9010
      %v9012 = vpop.f32.mrb[0].mxu0
      %9013 = vmatprep.mubr.f32.mxu0 %v8915
      %9014 = vmatmul.mubr.f32.gmra.mrb[0].mxu0 %v8840
      %v9015 = vpop.f32.mrb[0].mxu0
      %v9016 = vadd.f32 0.0, %v9015
      %v9017 = vpop.f32.mrb[0].mxu0
      %9018 = vmatprep.mubr.f32.mxu0 %v8917
      %9019 = vmatmul.mubr.f32.gmra.mrb[0].mxu0 %v8877
      %v9020 = vpop.f32.mrb[0].mxu0
      %v9021 = vadd.f32 0.0, %v9020
      %v9022 = vpop.f32.mrb[0].mxu0
      %9023 = vdwg.mxu0
      %v9024 = vsel %vm198, %v8811, 0
      %9026 = vmatprep.subr.mxu0 0.0
      %9027 = vmatpush1.msra.mxu0 %v8842
      %9028 = vmatprep.subr.mxu0 0.0
      %9029 = vmatpush1.msra.mxu0 %v8843
      %9030 = vmatprep.subr.mxu0 0.0
      %9031 = vmatpush1.msra.mxu0 %v8844
      %9032 = vmatprep.subr.mxu0 0.0
      %9033 = vmatpush1.msra.mxu0 %v8845
      %9034 = vmatprep.subr.mxu0 0.0
      %9035 = vmatpush1.msra.mxu0 %v8846
      %9036 = vmatprep.subr.mxu0 0.0
      %9037 = vmatpush1.msra.mxu0 %v8847
      %9038 = vmatprep.subr.mxu0 0.0
      %9039 = vmatpush1.msra.mxu0 %v8848
      %9040 = vmatprep.subr.mxu0 0.0
      %9041 = vmatpush1.msra.mxu0 %v8849
      %9042 = vmatprep.subr.mxu0 0.0
      %9043 = vmatpush1.msra.mxu0 %v8850
      %9044 = vmatprep.subr.mxu0 0.0
      %9045 = vmatpush1.msra.mxu0 %v8851
      %9046 = vmatprep.subr.mxu0 0.0
      %9047 = vmatpush1.msra.mxu0 %v8852
      %9048 = vmatprep.subr.mxu0 0.0
      %9049 = vmatpush1.msra.mxu0 %v8853
      %9050 = vmatprep.subr.mxu0 0.0
      %9051 = vmatpush1.msra.mxu0 %v8854
      %9052 = vmatprep.subr.mxu0 0.0
      %9053 = vmatpush1.msra.mxu0 %v8855
      %9054 = vmatprep.subr.mxu0 0.0
      %9055 = vmatpush1.msra.mxu0 %v8856
      %9056 = vmatprep.subr.mxu0 0.0
      %9057 = vmatpush1.msra.mxu0 %v8857
      %9058 = vmatprep.subr.mxu0 0.0
      %9059 = vmatpush1.msra.mxu0 %v8858
      %9060 = vmatprep.subr.mxu0 0.0
      %9061 = vmatpush1.msra.mxu0 %v8859
      %9062 = vmatprep.subr.mxu0 0.0
      %9063 = vmatpush1.msra.mxu0 %v8860
      %9064 = vmatprep.subr.mxu0 0.0
      %9065 = vmatpush1.msra.mxu0 %v8861
      %9066 = vmatprep.subr.mxu0 0.0
      %9067 = vmatpush1.msra.mxu0 %v8862
      %9068 = vmatprep.subr.mxu0 0.0
      %9069 = vmatpush1.msra.mxu0 %v8863
      %9070 = vmatprep.subr.mxu0 0.0
      %9071 = vmatpush1.msra.mxu0 %v8864
      %9072 = vmatprep.subr.mxu0 0.0
      %9073 = vmatpush1.msra.mxu0 %v8865
      %9074 = vmatprep.subr.mxu0 0.0
      %9075 = vmatpush1.msra.mxu0 0.0
      %9076 = vmatprep.subr.mxu0 0.0
      %9077 = vmatpush1.msra.mxu0 0.0
      %9078 = vmatprep.subr.mxu0 0.0
      %9079 = vmatpush1.msra.mxu0 0.0
      %9080 = vmatprep.subr.mxu0 0.0
      %9081 = vmatpush1.msra.mxu0 0.0
      %9082 = vmatprep.subr.mxu0 0.0
      %9083 = vmatpush1.msra.mxu0 0.0
      %9084 = vmatprep.subr.mxu0 0.0
      %9085 = vmatpush1.msra.mxu0 0.0
      %9086 = vmatprep.subr.mxu0 0.0
      %9087 = vmatpush1.msra.mxu0 0.0
      %9088 = vmatprep.subr.mxu0 0.0
      %9089 = vmatpush1.msra.mxu0 0.0
      %9090 = vmatprep.mubr.f32.mxu0 %v9024
      %9091 = vmatmul.mubr.f32.gmra.mrb[0].mxu0 %v8833
      %v9092 = vpop.f32.mrb[0].mxu0
      %v9093 = vadd.f32 %v8986, %v9092
      %v9094 = vpop.f32.mrb[0].mxu0
      %9095 = vmatprep.mubr.f32.mxu0 %v8903
      %9096 = vmatmul.mubr.f32.gmra.mrb[0].mxu0 %v8834
      %v9097 = vpop.f32.mrb[0].mxu0
      %v9098 = vadd.f32 %v8991, %v9097
      %v9099 = vpop.f32.mrb[0].mxu0
      %9100 = vmatprep.mubr.f32.mxu0 %v8905
      %9101 = vmatmul.mubr.f32.gmra.mrb[0].mxu0 %v8835
      %v9102 = vpop.f32.mrb[0].mxu0
      %v9103 = vadd.f32 %v8996, %v9102
      %v9104 = vpop.f32.mrb[0].mxu0
      %9105 = vmatprep.mubr.f32.mxu0 %v8907
      %9106 = vmatmul.mubr.f32.gmra.mrb[0].mxu0 %v8836
      %v9107 = vpop.f32.mrb[0].mxu0
      %v9108 = vadd.f32 %v9001, %v9107
      %v9109 = vpop.f32.mrb[0].mxu0
      %9110 = vmatprep.mubr.f32.mxu0 %v8909
      %9111 = vmatmul.mubr.f32.gmra.mrb[0].mxu0 %v8837
      %v9112 = vpop.f32.mrb[0].mxu0
      %v9113 = vadd.f32 %v9006, %v9112
      %v9114 = vpop.f32.mrb[0].mxu0
      %9115 = vmatprep.mubr.f32.mxu0 %v8911
      %9116 = vmatmul.mubr.f32.gmra.mrb[0].mxu0 %v8838
      %v9117 = vpop.f32.mrb[0].mxu0
      %v9118 = vadd.f32 %v9011, %v9117
      %v9119 = vpop.f32.mrb[0].mxu0
      %9120 = vmatprep.mubr.f32.mxu0 %v8913
      %9121 = vmatmul.mubr.f32.gmra.mrb[0].mxu0 %v8839
      %v9122 = vpop.f32.mrb[0].mxu0
      %v9123 = vadd.f32 %v9016, %v9122
      %v9124 = vpop.f32.mrb[0].mxu0
      %9125 = vmatprep.mubr.f32.mxu0 %v8915
      %9126 = vmatmul.mubr.f32.gmra.mrb[0].mxu0 %v8840
      %v9127 = vpop.f32.mrb[0].mxu0
      %v9128 = vadd.f32 %v9021, %v9127
      %v9129 = vpop.f32.mrb[0].mxu0
      %9130 = vdwg.mxu0
      %v9133 = vrot.slane %v8743, 1
      %v9134 = vrot.slane %v8744, 1
      %v9135 = vsel %vm276, %v9133, %v9134
      %9136 = vrot.lane.b32.xlu0 %v9135, 64
      %v9137 = vpop.permute.xlu0 %9136
      %v9139 = vrot.slane %v8743, 2
      %v9140 = vrot.slane %v8744, 2
      %v9141 = vsel %vm325, %v9139, %v9140
      %v9142 = vsel %vm198, %v8743, %v9137
      %s9143 = scalar_lea.vmem %s1, 8448
      %v9144 = vld [vmem:[%s9143] sm:$0xff]
      %v9145 = vld [vmem:[%s9143 + $0x8] sm:$0xff]
      %v9146 = vld [vmem:[%s9143 + $0x10] sm:$0xff]
      %v9147 = vld [vmem:[%s9143 + $0x18] sm:$0xff]
      %v9148 = vld [vmem:[%s9143 + $0x20] sm:$0xff]
      %v9149 = vld [vmem:[%s9143 + $0x28] sm:$0xff]
      %v9150 = vld [vmem:[%s9143 + $0x30] sm:$0xff]
      %v9151 = vld [vmem:[%s9143 + $0x38] sm:$0xff]
      %v9152 = vld [vmem:[%s9143 + $0x40] sm:$0xff]
      %v9153 = vld [vmem:[%s9143 + $0x48] sm:$0xff]
      %v9154 = vld [vmem:[%s9143 + $0x50] sm:$0xff]
      %v9155 = vld [vmem:[%s9143 + $0x58] sm:$0xff]
      %v9156 = vld [vmem:[%s9143 + $0x60] sm:$0xff]
      %v9157 = vld [vmem:[%s9143 + $0x68] sm:$0xff]
      %v9158 = vld [vmem:[%s9143 + $0x70] sm:$0xff]
      %v9159 = vld [vmem:[%s9143 + $0x78] sm:$0xff]
      %v9160 = vld [vmem:[%s9143 + $0x80] sm:$0xff]
      %v9161 = vld [vmem:[%s9143 + $0x88] sm:$0xff]
      %v9162 = vld [vmem:[%s9143 + $0x90] sm:$0xff]
      %v9163 = vld [vmem:[%s9143 + $0x98] sm:$0xff]
      %v9164 = vld [vmem:[%s9143 + $0xa0] sm:$0xff]
      %v9165 = vld [vmem:[%s9143 + $0xa8] sm:$0xff]
      %v9166 = vld [vmem:[%s9143 + $0xb0] sm:$0xff]
      %v9167 = vld [vmem:[%s9143 + $0xb8] sm:$0xff]
      %v9168 = vsel %vm198, %v9141, 0
      %9170 = vmatprep.subr.mxu0 0.0
      %9171 = vmatpush1.msra.mxu0 %v9144
      %9172 = vmatprep.subr.mxu0 0.0
      %9173 = vmatpush1.msra.mxu0 %v9145
      %9174 = vmatprep.subr.mxu0 0.0
      %9175 = vmatpush1.msra.mxu0 %v9146
      %9176 = vmatprep.subr.mxu0 0.0
      %9177 = vmatpush1.msra.mxu0 %v9147
      %9178 = vmatprep.subr.mxu0 0.0
      %9179 = vmatpush1.msra.mxu0 %v9148
      %9180 = vmatprep.subr.mxu0 0.0
      %9181 = vmatpush1.msra.mxu0 %v9149
      %9182 = vmatprep.subr.mxu0 0.0
      %9183 = vmatpush1.msra.mxu0 %v9150
      %9184 = vmatprep.subr.mxu0 0.0
      %9185 = vmatpush1.msra.mxu0 %v9151
      %9186 = vmatprep.subr.mxu0 0.0
      %9187 = vmatpush1.msra.mxu0 %v9152
      %9188 = vmatprep.subr.mxu0 0.0
      %9189 = vmatpush1.msra.mxu0 %v9153
      %9190 = vmatprep.subr.mxu0 0.0
      %9191 = vmatpush1.msra.mxu0 %v9154
      %9192 = vmatprep.subr.mxu0 0.0
      %9193 = vmatpush1.msra.mxu0 %v9155
      %9194 = vmatprep.subr.mxu0 0.0
      %9195 = vmatpush1.msra.mxu0 %v9156
      %9196 = vmatprep.subr.mxu0 0.0
      %9197 = vmatpush1.msra.mxu0 %v9157
      %9198 = vmatprep.subr.mxu0 0.0
      %9199 = vmatpush1.msra.mxu0 %v9158
      %9200 = vmatprep.subr.mxu0 0.0
      %9201 = vmatpush1.msra.mxu0 %v9159
      %9202 = vmatprep.subr.mxu0 0.0
      %9203 = vmatpush1.msra.mxu0 %v9160
      %9204 = vmatprep.subr.mxu0 0.0
      %9205 = vmatpush1.msra.mxu0 %v9161
      %9206 = vmatprep.subr.mxu0 0.0
      %9207 = vmatpush1.msra.mxu0 %v9162
      %9208 = vmatprep.subr.mxu0 0.0
      %9209 = vmatpush1.msra.mxu0 %v9163
      %9210 = vmatprep.subr.mxu0 0.0
      %9211 = vmatpush1.msra.mxu0 %v9164
      %9212 = vmatprep.subr.mxu0 0.0
      %9213 = vmatpush1.msra.mxu0 %v9165
      %9214 = vmatprep.subr.mxu0 0.0
      %9215 = vmatpush1.msra.mxu0 %v9166
      %9216 = vmatprep.subr.mxu0 0.0
      %9217 = vmatpush1.msra.mxu0 %v9167
      %9218 = vmatprep.subr.mxu0 0.0
      %9219 = vmatpush1.msra.mxu0 0.0
      %9220 = vmatprep.subr.mxu0 0.0
      %9221 = vmatpush1.msra.mxu0 0.0
      %9222 = vmatprep.subr.mxu0 0.0
      %9223 = vmatpush1.msra.mxu0 0.0
      %9224 = vmatprep.subr.mxu0 0.0
      %9225 = vmatpush1.msra.mxu0 0.0
      %9226 = vmatprep.subr.mxu0 0.0
      %9227 = vmatpush1.msra.mxu0 0.0
      %9228 = vmatprep.subr.mxu0 0.0
      %9229 = vmatpush1.msra.mxu0 0.0
      %9230 = vmatprep.subr.mxu0 0.0
      %9231 = vmatpush1.msra.mxu0 0.0
      %9232 = vmatprep.subr.mxu0 0.0
      %9233 = vmatpush1.msra.mxu0 0.0
      %9234 = vmatprep.mubr.f32.mxu0 %v8905
      %9235 = vmatmul.mubr.f32.gmra.mrb[0].mxu0 %v8835
      %v9236 = vpop.f32.mrb[0].mxu0
      %v9237 = vadd.f32 0.0, %v9236
      %v9238 = vpop.f32.mrb[0].mxu0
      %9239 = vmatprep.mubr.f32.mxu0 %v8907
      %9240 = vmatmul.mubr.f32.gmra.mrb[0].mxu0 %v8836
      %v9241 = vpop.f32.mrb[0].mxu0
      %v9242 = vadd.f32 0.0, %v9241
      %v9243 = vpop.f32.mrb[0].mxu0
      %9244 = vmatprep.mubr.f32.mxu0 %v8909
      %9245 = vmatmul.mubr.f32.gmra.mrb[0].mxu0 %v8837
      %v9246 = vpop.f32.mrb[0].mxu0
      %v9247 = vadd.f32 0.0, %v9246
      %v9248 = vpop.f32.mrb[0].mxu0
      %9249 = vmatprep.mubr.f32.mxu0 %v8911
      %9250 = vmatmul.mubr.f32.gmra.mrb[0].mxu0 %v8838
      %v9251 = vpop.f32.mrb[0].mxu0
      %v9252 = vadd.f32 0.0, %v9251
      %v9253 = vpop.f32.mrb[0].mxu0
      %9254 = vmatprep.mubr.f32.mxu0 %v8913
      %9255 = vmatmul.mubr.f32.gmra.mrb[0].mxu0 %v8839
      %v9256 = vpop.f32.mrb[0].mxu0
      %v9257 = vadd.f32 0.0, %v9256
      %v9258 = vpop.f32.mrb[0].mxu0
      %9259 = vmatprep.mubr.f32.mxu0 %v8915
      %9260 = vmatmul.mubr.f32.gmra.mrb[0].mxu0 %v8840
      %v9261 = vpop.f32.mrb[0].mxu0
      %v9262 = vadd.f32 0.0, %v9261
      %v9263 = vpop.f32.mrb[0].mxu0
      %9264 = vmatprep.mubr.f32.mxu0 %v8917
      %9265 = vmatmul.mubr.f32.gmra.mrb[0].mxu0 %v8877
      %v9266 = vpop.f32.mrb[0].mxu0
      %v9267 = vadd.f32 0.0, %v9266
      %v9268 = vpop.f32.mrb[0].mxu0
      %9269 = vmatprep.mubr.f32.mxu0 %v9168
      %9270 = vmatmul.mubr.f32.gmra.mrb[0].mxu0 %v9142
      %v9271 = vpop.f32.mrb[0].mxu0
      %v9272 = vadd.f32 0.0, %v9271
      %v9273 = vpop.f32.mrb[0].mxu0
      %9274 = vdwg.mxu0
      %v9275 = vadd.f32 %v9093, %v9237
      %v9276 = vadd.f32 %v9098, %v9242
      %v9277 = vadd.f32 %v9103, %v9247
      %v9278 = vadd.f32 %v9108, %v9252
      %v9279 = vadd.f32 %v9113, %v9257
      %v9280 = vadd.f32 %v9118, %v9262
      %v9281 = vadd.f32 %v9123, %v9267
      %v9282 = vadd.f32 %v9128, %v9272
      %s9283 = scalar_lea.vmem %s2, 14
      %v9284 = vld [vmem:[%s9283] sm:$0x1]
      %v9286 = vlaneseq
      %v9287 = vshrl.u32 %v9286, 7
      %v9288 = vsub.s32 0, %v9287
      %v9289 = vrot.slane %v9284, %v9288
      %v9291 = vmul.f32 %v9275, %v9289
      %v9292 = vmul.f32 %v9276, %v9289
      %v9293 = vmul.f32 %v9277, %v9289
      %v9294 = vmul.f32 %v9278, %v9289
      %v9295 = vmul.f32 %v9279, %v9289
      %v9296 = vmul.f32 %v9280, %v9289
      %v9297 = vmul.f32 %v9281, %v9289
      %v9298 = vmul.f32 %v9282, %v9289
      %s9299 = scalar_lea.vmem %s3, 14
      %v9300 = vld [vmem:[%s9299] sm:$0x1]
      %v9302 = vlaneseq
      %v9303 = vshrl.u32 %v9302, 7
      %v9304 = vsub.s32 0, %v9303
      %v9305 = vrot.slane %v9300, %v9304
      %v9307 = vadd.f32 %v9291, %v9305
      %v9308 = vadd.f32 %v9292, %v9305
      %v9309 = vadd.f32 %v9293, %v9305
      %v9310 = vadd.f32 %v9294, %v9305
      %v9311 = vadd.f32 %v9295, %v9305
      %v9312 = vadd.f32 %v9296, %v9305
      %v9313 = vadd.f32 %v9297, %v9305
      %v9314 = vadd.f32 %v9298, %v9305
      %vm9315 = vcmask 31744
      %9316 = vst.msk [vmem:[%s197] sm:$0xff] %vm9315, %v9307
      %9317 = vst.msk [vmem:[%s197 + $0x8] sm:$0xff] %vm9315, %v9308
      %9318 = vst.msk [vmem:[%s197 + $0x10] sm:$0xff] %vm9315, %v9309
      %9319 = vst.msk [vmem:[%s197 + $0x18] sm:$0xff] %vm9315, %v9310
      %9320 = vst.msk [vmem:[%s197 + $0x20] sm:$0xff] %vm9315, %v9311
      %9321 = vst.msk [vmem:[%s197 + $0x28] sm:$0xff] %vm9315, %v9312
      %9322 = vst.msk [vmem:[%s197 + $0x30] sm:$0xff] %vm9315, %v9313
      %9323 = vst.msk [vmem:[%s197 + $0x38] sm:$0xff] %vm9315, %v9314
      %p9324 = scmp.lt.s32.totalorder %s15, 1
      %s9325 = scalar_select %p9324, %s15, 1
      %s9326 = smul.addr %s9325, 8
      %s9327 = smul.addr %s9326, 8
      %s9328 = scalar_lea.vmem %s4, %s9327
      // Predicated region
      $region37: #{run_fused.1} parent=35 // pred_check
        %p9329 = pneg %p122
      $region38: #{run_fused.1} parent=35 // pred_check_branch
        %9331 = sbr.rel (%p9329) target = $region40
      $region39: #{run_fused.1} parent=35 // pred_region
        _
      $region40: #{run_fused.1} parent=35 // pred_fallthru
        _
    $region36: #{run_fused.1} parent=5 // pred_fallthru
      _
    %p9332 = scmp.le.s32.totalorder 2, %s10
    // Predicated region
    $region41: #{run_fused.1} parent=5 // pred_check
      %p9333 = pneg %p9332
    $region42: #{run_fused.1} parent=5 // pred_check_branch
      %9335 = sbr.rel (%p9333) target = $region44
    $region43: #{run_fused.1} parent=5 // pred_region
      %s9336 = ssub.s32 %s10, 2
      // Predicated region
      $region45: #{run_fused.1} parent=43 // pred_check
        %p9337 = pneg %p128
      $region46: #{run_fused.1} parent=43 // pred_check_branch
        %9339 = sbr.rel (%p9337) target = $region48
      $region47: #{run_fused.1} parent=43 // pred_region
        %p9340 = scmp.lt.s32.totalorder %s16, 1
        %s9341 = scalar_select %p9340, %s16, 1
        %s9342 = smul.addr %s9341, 8
        %s9343 = smul.addr %s9342, 8
        %s9344 = scalar_lea.vmem %s4, %s9343
      $region48: #{run_fused.1} parent=43 // pred_fallthru
        _
    $region44: #{run_fused.1} parent=5 // pred_fallthru
      _
  $region6: #{run_fused.1} parent=0 // loop_footer
    %s14 = sadd.s32 1, %s10
  $region7: #{run_fused.1} parent=0 // loop_footer_branch
    %9 = sbr.rel target = $region3
  $region8: #{run_fused.1} parent=0 // loop_exit
    _

</llo_original>
